<compile_context>
chip_gen: v5e
topology: v5e:2x2
jax: 0.10.0
libtpu: 0.0.40
codegen_flags: <defaults>
</compile_context>

<pallas_src>
import functools

import jax
import jax.numpy as jnp
from jax.experimental import pallas as pl
from jax.experimental.pallas import tpu as pltpu

NEG_SLOPE = 0.01   # nn.LeakyReLU default negative_slope
BN_EPS = 1e-5      # nn.BatchNorm2d default eps


# ---------------------------- in-kernel helpers ----------------------------

def _bn_lrelu(v, gamma, beta):
    """Training-mode BatchNorm (two-pass biased variance) + LeakyReLU. v: (M, C)."""
    mean = jnp.mean(v, axis=0, keepdims=True)                      # (1, C)
    var = jnp.mean(jnp.square(v - mean), axis=0, keepdims=True)    # (1, C)
    y = (v - mean) * jax.lax.rsqrt(var + BN_EPS) * gamma + beta
    return jnp.where(y >= 0, y, NEG_SLOPE * y)


# ---------------------------- fused kernel ----------------------------

def _residual_block_kernel(x_ref,
                           g0_ref, b0_ref, w1_ref, c1b_ref,
                           g1_ref, b1_ref, w2_ref, c2b_ref,
                           g2_ref, b2_ref, w3_ref, c3b_ref,
                           g3_ref, b3_ref,
                           out_ref, apad_ref, *, n, h, w):
    cmid = w1_ref.shape[1]
    m = n * h * w

    x = x_ref[...]                                                 # (M, Cin)

    # bn_0 + relu_0 + conv2d_1 (1x1 conv == matmul on the MXU)
    a0 = _bn_lrelu(x, g0_ref[...], b0_ref[...])
    h1 = jnp.dot(a0, w1_ref[...], preferred_element_type=jnp.float32) + c1b_ref[...]

    # bn_1 + relu_1 (must happen BEFORE the conv's spatial zero-padding)
    a1 = _bn_lrelu(h1, g1_ref[...], b1_ref[...])                   # (M, Cmid)

    # conv2d_2 (3x3, pad 1): spatially zero-padded tile in VMEM, in-VMEM im2col,
    # single MXU matmul against the tap-major pre-packed weight.
    apad_ref[...] = jnp.zeros_like(apad_ref)
    apad_ref[:, 1:h + 1, 1:w + 1, :] = a1.reshape(n, h, w, cmid)
    taps = [apad_ref[:, dy:dy + h, dx:dx + w, :]                   # 9 x (N,H,W,Cmid)
            for dy in range(3) for dx in range(3)]
    col = jnp.concatenate(taps, axis=-1).reshape(m, 9 * cmid)      # (M, 9*Cmid)
    h2 = jnp.dot(col, w2_ref[...], preferred_element_type=jnp.float32) + c2b_ref[...]

    # bn_2 + relu_2 + conv2d_3 (1x1)
    a2 = _bn_lrelu(h2, g2_ref[...], b2_ref[...])
    h3 = jnp.dot(a2, w3_ref[...], preferred_element_type=jnp.float32) + c3b_ref[...]

    # bn_3 + relu_3, then fused torch.cat((x, out), dim=1) along channels
    a3 = _bn_lrelu(h3, g3_ref[...], b3_ref[...])                   # (M, Cout)
    out_ref[...] = jnp.concatenate([x, a3], axis=-1)               # (M, Cin+Cout)


# ---------------------------- pallas_call wrapper ----------------------------

def residual_block_forward(x_nchw, packed, in_channels, out_channels):
    p = packed
    n, cin, h, w = x_nchw.shape
    assert cin == in_channels
    cmid = out_channels // 2
    m = n * h * w

    # Gate the fully fused path on a rough VMEM estimate (activation slabs are
    # lane-padded to 128 in VMEM regardless of their logical channel width).
    vmem_est = 12 * m * 512 + n * (h + 2) * (((w + 2 + 7) // 8) * 8) * 128 * 4
    assert vmem_est < 24 * 1024 * 1024, (
        "TODO(synk): input too large for the VMEM-resident fused path; "
        "add an M-tiled multi-call fallback")

    # NCHW -> NHWC on the tiny Cin-channel input; no 128-lane padding anywhere.
    x_nhwc = jnp.transpose(x_nchw.astype(jnp.float32), (0, 2, 3, 1))
    x2d = x_nhwc.reshape(m, cin)

    vec = lambda c: pl.BlockSpec((1, c), lambda i: (0, 0))
    mat = lambda r, c: pl.BlockSpec((r, c), lambda i: (0, 0))

    out2d = pl.pallas_call(
        functools.partial(_residual_block_kernel, n=n, h=h, w=w),
        out_shape=jax.ShapeDtypeStruct((m, cin + out_channels), jnp.float32),
        grid=(1,),
        in_specs=[
            mat(m, cin),
            vec(cin), vec(cin), mat(cin, cmid), vec(cmid),
            vec(cmid), vec(cmid), mat(9 * cmid, out_channels), vec(out_channels),
            vec(out_channels), vec(out_channels),
            mat(out_channels, out_channels), vec(out_channels),
            vec(out_channels), vec(out_channels),
        ],
        out_specs=mat(m, cin + out_channels),
        scratch_shapes=[pltpu.VMEM((n, h + 2, w + 2, cmid), jnp.float32)],
        compiler_params=pltpu.CompilerParams(dimension_semantics=("arbitrary",)),
    )(x2d,
      p["g0"], p["b0"], p["w1"], p["c1b"],
      p["g1"], p["b1"], p["w2"], p["c2b"],
      p["g2"], p["b2"], p["w3"], p["c3b"],
      p["g3"], p["b3"])

    y = out2d.reshape(n, h, w, cin + out_channels)
    return jnp.transpose(y, (0, 3, 1, 2))            # back to NCHW


# ---------------------------- params (raw + pre-packed) ----------------------------

def init_params(key, in_channels, out_channels):
    """Deterministic params: raw PyTorch-layout + pre-packed kernel copies."""
    keys = iter(jax.random.split(key, 32))
    c_mid = out_channels // 2

    def conv_p(ci, co, k):
        fan = ci * k * k
        wgt = jax.random.normal(next(keys), (co, ci, k, k), jnp.float32) / jnp.sqrt(fan)
        bia = 0.01 * jax.random.normal(next(keys), (co,), jnp.float32)
        return wgt, bia

    def bn_p(c):
        g = 1.0 + 0.1 * jax.random.normal(next(keys), (c,), jnp.float32)
        b = 0.1 * jax.random.normal(next(keys), (c,), jnp.float32)
        return g, b

    raw = {}
    raw["g0"], raw["b0"] = bn_p(in_channels)
    raw["w1"], raw["c1b"] = conv_p(in_channels, c_mid, 1)           # conv2d_1 (1x1, pad 0)
    raw["g1"], raw["b1"] = bn_p(c_mid)
    raw["w2"], raw["c2b"] = conv_p(c_mid, out_channels, 3)          # conv2d_2 (3x3, pad 1)
    raw["g2"], raw["b2"] = bn_p(out_channels)
    raw["w3"], raw["c3b"] = conv_p(out_channels, out_channels, 1)   # conv2d_3 (1x1, pad 0)
    raw["g3"], raw["b3"] = bn_p(out_channels)
    # TODO(synk): `shortcut` / `shortcut_bn` exist in __init__ but are unused in forward().

    row = lambda v: v.reshape(1, -1)
    packed = {
        "g0": row(raw["g0"]), "b0": row(raw["b0"]),
        "g1": row(raw["g1"]), "b1": row(raw["b1"]),
        "g2": row(raw["g2"]), "b2": row(raw["b2"]),
        "g3": row(raw["g3"]), "b3": row(raw["b3"]),
        # 1x1 weights pre-transposed to (Cin, Cout) once at init.
        "w1": raw["w1"][:, :, 0, 0].T, "c1b": row(raw["c1b"]),
        "w3": raw["w3"][:, :, 0, 0].T, "c3b": row(raw["c3b"]),
        # 3x3 weight pre-packed tap-major: row (ky*3+kx)*Cmid + cin -> Cout.
        "w2": jnp.transpose(raw["w2"], (2, 3, 1, 0)).reshape(9 * c_mid, out_channels),
        "c2b": row(raw["c2b"]),
    }
    return raw, packed


# ---------------------------- pure-JAX reference (validation) ----------------------------

def reference_forward(x_nchw, raw):
    x = jnp.transpose(x_nchw.astype(jnp.float32), (0, 2, 3, 1))

    def bn_lrelu(v, g, b):
        mean = jnp.mean(v, axis=(0, 1, 2), keepdims=True)
        var = jnp.mean(jnp.square(v - mean), axis=(0, 1, 2), keepdims=True)
        y = (v - mean) * jax.lax.rsqrt(var + BN_EPS) * g + b
        return jnp.where(y >= 0, y, NEG_SLOPE * y)

    def conv(v, wgt, b, pad):
        out = jax.lax.conv_general_dilated(
            v, jnp.transpose(wgt, (2, 3, 1, 0)), (1, 1), [(pad, pad), (pad, pad)],
            dimension_numbers=("NHWC", "HWIO", "NHWC"))
        return out + b

    out = bn_lrelu(x, raw["g0"], raw["b0"])
    out = conv(out, raw["w1"], raw["c1b"], 0)
    out = bn_lrelu(out, raw["g1"], raw["b1"])
    out = conv(out, raw["w2"], raw["c2b"], 1)
    out = bn_lrelu(out, raw["g2"], raw["b2"])
    out = conv(out, raw["w3"], raw["c3b"], 0)
    out = bn_lrelu(out, raw["g3"], raw["b3"])
    y = jnp.concatenate([x, out], axis=-1)
    return jnp.transpose(y, (0, 3, 1, 2))


# ---------------------------- main ----------------------------

if __name__ == "__main__":
    IN_CH, OUT_CH = 4, 8
    key = jax.random.PRNGKey(0)
    pkey, xkey = jax.random.split(key)
    raw, packed = init_params(pkey, IN_CH, OUT_CH)
    x = jax.random.normal(xkey, (2, IN_CH, 16, 16), jnp.float32)   # NCHW, like PyTorch

    fwd = jax.jit(residual_block_forward, static_argnums=(2, 3))
    out = fwd(x, packed, IN_CH, OUT_CH)
    jax.block_until_ready(out)
    assert out.shape == (2, IN_CH + OUT_CH, 16, 16) and out.dtype == jnp.float32

    ref = jax.jit(reference_forward)(x, raw)
    err = float(jnp.max(jnp.abs(out - ref)))
    assert err < 5e-2, f"mismatch vs reference: max |diff| = {err}"
    print("KERNEL_OK")
</pallas_src>

<mosaic_0001>
module attributes {stable_mosaic.version = 11 : i64} {
  func.func @_residual_block_kernel(%arg0: i32, %arg1: memref<512x4xf32, #tpu.memory_space<vmem>>, %arg2: memref<1x4xf32, #tpu.memory_space<vmem>>, %arg3: memref<1x4xf32, #tpu.memory_space<vmem>>, %arg4: memref<4x4xf32, #tpu.memory_space<vmem>>, %arg5: memref<1x4xf32, #tpu.memory_space<vmem>>, %arg6: memref<1x4xf32, #tpu.memory_space<vmem>>, %arg7: memref<1x4xf32, #tpu.memory_space<vmem>>, %arg8: memref<36x8xf32, #tpu.memory_space<vmem>>, %arg9: memref<1x8xf32, #tpu.memory_space<vmem>>, %arg10: memref<1x8xf32, #tpu.memory_space<vmem>>, %arg11: memref<1x8xf32, #tpu.memory_space<vmem>>, %arg12: memref<8x8xf32, #tpu.memory_space<vmem>>, %arg13: memref<1x8xf32, #tpu.memory_space<vmem>>, %arg14: memref<1x8xf32, #tpu.memory_space<vmem>>, %arg15: memref<1x8xf32, #tpu.memory_space<vmem>>, %arg16: memref<512x12xf32, #tpu.memory_space<vmem>>, %arg17: memref<2x18x18x4xf32, #tpu.memory_space<vmem>>) attributes {dimension_semantics = [#tpu.dimension_semantics<arbitrary>], iteration_bounds = array<i64: 1>, scalar_prefetch = 0 : i64, scratch_operands = 1 : i64, tpu.core_type = #tpu.core_type<tc>, window_params = [{pipeline_mode = #tpu.pipeline_mode<synchronous>, transform_indices = @transform_0, window_bounds = array<i64: 512, 4>}, {pipeline_mode = #tpu.pipeline_mode<synchronous>, transform_indices = @transform_1, window_bounds = array<i64: 1, 4>}, {pipeline_mode = #tpu.pipeline_mode<synchronous>, transform_indices = @transform_2, window_bounds = array<i64: 1, 4>}, {pipeline_mode = #tpu.pipeline_mode<synchronous>, transform_indices = @transform_3, window_bounds = array<i64: 4, 4>}, {pipeline_mode = #tpu.pipeline_mode<synchronous>, transform_indices = @transform_4, window_bounds = array<i64: 1, 4>}, {pipeline_mode = #tpu.pipeline_mode<synchronous>, transform_indices = @transform_5, window_bounds = array<i64: 1, 4>}, {pipeline_mode = #tpu.pipeline_mode<synchronous>, transform_indices = @transform_6, window_bounds = array<i64: 1, 4>}, {pipeline_mode = #tpu.pipeline_mode<synchronous>, transform_indices = @transform_7, window_bounds = array<i64: 36, 8>}, {pipeline_mode = #tpu.pipeline_mode<synchronous>, transform_indices = @transform_8, window_bounds = array<i64: 1, 8>}, {pipeline_mode = #tpu.pipeline_mode<synchronous>, transform_indices = @transform_9, window_bounds = array<i64: 1, 8>}, {pipeline_mode = #tpu.pipeline_mode<synchronous>, transform_indices = @transform_10, window_bounds = array<i64: 1, 8>}, {pipeline_mode = #tpu.pipeline_mode<synchronous>, transform_indices = @transform_11, window_bounds = array<i64: 8, 8>}, {pipeline_mode = #tpu.pipeline_mode<synchronous>, transform_indices = @transform_12, window_bounds = array<i64: 1, 8>}, {pipeline_mode = #tpu.pipeline_mode<synchronous>, transform_indices = @transform_13, window_bounds = array<i64: 1, 8>}, {pipeline_mode = #tpu.pipeline_mode<synchronous>, transform_indices = @transform_14, window_bounds = array<i64: 1, 8>}, {pipeline_mode = #tpu.pipeline_mode<synchronous>, transform_indices = @transform_15, window_bounds = array<i64: 512, 12>}]} {
    %c0 = arith.constant 0 : index
    %c0_0 = arith.constant 0 : index
    %0 = vector.load %arg1[%c0, %c0_0] : memref<512x4xf32, #tpu.memory_space<vmem>>, vector<512x4xf32>
    %c0_1 = arith.constant 0 : index
    %c0_2 = arith.constant 0 : index
    %1 = vector.load %arg2[%c0_1, %c0_2] : memref<1x4xf32, #tpu.memory_space<vmem>>, vector<1x4xf32>
    %c0_3 = arith.constant 0 : index
    %c0_4 = arith.constant 0 : index
    %2 = vector.load %arg3[%c0_3, %c0_4] : memref<1x4xf32, #tpu.memory_space<vmem>>, vector<1x4xf32>
    %cst = arith.constant dense<0.000000e+00> : vector<4xf32>
    %3 = vector.multi_reduction <add>, %0, %cst [0] : vector<512x4xf32> to vector<4xf32>
    %4 = vector.shape_cast %3 : vector<4xf32> to vector<1x4xf32>
    %cst_5 = arith.constant 5.120000e+02 : f32
    %5 = vector.broadcast %cst_5 : f32 to vector<1x4xf32>
    %6 = arith.divf %4, %5 : vector<1x4xf32>
    %7 = vector.broadcast %6 : vector<1x4xf32> to vector<512x4xf32>
    %8 = arith.subf %0, %7 : vector<512x4xf32>
    %9 = arith.mulf %8, %8 : vector<512x4xf32>
    %cst_6 = arith.constant dense<0.000000e+00> : vector<4xf32>
    %10 = vector.multi_reduction <add>, %9, %cst_6 [0] : vector<512x4xf32> to vector<4xf32>
    %11 = vector.shape_cast %10 : vector<4xf32> to vector<1x4xf32>
    %cst_7 = arith.constant 5.120000e+02 : f32
    %12 = vector.broadcast %cst_7 : f32 to vector<1x4xf32>
    %13 = arith.divf %11, %12 : vector<1x4xf32>
    %14 = vector.broadcast %6 : vector<1x4xf32> to vector<512x4xf32>
    %15 = arith.subf %0, %14 : vector<512x4xf32>
    %cst_8 = arith.constant 9.99999974E-6 : f32
    %16 = vector.broadcast %cst_8 : f32 to vector<1x4xf32>
    %17 = arith.addf %13, %16 : vector<1x4xf32>
    %18 = math.rsqrt %17 : vector<1x4xf32>
    %19 = vector.broadcast %18 : vector<1x4xf32> to vector<512x4xf32>
    %20 = arith.mulf %15, %19 : vector<512x4xf32>
    %21 = vector.broadcast %1 : vector<1x4xf32> to vector<512x4xf32>
    %22 = arith.mulf %20, %21 : vector<512x4xf32>
    %23 = vector.broadcast %2 : vector<1x4xf32> to vector<512x4xf32>
    %24 = arith.addf %22, %23 : vector<512x4xf32>
    %cst_9 = arith.constant 0.000000e+00 : f32
    %25 = vector.broadcast %cst_9 : f32 to vector<512x4xf32>
    %26 = arith.cmpf oge, %24, %25 : vector<512x4xf32>
    %cst_10 = arith.constant 0.00999999977 : f32
    %27 = vector.broadcast %cst_10 : f32 to vector<512x4xf32>
    %28 = arith.mulf %27, %24 : vector<512x4xf32>
    %29 = arith.select %26, %24, %28 : vector<512x4xi1>, vector<512x4xf32>
    %c0_11 = arith.constant 0 : index
    %c0_12 = arith.constant 0 : index
    %30 = vector.load %arg4[%c0_11, %c0_12] : memref<4x4xf32, #tpu.memory_space<vmem>>, vector<4x4xf32>
    %cst_13 = arith.constant dense<0.000000e+00> : vector<512x4xf32>
    %31 = tpu.matmul %29, %30, %cst_13 {dimension_numbers = #tpu.dot_dimension_numbers<[1], [0], [0], [1], [0, 0, 1, 1], [], []>} : vector<512x4xf32>, vector<4x4xf32>, vector<512x4xf32> -> vector<512x4xf32>
    %c0_14 = arith.constant 0 : index
    %c0_15 = arith.constant 0 : index
    %32 = vector.load %arg5[%c0_14, %c0_15] : memref<1x4xf32, #tpu.memory_space<vmem>>, vector<1x4xf32>
    %33 = vector.broadcast %32 : vector<1x4xf32> to vector<512x4xf32>
    %34 = arith.addf %31, %33 : vector<512x4xf32>
    %c0_16 = arith.constant 0 : index
    %c0_17 = arith.constant 0 : index
    %35 = vector.load %arg6[%c0_16, %c0_17] : memref<1x4xf32, #tpu.memory_space<vmem>>, vector<1x4xf32>
    %c0_18 = arith.constant 0 : index
    %c0_19 = arith.constant 0 : index
    %36 = vector.load %arg7[%c0_18, %c0_19] : memref<1x4xf32, #tpu.memory_space<vmem>>, vector<1x4xf32>
    %cst_20 = arith.constant dense<0.000000e+00> : vector<4xf32>
    %37 = vector.multi_reduction <add>, %34, %cst_20 [0] : vector<512x4xf32> to vector<4xf32>
    %38 = vector.shape_cast %37 : vector<4xf32> to vector<1x4xf32>
    %cst_21 = arith.constant 5.120000e+02 : f32
    %39 = vector.broadcast %cst_21 : f32 to vector<1x4xf32>
    %40 = arith.divf %38, %39 : vector<1x4xf32>
    %41 = vector.broadcast %40 : vector<1x4xf32> to vector<512x4xf32>
    %42 = arith.subf %34, %41 : vector<512x4xf32>
    %43 = arith.mulf %42, %42 : vector<512x4xf32>
    %cst_22 = arith.constant dense<0.000000e+00> : vector<4xf32>
    %44 = vector.multi_reduction <add>, %43, %cst_22 [0] : vector<512x4xf32> to vector<4xf32>
    %45 = vector.shape_cast %44 : vector<4xf32> to vector<1x4xf32>
    %cst_23 = arith.constant 5.120000e+02 : f32
    %46 = vector.broadcast %cst_23 : f32 to vector<1x4xf32>
    %47 = arith.divf %45, %46 : vector<1x4xf32>
    %48 = vector.broadcast %40 : vector<1x4xf32> to vector<512x4xf32>
    %49 = arith.subf %34, %48 : vector<512x4xf32>
    %cst_24 = arith.constant 9.99999974E-6 : f32
    %50 = vector.broadcast %cst_24 : f32 to vector<1x4xf32>
    %51 = arith.addf %47, %50 : vector<1x4xf32>
    %52 = math.rsqrt %51 : vector<1x4xf32>
    %53 = vector.broadcast %52 : vector<1x4xf32> to vector<512x4xf32>
    %54 = arith.mulf %49, %53 : vector<512x4xf32>
    %55 = vector.broadcast %35 : vector<1x4xf32> to vector<512x4xf32>
    %56 = arith.mulf %54, %55 : vector<512x4xf32>
    %57 = vector.broadcast %36 : vector<1x4xf32> to vector<512x4xf32>
    %58 = arith.addf %56, %57 : vector<512x4xf32>
    %cst_25 = arith.constant 0.000000e+00 : f32
    %59 = vector.broadcast %cst_25 : f32 to vector<512x4xf32>
    %60 = arith.cmpf oge, %58, %59 : vector<512x4xf32>
    %cst_26 = arith.constant 0.00999999977 : f32
    %61 = vector.broadcast %cst_26 : f32 to vector<512x4xf32>
    %62 = arith.mulf %61, %58 : vector<512x4xf32>
    %63 = arith.select %60, %58, %62 : vector<512x4xi1>, vector<512x4xf32>
    %cst_27 = arith.constant 0.000000e+00 : f32
    %64 = vector.broadcast %cst_27 : f32 to vector<2x18x18x4xf32>
    %c0_28 = arith.constant 0 : index
    %c0_29 = arith.constant 0 : index
    %c0_30 = arith.constant 0 : index
    %c0_31 = arith.constant 0 : index
    %65 = vector.load %arg17[%c0_28, %c0_29, %c0_30, %c0_31] : memref<2x18x18x4xf32, #tpu.memory_space<vmem>>, vector<2x18x18x4xf32>
    tpu.vector_store %arg17[%c0_28, %c0_29, %c0_30, %c0_31], %64 {strides = array<i32>} : memref<2x18x18x4xf32, #tpu.memory_space<vmem>>, vector<2x18x18x4xf32>,
    %66 = vector.shape_cast %63 : vector<512x4xf32> to vector<2x16x16x4xf32>
    %c0_32 = arith.constant 0 : index
    %c1 = arith.constant 1 : index
    %c1_33 = arith.constant 1 : index
    %c0_34 = arith.constant 0 : index
    %67 = vector.load %arg17[%c0_32, %c1, %c1_33, %c0_34] : memref<2x18x18x4xf32, #tpu.memory_space<vmem>>, vector<2x16x16x4xf32>
    tpu.vector_store %arg17[%c0_32, %c1, %c1_33, %c0_34], %66 {strides = array<i32>} : memref<2x18x18x4xf32, #tpu.memory_space<vmem>>, vector<2x16x16x4xf32>,
    %c0_35 = arith.constant 0 : index
    %c0_36 = arith.constant 0 : index
    %c0_37 = arith.constant 0 : index
    %c0_38 = arith.constant 0 : index
    %68 = vector.load %arg17[%c0_35, %c0_36, %c0_37, %c0_38] : memref<2x18x18x4xf32, #tpu.memory_space<vmem>>, vector<2x16x16x4xf32>
    %c0_39 = arith.constant 0 : index
    %c0_40 = arith.constant 0 : index
    %c1_41 = arith.constant 1 : index
    %c0_42 = arith.constant 0 : index
    %69 = vector.load %arg17[%c0_39, %c0_40, %c1_41, %c0_42] : memref<2x18x18x4xf32, #tpu.memory_space<vmem>>, vector<2x16x16x4xf32>
    %c0_43 = arith.constant 0 : index
    %c0_44 = arith.constant 0 : index
    %c2 = arith.constant 2 : index
    %c0_45 = arith.constant 0 : index
    %70 = vector.load %arg17[%c0_43, %c0_44, %c2, %c0_45] : memref<2x18x18x4xf32, #tpu.memory_space<vmem>>, vector<2x16x16x4xf32>
    %c0_46 = arith.constant 0 : index
    %c1_47 = arith.constant 1 : index
    %c0_48 = arith.constant 0 : index
    %c0_49 = arith.constant 0 : index
    %71 = vector.load %arg17[%c0_46, %c1_47, %c0_48, %c0_49] : memref<2x18x18x4xf32, #tpu.memory_space<vmem>>, vector<2x16x16x4xf32>
    %c0_50 = arith.constant 0 : index
    %c1_51 = arith.constant 1 : index
    %c1_52 = arith.constant 1 : index
    %c0_53 = arith.constant 0 : index
    %72 = vector.load %arg17[%c0_50, %c1_51, %c1_52, %c0_53] : memref<2x18x18x4xf32, #tpu.memory_space<vmem>>, vector<2x16x16x4xf32>
    %c0_54 = arith.constant 0 : index
    %c1_55 = arith.constant 1 : index
    %c2_56 = arith.constant 2 : index
    %c0_57 = arith.constant 0 : index
    %73 = vector.load %arg17[%c0_54, %c1_55, %c2_56, %c0_57] : memref<2x18x18x4xf32, #tpu.memory_space<vmem>>, vector<2x16x16x4xf32>
    %c0_58 = arith.constant 0 : index
    %c2_59 = arith.constant 2 : index
    %c0_60 = arith.constant 0 : index
    %c0_61 = arith.constant 0 : index
    %74 = vector.load %arg17[%c0_58, %c2_59, %c0_60, %c0_61] : memref<2x18x18x4xf32, #tpu.memory_space<vmem>>, vector<2x16x16x4xf32>
    %c0_62 = arith.constant 0 : index
    %c2_63 = arith.constant 2 : index
    %c1_64 = arith.constant 1 : index
    %c0_65 = arith.constant 0 : index
    %75 = vector.load %arg17[%c0_62, %c2_63, %c1_64, %c0_65] : memref<2x18x18x4xf32, #tpu.memory_space<vmem>>, vector<2x16x16x4xf32>
    %c0_66 = arith.constant 0 : index
    %c2_67 = arith.constant 2 : index
    %c2_68 = arith.constant 2 : index
    %c0_69 = arith.constant 0 : index
    %76 = vector.load %arg17[%c0_66, %c2_67, %c2_68, %c0_69] : memref<2x18x18x4xf32, #tpu.memory_space<vmem>>, vector<2x16x16x4xf32>
    %77 = tpu.concatenate %68, %69, %70, %71, %72, %73, %74, %75, %76 in 3 : vector<2x16x16x4xf32>, vector<2x16x16x4xf32>, vector<2x16x16x4xf32>, vector<2x16x16x4xf32>, vector<2x16x16x4xf32>, vector<2x16x16x4xf32>, vector<2x16x16x4xf32>, vector<2x16x16x4xf32>, vector<2x16x16x4xf32> -> vector<2x16x16x36xf32>
    %78 = vector.shape_cast %77 : vector<2x16x16x36xf32> to vector<512x36xf32>
    %c0_70 = arith.constant 0 : index
    %c0_71 = arith.constant 0 : index
    %79 = vector.load %arg8[%c0_70, %c0_71] : memref<36x8xf32, #tpu.memory_space<vmem>>, vector<36x8xf32>
    %cst_72 = arith.constant dense<0.000000e+00> : vector<512x8xf32>
    %80 = tpu.matmul %78, %79, %cst_72 {dimension_numbers = #tpu.dot_dimension_numbers<[1], [0], [0], [1], [0, 0, 1, 1], [], []>} : vector<512x36xf32>, vector<36x8xf32>, vector<512x8xf32> -> vector<512x8xf32>
    %c0_73 = arith.constant 0 : index
    %c0_74 = arith.constant 0 : index
    %81 = vector.load %arg9[%c0_73, %c0_74] : memref<1x8xf32, #tpu.memory_space<vmem>>, vector<1x8xf32>
    %82 = vector.broadcast %81 : vector<1x8xf32> to vector<512x8xf32>
    %83 = arith.addf %80, %82 : vector<512x8xf32>
    %c0_75 = arith.constant 0 : index
    %c0_76 = arith.constant 0 : index
    %84 = vector.load %arg10[%c0_75, %c0_76] : memref<1x8xf32, #tpu.memory_space<vmem>>, vector<1x8xf32>
    %c0_77 = arith.constant 0 : index
    %c0_78 = arith.constant 0 : index
    %85 = vector.load %arg11[%c0_77, %c0_78] : memref<1x8xf32, #tpu.memory_space<vmem>>, vector<1x8xf32>
    %cst_79 = arith.constant dense<0.000000e+00> : vector<8xf32>
    %86 = vector.multi_reduction <add>, %83, %cst_79 [0] : vector<512x8xf32> to vector<8xf32>
    %87 = vector.shape_cast %86 : vector<8xf32> to vector<1x8xf32>
    %cst_80 = arith.constant 5.120000e+02 : f32
    %88 = vector.broadcast %cst_80 : f32 to vector<1x8xf32>
    %89 = arith.divf %87, %88 : vector<1x8xf32>
    %90 = vector.broadcast %89 : vector<1x8xf32> to vector<512x8xf32>
    %91 = arith.subf %83, %90 : vector<512x8xf32>
    %92 = arith.mulf %91, %91 : vector<512x8xf32>
    %cst_81 = arith.constant dense<0.000000e+00> : vector<8xf32>
    %93 = vector.multi_reduction <add>, %92, %cst_81 [0] : vector<512x8xf32> to vector<8xf32>
    %94 = vector.shape_cast %93 : vector<8xf32> to vector<1x8xf32>
    %cst_82 = arith.constant 5.120000e+02 : f32
    %95 = vector.broadcast %cst_82 : f32 to vector<1x8xf32>
    %96 = arith.divf %94, %95 : vector<1x8xf32>
    %97 = vector.broadcast %89 : vector<1x8xf32> to vector<512x8xf32>
    %98 = arith.subf %83, %97 : vector<512x8xf32>
    %cst_83 = arith.constant 9.99999974E-6 : f32
    %99 = vector.broadcast %cst_83 : f32 to vector<1x8xf32>
    %100 = arith.addf %96, %99 : vector<1x8xf32>
    %101 = math.rsqrt %100 : vector<1x8xf32>
    %102 = vector.broadcast %101 : vector<1x8xf32> to vector<512x8xf32>
    %103 = arith.mulf %98, %102 : vector<512x8xf32>
    %104 = vector.broadcast %84 : vector<1x8xf32> to vector<512x8xf32>
    %105 = arith.mulf %103, %104 : vector<512x8xf32>
    %106 = vector.broadcast %85 : vector<1x8xf32> to vector<512x8xf32>
    %107 = arith.addf %105, %106 : vector<512x8xf32>
    %cst_84 = arith.constant 0.000000e+00 : f32
    %108 = vector.broadcast %cst_84 : f32 to vector<512x8xf32>
    %109 = arith.cmpf oge, %107, %108 : vector<512x8xf32>
    %cst_85 = arith.constant 0.00999999977 : f32
    %110 = vector.broadcast %cst_85 : f32 to vector<512x8xf32>
    %111 = arith.mulf %110, %107 : vector<512x8xf32>
    %112 = arith.select %109, %107, %111 : vector<512x8xi1>, vector<512x8xf32>
    %c0_86 = arith.constant 0 : index
    %c0_87 = arith.constant 0 : index
    %113 = vector.load %arg12[%c0_86, %c0_87] : memref<8x8xf32, #tpu.memory_space<vmem>>, vector<8x8xf32>
    %cst_88 = arith.constant dense<0.000000e+00> : vector<512x8xf32>
    %114 = tpu.matmul %112, %113, %cst_88 {dimension_numbers = #tpu.dot_dimension_numbers<[1], [0], [0], [1], [0, 0, 1, 1], [], []>} : vector<512x8xf32>, vector<8x8xf32>, vector<512x8xf32> -> vector<512x8xf32>
    %c0_89 = arith.constant 0 : index
    %c0_90 = arith.constant 0 : index
    %115 = vector.load %arg13[%c0_89, %c0_90] : memref<1x8xf32, #tpu.memory_space<vmem>>, vector<1x8xf32>
    %116 = vector.broadcast %115 : vector<1x8xf32> to vector<512x8xf32>
    %117 = arith.addf %114, %116 : vector<512x8xf32>
    %c0_91 = arith.constant 0 : index
    %c0_92 = arith.constant 0 : index
    %118 = vector.load %arg14[%c0_91, %c0_92] : memref<1x8xf32, #tpu.memory_space<vmem>>, vector<1x8xf32>
    %c0_93 = arith.constant 0 : index
    %c0_94 = arith.constant 0 : index
    %119 = vector.load %arg15[%c0_93, %c0_94] : memref<1x8xf32, #tpu.memory_space<vmem>>, vector<1x8xf32>
    %cst_95 = arith.constant dense<0.000000e+00> : vector<8xf32>
    %120 = vector.multi_reduction <add>, %117, %cst_95 [0] : vector<512x8xf32> to vector<8xf32>
    %121 = vector.shape_cast %120 : vector<8xf32> to vector<1x8xf32>
    %cst_96 = arith.constant 5.120000e+02 : f32
    %122 = vector.broadcast %cst_96 : f32 to vector<1x8xf32>
    %123 = arith.divf %121, %122 : vector<1x8xf32>
    %124 = vector.broadcast %123 : vector<1x8xf32> to vector<512x8xf32>
    %125 = arith.subf %117, %124 : vector<512x8xf32>
    %126 = arith.mulf %125, %125 : vector<512x8xf32>
    %cst_97 = arith.constant dense<0.000000e+00> : vector<8xf32>
    %127 = vector.multi_reduction <add>, %126, %cst_97 [0] : vector<512x8xf32> to vector<8xf32>
    %128 = vector.shape_cast %127 : vector<8xf32> to vector<1x8xf32>
    %cst_98 = arith.constant 5.120000e+02 : f32
    %129 = vector.broadcast %cst_98 : f32 to vector<1x8xf32>
    %130 = arith.divf %128, %129 : vector<1x8xf32>
    %131 = vector.broadcast %123 : vector<1x8xf32> to vector<512x8xf32>
    %132 = arith.subf %117, %131 : vector<512x8xf32>
    %cst_99 = arith.constant 9.99999974E-6 : f32
    %133 = vector.broadcast %cst_99 : f32 to vector<1x8xf32>
    %134 = arith.addf %130, %133 : vector<1x8xf32>
    %135 = math.rsqrt %134 : vector<1x8xf32>
    %136 = vector.broadcast %135 : vector<1x8xf32> to vector<512x8xf32>
    %137 = arith.mulf %132, %136 : vector<512x8xf32>
    %138 = vector.broadcast %118 : vector<1x8xf32> to vector<512x8xf32>
    %139 = arith.mulf %137, %138 : vector<512x8xf32>
    %140 = vector.broadcast %119 : vector<1x8xf32> to vector<512x8xf32>
    %141 = arith.addf %139, %140 : vector<512x8xf32>
    %cst_100 = arith.constant 0.000000e+00 : f32
    %142 = vector.broadcast %cst_100 : f32 to vector<512x8xf32>
    %143 = arith.cmpf oge, %141, %142 : vector<512x8xf32>
    %cst_101 = arith.constant 0.00999999977 : f32
    %144 = vector.broadcast %cst_101 : f32 to vector<512x8xf32>
    %145 = arith.mulf %144, %141 : vector<512x8xf32>
    %146 = arith.select %143, %141, %145 : vector<512x8xi1>, vector<512x8xf32>
    %147 = tpu.concatenate %0, %146 in 1 : vector<512x4xf32>, vector<512x8xf32> -> vector<512x12xf32>
    %c0_102 = arith.constant 0 : index
    %c0_103 = arith.constant 0 : index
    %148 = vector.load %arg16[%c0_102, %c0_103] : memref<512x12xf32, #tpu.memory_space<vmem>>, vector<512x12xf32>
    tpu.vector_store %arg16[%c0_102, %c0_103], %147 {strides = array<i32>} : memref<512x12xf32, #tpu.memory_space<vmem>>, vector<512x12xf32>,
    return
  }
  func.func @transform_0(%arg0: i32) -> (i32, i32) {
    %c0_i32 = arith.constant 0 : i32
    %c0_i32_0 = arith.constant 0 : i32
    %c0_i32_1 = arith.constant 0 : i32
    return %c0_i32, %c0_i32_0 : i32, i32
  }
  func.func @transform_1(%arg0: i32) -> (i32, i32) {
    %c0_i32 = arith.constant 0 : i32
    %c0_i32_0 = arith.constant 0 : i32
    %c0_i32_1 = arith.constant 0 : i32
    return %c0_i32, %c0_i32_0 : i32, i32
  }
  func.func @transform_2(%arg0: i32) -> (i32, i32) {
    %c0_i32 = arith.constant 0 : i32
    %c0_i32_0 = arith.constant 0 : i32
    %c0_i32_1 = arith.constant 0 : i32
    return %c0_i32, %c0_i32_0 : i32, i32
  }
  func.func @transform_3(%arg0: i32) -> (i32, i32) {
    %c0_i32 = arith.constant 0 : i32
    %c0_i32_0 = arith.constant 0 : i32
    %c0_i32_1 = arith.constant 0 : i32
    return %c0_i32, %c0_i32_0 : i32, i32
  }
  func.func @transform_4(%arg0: i32) -> (i32, i32) {
    %c0_i32 = arith.constant 0 : i32
    %c0_i32_0 = arith.constant 0 : i32
    %c0_i32_1 = arith.constant 0 : i32
    return %c0_i32, %c0_i32_0 : i32, i32
  }
  func.func @transform_5(%arg0: i32) -> (i32, i32) {
    %c0_i32 = arith.constant 0 : i32
    %c0_i32_0 = arith.constant 0 : i32
    %c0_i32_1 = arith.constant 0 : i32
    return %c0_i32, %c0_i32_0 : i32, i32
  }
  func.func @transform_6(%arg0: i32) -> (i32, i32) {
    %c0_i32 = arith.constant 0 : i32
    %c0_i32_0 = arith.constant 0 : i32
    %c0_i32_1 = arith.constant 0 : i32
    return %c0_i32, %c0_i32_0 : i32, i32
  }
  func.func @transform_7(%arg0: i32) -> (i32, i32) {
    %c0_i32 = arith.constant 0 : i32
    %c0_i32_0 = arith.constant 0 : i32
    %c0_i32_1 = arith.constant 0 : i32
    return %c0_i32, %c0_i32_0 : i32, i32
  }
  func.func @transform_8(%arg0: i32) -> (i32, i32) {
    %c0_i32 = arith.constant 0 : i32
    %c0_i32_0 = arith.constant 0 : i32
    %c0_i32_1 = arith.constant 0 : i32
    return %c0_i32, %c0_i32_0 : i32, i32
  }
  func.func @transform_9(%arg0: i32) -> (i32, i32) {
    %c0_i32 = arith.constant 0 : i32
    %c0_i32_0 = arith.constant 0 : i32
    %c0_i32_1 = arith.constant 0 : i32
    return %c0_i32, %c0_i32_0 : i32, i32
  }
  func.func @transform_10(%arg0: i32) -> (i32, i32) {
    %c0_i32 = arith.constant 0 : i32
    %c0_i32_0 = arith.constant 0 : i32
    %c0_i32_1 = arith.constant 0 : i32
    return %c0_i32, %c0_i32_0 : i32, i32
  }
  func.func @transform_11(%arg0: i32) -> (i32, i32) {
    %c0_i32 = arith.constant 0 : i32
    %c0_i32_0 = arith.constant 0 : i32
    %c0_i32_1 = arith.constant 0 : i32
    return %c0_i32, %c0_i32_0 : i32, i32
  }
  func.func @transform_12(%arg0: i32) -> (i32, i32) {
    %c0_i32 = arith.constant 0 : i32
    %c0_i32_0 = arith.constant 0 : i32
    %c0_i32_1 = arith.constant 0 : i32
    return %c0_i32, %c0_i32_0 : i32, i32
  }
  func.func @transform_13(%arg0: i32) -> (i32, i32) {
    %c0_i32 = arith.constant 0 : i32
    %c0_i32_0 = arith.constant 0 : i32
    %c0_i32_1 = arith.constant 0 : i32
    return %c0_i32, %c0_i32_0 : i32, i32
  }
  func.func @transform_14(%arg0: i32) -> (i32, i32) {
    %c0_i32 = arith.constant 0 : i32
    %c0_i32_0 = arith.constant 0 : i32
    %c0_i32_1 = arith.constant 0 : i32
    return %c0_i32, %c0_i32_0 : i32, i32
  }
  func.func @transform_15(%arg0: i32) -> (i32, i32) {
    %c0_i32 = arith.constant 0 : i32
    %c0_i32_0 = arith.constant 0 : i32
    %c0_i32_1 = arith.constant 0 : i32
    return %c0_i32, %c0_i32_0 : i32, i32
  }
}

</mosaic_0001>

<llo_original>
// kernel: residual_block_forward.1
$region0: #{residual_block_forward.1}
  #allocation0 [shape = 'u32[]', space=smem, size = 0x4, offset = 0x4, fixed_abs, tag = 'smem constant byte address 0x4 - core index']
  #allocation1 [shape = 'u32[72,128]{1,0:T(1,128)}', space=vmem, size = 0x9000, scoped, tag = 'internal scratch']
  #allocation2 [shape = 'f32[2,18,18,4]{3,2,1,0:T(8,128)}', space=vmem, size = 0x6c000, scoped, tag = 'scratch operand']
  %s0 = inlined_call_operand.vmem [shape: f32[512,4], index: 0, kind: input, shape index: {}]
  %s1 = inlined_call_operand.vmem [shape: f32[1,4], index: 1, kind: input, shape index: {}]
  %s2 = inlined_call_operand.vmem [shape: f32[1,4], index: 2, kind: input, shape index: {}]
  %s3 = inlined_call_operand.vmem [shape: f32[4,4], index: 3, kind: input, shape index: {}]
  %s4 = inlined_call_operand.vmem [shape: f32[1,4], index: 4, kind: input, shape index: {}]
  %s5 = inlined_call_operand.vmem [shape: f32[1,4], index: 5, kind: input, shape index: {}]
  %s6 = inlined_call_operand.vmem [shape: f32[1,4], index: 6, kind: input, shape index: {}]
  %s7 = inlined_call_operand.vmem [shape: f32[36,8], index: 7, kind: input, shape index: {}]
  %s8 = inlined_call_operand.vmem [shape: f32[1,8], index: 8, kind: input, shape index: {}]
  %s9 = inlined_call_operand.vmem [shape: f32[1,8], index: 9, kind: input, shape index: {}]
  %s10 = inlined_call_operand.vmem [shape: f32[1,8], index: 10, kind: input, shape index: {}]
  %s11 = inlined_call_operand.vmem [shape: f32[8,8], index: 11, kind: input, shape index: {}]
  %s12 = inlined_call_operand.vmem [shape: f32[1,8], index: 12, kind: input, shape index: {}]
  %s13 = inlined_call_operand.vmem [shape: f32[1,8], index: 13, kind: input, shape index: {}]
  %s14 = inlined_call_operand.vmem [shape: f32[1,8], index: 14, kind: input, shape index: {}]
  %s15 = inlined_call_operand.vmem [shape: f32[512,12], index: 15, kind: output, shape index: {}]
  %s16 = sld [smem:[#allocation0]]
  $region70: #{residual_block_forward.1} parent=0
    _
  %s18 = ssub.s32 1, %s16
  %s19 = scalar_select 0, %s18, %s16
  // Predicated region
  $region2: #{residual_block_forward.1} parent=0 // pred_check
    _
  $region3: #{residual_block_forward.1} parent=0 // pred_check_branch
    %21 = sbr.rel (0) target = $region5
  $region4: #{residual_block_forward.1} parent=0 // pred_region
    _
  $region5: #{residual_block_forward.1} parent=0 // pred_fallthru
    _
  // Predicated region
  $region6: #{residual_block_forward.1} parent=0 // pred_check
    _
  $region7: #{residual_block_forward.1} parent=0 // pred_check_branch
    %23 = sbr.rel (0) target = $region9
  $region8: #{residual_block_forward.1} parent=0 // pred_region
    _
  $region9: #{residual_block_forward.1} parent=0 // pred_fallthru
    _
  // Predicated region
  $region10: #{residual_block_forward.1} parent=0 // pred_check
    _
  $region11: #{residual_block_forward.1} parent=0 // pred_check_branch
    %25 = sbr.rel (0) target = $region13
  $region12: #{residual_block_forward.1} parent=0 // pred_region
    _
  $region13: #{residual_block_forward.1} parent=0 // pred_fallthru
    _
  // Predicated region
  $region14: #{residual_block_forward.1} parent=0 // pred_check
    _
  $region15: #{residual_block_forward.1} parent=0 // pred_check_branch
    %27 = sbr.rel (0) target = $region17
  $region16: #{residual_block_forward.1} parent=0 // pred_region
    _
  $region17: #{residual_block_forward.1} parent=0 // pred_fallthru
    _
  // Predicated region
  $region18: #{residual_block_forward.1} parent=0 // pred_check
    _
  $region19: #{residual_block_forward.1} parent=0 // pred_check_branch
    %29 = sbr.rel (0) target = $region21
  $region20: #{residual_block_forward.1} parent=0 // pred_region
    _
  $region21: #{residual_block_forward.1} parent=0 // pred_fallthru
    _
  // Predicated region
  $region22: #{residual_block_forward.1} parent=0 // pred_check
    _
  $region23: #{residual_block_forward.1} parent=0 // pred_check_branch
    %31 = sbr.rel (0) target = $region25
  $region24: #{residual_block_forward.1} parent=0 // pred_region
    _
  $region25: #{residual_block_forward.1} parent=0 // pred_fallthru
    _
  // Predicated region
  $region26: #{residual_block_forward.1} parent=0 // pred_check
    _
  $region27: #{residual_block_forward.1} parent=0 // pred_check_branch
    %33 = sbr.rel (0) target = $region29
  $region28: #{residual_block_forward.1} parent=0 // pred_region
    _
  $region29: #{residual_block_forward.1} parent=0 // pred_fallthru
    _
  // Predicated region
  $region30: #{residual_block_forward.1} parent=0 // pred_check
    _
  $region31: #{residual_block_forward.1} parent=0 // pred_check_branch
    %35 = sbr.rel (0) target = $region33
  $region32: #{residual_block_forward.1} parent=0 // pred_region
    _
  $region33: #{residual_block_forward.1} parent=0 // pred_fallthru
    _
  // Predicated region
  $region34: #{residual_block_forward.1} parent=0 // pred_check
    _
  $region35: #{residual_block_forward.1} parent=0 // pred_check_branch
    %37 = sbr.rel (0) target = $region37
  $region36: #{residual_block_forward.1} parent=0 // pred_region
    _
  $region37: #{residual_block_forward.1} parent=0 // pred_fallthru
    _
  // Predicated region
  $region38: #{residual_block_forward.1} parent=0 // pred_check
    _
  $region39: #{residual_block_forward.1} parent=0 // pred_check_branch
    %39 = sbr.rel (0) target = $region41
  $region40: #{residual_block_forward.1} parent=0 // pred_region
    _
  $region41: #{residual_block_forward.1} parent=0 // pred_fallthru
    _
  // Predicated region
  $region42: #{residual_block_forward.1} parent=0 // pred_check
    _
  $region43: #{residual_block_forward.1} parent=0 // pred_check_branch
    %41 = sbr.rel (0) target = $region45
  $region44: #{residual_block_forward.1} parent=0 // pred_region
    _
  $region45: #{residual_block_forward.1} parent=0 // pred_fallthru
    _
  // Predicated region
  $region46: #{residual_block_forward.1} parent=0 // pred_check
    _
  $region47: #{residual_block_forward.1} parent=0 // pred_check_branch
    %43 = sbr.rel (0) target = $region49
  $region48: #{residual_block_forward.1} parent=0 // pred_region
    _
  $region49: #{residual_block_forward.1} parent=0 // pred_fallthru
    _
  // Predicated region
  $region50: #{residual_block_forward.1} parent=0 // pred_check
    _
  $region51: #{residual_block_forward.1} parent=0 // pred_check_branch
    %45 = sbr.rel (0) target = $region53
  $region52: #{residual_block_forward.1} parent=0 // pred_region
    _
  $region53: #{residual_block_forward.1} parent=0 // pred_fallthru
    _
  // Predicated region
  $region54: #{residual_block_forward.1} parent=0 // pred_check
    _
  $region55: #{residual_block_forward.1} parent=0 // pred_check_branch
    %47 = sbr.rel (0) target = $region57
  $region56: #{residual_block_forward.1} parent=0 // pred_region
    _
  $region57: #{residual_block_forward.1} parent=0 // pred_fallthru
    _
  // Predicated region
  $region58: #{residual_block_forward.1} parent=0 // pred_check
    _
  $region59: #{residual_block_forward.1} parent=0 // pred_check_branch
    %49 = sbr.rel (0) target = $region61
  $region60: #{residual_block_forward.1} parent=0 // pred_region
    _
  $region61: #{residual_block_forward.1} parent=0 // pred_fallthru
    _
  %v50 = vld [vmem:[%s0] sm:$0xff]
  %v51 = vld [vmem:[%s0 + $0x8] sm:$0xff]
  %v52 = vld [vmem:[%s0 + $0x10] sm:$0xff]
  %v53 = vld [vmem:[%s0 + $0x18] sm:$0xff]
  %v54 = vld [vmem:[%s0 + $0x20] sm:$0xff]
  %v55 = vld [vmem:[%s0 + $0x28] sm:$0xff]
  %v56 = vld [vmem:[%s0 + $0x30] sm:$0xff]
  %v57 = vld [vmem:[%s0 + $0x38] sm:$0xff]
  %v58 = vld [vmem:[%s0 + $0x40] sm:$0xff]
  %v59 = vld [vmem:[%s0 + $0x48] sm:$0xff]
  %v60 = vld [vmem:[%s0 + $0x50] sm:$0xff]
  %v61 = vld [vmem:[%s0 + $0x58] sm:$0xff]
  %v62 = vld [vmem:[%s0 + $0x60] sm:$0xff]
  %v63 = vld [vmem:[%s0 + $0x68] sm:$0xff]
  %v64 = vld [vmem:[%s0 + $0x70] sm:$0xff]
  %v65 = vld [vmem:[%s0 + $0x78] sm:$0xff]
  %v66 = vld [vmem:[%s0 + $0x80] sm:$0xff]
  %v67 = vld [vmem:[%s0 + $0x88] sm:$0xff]
  %v68 = vld [vmem:[%s0 + $0x90] sm:$0xff]
  %v69 = vld [vmem:[%s0 + $0x98] sm:$0xff]
  %v70 = vld [vmem:[%s0 + $0xa0] sm:$0xff]
  %v71 = vld [vmem:[%s0 + $0xa8] sm:$0xff]
  %v72 = vld [vmem:[%s0 + $0xb0] sm:$0xff]
  %v73 = vld [vmem:[%s0 + $0xb8] sm:$0xff]
  %v74 = vld [vmem:[%s0 + $0xc0] sm:$0xff]
  %v75 = vld [vmem:[%s0 + $0xc8] sm:$0xff]
  %v76 = vld [vmem:[%s0 + $0xd0] sm:$0xff]
  %v77 = vld [vmem:[%s0 + $0xd8] sm:$0xff]
  %v78 = vld [vmem:[%s0 + $0xe0] sm:$0xff]
  %v79 = vld [vmem:[%s0 + $0xe8] sm:$0xff]
  %v80 = vld [vmem:[%s0 + $0xf0] sm:$0xff]
  %v81 = vld [vmem:[%s0 + $0xf8] sm:$0xff]
  %v82 = vld [vmem:[%s0 + $0x100] sm:$0xff]
  %v83 = vld [vmem:[%s0 + $0x108] sm:$0xff]
  %v84 = vld [vmem:[%s0 + $0x110] sm:$0xff]
  %v85 = vld [vmem:[%s0 + $0x118] sm:$0xff]
  %v86 = vld [vmem:[%s0 + $0x120] sm:$0xff]
  %v87 = vld [vmem:[%s0 + $0x128] sm:$0xff]
  %v88 = vld [vmem:[%s0 + $0x130] sm:$0xff]
  %v89 = vld [vmem:[%s0 + $0x138] sm:$0xff]
  %v90 = vld [vmem:[%s0 + $0x140] sm:$0xff]
  %v91 = vld [vmem:[%s0 + $0x148] sm:$0xff]
  %v92 = vld [vmem:[%s0 + $0x150] sm:$0xff]
  %v93 = vld [vmem:[%s0 + $0x158] sm:$0xff]
  %v94 = vld [vmem:[%s0 + $0x160] sm:$0xff]
  %v95 = vld [vmem:[%s0 + $0x168] sm:$0xff]
  %v96 = vld [vmem:[%s0 + $0x170] sm:$0xff]
  %v97 = vld [vmem:[%s0 + $0x178] sm:$0xff]
  %v98 = vld [vmem:[%s0 + $0x180] sm:$0xff]
  %v99 = vld [vmem:[%s0 + $0x188] sm:$0xff]
  %v100 = vld [vmem:[%s0 + $0x190] sm:$0xff]
  %v101 = vld [vmem:[%s0 + $0x198] sm:$0xff]
  %v102 = vld [vmem:[%s0 + $0x1a0] sm:$0xff]
  %v103 = vld [vmem:[%s0 + $0x1a8] sm:$0xff]
  %v104 = vld [vmem:[%s0 + $0x1b0] sm:$0xff]
  %v105 = vld [vmem:[%s0 + $0x1b8] sm:$0xff]
  %v106 = vld [vmem:[%s0 + $0x1c0] sm:$0xff]
  %v107 = vld [vmem:[%s0 + $0x1c8] sm:$0xff]
  %v108 = vld [vmem:[%s0 + $0x1d0] sm:$0xff]
  %v109 = vld [vmem:[%s0 + $0x1d8] sm:$0xff]
  %v110 = vld [vmem:[%s0 + $0x1e0] sm:$0xff]
  %v111 = vld [vmem:[%s0 + $0x1e8] sm:$0xff]
  %v112 = vld [vmem:[%s0 + $0x1f0] sm:$0xff]
  %v113 = vld [vmem:[%s0 + $0x1f8] sm:$0xff]
  %v114 = vld [vmem:[%s1] sm:$0x1]
  %v115 = vld [vmem:[%s2] sm:$0x1]
  %vm116 = vcmask 31744
  %v117 = vsel %vm116, %v50, 0.0
  %v118 = vsel %vm116, %v51, 0.0
  %v119 = vadd.f32 %v117, %v118
  %v120 = vsel %vm116, %v52, 0.0
  %v121 = vadd.f32 %v119, %v120
  %v122 = vsel %vm116, %v53, 0.0
  %v123 = vadd.f32 %v121, %v122
  %v124 = vsel %vm116, %v54, 0.0
  %v125 = vadd.f32 %v123, %v124
  %v126 = vsel %vm116, %v55, 0.0
  %v127 = vadd.f32 %v125, %v126
  %v128 = vsel %vm116, %v56, 0.0
  %v129 = vadd.f32 %v127, %v128
  %v130 = vsel %vm116, %v57, 0.0
  %v131 = vadd.f32 %v129, %v130
  %v132 = vsel %vm116, %v58, 0.0
  %v133 = vadd.f32 %v131, %v132
  %v134 = vsel %vm116, %v59, 0.0
  %v135 = vadd.f32 %v133, %v134
  %v136 = vsel %vm116, %v60, 0.0
  %v137 = vadd.f32 %v135, %v136
  %v138 = vsel %vm116, %v61, 0.0
  %v139 = vadd.f32 %v137, %v138
  %v140 = vsel %vm116, %v62, 0.0
  %v141 = vadd.f32 %v139, %v140
  %v142 = vsel %vm116, %v63, 0.0
  %v143 = vadd.f32 %v141, %v142
  %v144 = vsel %vm116, %v64, 0.0
  %v145 = vadd.f32 %v143, %v144
  %v146 = vsel %vm116, %v65, 0.0
  %v147 = vadd.f32 %v145, %v146
  %v148 = vsel %vm116, %v66, 0.0
  %v149 = vadd.f32 %v147, %v148
  %v150 = vsel %vm116, %v67, 0.0
  %v151 = vadd.f32 %v149, %v150
  %v152 = vsel %vm116, %v68, 0.0
  %v153 = vadd.f32 %v151, %v152
  %v154 = vsel %vm116, %v69, 0.0
  %v155 = vadd.f32 %v153, %v154
  %v156 = vsel %vm116, %v70, 0.0
  %v157 = vadd.f32 %v155, %v156
  %v158 = vsel %vm116, %v71, 0.0
  %v159 = vadd.f32 %v157, %v158
  %v160 = vsel %vm116, %v72, 0.0
  %v161 = vadd.f32 %v159, %v160
  %v162 = vsel %vm116, %v73, 0.0
  %v163 = vadd.f32 %v161, %v162
  %v164 = vsel %vm116, %v74, 0.0
  %v165 = vadd.f32 %v163, %v164
  %v166 = vsel %vm116, %v75, 0.0
  %v167 = vadd.f32 %v165, %v166
  %v168 = vsel %vm116, %v76, 0.0
  %v169 = vadd.f32 %v167, %v168
  %v170 = vsel %vm116, %v77, 0.0
  %v171 = vadd.f32 %v169, %v170
  %v172 = vsel %vm116, %v78, 0.0
  %v173 = vadd.f32 %v171, %v172
  %v174 = vsel %vm116, %v79, 0.0
  %v175 = vadd.f32 %v173, %v174
  %v176 = vsel %vm116, %v80, 0.0
  %v177 = vadd.f32 %v175, %v176
  %v178 = vsel %vm116, %v81, 0.0
  %v179 = vadd.f32 %v177, %v178
  %v180 = vsel %vm116, %v82, 0.0
  %v181 = vadd.f32 %v179, %v180
  %v182 = vsel %vm116, %v83, 0.0
  %v183 = vadd.f32 %v181, %v182
  %v184 = vsel %vm116, %v84, 0.0
  %v185 = vadd.f32 %v183, %v184
  %v186 = vsel %vm116, %v85, 0.0
  %v187 = vadd.f32 %v185, %v186
  %v188 = vsel %vm116, %v86, 0.0
  %v189 = vadd.f32 %v187, %v188
  %v190 = vsel %vm116, %v87, 0.0
  %v191 = vadd.f32 %v189, %v190
  %v192 = vsel %vm116, %v88, 0.0
  %v193 = vadd.f32 %v191, %v192
  %v194 = vsel %vm116, %v89, 0.0
  %v195 = vadd.f32 %v193, %v194
  %v196 = vsel %vm116, %v90, 0.0
  %v197 = vadd.f32 %v195, %v196
  %v198 = vsel %vm116, %v91, 0.0
  %v199 = vadd.f32 %v197, %v198
  %v200 = vsel %vm116, %v92, 0.0
  %v201 = vadd.f32 %v199, %v200
  %v202 = vsel %vm116, %v93, 0.0
  %v203 = vadd.f32 %v201, %v202
  %v204 = vsel %vm116, %v94, 0.0
  %v205 = vadd.f32 %v203, %v204
  %v206 = vsel %vm116, %v95, 0.0
  %v207 = vadd.f32 %v205, %v206
  %v208 = vsel %vm116, %v96, 0.0
  %v209 = vadd.f32 %v207, %v208
  %v210 = vsel %vm116, %v97, 0.0
  %v211 = vadd.f32 %v209, %v210
  %v212 = vsel %vm116, %v98, 0.0
  %v213 = vadd.f32 %v211, %v212
  %v214 = vsel %vm116, %v99, 0.0
  %v215 = vadd.f32 %v213, %v214
  %v216 = vsel %vm116, %v100, 0.0
  %v217 = vadd.f32 %v215, %v216
  %v218 = vsel %vm116, %v101, 0.0
  %v219 = vadd.f32 %v217, %v218
  %v220 = vsel %vm116, %v102, 0.0
  %v221 = vadd.f32 %v219, %v220
  %v222 = vsel %vm116, %v103, 0.0
  %v223 = vadd.f32 %v221, %v222
  %v224 = vsel %vm116, %v104, 0.0
  %v225 = vadd.f32 %v223, %v224
  %v226 = vsel %vm116, %v105, 0.0
  %v227 = vadd.f32 %v225, %v226
  %v228 = vsel %vm116, %v106, 0.0
  %v229 = vadd.f32 %v227, %v228
  %v230 = vsel %vm116, %v107, 0.0
  %v231 = vadd.f32 %v229, %v230
  %v232 = vsel %vm116, %v108, 0.0
  %v233 = vadd.f32 %v231, %v232
  %v234 = vsel %vm116, %v109, 0.0
  %v235 = vadd.f32 %v233, %v234
  %v236 = vsel %vm116, %v110, 0.0
  %v237 = vadd.f32 %v235, %v236
  %v238 = vsel %vm116, %v111, 0.0
  %v239 = vadd.f32 %v237, %v238
  %v240 = vsel %vm116, %v112, 0.0
  %v241 = vadd.f32 %v239, %v240
  %v242 = vsel %vm116, %v113, 0.0
  %v243 = vadd.f32 %v241, %v242
  %v244 = vrot.slane %v243, 4
  %v245 = vadd.f32 %v243, %v244
  %v246 = vrot.slane %v245, 2
  %v247 = vadd.f32 %v245, %v246
  %v248 = vrot.slane %v247, 1
  %v249 = vadd.f32 %v247, %v248
  %v250 = vrcp.pop 512.0
  %v251 = vmul.f32 512.0, %v250
  %v252 = vsub.f32 1.0, %v251
  %v253 = vmul.f32 %v250, %v252
  %v254 = vadd.f32 %v250, %v253
  %vm255 = vweird.f32 %v250
  %v256 = vsel %vm255, %v250, %v254
  %v257 = vmul.f32 %v249, %v256
  %v258 = vsub.f32 %v50, %v257
  %v259 = vsub.f32 %v51, %v257
  %v260 = vsub.f32 %v52, %v257
  %v261 = vsub.f32 %v53, %v257
  %v262 = vsub.f32 %v54, %v257
  %v263 = vsub.f32 %v55, %v257
  %v264 = vsub.f32 %v56, %v257
  %v265 = vsub.f32 %v57, %v257
  %v266 = vsub.f32 %v58, %v257
  %v267 = vsub.f32 %v59, %v257
  %v268 = vsub.f32 %v60, %v257
  %v269 = vsub.f32 %v61, %v257
  %v270 = vsub.f32 %v62, %v257
  %v271 = vsub.f32 %v63, %v257
  %v272 = vsub.f32 %v64, %v257
  %v273 = vsub.f32 %v65, %v257
  %v274 = vsub.f32 %v66, %v257
  %v275 = vsub.f32 %v67, %v257
  %v276 = vsub.f32 %v68, %v257
  %v277 = vsub.f32 %v69, %v257
  %v278 = vsub.f32 %v70, %v257
  %v279 = vsub.f32 %v71, %v257
  %v280 = vsub.f32 %v72, %v257
  %v281 = vsub.f32 %v73, %v257
  %v282 = vsub.f32 %v74, %v257
  %v283 = vsub.f32 %v75, %v257
  %v284 = vsub.f32 %v76, %v257
  %v285 = vsub.f32 %v77, %v257
  %v286 = vsub.f32 %v78, %v257
  %v287 = vsub.f32 %v79, %v257
  %v288 = vsub.f32 %v80, %v257
  %v289 = vsub.f32 %v81, %v257
  %v290 = vsub.f32 %v82, %v257
  %v291 = vsub.f32 %v83, %v257
  %v292 = vsub.f32 %v84, %v257
  %v293 = vsub.f32 %v85, %v257
  %v294 = vsub.f32 %v86, %v257
  %v295 = vsub.f32 %v87, %v257
  %v296 = vsub.f32 %v88, %v257
  %v297 = vsub.f32 %v89, %v257
  %v298 = vsub.f32 %v90, %v257
  %v299 = vsub.f32 %v91, %v257
  %v300 = vsub.f32 %v92, %v257
  %v301 = vsub.f32 %v93, %v257
  %v302 = vsub.f32 %v94, %v257
  %v303 = vsub.f32 %v95, %v257
  %v304 = vsub.f32 %v96, %v257
  %v305 = vsub.f32 %v97, %v257
  %v306 = vsub.f32 %v98, %v257
  %v307 = vsub.f32 %v99, %v257
  %v308 = vsub.f32 %v100, %v257
  %v309 = vsub.f32 %v101, %v257
  %v310 = vsub.f32 %v102, %v257
  %v311 = vsub.f32 %v103, %v257
  %v312 = vsub.f32 %v104, %v257
  %v313 = vsub.f32 %v105, %v257
  %v314 = vsub.f32 %v106, %v257
  %v315 = vsub.f32 %v107, %v257
  %v316 = vsub.f32 %v108, %v257
  %v317 = vsub.f32 %v109, %v257
  %v318 = vsub.f32 %v110, %v257
  %v319 = vsub.f32 %v111, %v257
  %v320 = vsub.f32 %v112, %v257
  %v321 = vsub.f32 %v113, %v257
  %v322 = vmul.f32 %v258, %v258
  %v323 = vmul.f32 %v259, %v259
  %v324 = vmul.f32 %v260, %v260
  %v325 = vmul.f32 %v261, %v261
  %v326 = vmul.f32 %v262, %v262
  %v327 = vmul.f32 %v263, %v263
  %v328 = vmul.f32 %v264, %v264
  %v329 = vmul.f32 %v265, %v265
  %v330 = vmul.f32 %v266, %v266
  %v331 = vmul.f32 %v267, %v267
  %v332 = vmul.f32 %v268, %v268
  %v333 = vmul.f32 %v269, %v269
  %v334 = vmul.f32 %v270, %v270
  %v335 = vmul.f32 %v271, %v271
  %v336 = vmul.f32 %v272, %v272
  %v337 = vmul.f32 %v273, %v273
  %v338 = vmul.f32 %v274, %v274
  %v339 = vmul.f32 %v275, %v275
  %v340 = vmul.f32 %v276, %v276
  %v341 = vmul.f32 %v277, %v277
  %v342 = vmul.f32 %v278, %v278
  %v343 = vmul.f32 %v279, %v279
  %v344 = vmul.f32 %v280, %v280
  %v345 = vmul.f32 %v281, %v281
  %v346 = vmul.f32 %v282, %v282
  %v347 = vmul.f32 %v283, %v283
  %v348 = vmul.f32 %v284, %v284
  %v349 = vmul.f32 %v285, %v285
  %v350 = vmul.f32 %v286, %v286
  %v351 = vmul.f32 %v287, %v287
  %v352 = vmul.f32 %v288, %v288
  %v353 = vmul.f32 %v289, %v289
  %v354 = vmul.f32 %v290, %v290
  %v355 = vmul.f32 %v291, %v291
  %v356 = vmul.f32 %v292, %v292
  %v357 = vmul.f32 %v293, %v293
  %v358 = vmul.f32 %v294, %v294
  %v359 = vmul.f32 %v295, %v295
  %v360 = vmul.f32 %v296, %v296
  %v361 = vmul.f32 %v297, %v297
  %v362 = vmul.f32 %v298, %v298
  %v363 = vmul.f32 %v299, %v299
  %v364 = vmul.f32 %v300, %v300
  %v365 = vmul.f32 %v301, %v301
  %v366 = vmul.f32 %v302, %v302
  %v367 = vmul.f32 %v303, %v303
  %v368 = vmul.f32 %v304, %v304
  %v369 = vmul.f32 %v305, %v305
  %v370 = vmul.f32 %v306, %v306
  %v371 = vmul.f32 %v307, %v307
  %v372 = vmul.f32 %v308, %v308
  %v373 = vmul.f32 %v309, %v309
  %v374 = vmul.f32 %v310, %v310
  %v375 = vmul.f32 %v311, %v311
  %v376 = vmul.f32 %v312, %v312
  %v377 = vmul.f32 %v313, %v313
  %v378 = vmul.f32 %v314, %v314
  %v379 = vmul.f32 %v315, %v315
  %v380 = vmul.f32 %v316, %v316
  %v381 = vmul.f32 %v317, %v317
  %v382 = vmul.f32 %v318, %v318
  %v383 = vmul.f32 %v319, %v319
  %v384 = vmul.f32 %v320, %v320
  %v385 = vmul.f32 %v321, %v321
  %v386 = vsel %vm116, %v322, 0.0
  %v387 = vsel %vm116, %v323, 0.0
  %v388 = vadd.f32 %v386, %v387
  %v389 = vsel %vm116, %v324, 0.0
  %v390 = vadd.f32 %v388, %v389
  %v391 = vsel %vm116, %v325, 0.0
  %v392 = vadd.f32 %v390, %v391
  %v393 = vsel %vm116, %v326, 0.0
  %v394 = vadd.f32 %v392, %v393
  %v395 = vsel %vm116, %v327, 0.0
  %v396 = vadd.f32 %v394, %v395
  %v397 = vsel %vm116, %v328, 0.0
  %v398 = vadd.f32 %v396, %v397
  %v399 = vsel %vm116, %v329, 0.0
  %v400 = vadd.f32 %v398, %v399
  %v401 = vsel %vm116, %v330, 0.0
  %v402 = vadd.f32 %v400, %v401
  %v403 = vsel %vm116, %v331, 0.0
  %v404 = vadd.f32 %v402, %v403
  %v405 = vsel %vm116, %v332, 0.0
  %v406 = vadd.f32 %v404, %v405
  %v407 = vsel %vm116, %v333, 0.0
  %v408 = vadd.f32 %v406, %v407
  %v409 = vsel %vm116, %v334, 0.0
  %v410 = vadd.f32 %v408, %v409
  %v411 = vsel %vm116, %v335, 0.0
  %v412 = vadd.f32 %v410, %v411
  %v413 = vsel %vm116, %v336, 0.0
  %v414 = vadd.f32 %v412, %v413
  %v415 = vsel %vm116, %v337, 0.0
  %v416 = vadd.f32 %v414, %v415
  %v417 = vsel %vm116, %v338, 0.0
  %v418 = vadd.f32 %v416, %v417
  %v419 = vsel %vm116, %v339, 0.0
  %v420 = vadd.f32 %v418, %v419
  %v421 = vsel %vm116, %v340, 0.0
  %v422 = vadd.f32 %v420, %v421
  %v423 = vsel %vm116, %v341, 0.0
  %v424 = vadd.f32 %v422, %v423
  %v425 = vsel %vm116, %v342, 0.0
  %v426 = vadd.f32 %v424, %v425
  %v427 = vsel %vm116, %v343, 0.0
  %v428 = vadd.f32 %v426, %v427
  %v429 = vsel %vm116, %v344, 0.0
  %v430 = vadd.f32 %v428, %v429
  %v431 = vsel %vm116, %v345, 0.0
  %v432 = vadd.f32 %v430, %v431
  %v433 = vsel %vm116, %v346, 0.0
  %v434 = vadd.f32 %v432, %v433
  %v435 = vsel %vm116, %v347, 0.0
  %v436 = vadd.f32 %v434, %v435
  %v437 = vsel %vm116, %v348, 0.0
  %v438 = vadd.f32 %v436, %v437
  %v439 = vsel %vm116, %v349, 0.0
  %v440 = vadd.f32 %v438, %v439
  %v441 = vsel %vm116, %v350, 0.0
  %v442 = vadd.f32 %v440, %v441
  %v443 = vsel %vm116, %v351, 0.0
  %v444 = vadd.f32 %v442, %v443
  %v445 = vsel %vm116, %v352, 0.0
  %v446 = vadd.f32 %v444, %v445
  %v447 = vsel %vm116, %v353, 0.0
  %v448 = vadd.f32 %v446, %v447
  %v449 = vsel %vm116, %v354, 0.0
  %v450 = vadd.f32 %v448, %v449
  %v451 = vsel %vm116, %v355, 0.0
  %v452 = vadd.f32 %v450, %v451
  %v453 = vsel %vm116, %v356, 0.0
  %v454 = vadd.f32 %v452, %v453
  %v455 = vsel %vm116, %v357, 0.0
  %v456 = vadd.f32 %v454, %v455
  %v457 = vsel %vm116, %v358, 0.0
  %v458 = vadd.f32 %v456, %v457
  %v459 = vsel %vm116, %v359, 0.0
  %v460 = vadd.f32 %v458, %v459
  %v461 = vsel %vm116, %v360, 0.0
  %v462 = vadd.f32 %v460, %v461
  %v463 = vsel %vm116, %v361, 0.0
  %v464 = vadd.f32 %v462, %v463
  %v465 = vsel %vm116, %v362, 0.0
  %v466 = vadd.f32 %v464, %v465
  %v467 = vsel %vm116, %v363, 0.0
  %v468 = vadd.f32 %v466, %v467
  %v469 = vsel %vm116, %v364, 0.0
  %v470 = vadd.f32 %v468, %v469
  %v471 = vsel %vm116, %v365, 0.0
  %v472 = vadd.f32 %v470, %v471
  %v473 = vsel %vm116, %v366, 0.0
  %v474 = vadd.f32 %v472, %v473
  %v475 = vsel %vm116, %v367, 0.0
  %v476 = vadd.f32 %v474, %v475
  %v477 = vsel %vm116, %v368, 0.0
  %v478 = vadd.f32 %v476, %v477
  %v479 = vsel %vm116, %v369, 0.0
  %v480 = vadd.f32 %v478, %v479
  %v481 = vsel %vm116, %v370, 0.0
  %v482 = vadd.f32 %v480, %v481
  %v483 = vsel %vm116, %v371, 0.0
  %v484 = vadd.f32 %v482, %v483
  %v485 = vsel %vm116, %v372, 0.0
  %v486 = vadd.f32 %v484, %v485
  %v487 = vsel %vm116, %v373, 0.0
  %v488 = vadd.f32 %v486, %v487
  %v489 = vsel %vm116, %v374, 0.0
  %v490 = vadd.f32 %v488, %v489
  %v491 = vsel %vm116, %v375, 0.0
  %v492 = vadd.f32 %v490, %v491
  %v493 = vsel %vm116, %v376, 0.0
  %v494 = vadd.f32 %v492, %v493
  %v495 = vsel %vm116, %v377, 0.0
  %v496 = vadd.f32 %v494, %v495
  %v497 = vsel %vm116, %v378, 0.0
  %v498 = vadd.f32 %v496, %v497
  %v499 = vsel %vm116, %v379, 0.0
  %v500 = vadd.f32 %v498, %v499
  %v501 = vsel %vm116, %v380, 0.0
  %v502 = vadd.f32 %v500, %v501
  %v503 = vsel %vm116, %v381, 0.0
  %v504 = vadd.f32 %v502, %v503
  %v505 = vsel %vm116, %v382, 0.0
  %v506 = vadd.f32 %v504, %v505
  %v507 = vsel %vm116, %v383, 0.0
  %v508 = vadd.f32 %v506, %v507
  %v509 = vsel %vm116, %v384, 0.0
  %v510 = vadd.f32 %v508, %v509
  %v511 = vsel %vm116, %v385, 0.0
  %v512 = vadd.f32 %v510, %v511
  %v513 = vrot.slane %v512, 4
  %v514 = vadd.f32 %v512, %v513
  %v515 = vrot.slane %v514, 2
  %v516 = vadd.f32 %v514, %v515
  %v517 = vrot.slane %v516, 1
  %v518 = vadd.f32 %v516, %v517
  %v519 = vmul.f32 %v518, %v256
  %v520 = vadd.f32 %v519, 1e-05
  %v521 = vrsqrt.pop %v520
  %v522 = vmul.f32 %v521, %v520
  %v523 = vmul.f32 %v522, %v521
  %v524 = vmul.f32 0.5, %v523
  %v525 = vsub.f32 1.5, %v524
  %v526 = vmul.f32 %v521, %v525
  %vm527 = vweird.f32 %v520
  %vm528 = vweird.f32 %v521
  %vm529 = vmor %vm527, %vm528
  %v530 = vsel %vm529, %v521, %v526
  %v531 = vmul.f32 %v258, %v530
  %v532 = vmul.f32 %v259, %v530
  %v533 = vmul.f32 %v260, %v530
  %v534 = vmul.f32 %v261, %v530
  %v535 = vmul.f32 %v262, %v530
  %v536 = vmul.f32 %v263, %v530
  %v537 = vmul.f32 %v264, %v530
  %v538 = vmul.f32 %v265, %v530
  %v539 = vmul.f32 %v266, %v530
  %v540 = vmul.f32 %v267, %v530
  %v541 = vmul.f32 %v268, %v530
  %v542 = vmul.f32 %v269, %v530
  %v543 = vmul.f32 %v270, %v530
  %v544 = vmul.f32 %v271, %v530
  %v545 = vmul.f32 %v272, %v530
  %v546 = vmul.f32 %v273, %v530
  %v547 = vmul.f32 %v274, %v530
  %v548 = vmul.f32 %v275, %v530
  %v549 = vmul.f32 %v276, %v530
  %v550 = vmul.f32 %v277, %v530
  %v551 = vmul.f32 %v278, %v530
  %v552 = vmul.f32 %v279, %v530
  %v553 = vmul.f32 %v280, %v530
  %v554 = vmul.f32 %v281, %v530
  %v555 = vmul.f32 %v282, %v530
  %v556 = vmul.f32 %v283, %v530
  %v557 = vmul.f32 %v284, %v530
  %v558 = vmul.f32 %v285, %v530
  %v559 = vmul.f32 %v286, %v530
  %v560 = vmul.f32 %v287, %v530
  %v561 = vmul.f32 %v288, %v530
  %v562 = vmul.f32 %v289, %v530
  %v563 = vmul.f32 %v290, %v530
  %v564 = vmul.f32 %v291, %v530
  %v565 = vmul.f32 %v292, %v530
  %v566 = vmul.f32 %v293, %v530
  %v567 = vmul.f32 %v294, %v530
  %v568 = vmul.f32 %v295, %v530
  %v569 = vmul.f32 %v296, %v530
  %v570 = vmul.f32 %v297, %v530
  %v571 = vmul.f32 %v298, %v530
  %v572 = vmul.f32 %v299, %v530
  %v573 = vmul.f32 %v300, %v530
  %v574 = vmul.f32 %v301, %v530
  %v575 = vmul.f32 %v302, %v530
  %v576 = vmul.f32 %v303, %v530
  %v577 = vmul.f32 %v304, %v530
  %v578 = vmul.f32 %v305, %v530
  %v579 = vmul.f32 %v306, %v530
  %v580 = vmul.f32 %v307, %v530
  %v581 = vmul.f32 %v308, %v530
  %v582 = vmul.f32 %v309, %v530
  %v583 = vmul.f32 %v310, %v530
  %v584 = vmul.f32 %v311, %v530
  %v585 = vmul.f32 %v312, %v530
  %v586 = vmul.f32 %v313, %v530
  %v587 = vmul.f32 %v314, %v530
  %v588 = vmul.f32 %v315, %v530
  %v589 = vmul.f32 %v316, %v530
  %v590 = vmul.f32 %v317, %v530
  %v591 = vmul.f32 %v318, %v530
  %v592 = vmul.f32 %v319, %v530
  %v593 = vmul.f32 %v320, %v530
  %v594 = vmul.f32 %v321, %v530
  %v596 = vperm.slane %v114, 0
  %v598 = vmul.f32 %v531, %v596
  %v599 = vmul.f32 %v532, %v596
  %v600 = vmul.f32 %v533, %v596
  %v601 = vmul.f32 %v534, %v596
  %v602 = vmul.f32 %v535, %v596
  %v603 = vmul.f32 %v536, %v596
  %v604 = vmul.f32 %v537, %v596
  %v605 = vmul.f32 %v538, %v596
  %v606 = vmul.f32 %v539, %v596
  %v607 = vmul.f32 %v540, %v596
  %v608 = vmul.f32 %v541, %v596
  %v609 = vmul.f32 %v542, %v596
  %v610 = vmul.f32 %v543, %v596
  %v611 = vmul.f32 %v544, %v596
  %v612 = vmul.f32 %v545, %v596
  %v613 = vmul.f32 %v546, %v596
  %v614 = vmul.f32 %v547, %v596
  %v615 = vmul.f32 %v548, %v596
  %v616 = vmul.f32 %v549, %v596
  %v617 = vmul.f32 %v550, %v596
  %v618 = vmul.f32 %v551, %v596
  %v619 = vmul.f32 %v552, %v596
  %v620 = vmul.f32 %v553, %v596
  %v621 = vmul.f32 %v554, %v596
  %v622 = vmul.f32 %v555, %v596
  %v623 = vmul.f32 %v556, %v596
  %v624 = vmul.f32 %v557, %v596
  %v625 = vmul.f32 %v558, %v596
  %v626 = vmul.f32 %v559, %v596
  %v627 = vmul.f32 %v560, %v596
  %v628 = vmul.f32 %v561, %v596
  %v629 = vmul.f32 %v562, %v596
  %v630 = vmul.f32 %v563, %v596
  %v631 = vmul.f32 %v564, %v596
  %v632 = vmul.f32 %v565, %v596
  %v633 = vmul.f32 %v566, %v596
  %v634 = vmul.f32 %v567, %v596
  %v635 = vmul.f32 %v568, %v596
  %v636 = vmul.f32 %v569, %v596
  %v637 = vmul.f32 %v570, %v596
  %v638 = vmul.f32 %v571, %v596
  %v639 = vmul.f32 %v572, %v596
  %v640 = vmul.f32 %v573, %v596
  %v641 = vmul.f32 %v574, %v596
  %v642 = vmul.f32 %v575, %v596
  %v643 = vmul.f32 %v576, %v596
  %v644 = vmul.f32 %v577, %v596
  %v645 = vmul.f32 %v578, %v596
  %v646 = vmul.f32 %v579, %v596
  %v647 = vmul.f32 %v580, %v596
  %v648 = vmul.f32 %v581, %v596
  %v649 = vmul.f32 %v582, %v596
  %v650 = vmul.f32 %v583, %v596
  %v651 = vmul.f32 %v584, %v596
  %v652 = vmul.f32 %v585, %v596
  %v653 = vmul.f32 %v586, %v596
  %v654 = vmul.f32 %v587, %v596
  %v655 = vmul.f32 %v588, %v596
  %v656 = vmul.f32 %v589, %v596
  %v657 = vmul.f32 %v590, %v596
  %v658 = vmul.f32 %v591, %v596
  %v659 = vmul.f32 %v592, %v596
  %v660 = vmul.f32 %v593, %v596
  %v661 = vmul.f32 %v594, %v596
  %v663 = vperm.slane %v115, 0
  %v665 = vadd.f32 %v598, %v663
  %v666 = vadd.f32 %v599, %v663
  %v667 = vadd.f32 %v600, %v663
  %v668 = vadd.f32 %v601, %v663
  %v669 = vadd.f32 %v602, %v663
  %v670 = vadd.f32 %v603, %v663
  %v671 = vadd.f32 %v604, %v663
  %v672 = vadd.f32 %v605, %v663
  %v673 = vadd.f32 %v606, %v663
  %v674 = vadd.f32 %v607, %v663
  %v675 = vadd.f32 %v608, %v663
  %v676 = vadd.f32 %v609, %v663
  %v677 = vadd.f32 %v610, %v663
  %v678 = vadd.f32 %v611, %v663
  %v679 = vadd.f32 %v612, %v663
  %v680 = vadd.f32 %v613, %v663
  %v681 = vadd.f32 %v614, %v663
  %v682 = vadd.f32 %v615, %v663
  %v683 = vadd.f32 %v616, %v663
  %v684 = vadd.f32 %v617, %v663
  %v685 = vadd.f32 %v618, %v663
  %v686 = vadd.f32 %v619, %v663
  %v687 = vadd.f32 %v620, %v663
  %v688 = vadd.f32 %v621, %v663
  %v689 = vadd.f32 %v622, %v663
  %v690 = vadd.f32 %v623, %v663
  %v691 = vadd.f32 %v624, %v663
  %v692 = vadd.f32 %v625, %v663
  %v693 = vadd.f32 %v626, %v663
  %v694 = vadd.f32 %v627, %v663
  %v695 = vadd.f32 %v628, %v663
  %v696 = vadd.f32 %v629, %v663
  %v697 = vadd.f32 %v630, %v663
  %v698 = vadd.f32 %v631, %v663
  %v699 = vadd.f32 %v632, %v663
  %v700 = vadd.f32 %v633, %v663
  %v701 = vadd.f32 %v634, %v663
  %v702 = vadd.f32 %v635, %v663
  %v703 = vadd.f32 %v636, %v663
  %v704 = vadd.f32 %v637, %v663
  %v705 = vadd.f32 %v638, %v663
  %v706 = vadd.f32 %v639, %v663
  %v707 = vadd.f32 %v640, %v663
  %v708 = vadd.f32 %v641, %v663
  %v709 = vadd.f32 %v642, %v663
  %v710 = vadd.f32 %v643, %v663
  %v711 = vadd.f32 %v644, %v663
  %v712 = vadd.f32 %v645, %v663
  %v713 = vadd.f32 %v646, %v663
  %v714 = vadd.f32 %v647, %v663
  %v715 = vadd.f32 %v648, %v663
  %v716 = vadd.f32 %v649, %v663
  %v717 = vadd.f32 %v650, %v663
  %v718 = vadd.f32 %v651, %v663
  %v719 = vadd.f32 %v652, %v663
  %v720 = vadd.f32 %v653, %v663
  %v721 = vadd.f32 %v654, %v663
  %v722 = vadd.f32 %v655, %v663
  %v723 = vadd.f32 %v656, %v663
  %v724 = vadd.f32 %v657, %v663
  %v725 = vadd.f32 %v658, %v663
  %v726 = vadd.f32 %v659, %v663
  %v727 = vadd.f32 %v660, %v663
  %v728 = vadd.f32 %v661, %v663
  %vm729 = vcmp.ge.f32.partialorder %v665, 0.0
  %vm730 = vcmp.ge.f32.partialorder %v666, 0.0
  %vm731 = vcmp.ge.f32.partialorder %v667, 0.0
  %vm732 = vcmp.ge.f32.partialorder %v668, 0.0
  %vm733 = vcmp.ge.f32.partialorder %v669, 0.0
  %vm734 = vcmp.ge.f32.partialorder %v670, 0.0
  %vm735 = vcmp.ge.f32.partialorder %v671, 0.0
  %vm736 = vcmp.ge.f32.partialorder %v672, 0.0
  %vm737 = vcmp.ge.f32.partialorder %v673, 0.0
  %vm738 = vcmp.ge.f32.partialorder %v674, 0.0
  %vm739 = vcmp.ge.f32.partialorder %v675, 0.0
  %vm740 = vcmp.ge.f32.partialorder %v676, 0.0
  %vm741 = vcmp.ge.f32.partialorder %v677, 0.0
  %vm742 = vcmp.ge.f32.partialorder %v678, 0.0
  %vm743 = vcmp.ge.f32.partialorder %v679, 0.0
  %vm744 = vcmp.ge.f32.partialorder %v680, 0.0
  %vm745 = vcmp.ge.f32.partialorder %v681, 0.0
  %vm746 = vcmp.ge.f32.partialorder %v682, 0.0
  %vm747 = vcmp.ge.f32.partialorder %v683, 0.0
  %vm748 = vcmp.ge.f32.partialorder %v684, 0.0
  %vm749 = vcmp.ge.f32.partialorder %v685, 0.0
  %vm750 = vcmp.ge.f32.partialorder %v686, 0.0
  %vm751 = vcmp.ge.f32.partialorder %v687, 0.0
  %vm752 = vcmp.ge.f32.partialorder %v688, 0.0
  %vm753 = vcmp.ge.f32.partialorder %v689, 0.0
  %vm754 = vcmp.ge.f32.partialorder %v690, 0.0
  %vm755 = vcmp.ge.f32.partialorder %v691, 0.0
  %vm756 = vcmp.ge.f32.partialorder %v692, 0.0
  %vm757 = vcmp.ge.f32.partialorder %v693, 0.0
  %vm758 = vcmp.ge.f32.partialorder %v694, 0.0
  %vm759 = vcmp.ge.f32.partialorder %v695, 0.0
  %vm760 = vcmp.ge.f32.partialorder %v696, 0.0
  %vm761 = vcmp.ge.f32.partialorder %v697, 0.0
  %vm762 = vcmp.ge.f32.partialorder %v698, 0.0
  %vm763 = vcmp.ge.f32.partialorder %v699, 0.0
  %vm764 = vcmp.ge.f32.partialorder %v700, 0.0
  %vm765 = vcmp.ge.f32.partialorder %v701, 0.0
  %vm766 = vcmp.ge.f32.partialorder %v702, 0.0
  %vm767 = vcmp.ge.f32.partialorder %v703, 0.0
  %vm768 = vcmp.ge.f32.partialorder %v704, 0.0
  %vm769 = vcmp.ge.f32.partialorder %v705, 0.0
  %vm770 = vcmp.ge.f32.partialorder %v706, 0.0
  %vm771 = vcmp.ge.f32.partialorder %v707, 0.0
  %vm772 = vcmp.ge.f32.partialorder %v708, 0.0
  %vm773 = vcmp.ge.f32.partialorder %v709, 0.0
  %vm774 = vcmp.ge.f32.partialorder %v710, 0.0
  %vm775 = vcmp.ge.f32.partialorder %v711, 0.0
  %vm776 = vcmp.ge.f32.partialorder %v712, 0.0
  %vm777 = vcmp.ge.f32.partialorder %v713, 0.0
  %vm778 = vcmp.ge.f32.partialorder %v714, 0.0
  %vm779 = vcmp.ge.f32.partialorder %v715, 0.0
  %vm780 = vcmp.ge.f32.partialorder %v716, 0.0
  %vm781 = vcmp.ge.f32.partialorder %v717, 0.0
  %vm782 = vcmp.ge.f32.partialorder %v718, 0.0
  %vm783 = vcmp.ge.f32.partialorder %v719, 0.0
  %vm784 = vcmp.ge.f32.partialorder %v720, 0.0
  %vm785 = vcmp.ge.f32.partialorder %v721, 0.0
  %vm786 = vcmp.ge.f32.partialorder %v722, 0.0
  %vm787 = vcmp.ge.f32.partialorder %v723, 0.0
  %vm788 = vcmp.ge.f32.partialorder %v724, 0.0
  %vm789 = vcmp.ge.f32.partialorder %v725, 0.0
  %vm790 = vcmp.ge.f32.partialorder %v726, 0.0
  %vm791 = vcmp.ge.f32.partialorder %v727, 0.0
  %vm792 = vcmp.ge.f32.partialorder %v728, 0.0
  %v793 = vmul.f32 %v665, 0.01
  %v794 = vmul.f32 %v666, 0.01
  %v795 = vmul.f32 %v667, 0.01
  %v796 = vmul.f32 %v668, 0.01
  %v797 = vmul.f32 %v669, 0.01
  %v798 = vmul.f32 %v670, 0.01
  %v799 = vmul.f32 %v671, 0.01
  %v800 = vmul.f32 %v672, 0.01
  %v801 = vmul.f32 %v673, 0.01
  %v802 = vmul.f32 %v674, 0.01
  %v803 = vmul.f32 %v675, 0.01
  %v804 = vmul.f32 %v676, 0.01
  %v805 = vmul.f32 %v677, 0.01
  %v806 = vmul.f32 %v678, 0.01
  %v807 = vmul.f32 %v679, 0.01
  %v808 = vmul.f32 %v680, 0.01
  %v809 = vmul.f32 %v681, 0.01
  %v810 = vmul.f32 %v682, 0.01
  %v811 = vmul.f32 %v683, 0.01
  %v812 = vmul.f32 %v684, 0.01
  %v813 = vmul.f32 %v685, 0.01
  %v814 = vmul.f32 %v686, 0.01
  %v815 = vmul.f32 %v687, 0.01
  %v816 = vmul.f32 %v688, 0.01
  %v817 = vmul.f32 %v689, 0.01
  %v818 = vmul.f32 %v690, 0.01
  %v819 = vmul.f32 %v691, 0.01
  %v820 = vmul.f32 %v692, 0.01
  %v821 = vmul.f32 %v693, 0.01
  %v822 = vmul.f32 %v694, 0.01
  %v823 = vmul.f32 %v695, 0.01
  %v824 = vmul.f32 %v696, 0.01
  %v825 = vmul.f32 %v697, 0.01
  %v826 = vmul.f32 %v698, 0.01
  %v827 = vmul.f32 %v699, 0.01
  %v828 = vmul.f32 %v700, 0.01
  %v829 = vmul.f32 %v701, 0.01
  %v830 = vmul.f32 %v702, 0.01
  %v831 = vmul.f32 %v703, 0.01
  %v832 = vmul.f32 %v704, 0.01
  %v833 = vmul.f32 %v705, 0.01
  %v834 = vmul.f32 %v706, 0.01
  %v835 = vmul.f32 %v707, 0.01
  %v836 = vmul.f32 %v708, 0.01
  %v837 = vmul.f32 %v709, 0.01
  %v838 = vmul.f32 %v710, 0.01
  %v839 = vmul.f32 %v711, 0.01
  %v840 = vmul.f32 %v712, 0.01
  %v841 = vmul.f32 %v713, 0.01
  %v842 = vmul.f32 %v714, 0.01
  %v843 = vmul.f32 %v715, 0.01
  %v844 = vmul.f32 %v716, 0.01
  %v845 = vmul.f32 %v717, 0.01
  %v846 = vmul.f32 %v718, 0.01
  %v847 = vmul.f32 %v719, 0.01
  %v848 = vmul.f32 %v720, 0.01
  %v849 = vmul.f32 %v721, 0.01
  %v850 = vmul.f32 %v722, 0.01
  %v851 = vmul.f32 %v723, 0.01
  %v852 = vmul.f32 %v724, 0.01
  %v853 = vmul.f32 %v725, 0.01
  %v854 = vmul.f32 %v726, 0.01
  %v855 = vmul.f32 %v727, 0.01
  %v856 = vmul.f32 %v728, 0.01
  %v857 = vsel %vm729, %v665, %v793
  %v858 = vsel %vm730, %v666, %v794
  %v859 = vsel %vm731, %v667, %v795
  %v860 = vsel %vm732, %v668, %v796
  %v861 = vsel %vm733, %v669, %v797
  %v862 = vsel %vm734, %v670, %v798
  %v863 = vsel %vm735, %v671, %v799
  %v864 = vsel %vm736, %v672, %v800
  %v865 = vsel %vm737, %v673, %v801
  %v866 = vsel %vm738, %v674, %v802
  %v867 = vsel %vm739, %v675, %v803
  %v868 = vsel %vm740, %v676, %v804
  %v869 = vsel %vm741, %v677, %v805
  %v870 = vsel %vm742, %v678, %v806
  %v871 = vsel %vm743, %v679, %v807
  %v872 = vsel %vm744, %v680, %v808
  %v873 = vsel %vm745, %v681, %v809
  %v874 = vsel %vm746, %v682, %v810
  %v875 = vsel %vm747, %v683, %v811
  %v876 = vsel %vm748, %v684, %v812
  %v877 = vsel %vm749, %v685, %v813
  %v878 = vsel %vm750, %v686, %v814
  %v879 = vsel %vm751, %v687, %v815
  %v880 = vsel %vm752, %v688, %v816
  %v881 = vsel %vm753, %v689, %v817
  %v882 = vsel %vm754, %v690, %v818
  %v883 = vsel %vm755, %v691, %v819
  %v884 = vsel %vm756, %v692, %v820
  %v885 = vsel %vm757, %v693, %v821
  %v886 = vsel %vm758, %v694, %v822
  %v887 = vsel %vm759, %v695, %v823
  %v888 = vsel %vm760, %v696, %v824
  %v889 = vsel %vm761, %v697, %v825
  %v890 = vsel %vm762, %v698, %v826
  %v891 = vsel %vm763, %v699, %v827
  %v892 = vsel %vm764, %v700, %v828
  %v893 = vsel %vm765, %v701, %v829
  %v894 = vsel %vm766, %v702, %v830
  %v895 = vsel %vm767, %v703, %v831
  %v896 = vsel %vm768, %v704, %v832
  %v897 = vsel %vm769, %v705, %v833
  %v898 = vsel %vm770, %v706, %v834
  %v899 = vsel %vm771, %v707, %v835
  %v900 = vsel %vm772, %v708, %v836
  %v901 = vsel %vm773, %v709, %v837
  %v902 = vsel %vm774, %v710, %v838
  %v903 = vsel %vm775, %v711, %v839
  %v904 = vsel %vm776, %v712, %v840
  %v905 = vsel %vm777, %v713, %v841
  %v906 = vsel %vm778, %v714, %v842
  %v907 = vsel %vm779, %v715, %v843
  %v908 = vsel %vm780, %v716, %v844
  %v909 = vsel %vm781, %v717, %v845
  %v910 = vsel %vm782, %v718, %v846
  %v911 = vsel %vm783, %v719, %v847
  %v912 = vsel %vm784, %v720, %v848
  %v913 = vsel %vm785, %v721, %v849
  %v914 = vsel %vm786, %v722, %v850
  %v915 = vsel %vm787, %v723, %v851
  %v916 = vsel %vm788, %v724, %v852
  %v917 = vsel %vm789, %v725, %v853
  %v918 = vsel %vm790, %v726, %v854
  %v919 = vsel %vm791, %v727, %v855
  %v920 = vsel %vm792, %v728, %v856
  %v921 = vld [vmem:[%s3] sm:$0xf]
  %v922 = vld [vmem:[%s4] sm:$0x1]
  %v924 = vperm.slane %v922, 0
  %v927 = vsel %vm116, %v857, 0
  %v930 = vsel %vm116, %v858, 0
  %v933 = vsel %vm116, %v859, 0
  %v936 = vsel %vm116, %v860, 0
  %v939 = vsel %vm116, %v861, 0
  %v942 = vsel %vm116, %v862, 0
  %v945 = vsel %vm116, %v863, 0
  %v948 = vsel %vm116, %v864, 0
  %v951 = vsel %vm116, %v865, 0
  %v954 = vsel %vm116, %v866, 0
  %v957 = vsel %vm116, %v867, 0
  %v960 = vsel %vm116, %v868, 0
  %v963 = vsel %vm116, %v869, 0
  %v966 = vsel %vm116, %v870, 0
  %v969 = vsel %vm116, %v871, 0
  %v972 = vsel %vm116, %v872, 0
  %v975 = vsel %vm116, %v873, 0
  %v978 = vsel %vm116, %v874, 0
  %v981 = vsel %vm116, %v875, 0
  %v984 = vsel %vm116, %v876, 0
  %v987 = vsel %vm116, %v877, 0
  %v990 = vsel %vm116, %v878, 0
  %v993 = vsel %vm116, %v879, 0
  %v996 = vsel %vm116, %v880, 0
  %v999 = vsel %vm116, %v881, 0
  %v1002 = vsel %vm116, %v882, 0
  %v1005 = vsel %vm116, %v883, 0
  %v1008 = vsel %vm116, %v884, 0
  %v1011 = vsel %vm116, %v885, 0
  %v1014 = vsel %vm116, %v886, 0
  %v1017 = vsel %vm116, %v887, 0
  %v1020 = vsel %vm116, %v888, 0
  %v1023 = vsel %vm116, %v889, 0
  %v1026 = vsel %vm116, %v890, 0
  %v1029 = vsel %vm116, %v891, 0
  %v1032 = vsel %vm116, %v892, 0
  %v1035 = vsel %vm116, %v893, 0
  %v1038 = vsel %vm116, %v894, 0
  %v1041 = vsel %vm116, %v895, 0
  %v1044 = vsel %vm116, %v896, 0
  %v1047 = vsel %vm116, %v897, 0
  %v1050 = vsel %vm116, %v898, 0
  %v1053 = vsel %vm116, %v899, 0
  %v1056 = vsel %vm116, %v900, 0
  %v1059 = vsel %vm116, %v901, 0
  %v1062 = vsel %vm116, %v902, 0
  %v1065 = vsel %vm116, %v903, 0
  %v1068 = vsel %vm116, %v904, 0
  %v1071 = vsel %vm116, %v905, 0
  %v1074 = vsel %vm116, %v906, 0
  %v1077 = vsel %vm116, %v907, 0
  %v1080 = vsel %vm116, %v908, 0
  %v1083 = vsel %vm116, %v909, 0
  %v1086 = vsel %vm116, %v910, 0
  %v1089 = vsel %vm116, %v911, 0
  %v1092 = vsel %vm116, %v912, 0
  %v1095 = vsel %vm116, %v913, 0
  %v1098 = vsel %vm116, %v914, 0
  %v1101 = vsel %vm116, %v915, 0
  %v1104 = vsel %vm116, %v916, 0
  %v1107 = vsel %vm116, %v917, 0
  %v1110 = vsel %vm116, %v918, 0
  %v1113 = vsel %vm116, %v919, 0
  %v1116 = vsel %vm116, %v920, 0
  %vm1118 = vcmask 1043456
  %v1120 = vsel %vm1118, %v921, 0
  %1122 = vmatpush.msra.mxu0 0.0
  %1123 = vmatpush.msra.mxu0 0.0
  %1124 = vmatpush.msra.mxu0 0.0
  %1125 = vmatpush.msra.mxu0 0.0
  %1126 = vmatpush.msra.mxu0 0.0
  %1127 = vmatpush.msra.mxu0 0.0
  %1128 = vmatpush.msra.mxu0 0.0
  %1129 = vmatpush.msra.mxu0 0.0
  %1130 = vmatpush.msra.mxu0 0.0
  %1131 = vmatpush.msra.mxu0 0.0
  %1132 = vmatpush.msra.mxu0 0.0
  %1133 = vmatpush.msra.mxu0 0.0
  %1134 = vmatpush.msra.mxu0 0.0
  %1135 = vmatpush.msra.mxu0 0.0
  %1136 = vmatpush.msra.mxu0 0.0
  %1137 = vmatpush.msra.mxu0 %v1120
  %1138 = vmatmul.f32.gmra.mxu0 %v927
  %v1139 = vpop.f32.mrf.mxu0
  %v1140 = vadd.f32 %v924, %v1139
  %1141 = vmatmul.f32.gmra.mxu0 %v930
  %v1142 = vpop.f32.mrf.mxu0
  %v1143 = vadd.f32 %v924, %v1142
  %1144 = vmatmul.f32.gmra.mxu0 %v933
  %v1145 = vpop.f32.mrf.mxu0
  %v1146 = vadd.f32 %v924, %v1145
  %1147 = vmatmul.f32.gmra.mxu0 %v936
  %v1148 = vpop.f32.mrf.mxu0
  %v1149 = vadd.f32 %v924, %v1148
  %1150 = vmatmul.f32.gmra.mxu0 %v939
  %v1151 = vpop.f32.mrf.mxu0
  %v1152 = vadd.f32 %v924, %v1151
  %1153 = vmatmul.f32.gmra.mxu0 %v942
  %v1154 = vpop.f32.mrf.mxu0
  %v1155 = vadd.f32 %v924, %v1154
  %1156 = vmatmul.f32.gmra.mxu0 %v945
  %v1157 = vpop.f32.mrf.mxu0
  %v1158 = vadd.f32 %v924, %v1157
  %1159 = vmatmul.f32.gmra.mxu0 %v948
  %v1160 = vpop.f32.mrf.mxu0
  %v1161 = vadd.f32 %v924, %v1160
  %1162 = vmatmul.f32.gmra.mxu0 %v951
  %v1163 = vpop.f32.mrf.mxu0
  %v1164 = vadd.f32 %v924, %v1163
  %1165 = vmatmul.f32.gmra.mxu0 %v954
  %v1166 = vpop.f32.mrf.mxu0
  %v1167 = vadd.f32 %v924, %v1166
  %1168 = vmatmul.f32.gmra.mxu0 %v957
  %v1169 = vpop.f32.mrf.mxu0
  %v1170 = vadd.f32 %v924, %v1169
  %1171 = vmatmul.f32.gmra.mxu0 %v960
  %v1172 = vpop.f32.mrf.mxu0
  %v1173 = vadd.f32 %v924, %v1172
  %1174 = vmatmul.f32.gmra.mxu0 %v963
  %v1175 = vpop.f32.mrf.mxu0
  %v1176 = vadd.f32 %v924, %v1175
  %1177 = vmatmul.f32.gmra.mxu0 %v966
  %v1178 = vpop.f32.mrf.mxu0
  %v1179 = vadd.f32 %v924, %v1178
  %1180 = vmatmul.f32.gmra.mxu0 %v969
  %v1181 = vpop.f32.mrf.mxu0
  %v1182 = vadd.f32 %v924, %v1181
  %1183 = vmatmul.f32.gmra.mxu0 %v972
  %v1184 = vpop.f32.mrf.mxu0
  %v1185 = vadd.f32 %v924, %v1184
  %1186 = vmatmul.f32.gmra.mxu0 %v975
  %v1187 = vpop.f32.mrf.mxu0
  %v1188 = vadd.f32 %v924, %v1187
  %1189 = vmatmul.f32.gmra.mxu0 %v978
  %v1190 = vpop.f32.mrf.mxu0
  %v1191 = vadd.f32 %v924, %v1190
  %1192 = vmatmul.f32.gmra.mxu0 %v981
  %v1193 = vpop.f32.mrf.mxu0
  %v1194 = vadd.f32 %v924, %v1193
  %1195 = vmatmul.f32.gmra.mxu0 %v984
  %v1196 = vpop.f32.mrf.mxu0
  %v1197 = vadd.f32 %v924, %v1196
  %1198 = vmatmul.f32.gmra.mxu0 %v987
  %v1199 = vpop.f32.mrf.mxu0
  %v1200 = vadd.f32 %v924, %v1199
  %1201 = vmatmul.f32.gmra.mxu0 %v990
  %v1202 = vpop.f32.mrf.mxu0
  %v1203 = vadd.f32 %v924, %v1202
  %1204 = vmatmul.f32.gmra.mxu0 %v993
  %v1205 = vpop.f32.mrf.mxu0
  %v1206 = vadd.f32 %v924, %v1205
  %1207 = vmatmul.f32.gmra.mxu0 %v996
  %v1208 = vpop.f32.mrf.mxu0
  %v1209 = vadd.f32 %v924, %v1208
  %1210 = vmatmul.f32.gmra.mxu0 %v999
  %v1211 = vpop.f32.mrf.mxu0
  %v1212 = vadd.f32 %v924, %v1211
  %1213 = vmatmul.f32.gmra.mxu0 %v1002
  %v1214 = vpop.f32.mrf.mxu0
  %v1215 = vadd.f32 %v924, %v1214
  %1216 = vmatmul.f32.gmra.mxu0 %v1005
  %v1217 = vpop.f32.mrf.mxu0
  %v1218 = vadd.f32 %v924, %v1217
  %1219 = vmatmul.f32.gmra.mxu0 %v1008
  %v1220 = vpop.f32.mrf.mxu0
  %v1221 = vadd.f32 %v924, %v1220
  %1222 = vmatmul.f32.gmra.mxu0 %v1011
  %v1223 = vpop.f32.mrf.mxu0
  %v1224 = vadd.f32 %v924, %v1223
  %1225 = vmatmul.f32.gmra.mxu0 %v1014
  %v1226 = vpop.f32.mrf.mxu0
  %v1227 = vadd.f32 %v924, %v1226
  %1228 = vmatmul.f32.gmra.mxu0 %v1017
  %v1229 = vpop.f32.mrf.mxu0
  %v1230 = vadd.f32 %v924, %v1229
  %1231 = vmatmul.f32.gmra.mxu0 %v1020
  %v1232 = vpop.f32.mrf.mxu0
  %v1233 = vadd.f32 %v924, %v1232
  %1234 = vmatmul.f32.gmra.mxu0 %v1023
  %v1235 = vpop.f32.mrf.mxu0
  %v1236 = vadd.f32 %v924, %v1235
  %1237 = vmatmul.f32.gmra.mxu0 %v1026
  %v1238 = vpop.f32.mrf.mxu0
  %v1239 = vadd.f32 %v924, %v1238
  %1240 = vmatmul.f32.gmra.mxu0 %v1029
  %v1241 = vpop.f32.mrf.mxu0
  %v1242 = vadd.f32 %v924, %v1241
  %1243 = vmatmul.f32.gmra.mxu0 %v1032
  %v1244 = vpop.f32.mrf.mxu0
  %v1245 = vadd.f32 %v924, %v1244
  %1246 = vmatmul.f32.gmra.mxu0 %v1035
  %v1247 = vpop.f32.mrf.mxu0
  %v1248 = vadd.f32 %v924, %v1247
  %1249 = vmatmul.f32.gmra.mxu0 %v1038
  %v1250 = vpop.f32.mrf.mxu0
  %v1251 = vadd.f32 %v924, %v1250
  %1252 = vmatmul.f32.gmra.mxu0 %v1041
  %v1253 = vpop.f32.mrf.mxu0
  %v1254 = vadd.f32 %v924, %v1253
  %1255 = vmatmul.f32.gmra.mxu0 %v1044
  %v1256 = vpop.f32.mrf.mxu0
  %v1257 = vadd.f32 %v924, %v1256
  %1258 = vmatmul.f32.gmra.mxu0 %v1047
  %v1259 = vpop.f32.mrf.mxu0
  %v1260 = vadd.f32 %v924, %v1259
  %1261 = vmatmul.f32.gmra.mxu0 %v1050
  %v1262 = vpop.f32.mrf.mxu0
  %v1263 = vadd.f32 %v924, %v1262
  %1264 = vmatmul.f32.gmra.mxu0 %v1053
  %v1265 = vpop.f32.mrf.mxu0
  %v1266 = vadd.f32 %v924, %v1265
  %1267 = vmatmul.f32.gmra.mxu0 %v1056
  %v1268 = vpop.f32.mrf.mxu0
  %v1269 = vadd.f32 %v924, %v1268
  %1270 = vmatmul.f32.gmra.mxu0 %v1059
  %v1271 = vpop.f32.mrf.mxu0
  %v1272 = vadd.f32 %v924, %v1271
  %1273 = vmatmul.f32.gmra.mxu0 %v1062
  %v1274 = vpop.f32.mrf.mxu0
  %v1275 = vadd.f32 %v924, %v1274
  %1276 = vmatmul.f32.gmra.mxu0 %v1065
  %v1277 = vpop.f32.mrf.mxu0
  %v1278 = vadd.f32 %v924, %v1277
  %1279 = vmatmul.f32.gmra.mxu0 %v1068
  %v1280 = vpop.f32.mrf.mxu0
  %v1281 = vadd.f32 %v924, %v1280
  %1282 = vmatmul.f32.gmra.mxu0 %v1071
  %v1283 = vpop.f32.mrf.mxu0
  %v1284 = vadd.f32 %v924, %v1283
  %1285 = vmatmul.f32.gmra.mxu0 %v1074
  %v1286 = vpop.f32.mrf.mxu0
  %v1287 = vadd.f32 %v924, %v1286
  %1288 = vmatmul.f32.gmra.mxu0 %v1077
  %v1289 = vpop.f32.mrf.mxu0
  %v1290 = vadd.f32 %v924, %v1289
  %1291 = vmatmul.f32.gmra.mxu0 %v1080
  %v1292 = vpop.f32.mrf.mxu0
  %v1293 = vadd.f32 %v924, %v1292
  %1294 = vmatmul.f32.gmra.mxu0 %v1083
  %v1295 = vpop.f32.mrf.mxu0
  %v1296 = vadd.f32 %v924, %v1295
  %1297 = vmatmul.f32.gmra.mxu0 %v1086
  %v1298 = vpop.f32.mrf.mxu0
  %v1299 = vadd.f32 %v924, %v1298
  %1300 = vmatmul.f32.gmra.mxu0 %v1089
  %v1301 = vpop.f32.mrf.mxu0
  %v1302 = vadd.f32 %v924, %v1301
  %1303 = vmatmul.f32.gmra.mxu0 %v1092
  %v1304 = vpop.f32.mrf.mxu0
  %v1305 = vadd.f32 %v924, %v1304
  %1306 = vmatmul.f32.gmra.mxu0 %v1095
  %v1307 = vpop.f32.mrf.mxu0
  %v1308 = vadd.f32 %v924, %v1307
  %1309 = vmatmul.f32.gmra.mxu0 %v1098
  %v1310 = vpop.f32.mrf.mxu0
  %v1311 = vadd.f32 %v924, %v1310
  %1312 = vmatmul.f32.gmra.mxu0 %v1101
  %v1313 = vpop.f32.mrf.mxu0
  %v1314 = vadd.f32 %v924, %v1313
  %1315 = vmatmul.f32.gmra.mxu0 %v1104
  %v1316 = vpop.f32.mrf.mxu0
  %v1317 = vadd.f32 %v924, %v1316
  %1318 = vmatmul.f32.gmra.mxu0 %v1107
  %v1319 = vpop.f32.mrf.mxu0
  %v1320 = vadd.f32 %v924, %v1319
  %1321 = vmatmul.f32.gmra.mxu0 %v1110
  %v1322 = vpop.f32.mrf.mxu0
  %v1323 = vadd.f32 %v924, %v1322
  %1324 = vmatmul.f32.gmra.mxu0 %v1113
  %v1325 = vpop.f32.mrf.mxu0
  %v1326 = vadd.f32 %v924, %v1325
  %1327 = vmatmul.f32.gmra.mxu0 %v1116
  %v1328 = vpop.f32.mrf.mxu0
  %v1329 = vadd.f32 %v924, %v1328
  %1330 = vdwg.mxu0
  %v1331 = vld [vmem:[%s5] sm:$0x1]
  %v1332 = vld [vmem:[%s6] sm:$0x1]
  %v1333 = vsel %vm116, %v1140, 0.0
  %v1334 = vsel %vm116, %v1143, 0.0
  %v1335 = vadd.f32 %v1333, %v1334
  %v1336 = vsel %vm116, %v1146, 0.0
  %v1337 = vadd.f32 %v1335, %v1336
  %v1338 = vsel %vm116, %v1149, 0.0
  %v1339 = vadd.f32 %v1337, %v1338
  %v1340 = vsel %vm116, %v1152, 0.0
  %v1341 = vadd.f32 %v1339, %v1340
  %v1342 = vsel %vm116, %v1155, 0.0
  %v1343 = vadd.f32 %v1341, %v1342
  %v1344 = vsel %vm116, %v1158, 0.0
  %v1345 = vadd.f32 %v1343, %v1344
  %v1346 = vsel %vm116, %v1161, 0.0
  %v1347 = vadd.f32 %v1345, %v1346
  %v1348 = vsel %vm116, %v1164, 0.0
  %v1349 = vadd.f32 %v1347, %v1348
  %v1350 = vsel %vm116, %v1167, 0.0
  %v1351 = vadd.f32 %v1349, %v1350
  %v1352 = vsel %vm116, %v1170, 0.0
  %v1353 = vadd.f32 %v1351, %v1352
  %v1354 = vsel %vm116, %v1173, 0.0
  %v1355 = vadd.f32 %v1353, %v1354
  %v1356 = vsel %vm116, %v1176, 0.0
  %v1357 = vadd.f32 %v1355, %v1356
  %v1358 = vsel %vm116, %v1179, 0.0
  %v1359 = vadd.f32 %v1357, %v1358
  %v1360 = vsel %vm116, %v1182, 0.0
  %v1361 = vadd.f32 %v1359, %v1360
  %v1362 = vsel %vm116, %v1185, 0.0
  %v1363 = vadd.f32 %v1361, %v1362
  %v1364 = vsel %vm116, %v1188, 0.0
  %v1365 = vadd.f32 %v1363, %v1364
  %v1366 = vsel %vm116, %v1191, 0.0
  %v1367 = vadd.f32 %v1365, %v1366
  %v1368 = vsel %vm116, %v1194, 0.0
  %v1369 = vadd.f32 %v1367, %v1368
  %v1370 = vsel %vm116, %v1197, 0.0
  %v1371 = vadd.f32 %v1369, %v1370
  %v1372 = vsel %vm116, %v1200, 0.0
  %v1373 = vadd.f32 %v1371, %v1372
  %v1374 = vsel %vm116, %v1203, 0.0
  %v1375 = vadd.f32 %v1373, %v1374
  %v1376 = vsel %vm116, %v1206, 0.0
  %v1377 = vadd.f32 %v1375, %v1376
  %v1378 = vsel %vm116, %v1209, 0.0
  %v1379 = vadd.f32 %v1377, %v1378
  %v1380 = vsel %vm116, %v1212, 0.0
  %v1381 = vadd.f32 %v1379, %v1380
  %v1382 = vsel %vm116, %v1215, 0.0
  %v1383 = vadd.f32 %v1381, %v1382
  %v1384 = vsel %vm116, %v1218, 0.0
  %v1385 = vadd.f32 %v1383, %v1384
  %v1386 = vsel %vm116, %v1221, 0.0
  %v1387 = vadd.f32 %v1385, %v1386
  %v1388 = vsel %vm116, %v1224, 0.0
  %v1389 = vadd.f32 %v1387, %v1388
  %v1390 = vsel %vm116, %v1227, 0.0
  %v1391 = vadd.f32 %v1389, %v1390
  %v1392 = vsel %vm116, %v1230, 0.0
  %v1393 = vadd.f32 %v1391, %v1392
  %v1394 = vsel %vm116, %v1233, 0.0
  %v1395 = vadd.f32 %v1393, %v1394
  %v1396 = vsel %vm116, %v1236, 0.0
  %v1397 = vadd.f32 %v1395, %v1396
  %v1398 = vsel %vm116, %v1239, 0.0
  %v1399 = vadd.f32 %v1397, %v1398
  %v1400 = vsel %vm116, %v1242, 0.0
  %v1401 = vadd.f32 %v1399, %v1400
  %v1402 = vsel %vm116, %v1245, 0.0
  %v1403 = vadd.f32 %v1401, %v1402
  %v1404 = vsel %vm116, %v1248, 0.0
  %v1405 = vadd.f32 %v1403, %v1404
  %v1406 = vsel %vm116, %v1251, 0.0
  %v1407 = vadd.f32 %v1405, %v1406
  %v1408 = vsel %vm116, %v1254, 0.0
  %v1409 = vadd.f32 %v1407, %v1408
  %v1410 = vsel %vm116, %v1257, 0.0
  %v1411 = vadd.f32 %v1409, %v1410
  %v1412 = vsel %vm116, %v1260, 0.0
  %v1413 = vadd.f32 %v1411, %v1412
  %v1414 = vsel %vm116, %v1263, 0.0
  %v1415 = vadd.f32 %v1413, %v1414
  %v1416 = vsel %vm116, %v1266, 0.0
  %v1417 = vadd.f32 %v1415, %v1416
  %v1418 = vsel %vm116, %v1269, 0.0
  %v1419 = vadd.f32 %v1417, %v1418
  %v1420 = vsel %vm116, %v1272, 0.0
  %v1421 = vadd.f32 %v1419, %v1420
  %v1422 = vsel %vm116, %v1275, 0.0
  %v1423 = vadd.f32 %v1421, %v1422
  %v1424 = vsel %vm116, %v1278, 0.0
  %v1425 = vadd.f32 %v1423, %v1424
  %v1426 = vsel %vm116, %v1281, 0.0
  %v1427 = vadd.f32 %v1425, %v1426
  %v1428 = vsel %vm116, %v1284, 0.0
  %v1429 = vadd.f32 %v1427, %v1428
  %v1430 = vsel %vm116, %v1287, 0.0
  %v1431 = vadd.f32 %v1429, %v1430
  %v1432 = vsel %vm116, %v1290, 0.0
  %v1433 = vadd.f32 %v1431, %v1432
  %v1434 = vsel %vm116, %v1293, 0.0
  %v1435 = vadd.f32 %v1433, %v1434
  %v1436 = vsel %vm116, %v1296, 0.0
  %v1437 = vadd.f32 %v1435, %v1436
  %v1438 = vsel %vm116, %v1299, 0.0
  %v1439 = vadd.f32 %v1437, %v1438
  %v1440 = vsel %vm116, %v1302, 0.0
  %v1441 = vadd.f32 %v1439, %v1440
  %v1442 = vsel %vm116, %v1305, 0.0
  %v1443 = vadd.f32 %v1441, %v1442
  %v1444 = vsel %vm116, %v1308, 0.0
  %v1445 = vadd.f32 %v1443, %v1444
  %v1446 = vsel %vm116, %v1311, 0.0
  %v1447 = vadd.f32 %v1445, %v1446
  %v1448 = vsel %vm116, %v1314, 0.0
  %v1449 = vadd.f32 %v1447, %v1448
  %v1450 = vsel %vm116, %v1317, 0.0
  %v1451 = vadd.f32 %v1449, %v1450
  %v1452 = vsel %vm116, %v1320, 0.0
  %v1453 = vadd.f32 %v1451, %v1452
  %v1454 = vsel %vm116, %v1323, 0.0
  %v1455 = vadd.f32 %v1453, %v1454
  %v1456 = vsel %vm116, %v1326, 0.0
  %v1457 = vadd.f32 %v1455, %v1456
  %v1458 = vsel %vm116, %v1329, 0.0
  %v1459 = vadd.f32 %v1457, %v1458
  %v1460 = vrot.slane %v1459, 4
  %v1461 = vadd.f32 %v1459, %v1460
  %v1462 = vrot.slane %v1461, 2
  %v1463 = vadd.f32 %v1461, %v1462
  %v1464 = vrot.slane %v1463, 1
  %v1465 = vadd.f32 %v1463, %v1464
  %v1466 = vmul.f32 %v1465, %v256
  %v1467 = vsub.f32 %v1140, %v1466
  %v1468 = vsub.f32 %v1143, %v1466
  %v1469 = vsub.f32 %v1146, %v1466
  %v1470 = vsub.f32 %v1149, %v1466
  %v1471 = vsub.f32 %v1152, %v1466
  %v1472 = vsub.f32 %v1155, %v1466
  %v1473 = vsub.f32 %v1158, %v1466
  %v1474 = vsub.f32 %v1161, %v1466
  %v1475 = vsub.f32 %v1164, %v1466
  %v1476 = vsub.f32 %v1167, %v1466
  %v1477 = vsub.f32 %v1170, %v1466
  %v1478 = vsub.f32 %v1173, %v1466
  %v1479 = vsub.f32 %v1176, %v1466
  %v1480 = vsub.f32 %v1179, %v1466
  %v1481 = vsub.f32 %v1182, %v1466
  %v1482 = vsub.f32 %v1185, %v1466
  %v1483 = vsub.f32 %v1188, %v1466
  %v1484 = vsub.f32 %v1191, %v1466
  %v1485 = vsub.f32 %v1194, %v1466
  %v1486 = vsub.f32 %v1197, %v1466
  %v1487 = vsub.f32 %v1200, %v1466
  %v1488 = vsub.f32 %v1203, %v1466
  %v1489 = vsub.f32 %v1206, %v1466
  %v1490 = vsub.f32 %v1209, %v1466
  %v1491 = vsub.f32 %v1212, %v1466
  %v1492 = vsub.f32 %v1215, %v1466
  %v1493 = vsub.f32 %v1218, %v1466
  %v1494 = vsub.f32 %v1221, %v1466
  %v1495 = vsub.f32 %v1224, %v1466
  %v1496 = vsub.f32 %v1227, %v1466
  %v1497 = vsub.f32 %v1230, %v1466
  %v1498 = vsub.f32 %v1233, %v1466
  %v1499 = vsub.f32 %v1236, %v1466
  %v1500 = vsub.f32 %v1239, %v1466
  %v1501 = vsub.f32 %v1242, %v1466
  %v1502 = vsub.f32 %v1245, %v1466
  %v1503 = vsub.f32 %v1248, %v1466
  %v1504 = vsub.f32 %v1251, %v1466
  %v1505 = vsub.f32 %v1254, %v1466
  %v1506 = vsub.f32 %v1257, %v1466
  %v1507 = vsub.f32 %v1260, %v1466
  %v1508 = vsub.f32 %v1263, %v1466
  %v1509 = vsub.f32 %v1266, %v1466
  %v1510 = vsub.f32 %v1269, %v1466
  %v1511 = vsub.f32 %v1272, %v1466
  %v1512 = vsub.f32 %v1275, %v1466
  %v1513 = vsub.f32 %v1278, %v1466
  %v1514 = vsub.f32 %v1281, %v1466
  %v1515 = vsub.f32 %v1284, %v1466
  %v1516 = vsub.f32 %v1287, %v1466
  %v1517 = vsub.f32 %v1290, %v1466
  %v1518 = vsub.f32 %v1293, %v1466
  %v1519 = vsub.f32 %v1296, %v1466
  %v1520 = vsub.f32 %v1299, %v1466
  %v1521 = vsub.f32 %v1302, %v1466
  %v1522 = vsub.f32 %v1305, %v1466
  %v1523 = vsub.f32 %v1308, %v1466
  %v1524 = vsub.f32 %v1311, %v1466
  %v1525 = vsub.f32 %v1314, %v1466
  %v1526 = vsub.f32 %v1317, %v1466
  %v1527 = vsub.f32 %v1320, %v1466
  %v1528 = vsub.f32 %v1323, %v1466
  %v1529 = vsub.f32 %v1326, %v1466
  %v1530 = vsub.f32 %v1329, %v1466
  %v1531 = vmul.f32 %v1467, %v1467
  %v1532 = vmul.f32 %v1468, %v1468
  %v1533 = vmul.f32 %v1469, %v1469
  %v1534 = vmul.f32 %v1470, %v1470
  %v1535 = vmul.f32 %v1471, %v1471
  %v1536 = vmul.f32 %v1472, %v1472
  %v1537 = vmul.f32 %v1473, %v1473
  %v1538 = vmul.f32 %v1474, %v1474
  %v1539 = vmul.f32 %v1475, %v1475
  %v1540 = vmul.f32 %v1476, %v1476
  %v1541 = vmul.f32 %v1477, %v1477
  %v1542 = vmul.f32 %v1478, %v1478
  %v1543 = vmul.f32 %v1479, %v1479
  %v1544 = vmul.f32 %v1480, %v1480
  %v1545 = vmul.f32 %v1481, %v1481
  %v1546 = vmul.f32 %v1482, %v1482
  %v1547 = vmul.f32 %v1483, %v1483
  %v1548 = vmul.f32 %v1484, %v1484
  %v1549 = vmul.f32 %v1485, %v1485
  %v1550 = vmul.f32 %v1486, %v1486
  %v1551 = vmul.f32 %v1487, %v1487
  %v1552 = vmul.f32 %v1488, %v1488
  %v1553 = vmul.f32 %v1489, %v1489
  %v1554 = vmul.f32 %v1490, %v1490
  %v1555 = vmul.f32 %v1491, %v1491
  %v1556 = vmul.f32 %v1492, %v1492
  %v1557 = vmul.f32 %v1493, %v1493
  %v1558 = vmul.f32 %v1494, %v1494
  %v1559 = vmul.f32 %v1495, %v1495
  %v1560 = vmul.f32 %v1496, %v1496
  %v1561 = vmul.f32 %v1497, %v1497
  %v1562 = vmul.f32 %v1498, %v1498
  %v1563 = vmul.f32 %v1499, %v1499
  %v1564 = vmul.f32 %v1500, %v1500
  %v1565 = vmul.f32 %v1501, %v1501
  %v1566 = vmul.f32 %v1502, %v1502
  %v1567 = vmul.f32 %v1503, %v1503
  %v1568 = vmul.f32 %v1504, %v1504
  %v1569 = vmul.f32 %v1505, %v1505
  %v1570 = vmul.f32 %v1506, %v1506
  %v1571 = vmul.f32 %v1507, %v1507
  %v1572 = vmul.f32 %v1508, %v1508
  %v1573 = vmul.f32 %v1509, %v1509
  %v1574 = vmul.f32 %v1510, %v1510
  %v1575 = vmul.f32 %v1511, %v1511
  %v1576 = vmul.f32 %v1512, %v1512
  %v1577 = vmul.f32 %v1513, %v1513
  %v1578 = vmul.f32 %v1514, %v1514
  %v1579 = vmul.f32 %v1515, %v1515
  %v1580 = vmul.f32 %v1516, %v1516
  %v1581 = vmul.f32 %v1517, %v1517
  %v1582 = vmul.f32 %v1518, %v1518
  %v1583 = vmul.f32 %v1519, %v1519
  %v1584 = vmul.f32 %v1520, %v1520
  %v1585 = vmul.f32 %v1521, %v1521
  %v1586 = vmul.f32 %v1522, %v1522
  %v1587 = vmul.f32 %v1523, %v1523
  %v1588 = vmul.f32 %v1524, %v1524
  %v1589 = vmul.f32 %v1525, %v1525
  %v1590 = vmul.f32 %v1526, %v1526
  %v1591 = vmul.f32 %v1527, %v1527
  %v1592 = vmul.f32 %v1528, %v1528
  %v1593 = vmul.f32 %v1529, %v1529
  %v1594 = vmul.f32 %v1530, %v1530
  %v1595 = vsel %vm116, %v1531, 0.0
  %v1596 = vsel %vm116, %v1532, 0.0
  %v1597 = vadd.f32 %v1595, %v1596
  %v1598 = vsel %vm116, %v1533, 0.0
  %v1599 = vadd.f32 %v1597, %v1598
  %v1600 = vsel %vm116, %v1534, 0.0
  %v1601 = vadd.f32 %v1599, %v1600
  %v1602 = vsel %vm116, %v1535, 0.0
  %v1603 = vadd.f32 %v1601, %v1602
  %v1604 = vsel %vm116, %v1536, 0.0
  %v1605 = vadd.f32 %v1603, %v1604
  %v1606 = vsel %vm116, %v1537, 0.0
  %v1607 = vadd.f32 %v1605, %v1606
  %v1608 = vsel %vm116, %v1538, 0.0
  %v1609 = vadd.f32 %v1607, %v1608
  %v1610 = vsel %vm116, %v1539, 0.0
  %v1611 = vadd.f32 %v1609, %v1610
  %v1612 = vsel %vm116, %v1540, 0.0
  %v1613 = vadd.f32 %v1611, %v1612
  %v1614 = vsel %vm116, %v1541, 0.0
  %v1615 = vadd.f32 %v1613, %v1614
  %v1616 = vsel %vm116, %v1542, 0.0
  %v1617 = vadd.f32 %v1615, %v1616
  %v1618 = vsel %vm116, %v1543, 0.0
  %v1619 = vadd.f32 %v1617, %v1618
  %v1620 = vsel %vm116, %v1544, 0.0
  %v1621 = vadd.f32 %v1619, %v1620
  %v1622 = vsel %vm116, %v1545, 0.0
  %v1623 = vadd.f32 %v1621, %v1622
  %v1624 = vsel %vm116, %v1546, 0.0
  %v1625 = vadd.f32 %v1623, %v1624
  %v1626 = vsel %vm116, %v1547, 0.0
  %v1627 = vadd.f32 %v1625, %v1626
  %v1628 = vsel %vm116, %v1548, 0.0
  %v1629 = vadd.f32 %v1627, %v1628
  %v1630 = vsel %vm116, %v1549, 0.0
  %v1631 = vadd.f32 %v1629, %v1630
  %v1632 = vsel %vm116, %v1550, 0.0
  %v1633 = vadd.f32 %v1631, %v1632
  %v1634 = vsel %vm116, %v1551, 0.0
  %v1635 = vadd.f32 %v1633, %v1634
  %v1636 = vsel %vm116, %v1552, 0.0
  %v1637 = vadd.f32 %v1635, %v1636
  %v1638 = vsel %vm116, %v1553, 0.0
  %v1639 = vadd.f32 %v1637, %v1638
  %v1640 = vsel %vm116, %v1554, 0.0
  %v1641 = vadd.f32 %v1639, %v1640
  %v1642 = vsel %vm116, %v1555, 0.0
  %v1643 = vadd.f32 %v1641, %v1642
  %v1644 = vsel %vm116, %v1556, 0.0
  %v1645 = vadd.f32 %v1643, %v1644
  %v1646 = vsel %vm116, %v1557, 0.0
  %v1647 = vadd.f32 %v1645, %v1646
  %v1648 = vsel %vm116, %v1558, 0.0
  %v1649 = vadd.f32 %v1647, %v1648
  %v1650 = vsel %vm116, %v1559, 0.0
  %v1651 = vadd.f32 %v1649, %v1650
  %v1652 = vsel %vm116, %v1560, 0.0
  %v1653 = vadd.f32 %v1651, %v1652
  %v1654 = vsel %vm116, %v1561, 0.0
  %v1655 = vadd.f32 %v1653, %v1654
  %v1656 = vsel %vm116, %v1562, 0.0
  %v1657 = vadd.f32 %v1655, %v1656
  %v1658 = vsel %vm116, %v1563, 0.0
  %v1659 = vadd.f32 %v1657, %v1658
  %v1660 = vsel %vm116, %v1564, 0.0
  %v1661 = vadd.f32 %v1659, %v1660
  %v1662 = vsel %vm116, %v1565, 0.0
  %v1663 = vadd.f32 %v1661, %v1662
  %v1664 = vsel %vm116, %v1566, 0.0
  %v1665 = vadd.f32 %v1663, %v1664
  %v1666 = vsel %vm116, %v1567, 0.0
  %v1667 = vadd.f32 %v1665, %v1666
  %v1668 = vsel %vm116, %v1568, 0.0
  %v1669 = vadd.f32 %v1667, %v1668
  %v1670 = vsel %vm116, %v1569, 0.0
  %v1671 = vadd.f32 %v1669, %v1670
  %v1672 = vsel %vm116, %v1570, 0.0
  %v1673 = vadd.f32 %v1671, %v1672
  %v1674 = vsel %vm116, %v1571, 0.0
  %v1675 = vadd.f32 %v1673, %v1674
  %v1676 = vsel %vm116, %v1572, 0.0
  %v1677 = vadd.f32 %v1675, %v1676
  %v1678 = vsel %vm116, %v1573, 0.0
  %v1679 = vadd.f32 %v1677, %v1678
  %v1680 = vsel %vm116, %v1574, 0.0
  %v1681 = vadd.f32 %v1679, %v1680
  %v1682 = vsel %vm116, %v1575, 0.0
  %v1683 = vadd.f32 %v1681, %v1682
  %v1684 = vsel %vm116, %v1576, 0.0
  %v1685 = vadd.f32 %v1683, %v1684
  %v1686 = vsel %vm116, %v1577, 0.0
  %v1687 = vadd.f32 %v1685, %v1686
  %v1688 = vsel %vm116, %v1578, 0.0
  %v1689 = vadd.f32 %v1687, %v1688
  %v1690 = vsel %vm116, %v1579, 0.0
  %v1691 = vadd.f32 %v1689, %v1690
  %v1692 = vsel %vm116, %v1580, 0.0
  %v1693 = vadd.f32 %v1691, %v1692
  %v1694 = vsel %vm116, %v1581, 0.0
  %v1695 = vadd.f32 %v1693, %v1694
  %v1696 = vsel %vm116, %v1582, 0.0
  %v1697 = vadd.f32 %v1695, %v1696
  %v1698 = vsel %vm116, %v1583, 0.0
  %v1699 = vadd.f32 %v1697, %v1698
  %v1700 = vsel %vm116, %v1584, 0.0
  %v1701 = vadd.f32 %v1699, %v1700
  %v1702 = vsel %vm116, %v1585, 0.0
  %v1703 = vadd.f32 %v1701, %v1702
  %v1704 = vsel %vm116, %v1586, 0.0
  %v1705 = vadd.f32 %v1703, %v1704
  %v1706 = vsel %vm116, %v1587, 0.0
  %v1707 = vadd.f32 %v1705, %v1706
  %v1708 = vsel %vm116, %v1588, 0.0
  %v1709 = vadd.f32 %v1707, %v1708
  %v1710 = vsel %vm116, %v1589, 0.0
  %v1711 = vadd.f32 %v1709, %v1710
  %v1712 = vsel %vm116, %v1590, 0.0
  %v1713 = vadd.f32 %v1711, %v1712
  %v1714 = vsel %vm116, %v1591, 0.0
  %v1715 = vadd.f32 %v1713, %v1714
  %v1716 = vsel %vm116, %v1592, 0.0
  %v1717 = vadd.f32 %v1715, %v1716
  %v1718 = vsel %vm116, %v1593, 0.0
  %v1719 = vadd.f32 %v1717, %v1718
  %v1720 = vsel %vm116, %v1594, 0.0
  %v1721 = vadd.f32 %v1719, %v1720
  %v1722 = vrot.slane %v1721, 4
  %v1723 = vadd.f32 %v1721, %v1722
  %v1724 = vrot.slane %v1723, 2
  %v1725 = vadd.f32 %v1723, %v1724
  %v1726 = vrot.slane %v1725, 1
  %v1727 = vadd.f32 %v1725, %v1726
  %v1728 = vmul.f32 %v1727, %v256
  %v1729 = vadd.f32 %v1728, 1e-05
  %v1730 = vrsqrt.pop %v1729
  %v1731 = vmul.f32 %v1730, %v1729
  %v1732 = vmul.f32 %v1731, %v1730
  %v1733 = vmul.f32 0.5, %v1732
  %v1734 = vsub.f32 1.5, %v1733
  %v1735 = vmul.f32 %v1730, %v1734
  %vm1736 = vweird.f32 %v1729
  %vm1737 = vweird.f32 %v1730
  %vm1738 = vmor %vm1736, %vm1737
  %v1739 = vsel %vm1738, %v1730, %v1735
  %v1740 = vmul.f32 %v1467, %v1739
  %v1741 = vmul.f32 %v1468, %v1739
  %v1742 = vmul.f32 %v1469, %v1739
  %v1743 = vmul.f32 %v1470, %v1739
  %v1744 = vmul.f32 %v1471, %v1739
  %v1745 = vmul.f32 %v1472, %v1739
  %v1746 = vmul.f32 %v1473, %v1739
  %v1747 = vmul.f32 %v1474, %v1739
  %v1748 = vmul.f32 %v1475, %v1739
  %v1749 = vmul.f32 %v1476, %v1739
  %v1750 = vmul.f32 %v1477, %v1739
  %v1751 = vmul.f32 %v1478, %v1739
  %v1752 = vmul.f32 %v1479, %v1739
  %v1753 = vmul.f32 %v1480, %v1739
  %v1754 = vmul.f32 %v1481, %v1739
  %v1755 = vmul.f32 %v1482, %v1739
  %v1756 = vmul.f32 %v1483, %v1739
  %v1757 = vmul.f32 %v1484, %v1739
  %v1758 = vmul.f32 %v1485, %v1739
  %v1759 = vmul.f32 %v1486, %v1739
  %v1760 = vmul.f32 %v1487, %v1739
  %v1761 = vmul.f32 %v1488, %v1739
  %v1762 = vmul.f32 %v1489, %v1739
  %v1763 = vmul.f32 %v1490, %v1739
  %v1764 = vmul.f32 %v1491, %v1739
  %v1765 = vmul.f32 %v1492, %v1739
  %v1766 = vmul.f32 %v1493, %v1739
  %v1767 = vmul.f32 %v1494, %v1739
  %v1768 = vmul.f32 %v1495, %v1739
  %v1769 = vmul.f32 %v1496, %v1739
  %v1770 = vmul.f32 %v1497, %v1739
  %v1771 = vmul.f32 %v1498, %v1739
  %v1772 = vmul.f32 %v1499, %v1739
  %v1773 = vmul.f32 %v1500, %v1739
  %v1774 = vmul.f32 %v1501, %v1739
  %v1775 = vmul.f32 %v1502, %v1739
  %v1776 = vmul.f32 %v1503, %v1739
  %v1777 = vmul.f32 %v1504, %v1739
  %v1778 = vmul.f32 %v1505, %v1739
  %v1779 = vmul.f32 %v1506, %v1739
  %v1780 = vmul.f32 %v1507, %v1739
  %v1781 = vmul.f32 %v1508, %v1739
  %v1782 = vmul.f32 %v1509, %v1739
  %v1783 = vmul.f32 %v1510, %v1739
  %v1784 = vmul.f32 %v1511, %v1739
  %v1785 = vmul.f32 %v1512, %v1739
  %v1786 = vmul.f32 %v1513, %v1739
  %v1787 = vmul.f32 %v1514, %v1739
  %v1788 = vmul.f32 %v1515, %v1739
  %v1789 = vmul.f32 %v1516, %v1739
  %v1790 = vmul.f32 %v1517, %v1739
  %v1791 = vmul.f32 %v1518, %v1739
  %v1792 = vmul.f32 %v1519, %v1739
  %v1793 = vmul.f32 %v1520, %v1739
  %v1794 = vmul.f32 %v1521, %v1739
  %v1795 = vmul.f32 %v1522, %v1739
  %v1796 = vmul.f32 %v1523, %v1739
  %v1797 = vmul.f32 %v1524, %v1739
  %v1798 = vmul.f32 %v1525, %v1739
  %v1799 = vmul.f32 %v1526, %v1739
  %v1800 = vmul.f32 %v1527, %v1739
  %v1801 = vmul.f32 %v1528, %v1739
  %v1802 = vmul.f32 %v1529, %v1739
  %v1803 = vmul.f32 %v1530, %v1739
  %v1805 = vperm.slane %v1331, 0
  %v1807 = vmul.f32 %v1740, %v1805
  %v1808 = vmul.f32 %v1741, %v1805
  %v1809 = vmul.f32 %v1742, %v1805
  %v1810 = vmul.f32 %v1743, %v1805
  %v1811 = vmul.f32 %v1744, %v1805
  %v1812 = vmul.f32 %v1745, %v1805
  %v1813 = vmul.f32 %v1746, %v1805
  %v1814 = vmul.f32 %v1747, %v1805
  %v1815 = vmul.f32 %v1748, %v1805
  %v1816 = vmul.f32 %v1749, %v1805
  %v1817 = vmul.f32 %v1750, %v1805
  %v1818 = vmul.f32 %v1751, %v1805
  %v1819 = vmul.f32 %v1752, %v1805
  %v1820 = vmul.f32 %v1753, %v1805
  %v1821 = vmul.f32 %v1754, %v1805
  %v1822 = vmul.f32 %v1755, %v1805
  %v1823 = vmul.f32 %v1756, %v1805
  %v1824 = vmul.f32 %v1757, %v1805
  %v1825 = vmul.f32 %v1758, %v1805
  %v1826 = vmul.f32 %v1759, %v1805
  %v1827 = vmul.f32 %v1760, %v1805
  %v1828 = vmul.f32 %v1761, %v1805
  %v1829 = vmul.f32 %v1762, %v1805
  %v1830 = vmul.f32 %v1763, %v1805
  %v1831 = vmul.f32 %v1764, %v1805
  %v1832 = vmul.f32 %v1765, %v1805
  %v1833 = vmul.f32 %v1766, %v1805
  %v1834 = vmul.f32 %v1767, %v1805
  %v1835 = vmul.f32 %v1768, %v1805
  %v1836 = vmul.f32 %v1769, %v1805
  %v1837 = vmul.f32 %v1770, %v1805
  %v1838 = vmul.f32 %v1771, %v1805
  %v1839 = vmul.f32 %v1772, %v1805
  %v1840 = vmul.f32 %v1773, %v1805
  %v1841 = vmul.f32 %v1774, %v1805
  %v1842 = vmul.f32 %v1775, %v1805
  %v1843 = vmul.f32 %v1776, %v1805
  %v1844 = vmul.f32 %v1777, %v1805
  %v1845 = vmul.f32 %v1778, %v1805
  %v1846 = vmul.f32 %v1779, %v1805
  %v1847 = vmul.f32 %v1780, %v1805
  %v1848 = vmul.f32 %v1781, %v1805
  %v1849 = vmul.f32 %v1782, %v1805
  %v1850 = vmul.f32 %v1783, %v1805
  %v1851 = vmul.f32 %v1784, %v1805
  %v1852 = vmul.f32 %v1785, %v1805
  %v1853 = vmul.f32 %v1786, %v1805
  %v1854 = vmul.f32 %v1787, %v1805
  %v1855 = vmul.f32 %v1788, %v1805
  %v1856 = vmul.f32 %v1789, %v1805
  %v1857 = vmul.f32 %v1790, %v1805
  %v1858 = vmul.f32 %v1791, %v1805
  %v1859 = vmul.f32 %v1792, %v1805
  %v1860 = vmul.f32 %v1793, %v1805
  %v1861 = vmul.f32 %v1794, %v1805
  %v1862 = vmul.f32 %v1795, %v1805
  %v1863 = vmul.f32 %v1796, %v1805
  %v1864 = vmul.f32 %v1797, %v1805
  %v1865 = vmul.f32 %v1798, %v1805
  %v1866 = vmul.f32 %v1799, %v1805
  %v1867 = vmul.f32 %v1800, %v1805
  %v1868 = vmul.f32 %v1801, %v1805
  %v1869 = vmul.f32 %v1802, %v1805
  %v1870 = vmul.f32 %v1803, %v1805
  %v1872 = vperm.slane %v1332, 0
  %v1874 = vadd.f32 %v1807, %v1872
  %v1875 = vadd.f32 %v1808, %v1872
  %v1876 = vadd.f32 %v1809, %v1872
  %v1877 = vadd.f32 %v1810, %v1872
  %v1878 = vadd.f32 %v1811, %v1872
  %v1879 = vadd.f32 %v1812, %v1872
  %v1880 = vadd.f32 %v1813, %v1872
  %v1881 = vadd.f32 %v1814, %v1872
  %v1882 = vadd.f32 %v1815, %v1872
  %v1883 = vadd.f32 %v1816, %v1872
  %v1884 = vadd.f32 %v1817, %v1872
  %v1885 = vadd.f32 %v1818, %v1872
  %v1886 = vadd.f32 %v1819, %v1872
  %v1887 = vadd.f32 %v1820, %v1872
  %v1888 = vadd.f32 %v1821, %v1872
  %v1889 = vadd.f32 %v1822, %v1872
  %v1890 = vadd.f32 %v1823, %v1872
  %v1891 = vadd.f32 %v1824, %v1872
  %v1892 = vadd.f32 %v1825, %v1872
  %v1893 = vadd.f32 %v1826, %v1872
  %v1894 = vadd.f32 %v1827, %v1872
  %v1895 = vadd.f32 %v1828, %v1872
  %v1896 = vadd.f32 %v1829, %v1872
  %v1897 = vadd.f32 %v1830, %v1872
  %v1898 = vadd.f32 %v1831, %v1872
  %v1899 = vadd.f32 %v1832, %v1872
  %v1900 = vadd.f32 %v1833, %v1872
  %v1901 = vadd.f32 %v1834, %v1872
  %v1902 = vadd.f32 %v1835, %v1872
  %v1903 = vadd.f32 %v1836, %v1872
  %v1904 = vadd.f32 %v1837, %v1872
  %v1905 = vadd.f32 %v1838, %v1872
  %v1906 = vadd.f32 %v1839, %v1872
  %v1907 = vadd.f32 %v1840, %v1872
  %v1908 = vadd.f32 %v1841, %v1872
  %v1909 = vadd.f32 %v1842, %v1872
  %v1910 = vadd.f32 %v1843, %v1872
  %v1911 = vadd.f32 %v1844, %v1872
  %v1912 = vadd.f32 %v1845, %v1872
  %v1913 = vadd.f32 %v1846, %v1872
  %v1914 = vadd.f32 %v1847, %v1872
  %v1915 = vadd.f32 %v1848, %v1872
  %v1916 = vadd.f32 %v1849, %v1872
  %v1917 = vadd.f32 %v1850, %v1872
  %v1918 = vadd.f32 %v1851, %v1872
  %v1919 = vadd.f32 %v1852, %v1872
  %v1920 = vadd.f32 %v1853, %v1872
  %v1921 = vadd.f32 %v1854, %v1872
  %v1922 = vadd.f32 %v1855, %v1872
  %v1923 = vadd.f32 %v1856, %v1872
  %v1924 = vadd.f32 %v1857, %v1872
  %v1925 = vadd.f32 %v1858, %v1872
  %v1926 = vadd.f32 %v1859, %v1872
  %v1927 = vadd.f32 %v1860, %v1872
  %v1928 = vadd.f32 %v1861, %v1872
  %v1929 = vadd.f32 %v1862, %v1872
  %v1930 = vadd.f32 %v1863, %v1872
  %v1931 = vadd.f32 %v1864, %v1872
  %v1932 = vadd.f32 %v1865, %v1872
  %v1933 = vadd.f32 %v1866, %v1872
  %v1934 = vadd.f32 %v1867, %v1872
  %v1935 = vadd.f32 %v1868, %v1872
  %v1936 = vadd.f32 %v1869, %v1872
  %v1937 = vadd.f32 %v1870, %v1872
  %vm1938 = vcmp.ge.f32.partialorder %v1874, 0.0
  %vm1939 = vcmp.ge.f32.partialorder %v1875, 0.0
  %vm1940 = vcmp.ge.f32.partialorder %v1876, 0.0
  %vm1941 = vcmp.ge.f32.partialorder %v1877, 0.0
  %vm1942 = vcmp.ge.f32.partialorder %v1878, 0.0
  %vm1943 = vcmp.ge.f32.partialorder %v1879, 0.0
  %vm1944 = vcmp.ge.f32.partialorder %v1880, 0.0
  %vm1945 = vcmp.ge.f32.partialorder %v1881, 0.0
  %vm1946 = vcmp.ge.f32.partialorder %v1882, 0.0
  %vm1947 = vcmp.ge.f32.partialorder %v1883, 0.0
  %vm1948 = vcmp.ge.f32.partialorder %v1884, 0.0
  %vm1949 = vcmp.ge.f32.partialorder %v1885, 0.0
  %vm1950 = vcmp.ge.f32.partialorder %v1886, 0.0
  %vm1951 = vcmp.ge.f32.partialorder %v1887, 0.0
  %vm1952 = vcmp.ge.f32.partialorder %v1888, 0.0
  %vm1953 = vcmp.ge.f32.partialorder %v1889, 0.0
  %vm1954 = vcmp.ge.f32.partialorder %v1890, 0.0
  %vm1955 = vcmp.ge.f32.partialorder %v1891, 0.0
  %vm1956 = vcmp.ge.f32.partialorder %v1892, 0.0
  %vm1957 = vcmp.ge.f32.partialorder %v1893, 0.0
  %vm1958 = vcmp.ge.f32.partialorder %v1894, 0.0
  %vm1959 = vcmp.ge.f32.partialorder %v1895, 0.0
  %vm1960 = vcmp.ge.f32.partialorder %v1896, 0.0
  %vm1961 = vcmp.ge.f32.partialorder %v1897, 0.0
  %vm1962 = vcmp.ge.f32.partialorder %v1898, 0.0
  %vm1963 = vcmp.ge.f32.partialorder %v1899, 0.0
  %vm1964 = vcmp.ge.f32.partialorder %v1900, 0.0
  %vm1965 = vcmp.ge.f32.partialorder %v1901, 0.0
  %vm1966 = vcmp.ge.f32.partialorder %v1902, 0.0
  %vm1967 = vcmp.ge.f32.partialorder %v1903, 0.0
  %vm1968 = vcmp.ge.f32.partialorder %v1904, 0.0
  %vm1969 = vcmp.ge.f32.partialorder %v1905, 0.0
  %vm1970 = vcmp.ge.f32.partialorder %v1906, 0.0
  %vm1971 = vcmp.ge.f32.partialorder %v1907, 0.0
  %vm1972 = vcmp.ge.f32.partialorder %v1908, 0.0
  %vm1973 = vcmp.ge.f32.partialorder %v1909, 0.0
  %vm1974 = vcmp.ge.f32.partialorder %v1910, 0.0
  %vm1975 = vcmp.ge.f32.partialorder %v1911, 0.0
  %vm1976 = vcmp.ge.f32.partialorder %v1912, 0.0
  %vm1977 = vcmp.ge.f32.partialorder %v1913, 0.0
  %vm1978 = vcmp.ge.f32.partialorder %v1914, 0.0
  %vm1979 = vcmp.ge.f32.partialorder %v1915, 0.0
  %vm1980 = vcmp.ge.f32.partialorder %v1916, 0.0
  %vm1981 = vcmp.ge.f32.partialorder %v1917, 0.0
  %vm1982 = vcmp.ge.f32.partialorder %v1918, 0.0
  %vm1983 = vcmp.ge.f32.partialorder %v1919, 0.0
  %vm1984 = vcmp.ge.f32.partialorder %v1920, 0.0
  %vm1985 = vcmp.ge.f32.partialorder %v1921, 0.0
  %vm1986 = vcmp.ge.f32.partialorder %v1922, 0.0
  %vm1987 = vcmp.ge.f32.partialorder %v1923, 0.0
  %vm1988 = vcmp.ge.f32.partialorder %v1924, 0.0
  %vm1989 = vcmp.ge.f32.partialorder %v1925, 0.0
  %vm1990 = vcmp.ge.f32.partialorder %v1926, 0.0
  %vm1991 = vcmp.ge.f32.partialorder %v1927, 0.0
  %vm1992 = vcmp.ge.f32.partialorder %v1928, 0.0
  %vm1993 = vcmp.ge.f32.partialorder %v1929, 0.0
  %vm1994 = vcmp.ge.f32.partialorder %v1930, 0.0
  %vm1995 = vcmp.ge.f32.partialorder %v1931, 0.0
  %vm1996 = vcmp.ge.f32.partialorder %v1932, 0.0
  %vm1997 = vcmp.ge.f32.partialorder %v1933, 0.0
  %vm1998 = vcmp.ge.f32.partialorder %v1934, 0.0
  %vm1999 = vcmp.ge.f32.partialorder %v1935, 0.0
  %vm2000 = vcmp.ge.f32.partialorder %v1936, 0.0
  %vm2001 = vcmp.ge.f32.partialorder %v1937, 0.0
  %v2002 = vmul.f32 %v1874, 0.01
  %v2003 = vmul.f32 %v1875, 0.01
  %v2004 = vmul.f32 %v1876, 0.01
  %v2005 = vmul.f32 %v1877, 0.01
  %v2006 = vmul.f32 %v1878, 0.01
  %v2007 = vmul.f32 %v1879, 0.01
  %v2008 = vmul.f32 %v1880, 0.01
  %v2009 = vmul.f32 %v1881, 0.01
  %v2010 = vmul.f32 %v1882, 0.01
  %v2011 = vmul.f32 %v1883, 0.01
  %v2012 = vmul.f32 %v1884, 0.01
  %v2013 = vmul.f32 %v1885, 0.01
  %v2014 = vmul.f32 %v1886, 0.01
  %v2015 = vmul.f32 %v1887, 0.01
  %v2016 = vmul.f32 %v1888, 0.01
  %v2017 = vmul.f32 %v1889, 0.01
  %v2018 = vmul.f32 %v1890, 0.01
  %v2019 = vmul.f32 %v1891, 0.01
  %v2020 = vmul.f32 %v1892, 0.01
  %v2021 = vmul.f32 %v1893, 0.01
  %v2022 = vmul.f32 %v1894, 0.01
  %v2023 = vmul.f32 %v1895, 0.01
  %v2024 = vmul.f32 %v1896, 0.01
  %v2025 = vmul.f32 %v1897, 0.01
  %v2026 = vmul.f32 %v1898, 0.01
  %v2027 = vmul.f32 %v1899, 0.01
  %v2028 = vmul.f32 %v1900, 0.01
  %v2029 = vmul.f32 %v1901, 0.01
  %v2030 = vmul.f32 %v1902, 0.01
  %v2031 = vmul.f32 %v1903, 0.01
  %v2032 = vmul.f32 %v1904, 0.01
  %v2033 = vmul.f32 %v1905, 0.01
  %v2034 = vmul.f32 %v1906, 0.01
  %v2035 = vmul.f32 %v1907, 0.01
  %v2036 = vmul.f32 %v1908, 0.01
  %v2037 = vmul.f32 %v1909, 0.01
  %v2038 = vmul.f32 %v1910, 0.01
  %v2039 = vmul.f32 %v1911, 0.01
  %v2040 = vmul.f32 %v1912, 0.01
  %v2041 = vmul.f32 %v1913, 0.01
  %v2042 = vmul.f32 %v1914, 0.01
  %v2043 = vmul.f32 %v1915, 0.01
  %v2044 = vmul.f32 %v1916, 0.01
  %v2045 = vmul.f32 %v1917, 0.01
  %v2046 = vmul.f32 %v1918, 0.01
  %v2047 = vmul.f32 %v1919, 0.01
  %v2048 = vmul.f32 %v1920, 0.01
  %v2049 = vmul.f32 %v1921, 0.01
  %v2050 = vmul.f32 %v1922, 0.01
  %v2051 = vmul.f32 %v1923, 0.01
  %v2052 = vmul.f32 %v1924, 0.01
  %v2053 = vmul.f32 %v1925, 0.01
  %v2054 = vmul.f32 %v1926, 0.01
  %v2055 = vmul.f32 %v1927, 0.01
  %v2056 = vmul.f32 %v1928, 0.01
  %v2057 = vmul.f32 %v1929, 0.01
  %v2058 = vmul.f32 %v1930, 0.01
  %v2059 = vmul.f32 %v1931, 0.01
  %v2060 = vmul.f32 %v1932, 0.01
  %v2061 = vmul.f32 %v1933, 0.01
  %v2062 = vmul.f32 %v1934, 0.01
  %v2063 = vmul.f32 %v1935, 0.01
  %v2064 = vmul.f32 %v1936, 0.01
  %v2065 = vmul.f32 %v1937, 0.01
  %v2066 = vsel %vm1938, %v1874, %v2002
  %v2067 = vsel %vm1939, %v1875, %v2003
  %v2068 = vsel %vm1940, %v1876, %v2004
  %v2069 = vsel %vm1941, %v1877, %v2005
  %v2070 = vsel %vm1942, %v1878, %v2006
  %v2071 = vsel %vm1943, %v1879, %v2007
  %v2072 = vsel %vm1944, %v1880, %v2008
  %v2073 = vsel %vm1945, %v1881, %v2009
  %v2074 = vsel %vm1946, %v1882, %v2010
  %v2075 = vsel %vm1947, %v1883, %v2011
  %v2076 = vsel %vm1948, %v1884, %v2012
  %v2077 = vsel %vm1949, %v1885, %v2013
  %v2078 = vsel %vm1950, %v1886, %v2014
  %v2079 = vsel %vm1951, %v1887, %v2015
  %v2080 = vsel %vm1952, %v1888, %v2016
  %v2081 = vsel %vm1953, %v1889, %v2017
  %v2082 = vsel %vm1954, %v1890, %v2018
  %v2083 = vsel %vm1955, %v1891, %v2019
  %v2084 = vsel %vm1956, %v1892, %v2020
  %v2085 = vsel %vm1957, %v1893, %v2021
  %v2086 = vsel %vm1958, %v1894, %v2022
  %v2087 = vsel %vm1959, %v1895, %v2023
  %v2088 = vsel %vm1960, %v1896, %v2024
  %v2089 = vsel %vm1961, %v1897, %v2025
  %v2090 = vsel %vm1962, %v1898, %v2026
  %v2091 = vsel %vm1963, %v1899, %v2027
  %v2092 = vsel %vm1964, %v1900, %v2028
  %v2093 = vsel %vm1965, %v1901, %v2029
  %v2094 = vsel %vm1966, %v1902, %v2030
  %v2095 = vsel %vm1967, %v1903, %v2031
  %v2096 = vsel %vm1968, %v1904, %v2032
  %v2097 = vsel %vm1969, %v1905, %v2033
  %v2098 = vsel %vm1970, %v1906, %v2034
  %v2099 = vsel %vm1971, %v1907, %v2035
  %v2100 = vsel %vm1972, %v1908, %v2036
  %v2101 = vsel %vm1973, %v1909, %v2037
  %v2102 = vsel %vm1974, %v1910, %v2038
  %v2103 = vsel %vm1975, %v1911, %v2039
  %v2104 = vsel %vm1976, %v1912, %v2040
  %v2105 = vsel %vm1977, %v1913, %v2041
  %v2106 = vsel %vm1978, %v1914, %v2042
  %v2107 = vsel %vm1979, %v1915, %v2043
  %v2108 = vsel %vm1980, %v1916, %v2044
  %v2109 = vsel %vm1981, %v1917, %v2045
  %v2110 = vsel %vm1982, %v1918, %v2046
  %v2111 = vsel %vm1983, %v1919, %v2047
  %v2112 = vsel %vm1984, %v1920, %v2048
  %v2113 = vsel %vm1985, %v1921, %v2049
  %v2114 = vsel %vm1986, %v1922, %v2050
  %v2115 = vsel %vm1987, %v1923, %v2051
  %v2116 = vsel %vm1988, %v1924, %v2052
  %v2117 = vsel %vm1989, %v1925, %v2053
  %v2118 = vsel %vm1990, %v1926, %v2054
  %v2119 = vsel %vm1991, %v1927, %v2055
  %v2120 = vsel %vm1992, %v1928, %v2056
  %v2121 = vsel %vm1993, %v1929, %v2057
  %v2122 = vsel %vm1994, %v1930, %v2058
  %v2123 = vsel %vm1995, %v1931, %v2059
  %v2124 = vsel %vm1996, %v1932, %v2060
  %v2125 = vsel %vm1997, %v1933, %v2061
  %v2126 = vsel %vm1998, %v1934, %v2062
  %v2127 = vsel %vm1999, %v1935, %v2063
  %v2128 = vsel %vm2000, %v1936, %v2064
  %v2129 = vsel %vm2001, %v1937, %v2065
  %2130 = vst.msk [vmem:[#allocation2] sm:$0xff] %vm116, 0.0
  %2131 = vst.msk [vmem:[#allocation2 + $0x8] sm:$0xff] %vm116, 0.0
  %vm2132 = vcmask 25600
  %2133 = vst.msk [vmem:[#allocation2 + $0x10] sm:$0x3] %vm2132, 0.0
  %2134 = vst.msk [vmem:[#allocation2 + $0x18] sm:$0xff] %vm116, 0.0
  %2135 = vst.msk [vmem:[#allocation2 + $0x20] sm:$0xff] %vm116, 0.0
  %2136 = vst.msk [vmem:[#allocation2 + $0x28] sm:$0x3] %vm2132, 0.0
  %2137 = vst.msk [vmem:[#allocation2 + $0x30] sm:$0xff] %vm116, 0.0
  %2138 = vst.msk [vmem:[#allocation2 + $0x38] sm:$0xff] %vm116, 0.0
  %2139 = vst.msk [vmem:[#allocation2 + $0x40] sm:$0x3] %vm2132, 0.0
  %2140 = vst.msk [vmem:[#allocation2 + $0x48] sm:$0xff] %vm116, 0.0
  %2141 = vst.msk [vmem:[#allocation2 + $0x50] sm:$0xff] %vm116, 0.0
  %2142 = vst.msk [vmem:[#allocation2 + $0x58] sm:$0x3] %vm2132, 0.0
  %2143 = vst.msk [vmem:[#allocation2 + $0x60] sm:$0xff] %vm116, 0.0
  %2144 = vst.msk [vmem:[#allocation2 + $0x68] sm:$0xff] %vm116, 0.0
  %2145 = vst.msk [vmem:[#allocation2 + $0x70] sm:$0x3] %vm2132, 0.0
  %2146 = vst.msk [vmem:[#allocation2 + $0x78] sm:$0xff] %vm116, 0.0
  %2147 = vst.msk [vmem:[#allocation2 + $0x80] sm:$0xff] %vm116, 0.0
  %2148 = vst.msk [vmem:[#allocation2 + $0x88] sm:$0x3] %vm2132, 0.0
  %2149 = vst.msk [vmem:[#allocation2 + $0x90] sm:$0xff] %vm116, 0.0
  %2150 = vst.msk [vmem:[#allocation2 + $0x98] sm:$0xff] %vm116, 0.0
  %2151 = vst.msk [vmem:[#allocation2 + $0xa0] sm:$0x3] %vm2132, 0.0
  %2152 = vst.msk [vmem:[#allocation2 + $0xa8] sm:$0xff] %vm116, 0.0
  %2153 = vst.msk [vmem:[#allocation2 + $0xb0] sm:$0xff] %vm116, 0.0
  %2154 = vst.msk [vmem:[#allocation2 + $0xb8] sm:$0x3] %vm2132, 0.0
  %2155 = vst.msk [vmem:[#allocation2 + $0xc0] sm:$0xff] %vm116, 0.0
  %2156 = vst.msk [vmem:[#allocation2 + $0xc8] sm:$0xff] %vm116, 0.0
  %2157 = vst.msk [vmem:[#allocation2 + $0xd0] sm:$0x3] %vm2132, 0.0
  %2158 = vst.msk [vmem:[#allocation2 + $0xd8] sm:$0xff] %vm116, 0.0
  %2159 = vst.msk [vmem:[#allocation2 + $0xe0] sm:$0xff] %vm116, 0.0
  %2160 = vst.msk [vmem:[#allocation2 + $0xe8] sm:$0x3] %vm2132, 0.0
  %2161 = vst.msk [vmem:[#allocation2 + $0xf0] sm:$0xff] %vm116, 0.0
  %2162 = vst.msk [vmem:[#allocation2 + $0xf8] sm:$0xff] %vm116, 0.0
  %2163 = vst.msk [vmem:[#allocation2 + $0x100] sm:$0x3] %vm2132, 0.0
  %2164 = vst.msk [vmem:[#allocation2 + $0x108] sm:$0xff] %vm116, 0.0
  %2165 = vst.msk [vmem:[#allocation2 + $0x110] sm:$0xff] %vm116, 0.0
  %2166 = vst.msk [vmem:[#allocation2 + $0x118] sm:$0x3] %vm2132, 0.0
  %2167 = vst.msk [vmem:[#allocation2 + $0x120] sm:$0xff] %vm116, 0.0
  %2168 = vst.msk [vmem:[#allocation2 + $0x128] sm:$0xff] %vm116, 0.0
  %2169 = vst.msk [vmem:[#allocation2 + $0x130] sm:$0x3] %vm2132, 0.0
  %2170 = vst.msk [vmem:[#allocation2 + $0x138] sm:$0xff] %vm116, 0.0
  %2171 = vst.msk [vmem:[#allocation2 + $0x140] sm:$0xff] %vm116, 0.0
  %2172 = vst.msk [vmem:[#allocation2 + $0x148] sm:$0x3] %vm2132, 0.0
  %2173 = vst.msk [vmem:[#allocation2 + $0x150] sm:$0xff] %vm116, 0.0
  %2174 = vst.msk [vmem:[#allocation2 + $0x158] sm:$0xff] %vm116, 0.0
  %2175 = vst.msk [vmem:[#allocation2 + $0x160] sm:$0x3] %vm2132, 0.0
  %2176 = vst.msk [vmem:[#allocation2 + $0x168] sm:$0xff] %vm116, 0.0
  %2177 = vst.msk [vmem:[#allocation2 + $0x170] sm:$0xff] %vm116, 0.0
  %2178 = vst.msk [vmem:[#allocation2 + $0x178] sm:$0x3] %vm2132, 0.0
  %2179 = vst.msk [vmem:[#allocation2 + $0x180] sm:$0xff] %vm116, 0.0
  %2180 = vst.msk [vmem:[#allocation2 + $0x188] sm:$0xff] %vm116, 0.0
  %2181 = vst.msk [vmem:[#allocation2 + $0x190] sm:$0x3] %vm2132, 0.0
  %2182 = vst.msk [vmem:[#allocation2 + $0x198] sm:$0xff] %vm116, 0.0
  %2183 = vst.msk [vmem:[#allocation2 + $0x1a0] sm:$0xff] %vm116, 0.0
  %2184 = vst.msk [vmem:[#allocation2 + $0x1a8] sm:$0x3] %vm2132, 0.0
  %2185 = vst.msk [vmem:[#allocation2 + $0x1b0] sm:$0xff] %vm116, 0.0
  %2186 = vst.msk [vmem:[#allocation2 + $0x1b8] sm:$0xff] %vm116, 0.0
  %2187 = vst.msk [vmem:[#allocation2 + $0x1c0] sm:$0x3] %vm2132, 0.0
  %2188 = vst.msk [vmem:[#allocation2 + $0x1c8] sm:$0xff] %vm116, 0.0
  %2189 = vst.msk [vmem:[#allocation2 + $0x1d0] sm:$0xff] %vm116, 0.0
  %2190 = vst.msk [vmem:[#allocation2 + $0x1d8] sm:$0x3] %vm2132, 0.0
  %2191 = vst.msk [vmem:[#allocation2 + $0x1e0] sm:$0xff] %vm116, 0.0
  %2192 = vst.msk [vmem:[#allocation2 + $0x1e8] sm:$0xff] %vm116, 0.0
  %2193 = vst.msk [vmem:[#allocation2 + $0x1f0] sm:$0x3] %vm2132, 0.0
  %2194 = vst.msk [vmem:[#allocation2 + $0x1f8] sm:$0xff] %vm116, 0.0
  %2195 = vst.msk [vmem:[#allocation2 + $0x200] sm:$0xff] %vm116, 0.0
  %2196 = vst.msk [vmem:[#allocation2 + $0x208] sm:$0x3] %vm2132, 0.0
  %2197 = vst.msk [vmem:[#allocation2 + $0x210] sm:$0xff] %vm116, 0.0
  %2198 = vst.msk [vmem:[#allocation2 + $0x218] sm:$0xff] %vm116, 0.0
  %2199 = vst.msk [vmem:[#allocation2 + $0x220] sm:$0x3] %vm2132, 0.0
  %2200 = vst.msk [vmem:[#allocation2 + $0x228] sm:$0xff] %vm116, 0.0
  %2201 = vst.msk [vmem:[#allocation2 + $0x230] sm:$0xff] %vm116, 0.0
  %2202 = vst.msk [vmem:[#allocation2 + $0x238] sm:$0x3] %vm2132, 0.0
  %2203 = vst.msk [vmem:[#allocation2 + $0x240] sm:$0xff] %vm116, 0.0
  %2204 = vst.msk [vmem:[#allocation2 + $0x248] sm:$0xff] %vm116, 0.0
  %2205 = vst.msk [vmem:[#allocation2 + $0x250] sm:$0x3] %vm2132, 0.0
  %2206 = vst.msk [vmem:[#allocation2 + $0x258] sm:$0xff] %vm116, 0.0
  %2207 = vst.msk [vmem:[#allocation2 + $0x260] sm:$0xff] %vm116, 0.0
  %2208 = vst.msk [vmem:[#allocation2 + $0x268] sm:$0x3] %vm2132, 0.0
  %2209 = vst.msk [vmem:[#allocation2 + $0x270] sm:$0xff] %vm116, 0.0
  %2210 = vst.msk [vmem:[#allocation2 + $0x278] sm:$0xff] %vm116, 0.0
  %2211 = vst.msk [vmem:[#allocation2 + $0x280] sm:$0x3] %vm2132, 0.0
  %2212 = vst.msk [vmem:[#allocation2 + $0x288] sm:$0xff] %vm116, 0.0
  %2213 = vst.msk [vmem:[#allocation2 + $0x290] sm:$0xff] %vm116, 0.0
  %2214 = vst.msk [vmem:[#allocation2 + $0x298] sm:$0x3] %vm2132, 0.0
  %2215 = vst.msk [vmem:[#allocation2 + $0x2a0] sm:$0xff] %vm116, 0.0
  %2216 = vst.msk [vmem:[#allocation2 + $0x2a8] sm:$0xff] %vm116, 0.0
  %2217 = vst.msk [vmem:[#allocation2 + $0x2b0] sm:$0x3] %vm2132, 0.0
  %2218 = vst.msk [vmem:[#allocation2 + $0x2b8] sm:$0xff] %vm116, 0.0
  %2219 = vst.msk [vmem:[#allocation2 + $0x2c0] sm:$0xff] %vm116, 0.0
  %2220 = vst.msk [vmem:[#allocation2 + $0x2c8] sm:$0x3] %vm2132, 0.0
  %2221 = vst.msk [vmem:[#allocation2 + $0x2d0] sm:$0xff] %vm116, 0.0
  %2222 = vst.msk [vmem:[#allocation2 + $0x2d8] sm:$0xff] %vm116, 0.0
  %2223 = vst.msk [vmem:[#allocation2 + $0x2e0] sm:$0x3] %vm2132, 0.0
  %2224 = vst.msk [vmem:[#allocation2 + $0x2e8] sm:$0xff] %vm116, 0.0
  %2225 = vst.msk [vmem:[#allocation2 + $0x2f0] sm:$0xff] %vm116, 0.0
  %2226 = vst.msk [vmem:[#allocation2 + $0x2f8] sm:$0x3] %vm2132, 0.0
  %2227 = vst.msk [vmem:[#allocation2 + $0x300] sm:$0xff] %vm116, 0.0
  %2228 = vst.msk [vmem:[#allocation2 + $0x308] sm:$0xff] %vm116, 0.0
  %2229 = vst.msk [vmem:[#allocation2 + $0x310] sm:$0x3] %vm2132, 0.0
  %2230 = vst.msk [vmem:[#allocation2 + $0x318] sm:$0xff] %vm116, 0.0
  %2231 = vst.msk [vmem:[#allocation2 + $0x320] sm:$0xff] %vm116, 0.0
  %2232 = vst.msk [vmem:[#allocation2 + $0x328] sm:$0x3] %vm2132, 0.0
  %2233 = vst.msk [vmem:[#allocation2 + $0x330] sm:$0xff] %vm116, 0.0
  %2234 = vst.msk [vmem:[#allocation2 + $0x338] sm:$0xff] %vm116, 0.0
  %2235 = vst.msk [vmem:[#allocation2 + $0x340] sm:$0x3] %vm2132, 0.0
  %2236 = vst.msk [vmem:[#allocation2 + $0x348] sm:$0xff] %vm116, 0.0
  %2237 = vst.msk [vmem:[#allocation2 + $0x350] sm:$0xff] %vm116, 0.0
  %2238 = vst.msk [vmem:[#allocation2 + $0x358] sm:$0x3] %vm2132, 0.0
  %s2239 = scalar_lea.vmem [#allocation2], 24
  %2240 = vst.msk [vmem:[%s2239 + $0x1] sm:$0xff] %vm116, %v2066
  %2241 = vst.msk [vmem:[%s2239 + $0x9] sm:$0xff] %vm116, %v2067
  %2242 = vst.msk [vmem:[%s2239 + $0x19] sm:$0xff] %vm116, %v2068
  %2243 = vst.msk [vmem:[%s2239 + $0x21] sm:$0xff] %vm116, %v2069
  %2244 = vst.msk [vmem:[%s2239 + $0x31] sm:$0xff] %vm116, %v2070
  %2245 = vst.msk [vmem:[%s2239 + $0x39] sm:$0xff] %vm116, %v2071
  %2246 = vst.msk [vmem:[%s2239 + $0x49] sm:$0xff] %vm116, %v2072
  %2247 = vst.msk [vmem:[%s2239 + $0x51] sm:$0xff] %vm116, %v2073
  %2248 = vst.msk [vmem:[%s2239 + $0x61] sm:$0xff] %vm116, %v2074
  %2249 = vst.msk [vmem:[%s2239 + $0x69] sm:$0xff] %vm116, %v2075
  %2250 = vst.msk [vmem:[%s2239 + $0x79] sm:$0xff] %vm116, %v2076
  %2251 = vst.msk [vmem:[%s2239 + $0x81] sm:$0xff] %vm116, %v2077
  %2252 = vst.msk [vmem:[%s2239 + $0x91] sm:$0xff] %vm116, %v2078
  %2253 = vst.msk [vmem:[%s2239 + $0x99] sm:$0xff] %vm116, %v2079
  %2254 = vst.msk [vmem:[%s2239 + $0xa9] sm:$0xff] %vm116, %v2080
  %2255 = vst.msk [vmem:[%s2239 + $0xb1] sm:$0xff] %vm116, %v2081
  %2256 = vst.msk [vmem:[%s2239 + $0xc1] sm:$0xff] %vm116, %v2082
  %2257 = vst.msk [vmem:[%s2239 + $0xc9] sm:$0xff] %vm116, %v2083
  %2258 = vst.msk [vmem:[%s2239 + $0xd9] sm:$0xff] %vm116, %v2084
  %2259 = vst.msk [vmem:[%s2239 + $0xe1] sm:$0xff] %vm116, %v2085
  %2260 = vst.msk [vmem:[%s2239 + $0xf1] sm:$0xff] %vm116, %v2086
  %2261 = vst.msk [vmem:[%s2239 + $0xf9] sm:$0xff] %vm116, %v2087
  %2262 = vst.msk [vmem:[%s2239 + $0x109] sm:$0xff] %vm116, %v2088
  %2263 = vst.msk [vmem:[%s2239 + $0x111] sm:$0xff] %vm116, %v2089
  %2264 = vst.msk [vmem:[%s2239 + $0x121] sm:$0xff] %vm116, %v2090
  %2265 = vst.msk [vmem:[%s2239 + $0x129] sm:$0xff] %vm116, %v2091
  %2266 = vst.msk [vmem:[%s2239 + $0x139] sm:$0xff] %vm116, %v2092
  %2267 = vst.msk [vmem:[%s2239 + $0x141] sm:$0xff] %vm116, %v2093
  %2268 = vst.msk [vmem:[%s2239 + $0x151] sm:$0xff] %vm116, %v2094
  %2269 = vst.msk [vmem:[%s2239 + $0x159] sm:$0xff] %vm116, %v2095
  %2270 = vst.msk [vmem:[%s2239 + $0x169] sm:$0xff] %vm116, %v2096
  %2271 = vst.msk [vmem:[%s2239 + $0x171] sm:$0xff] %vm116, %v2097
  %2272 = vst.msk [vmem:[%s2239 + $0x1b1] sm:$0xff] %vm116, %v2098
  %2273 = vst.msk [vmem:[%s2239 + $0x1b9] sm:$0xff] %vm116, %v2099
  %2274 = vst.msk [vmem:[%s2239 + $0x1c9] sm:$0xff] %vm116, %v2100
  %2275 = vst.msk [vmem:[%s2239 + $0x1d1] sm:$0xff] %vm116, %v2101
  %2276 = vst.msk [vmem:[%s2239 + $0x1e1] sm:$0xff] %vm116, %v2102
  %2277 = vst.msk [vmem:[%s2239 + $0x1e9] sm:$0xff] %vm116, %v2103
  %2278 = vst.msk [vmem:[%s2239 + $0x1f9] sm:$0xff] %vm116, %v2104
  %2279 = vst.msk [vmem:[%s2239 + $0x201] sm:$0xff] %vm116, %v2105
  %2280 = vst.msk [vmem:[%s2239 + $0x211] sm:$0xff] %vm116, %v2106
  %2281 = vst.msk [vmem:[%s2239 + $0x219] sm:$0xff] %vm116, %v2107
  %2282 = vst.msk [vmem:[%s2239 + $0x229] sm:$0xff] %vm116, %v2108
  %2283 = vst.msk [vmem:[%s2239 + $0x231] sm:$0xff] %vm116, %v2109
  %2284 = vst.msk [vmem:[%s2239 + $0x241] sm:$0xff] %vm116, %v2110
  %2285 = vst.msk [vmem:[%s2239 + $0x249] sm:$0xff] %vm116, %v2111
  %2286 = vst.msk [vmem:[%s2239 + $0x259] sm:$0xff] %vm116, %v2112
  %2287 = vst.msk [vmem:[%s2239 + $0x261] sm:$0xff] %vm116, %v2113
  %2288 = vst.msk [vmem:[%s2239 + $0x271] sm:$0xff] %vm116, %v2114
  %2289 = vst.msk [vmem:[%s2239 + $0x279] sm:$0xff] %vm116, %v2115
  %2290 = vst.msk [vmem:[%s2239 + $0x289] sm:$0xff] %vm116, %v2116
  %2291 = vst.msk [vmem:[%s2239 + $0x291] sm:$0xff] %vm116, %v2117
  %2292 = vst.msk [vmem:[%s2239 + $0x2a1] sm:$0xff] %vm116, %v2118
  %2293 = vst.msk [vmem:[%s2239 + $0x2a9] sm:$0xff] %vm116, %v2119
  %2294 = vst.msk [vmem:[%s2239 + $0x2b9] sm:$0xff] %vm116, %v2120
  %2295 = vst.msk [vmem:[%s2239 + $0x2c1] sm:$0xff] %vm116, %v2121
  %2296 = vst.msk [vmem:[%s2239 + $0x2d1] sm:$0xff] %vm116, %v2122
  %2297 = vst.msk [vmem:[%s2239 + $0x2d9] sm:$0xff] %vm116, %v2123
  %2298 = vst.msk [vmem:[%s2239 + $0x2e9] sm:$0xff] %vm116, %v2124
  %2299 = vst.msk [vmem:[%s2239 + $0x2f1] sm:$0xff] %vm116, %v2125
  %2300 = vst.msk [vmem:[%s2239 + $0x301] sm:$0xff] %vm116, %v2126
  %2301 = vst.msk [vmem:[%s2239 + $0x309] sm:$0xff] %vm116, %v2127
  %2302 = vst.msk [vmem:[%s2239 + $0x319] sm:$0xff] %vm116, %v2128
  %2303 = vst.msk [vmem:[%s2239 + $0x321] sm:$0xff] %vm116, %v2129
  %v2304 = vld [vmem:[#allocation2] sm:$0xff]
  %v2305 = vld [vmem:[#allocation2 + $0x8] sm:$0xff]
  %v2306 = vld [vmem:[#allocation2 + $0x18] sm:$0xff]
  %v2307 = vld [vmem:[#allocation2 + $0x20] sm:$0xff]
  %v2308 = vld [vmem:[#allocation2 + $0x30] sm:$0xff]
  %v2309 = vld [vmem:[#allocation2 + $0x38] sm:$0xff]
  %v2310 = vld [vmem:[#allocation2 + $0x48] sm:$0xff]
  %v2311 = vld [vmem:[#allocation2 + $0x50] sm:$0xff]
  %v2312 = vld [vmem:[#allocation2 + $0x60] sm:$0xff]
  %v2313 = vld [vmem:[#allocation2 + $0x68] sm:$0xff]
  %v2314 = vld [vmem:[#allocation2 + $0x78] sm:$0xff]
  %v2315 = vld [vmem:[#allocation2 + $0x80] sm:$0xff]
  %v2316 = vld [vmem:[#allocation2 + $0x90] sm:$0xff]
  %v2317 = vld [vmem:[#allocation2 + $0x98] sm:$0xff]
  %v2318 = vld [vmem:[#allocation2 + $0xa8] sm:$0xff]
  %v2319 = vld [vmem:[#allocation2 + $0xb0] sm:$0xff]
  %v2320 = vld [vmem:[#allocation2 + $0xc0] sm:$0xff]
  %v2321 = vld [vmem:[#allocation2 + $0xc8] sm:$0xff]
  %v2322 = vld [vmem:[#allocation2 + $0xd8] sm:$0xff]
  %v2323 = vld [vmem:[#allocation2 + $0xe0] sm:$0xff]
  %v2324 = vld [vmem:[#allocation2 + $0xf0] sm:$0xff]
  %v2325 = vld [vmem:[#allocation2 + $0xf8] sm:$0xff]
  %v2326 = vld [vmem:[#allocation2 + $0x108] sm:$0xff]
  %v2327 = vld [vmem:[#allocation2 + $0x110] sm:$0xff]
  %v2328 = vld [vmem:[#allocation2 + $0x120] sm:$0xff]
  %v2329 = vld [vmem:[#allocation2 + $0x128] sm:$0xff]
  %v2330 = vld [vmem:[#allocation2 + $0x138] sm:$0xff]
  %v2331 = vld [vmem:[#allocation2 + $0x140] sm:$0xff]
  %v2332 = vld [vmem:[#allocation2 + $0x150] sm:$0xff]
  %v2333 = vld [vmem:[#allocation2 + $0x158] sm:$0xff]
  %v2334 = vld [vmem:[#allocation2 + $0x168] sm:$0xff]
  %v2335 = vld [vmem:[#allocation2 + $0x170] sm:$0xff]
  %v2336 = vld [vmem:[#allocation2 + $0x1b0] sm:$0xff]
  %v2337 = vld [vmem:[#allocation2 + $0x1b8] sm:$0xff]
  %v2338 = vld [vmem:[#allocation2 + $0x1c8] sm:$0xff]
  %v2339 = vld [vmem:[#allocation2 + $0x1d0] sm:$0xff]
  %v2340 = vld [vmem:[#allocation2 + $0x1e0] sm:$0xff]
  %v2341 = vld [vmem:[#allocation2 + $0x1e8] sm:$0xff]
  %v2342 = vld [vmem:[#allocation2 + $0x1f8] sm:$0xff]
  %v2343 = vld [vmem:[#allocation2 + $0x200] sm:$0xff]
  %v2344 = vld [vmem:[#allocation2 + $0x210] sm:$0xff]
  %v2345 = vld [vmem:[#allocation2 + $0x218] sm:$0xff]
  %v2346 = vld [vmem:[#allocation2 + $0x228] sm:$0xff]
  %v2347 = vld [vmem:[#allocation2 + $0x230] sm:$0xff]
  %v2348 = vld [vmem:[#allocation2 + $0x240] sm:$0xff]
  %v2349 = vld [vmem:[#allocation2 + $0x248] sm:$0xff]
  %v2350 = vld [vmem:[#allocation2 + $0x258] sm:$0xff]
  %v2351 = vld [vmem:[#allocation2 + $0x260] sm:$0xff]
  %v2352 = vld [vmem:[#allocation2 + $0x270] sm:$0xff]
  %v2353 = vld [vmem:[#allocation2 + $0x278] sm:$0xff]
  %v2354 = vld [vmem:[#allocation2 + $0x288] sm:$0xff]
  %v2355 = vld [vmem:[#allocation2 + $0x290] sm:$0xff]
  %v2356 = vld [vmem:[#allocation2 + $0x2a0] sm:$0xff]
  %v2357 = vld [vmem:[#allocation2 + $0x2a8] sm:$0xff]
  %v2358 = vld [vmem:[#allocation2 + $0x2b8] sm:$0xff]
  %v2359 = vld [vmem:[#allocation2 + $0x2c0] sm:$0xff]
  %v2360 = vld [vmem:[#allocation2 + $0x2d0] sm:$0xff]
  %v2361 = vld [vmem:[#allocation2 + $0x2d8] sm:$0xff]
  %v2362 = vld [vmem:[#allocation2 + $0x2e8] sm:$0xff]
  %v2363 = vld [vmem:[#allocation2 + $0x2f0] sm:$0xff]
  %v2364 = vld [vmem:[#allocation2 + $0x300] sm:$0xff]
  %v2365 = vld [vmem:[#allocation2 + $0x308] sm:$0xff]
  %v2366 = vld [vmem:[#allocation2 + $0x318] sm:$0xff]
  %v2367 = vld [vmem:[#allocation2 + $0x320] sm:$0xff]
  %v2368 = vld [vmem:[#allocation2 + $0x1] sm:$0xff]
  %v2369 = vld [vmem:[#allocation2 + $0x9] sm:$0xff]
  %v2370 = vld [vmem:[#allocation2 + $0x19] sm:$0xff]
  %v2371 = vld [vmem:[#allocation2 + $0x21] sm:$0xff]
  %v2372 = vld [vmem:[#allocation2 + $0x31] sm:$0xff]
  %v2373 = vld [vmem:[#allocation2 + $0x39] sm:$0xff]
  %v2374 = vld [vmem:[#allocation2 + $0x49] sm:$0xff]
  %v2375 = vld [vmem:[#allocation2 + $0x51] sm:$0xff]
  %v2376 = vld [vmem:[#allocation2 + $0x61] sm:$0xff]
  %v2377 = vld [vmem:[#allocation2 + $0x69] sm:$0xff]
  %v2378 = vld [vmem:[#allocation2 + $0x79] sm:$0xff]
  %v2379 = vld [vmem:[#allocation2 + $0x81] sm:$0xff]
  %v2380 = vld [vmem:[#allocation2 + $0x91] sm:$0xff]
  %v2381 = vld [vmem:[#allocation2 + $0x99] sm:$0xff]
  %v2382 = vld [vmem:[#allocation2 + $0xa9] sm:$0xff]
  %v2383 = vld [vmem:[#allocation2 + $0xb1] sm:$0xff]
  %v2384 = vld [vmem:[#allocation2 + $0xc1] sm:$0xff]
  %v2385 = vld [vmem:[#allocation2 + $0xc9] sm:$0xff]
  %v2386 = vld [vmem:[#allocation2 + $0xd9] sm:$0xff]
  %v2387 = vld [vmem:[#allocation2 + $0xe1] sm:$0xff]
  %v2388 = vld [vmem:[#allocation2 + $0xf1] sm:$0xff]
  %v2389 = vld [vmem:[#allocation2 + $0xf9] sm:$0xff]
  %v2390 = vld [vmem:[#allocation2 + $0x109] sm:$0xff]
  %v2391 = vld [vmem:[#allocation2 + $0x111] sm:$0xff]
  %v2392 = vld [vmem:[#allocation2 + $0x121] sm:$0xff]
  %v2393 = vld [vmem:[#allocation2 + $0x129] sm:$0xff]
  %v2394 = vld [vmem:[#allocation2 + $0x139] sm:$0xff]
  %v2395 = vld [vmem:[#allocation2 + $0x141] sm:$0xff]
  %v2396 = vld [vmem:[#allocation2 + $0x151] sm:$0xff]
  %v2397 = vld [vmem:[#allocation2 + $0x159] sm:$0xff]
  %v2398 = vld [vmem:[#allocation2 + $0x169] sm:$0xff]
  %v2399 = vld [vmem:[#allocation2 + $0x171] sm:$0xff]
  %v2400 = vld [vmem:[#allocation2 + $0x1b1] sm:$0xff]
  %v2401 = vld [vmem:[#allocation2 + $0x1b9] sm:$0xff]
  %v2402 = vld [vmem:[#allocation2 + $0x1c9] sm:$0xff]
  %v2403 = vld [vmem:[#allocation2 + $0x1d1] sm:$0xff]
  %v2404 = vld [vmem:[#allocation2 + $0x1e1] sm:$0xff]
  %v2405 = vld [vmem:[#allocation2 + $0x1e9] sm:$0xff]
  %v2406 = vld [vmem:[#allocation2 + $0x1f9] sm:$0xff]
  %v2407 = vld [vmem:[#allocation2 + $0x201] sm:$0xff]
  %v2408 = vld [vmem:[#allocation2 + $0x211] sm:$0xff]
  %v2409 = vld [vmem:[#allocation2 + $0x219] sm:$0xff]
  %v2410 = vld [vmem:[#allocation2 + $0x229] sm:$0xff]
  %v2411 = vld [vmem:[#allocation2 + $0x231] sm:$0xff]
  %v2412 = vld [vmem:[#allocation2 + $0x241] sm:$0xff]
  %v2413 = vld [vmem:[#allocation2 + $0x249] sm:$0xff]
  %v2414 = vld [vmem:[#allocation2 + $0x259] sm:$0xff]
  %v2415 = vld [vmem:[#allocation2 + $0x261] sm:$0xff]
  %v2416 = vld [vmem:[#allocation2 + $0x271] sm:$0xff]
  %v2417 = vld [vmem:[#allocation2 + $0x279] sm:$0xff]
  %v2418 = vld [vmem:[#allocation2 + $0x289] sm:$0xff]
  %v2419 = vld [vmem:[#allocation2 + $0x291] sm:$0xff]
  %v2420 = vld [vmem:[#allocation2 + $0x2a1] sm:$0xff]
  %v2421 = vld [vmem:[#allocation2 + $0x2a9] sm:$0xff]
  %v2422 = vld [vmem:[#allocation2 + $0x2b9] sm:$0xff]
  %v2423 = vld [vmem:[#allocation2 + $0x2c1] sm:$0xff]
  %v2424 = vld [vmem:[#allocation2 + $0x2d1] sm:$0xff]
  %v2425 = vld [vmem:[#allocation2 + $0x2d9] sm:$0xff]
  %v2426 = vld [vmem:[#allocation2 + $0x2e9] sm:$0xff]
  %v2427 = vld [vmem:[#allocation2 + $0x2f1] sm:$0xff]
  %v2428 = vld [vmem:[#allocation2 + $0x301] sm:$0xff]
  %v2429 = vld [vmem:[#allocation2 + $0x309] sm:$0xff]
  %v2430 = vld [vmem:[#allocation2 + $0x319] sm:$0xff]
  %v2431 = vld [vmem:[#allocation2 + $0x321] sm:$0xff]
  %v2432 = vld [vmem:[#allocation2 + $0x2] sm:$0xff]
  %v2433 = vld [vmem:[#allocation2 + $0xa] sm:$0xff]
  %v2434 = vld [vmem:[#allocation2 + $0x1a] sm:$0xff]
  %v2435 = vld [vmem:[#allocation2 + $0x22] sm:$0xff]
  %v2436 = vld [vmem:[#allocation2 + $0x32] sm:$0xff]
  %v2437 = vld [vmem:[#allocation2 + $0x3a] sm:$0xff]
  %v2438 = vld [vmem:[#allocation2 + $0x4a] sm:$0xff]
  %v2439 = vld [vmem:[#allocation2 + $0x52] sm:$0xff]
  %v2440 = vld [vmem:[#allocation2 + $0x62] sm:$0xff]
  %v2441 = vld [vmem:[#allocation2 + $0x6a] sm:$0xff]
  %v2442 = vld [vmem:[#allocation2 + $0x7a] sm:$0xff]
  %v2443 = vld [vmem:[#allocation2 + $0x82] sm:$0xff]
  %v2444 = vld [vmem:[#allocation2 + $0x92] sm:$0xff]
  %v2445 = vld [vmem:[#allocation2 + $0x9a] sm:$0xff]
  %v2446 = vld [vmem:[#allocation2 + $0xaa] sm:$0xff]
  %v2447 = vld [vmem:[#allocation2 + $0xb2] sm:$0xff]
  %v2448 = vld [vmem:[#allocation2 + $0xc2] sm:$0xff]
  %v2449 = vld [vmem:[#allocation2 + $0xca] sm:$0xff]
  %v2450 = vld [vmem:[#allocation2 + $0xda] sm:$0xff]
  %v2451 = vld [vmem:[#allocation2 + $0xe2] sm:$0xff]
  %v2452 = vld [vmem:[#allocation2 + $0xf2] sm:$0xff]
  %v2453 = vld [vmem:[#allocation2 + $0xfa] sm:$0xff]
  %v2454 = vld [vmem:[#allocation2 + $0x10a] sm:$0xff]
  %v2455 = vld [vmem:[#allocation2 + $0x112] sm:$0xff]
  %v2456 = vld [vmem:[#allocation2 + $0x122] sm:$0xff]
  %v2457 = vld [vmem:[#allocation2 + $0x12a] sm:$0xff]
  %v2458 = vld [vmem:[#allocation2 + $0x13a] sm:$0xff]
  %v2459 = vld [vmem:[#allocation2 + $0x142] sm:$0xff]
  %v2460 = vld [vmem:[#allocation2 + $0x152] sm:$0xff]
  %v2461 = vld [vmem:[#allocation2 + $0x15a] sm:$0xff]
  %v2462 = vld [vmem:[#allocation2 + $0x16a] sm:$0xff]
  %v2463 = vld [vmem:[#allocation2 + $0x172] sm:$0xff]
  %v2464 = vld [vmem:[#allocation2 + $0x1b2] sm:$0xff]
  %v2465 = vld [vmem:[#allocation2 + $0x1ba] sm:$0xff]
  %v2466 = vld [vmem:[#allocation2 + $0x1ca] sm:$0xff]
  %v2467 = vld [vmem:[#allocation2 + $0x1d2] sm:$0xff]
  %v2468 = vld [vmem:[#allocation2 + $0x1e2] sm:$0xff]
  %v2469 = vld [vmem:[#allocation2 + $0x1ea] sm:$0xff]
  %v2470 = vld [vmem:[#allocation2 + $0x1fa] sm:$0xff]
  %v2471 = vld [vmem:[#allocation2 + $0x202] sm:$0xff]
  %v2472 = vld [vmem:[#allocation2 + $0x212] sm:$0xff]
  %v2473 = vld [vmem:[#allocation2 + $0x21a] sm:$0xff]
  %v2474 = vld [vmem:[#allocation2 + $0x22a] sm:$0xff]
  %v2475 = vld [vmem:[#allocation2 + $0x232] sm:$0xff]
  %v2476 = vld [vmem:[#allocation2 + $0x242] sm:$0xff]
  %v2477 = vld [vmem:[#allocation2 + $0x24a] sm:$0xff]
  %v2478 = vld [vmem:[#allocation2 + $0x25a] sm:$0xff]
  %v2479 = vld [vmem:[#allocation2 + $0x262] sm:$0xff]
  %v2480 = vld [vmem:[#allocation2 + $0x272] sm:$0xff]
  %v2481 = vld [vmem:[#allocation2 + $0x27a] sm:$0xff]
  %v2482 = vld [vmem:[#allocation2 + $0x28a] sm:$0xff]
  %v2483 = vld [vmem:[#allocation2 + $0x292] sm:$0xff]
  %v2484 = vld [vmem:[#allocation2 + $0x2a2] sm:$0xff]
  %v2485 = vld [vmem:[#allocation2 + $0x2aa] sm:$0xff]
  %v2486 = vld [vmem:[#allocation2 + $0x2ba] sm:$0xff]
  %v2487 = vld [vmem:[#allocation2 + $0x2c2] sm:$0xff]
  %v2488 = vld [vmem:[#allocation2 + $0x2d2] sm:$0xff]
  %v2489 = vld [vmem:[#allocation2 + $0x2da] sm:$0xff]
  %v2490 = vld [vmem:[#allocation2 + $0x2ea] sm:$0xff]
  %v2491 = vld [vmem:[#allocation2 + $0x2f2] sm:$0xff]
  %v2492 = vld [vmem:[#allocation2 + $0x302] sm:$0xff]
  %v2493 = vld [vmem:[#allocation2 + $0x30a] sm:$0xff]
  %v2494 = vld [vmem:[#allocation2 + $0x31a] sm:$0xff]
  %v2495 = vld [vmem:[#allocation2 + $0x322] sm:$0xff]
  %v2496 = vld [vmem:[%s2239] sm:$0xff]
  %v2497 = vld [vmem:[%s2239 + $0x8] sm:$0xff]
  %v2498 = vld [vmem:[%s2239 + $0x18] sm:$0xff]
  %v2499 = vld [vmem:[%s2239 + $0x20] sm:$0xff]
  %v2500 = vld [vmem:[%s2239 + $0x30] sm:$0xff]
  %v2501 = vld [vmem:[%s2239 + $0x38] sm:$0xff]
  %v2502 = vld [vmem:[%s2239 + $0x48] sm:$0xff]
  %v2503 = vld [vmem:[%s2239 + $0x50] sm:$0xff]
  %v2504 = vld [vmem:[%s2239 + $0x60] sm:$0xff]
  %v2505 = vld [vmem:[%s2239 + $0x68] sm:$0xff]
  %v2506 = vld [vmem:[%s2239 + $0x78] sm:$0xff]
  %v2507 = vld [vmem:[%s2239 + $0x80] sm:$0xff]
  %v2508 = vld [vmem:[%s2239 + $0x90] sm:$0xff]
  %v2509 = vld [vmem:[%s2239 + $0x98] sm:$0xff]
  %v2510 = vld [vmem:[%s2239 + $0xa8] sm:$0xff]
  %v2511 = vld [vmem:[%s2239 + $0xb0] sm:$0xff]
  %v2512 = vld [vmem:[%s2239 + $0xc0] sm:$0xff]
  %v2513 = vld [vmem:[%s2239 + $0xc8] sm:$0xff]
  %v2514 = vld [vmem:[%s2239 + $0xd8] sm:$0xff]
  %v2515 = vld [vmem:[%s2239 + $0xe0] sm:$0xff]
  %v2516 = vld [vmem:[%s2239 + $0xf0] sm:$0xff]
  %v2517 = vld [vmem:[%s2239 + $0xf8] sm:$0xff]
  %v2518 = vld [vmem:[%s2239 + $0x108] sm:$0xff]
  %v2519 = vld [vmem:[%s2239 + $0x110] sm:$0xff]
  %v2520 = vld [vmem:[%s2239 + $0x120] sm:$0xff]
  %v2521 = vld [vmem:[%s2239 + $0x128] sm:$0xff]
  %v2522 = vld [vmem:[%s2239 + $0x138] sm:$0xff]
  %v2523 = vld [vmem:[%s2239 + $0x140] sm:$0xff]
  %v2524 = vld [vmem:[%s2239 + $0x150] sm:$0xff]
  %v2525 = vld [vmem:[%s2239 + $0x158] sm:$0xff]
  %v2526 = vld [vmem:[%s2239 + $0x168] sm:$0xff]
  %v2527 = vld [vmem:[%s2239 + $0x170] sm:$0xff]
  %v2528 = vld [vmem:[%s2239 + $0x1b0] sm:$0xff]
  %v2529 = vld [vmem:[%s2239 + $0x1b8] sm:$0xff]
  %v2530 = vld [vmem:[%s2239 + $0x1c8] sm:$0xff]
  %v2531 = vld [vmem:[%s2239 + $0x1d0] sm:$0xff]
  %v2532 = vld [vmem:[%s2239 + $0x1e0] sm:$0xff]
  %v2533 = vld [vmem:[%s2239 + $0x1e8] sm:$0xff]
  %v2534 = vld [vmem:[%s2239 + $0x1f8] sm:$0xff]
  %v2535 = vld [vmem:[%s2239 + $0x200] sm:$0xff]
  %v2536 = vld [vmem:[%s2239 + $0x210] sm:$0xff]
  %v2537 = vld [vmem:[%s2239 + $0x218] sm:$0xff]
  %v2538 = vld [vmem:[%s2239 + $0x228] sm:$0xff]
  %v2539 = vld [vmem:[%s2239 + $0x230] sm:$0xff]
  %v2540 = vld [vmem:[%s2239 + $0x240] sm:$0xff]
  %v2541 = vld [vmem:[%s2239 + $0x248] sm:$0xff]
  %v2542 = vld [vmem:[%s2239 + $0x258] sm:$0xff]
  %v2543 = vld [vmem:[%s2239 + $0x260] sm:$0xff]
  %v2544 = vld [vmem:[%s2239 + $0x270] sm:$0xff]
  %v2545 = vld [vmem:[%s2239 + $0x278] sm:$0xff]
  %v2546 = vld [vmem:[%s2239 + $0x288] sm:$0xff]
  %v2547 = vld [vmem:[%s2239 + $0x290] sm:$0xff]
  %v2548 = vld [vmem:[%s2239 + $0x2a0] sm:$0xff]
  %v2549 = vld [vmem:[%s2239 + $0x2a8] sm:$0xff]
  %v2550 = vld [vmem:[%s2239 + $0x2b8] sm:$0xff]
  %v2551 = vld [vmem:[%s2239 + $0x2c0] sm:$0xff]
  %v2552 = vld [vmem:[%s2239 + $0x2d0] sm:$0xff]
  %v2553 = vld [vmem:[%s2239 + $0x2d8] sm:$0xff]
  %v2554 = vld [vmem:[%s2239 + $0x2e8] sm:$0xff]
  %v2555 = vld [vmem:[%s2239 + $0x2f0] sm:$0xff]
  %v2556 = vld [vmem:[%s2239 + $0x300] sm:$0xff]
  %v2557 = vld [vmem:[%s2239 + $0x308] sm:$0xff]
  %v2558 = vld [vmem:[%s2239 + $0x318] sm:$0xff]
  %v2559 = vld [vmem:[%s2239 + $0x320] sm:$0xff]
  %v2560 = vld [vmem:[%s2239 + $0x1] sm:$0xff]
  %v2561 = vld [vmem:[%s2239 + $0x9] sm:$0xff]
  %v2562 = vld [vmem:[%s2239 + $0x19] sm:$0xff]
  %v2563 = vld [vmem:[%s2239 + $0x21] sm:$0xff]
  %v2564 = vld [vmem:[%s2239 + $0x31] sm:$0xff]
  %v2565 = vld [vmem:[%s2239 + $0x39] sm:$0xff]
  %v2566 = vld [vmem:[%s2239 + $0x49] sm:$0xff]
  %v2567 = vld [vmem:[%s2239 + $0x51] sm:$0xff]
  %v2568 = vld [vmem:[%s2239 + $0x61] sm:$0xff]
  %v2569 = vld [vmem:[%s2239 + $0x69] sm:$0xff]
  %v2570 = vld [vmem:[%s2239 + $0x79] sm:$0xff]
  %v2571 = vld [vmem:[%s2239 + $0x81] sm:$0xff]
  %v2572 = vld [vmem:[%s2239 + $0x91] sm:$0xff]
  %v2573 = vld [vmem:[%s2239 + $0x99] sm:$0xff]
  %v2574 = vld [vmem:[%s2239 + $0xa9] sm:$0xff]
  %v2575 = vld [vmem:[%s2239 + $0xb1] sm:$0xff]
  %v2576 = vld [vmem:[%s2239 + $0xc1] sm:$0xff]
  %v2577 = vld [vmem:[%s2239 + $0xc9] sm:$0xff]
  %v2578 = vld [vmem:[%s2239 + $0xd9] sm:$0xff]
  %v2579 = vld [vmem:[%s2239 + $0xe1] sm:$0xff]
  %v2580 = vld [vmem:[%s2239 + $0xf1] sm:$0xff]
  %v2581 = vld [vmem:[%s2239 + $0xf9] sm:$0xff]
  %v2582 = vld [vmem:[%s2239 + $0x109] sm:$0xff]
  %v2583 = vld [vmem:[%s2239 + $0x111] sm:$0xff]
  %v2584 = vld [vmem:[%s2239 + $0x121] sm:$0xff]
  %v2585 = vld [vmem:[%s2239 + $0x129] sm:$0xff]
  %v2586 = vld [vmem:[%s2239 + $0x139] sm:$0xff]
  %v2587 = vld [vmem:[%s2239 + $0x141] sm:$0xff]
  %v2588 = vld [vmem:[%s2239 + $0x151] sm:$0xff]
  %v2589 = vld [vmem:[%s2239 + $0x159] sm:$0xff]
  %v2590 = vld [vmem:[%s2239 + $0x169] sm:$0xff]
  %v2591 = vld [vmem:[%s2239 + $0x171] sm:$0xff]
  %v2592 = vld [vmem:[%s2239 + $0x1b1] sm:$0xff]
  %v2593 = vld [vmem:[%s2239 + $0x1b9] sm:$0xff]
  %v2594 = vld [vmem:[%s2239 + $0x1c9] sm:$0xff]
  %v2595 = vld [vmem:[%s2239 + $0x1d1] sm:$0xff]
  %v2596 = vld [vmem:[%s2239 + $0x1e1] sm:$0xff]
  %v2597 = vld [vmem:[%s2239 + $0x1e9] sm:$0xff]
  %v2598 = vld [vmem:[%s2239 + $0x1f9] sm:$0xff]
  %v2599 = vld [vmem:[%s2239 + $0x201] sm:$0xff]
  %v2600 = vld [vmem:[%s2239 + $0x211] sm:$0xff]
  %v2601 = vld [vmem:[%s2239 + $0x219] sm:$0xff]
  %v2602 = vld [vmem:[%s2239 + $0x229] sm:$0xff]
  %v2603 = vld [vmem:[%s2239 + $0x231] sm:$0xff]
  %v2604 = vld [vmem:[%s2239 + $0x241] sm:$0xff]
  %v2605 = vld [vmem:[%s2239 + $0x249] sm:$0xff]
  %v2606 = vld [vmem:[%s2239 + $0x259] sm:$0xff]
  %v2607 = vld [vmem:[%s2239 + $0x261] sm:$0xff]
  %v2608 = vld [vmem:[%s2239 + $0x271] sm:$0xff]
  %v2609 = vld [vmem:[%s2239 + $0x279] sm:$0xff]
  %v2610 = vld [vmem:[%s2239 + $0x289] sm:$0xff]
  %v2611 = vld [vmem:[%s2239 + $0x291] sm:$0xff]
  %v2612 = vld [vmem:[%s2239 + $0x2a1] sm:$0xff]
  %v2613 = vld [vmem:[%s2239 + $0x2a9] sm:$0xff]
  %v2614 = vld [vmem:[%s2239 + $0x2b9] sm:$0xff]
  %v2615 = vld [vmem:[%s2239 + $0x2c1] sm:$0xff]
  %v2616 = vld [vmem:[%s2239 + $0x2d1] sm:$0xff]
  %v2617 = vld [vmem:[%s2239 + $0x2d9] sm:$0xff]
  %v2618 = vld [vmem:[%s2239 + $0x2e9] sm:$0xff]
  %v2619 = vld [vmem:[%s2239 + $0x2f1] sm:$0xff]
  %v2620 = vld [vmem:[%s2239 + $0x301] sm:$0xff]
  %v2621 = vld [vmem:[%s2239 + $0x309] sm:$0xff]
  %v2622 = vld [vmem:[%s2239 + $0x319] sm:$0xff]
  %v2623 = vld [vmem:[%s2239 + $0x321] sm:$0xff]
  %v2624 = vld [vmem:[%s2239 + $0x2] sm:$0xff]
  %v2625 = vld [vmem:[%s2239 + $0xa] sm:$0xff]
  %v2626 = vld [vmem:[%s2239 + $0x1a] sm:$0xff]
  %v2627 = vld [vmem:[%s2239 + $0x22] sm:$0xff]
  %v2628 = vld [vmem:[%s2239 + $0x32] sm:$0xff]
  %v2629 = vld [vmem:[%s2239 + $0x3a] sm:$0xff]
  %v2630 = vld [vmem:[%s2239 + $0x4a] sm:$0xff]
  %v2631 = vld [vmem:[%s2239 + $0x52] sm:$0xff]
  %v2632 = vld [vmem:[%s2239 + $0x62] sm:$0xff]
  %v2633 = vld [vmem:[%s2239 + $0x6a] sm:$0xff]
  %v2634 = vld [vmem:[%s2239 + $0x7a] sm:$0xff]
  %v2635 = vld [vmem:[%s2239 + $0x82] sm:$0xff]
  %v2636 = vld [vmem:[%s2239 + $0x92] sm:$0xff]
  %v2637 = vld [vmem:[%s2239 + $0x9a] sm:$0xff]
  %v2638 = vld [vmem:[%s2239 + $0xaa] sm:$0xff]
  %v2639 = vld [vmem:[%s2239 + $0xb2] sm:$0xff]
  %v2640 = vld [vmem:[%s2239 + $0xc2] sm:$0xff]
  %v2641 = vld [vmem:[%s2239 + $0xca] sm:$0xff]
  %v2642 = vld [vmem:[%s2239 + $0xda] sm:$0xff]
  %v2643 = vld [vmem:[%s2239 + $0xe2] sm:$0xff]
  %v2644 = vld [vmem:[%s2239 + $0xf2] sm:$0xff]
  %v2645 = vld [vmem:[%s2239 + $0xfa] sm:$0xff]
  %v2646 = vld [vmem:[%s2239 + $0x10a] sm:$0xff]
  %v2647 = vld [vmem:[%s2239 + $0x112] sm:$0xff]
  %v2648 = vld [vmem:[%s2239 + $0x122] sm:$0xff]
  %v2649 = vld [vmem:[%s2239 + $0x12a] sm:$0xff]
  %v2650 = vld [vmem:[%s2239 + $0x13a] sm:$0xff]
  %v2651 = vld [vmem:[%s2239 + $0x142] sm:$0xff]
  %v2652 = vld [vmem:[%s2239 + $0x152] sm:$0xff]
  %v2653 = vld [vmem:[%s2239 + $0x15a] sm:$0xff]
  %v2654 = vld [vmem:[%s2239 + $0x16a] sm:$0xff]
  %v2655 = vld [vmem:[%s2239 + $0x172] sm:$0xff]
  %v2656 = vld [vmem:[%s2239 + $0x1b2] sm:$0xff]
  %v2657 = vld [vmem:[%s2239 + $0x1ba] sm:$0xff]
  %v2658 = vld [vmem:[%s2239 + $0x1ca] sm:$0xff]
  %v2659 = vld [vmem:[%s2239 + $0x1d2] sm:$0xff]
  %v2660 = vld [vmem:[%s2239 + $0x1e2] sm:$0xff]
  %v2661 = vld [vmem:[%s2239 + $0x1ea] sm:$0xff]
  %v2662 = vld [vmem:[%s2239 + $0x1fa] sm:$0xff]
  %v2663 = vld [vmem:[%s2239 + $0x202] sm:$0xff]
  %v2664 = vld [vmem:[%s2239 + $0x212] sm:$0xff]
  %v2665 = vld [vmem:[%s2239 + $0x21a] sm:$0xff]
  %v2666 = vld [vmem:[%s2239 + $0x22a] sm:$0xff]
  %v2667 = vld [vmem:[%s2239 + $0x232] sm:$0xff]
  %v2668 = vld [vmem:[%s2239 + $0x242] sm:$0xff]
  %v2669 = vld [vmem:[%s2239 + $0x24a] sm:$0xff]
  %v2670 = vld [vmem:[%s2239 + $0x25a] sm:$0xff]
  %v2671 = vld [vmem:[%s2239 + $0x262] sm:$0xff]
  %v2672 = vld [vmem:[%s2239 + $0x272] sm:$0xff]
  %v2673 = vld [vmem:[%s2239 + $0x27a] sm:$0xff]
  %v2674 = vld [vmem:[%s2239 + $0x28a] sm:$0xff]
  %v2675 = vld [vmem:[%s2239 + $0x292] sm:$0xff]
  %v2676 = vld [vmem:[%s2239 + $0x2a2] sm:$0xff]
  %v2677 = vld [vmem:[%s2239 + $0x2aa] sm:$0xff]
  %v2678 = vld [vmem:[%s2239 + $0x2ba] sm:$0xff]
  %v2679 = vld [vmem:[%s2239 + $0x2c2] sm:$0xff]
  %v2680 = vld [vmem:[%s2239 + $0x2d2] sm:$0xff]
  %v2681 = vld [vmem:[%s2239 + $0x2da] sm:$0xff]
  %v2682 = vld [vmem:[%s2239 + $0x2ea] sm:$0xff]
  %v2683 = vld [vmem:[%s2239 + $0x2f2] sm:$0xff]
  %v2684 = vld [vmem:[%s2239 + $0x302] sm:$0xff]
  %v2685 = vld [vmem:[%s2239 + $0x30a] sm:$0xff]
  %v2686 = vld [vmem:[%s2239 + $0x31a] sm:$0xff]
  %v2687 = vld [vmem:[%s2239 + $0x322] sm:$0xff]
  %s2688 = scalar_lea.vmem [#allocation2], 48
  %v2689 = vld [vmem:[%s2688] sm:$0xff]
  %v2690 = vld [vmem:[%s2688 + $0x8] sm:$0xff]
  %v2691 = vld [vmem:[%s2688 + $0x18] sm:$0xff]
  %v2692 = vld [vmem:[%s2688 + $0x20] sm:$0xff]
  %v2693 = vld [vmem:[%s2688 + $0x30] sm:$0xff]
  %v2694 = vld [vmem:[%s2688 + $0x38] sm:$0xff]
  %v2695 = vld [vmem:[%s2688 + $0x48] sm:$0xff]
  %v2696 = vld [vmem:[%s2688 + $0x50] sm:$0xff]
  %v2697 = vld [vmem:[%s2688 + $0x60] sm:$0xff]
  %v2698 = vld [vmem:[%s2688 + $0x68] sm:$0xff]
  %v2699 = vld [vmem:[%s2688 + $0x78] sm:$0xff]
  %v2700 = vld [vmem:[%s2688 + $0x80] sm:$0xff]
  %v2701 = vld [vmem:[%s2688 + $0x90] sm:$0xff]
  %v2702 = vld [vmem:[%s2688 + $0x98] sm:$0xff]
  %v2703 = vld [vmem:[%s2688 + $0xa8] sm:$0xff]
  %v2704 = vld [vmem:[%s2688 + $0xb0] sm:$0xff]
  %v2705 = vld [vmem:[%s2688 + $0xc0] sm:$0xff]
  %v2706 = vld [vmem:[%s2688 + $0xc8] sm:$0xff]
  %v2707 = vld [vmem:[%s2688 + $0xd8] sm:$0xff]
  %v2708 = vld [vmem:[%s2688 + $0xe0] sm:$0xff]
  %v2709 = vld [vmem:[%s2688 + $0xf0] sm:$0xff]
  %v2710 = vld [vmem:[%s2688 + $0xf8] sm:$0xff]
  %v2711 = vld [vmem:[%s2688 + $0x108] sm:$0xff]
  %v2712 = vld [vmem:[%s2688 + $0x110] sm:$0xff]
  %v2713 = vld [vmem:[%s2688 + $0x120] sm:$0xff]
  %v2714 = vld [vmem:[%s2688 + $0x128] sm:$0xff]
  %v2715 = vld [vmem:[%s2688 + $0x138] sm:$0xff]
  %v2716 = vld [vmem:[%s2688 + $0x140] sm:$0xff]
  %v2717 = vld [vmem:[%s2688 + $0x150] sm:$0xff]
  %v2718 = vld [vmem:[%s2688 + $0x158] sm:$0xff]
  %v2719 = vld [vmem:[%s2688 + $0x168] sm:$0xff]
  %v2720 = vld [vmem:[%s2688 + $0x170] sm:$0xff]
  %v2721 = vld [vmem:[%s2688 + $0x1b0] sm:$0xff]
  %v2722 = vld [vmem:[%s2688 + $0x1b8] sm:$0xff]
  %v2723 = vld [vmem:[%s2688 + $0x1c8] sm:$0xff]
  %v2724 = vld [vmem:[%s2688 + $0x1d0] sm:$0xff]
  %v2725 = vld [vmem:[%s2688 + $0x1e0] sm:$0xff]
  %v2726 = vld [vmem:[%s2688 + $0x1e8] sm:$0xff]
  %v2727 = vld [vmem:[%s2688 + $0x1f8] sm:$0xff]
  %v2728 = vld [vmem:[%s2688 + $0x200] sm:$0xff]
  %v2729 = vld [vmem:[%s2688 + $0x210] sm:$0xff]
  %v2730 = vld [vmem:[%s2688 + $0x218] sm:$0xff]
  %v2731 = vld [vmem:[%s2688 + $0x228] sm:$0xff]
  %v2732 = vld [vmem:[%s2688 + $0x230] sm:$0xff]
  %v2733 = vld [vmem:[%s2688 + $0x240] sm:$0xff]
  %v2734 = vld [vmem:[%s2688 + $0x248] sm:$0xff]
  %v2735 = vld [vmem:[%s2688 + $0x258] sm:$0xff]
  %v2736 = vld [vmem:[%s2688 + $0x260] sm:$0xff]
  %v2737 = vld [vmem:[%s2688 + $0x270] sm:$0xff]
  %v2738 = vld [vmem:[%s2688 + $0x278] sm:$0xff]
  %v2739 = vld [vmem:[%s2688 + $0x288] sm:$0xff]
  %v2740 = vld [vmem:[%s2688 + $0x290] sm:$0xff]
  %v2741 = vld [vmem:[%s2688 + $0x2a0] sm:$0xff]
  %v2742 = vld [vmem:[%s2688 + $0x2a8] sm:$0xff]
  %v2743 = vld [vmem:[%s2688 + $0x2b8] sm:$0xff]
  %v2744 = vld [vmem:[%s2688 + $0x2c0] sm:$0xff]
  %v2745 = vld [vmem:[%s2688 + $0x2d0] sm:$0xff]
  %v2746 = vld [vmem:[%s2688 + $0x2d8] sm:$0xff]
  %v2747 = vld [vmem:[%s2688 + $0x2e8] sm:$0xff]
  %v2748 = vld [vmem:[%s2688 + $0x2f0] sm:$0xff]
  %v2749 = vld [vmem:[%s2688 + $0x300] sm:$0xff]
  %v2750 = vld [vmem:[%s2688 + $0x308] sm:$0xff]
  %v2751 = vld [vmem:[%s2688 + $0x318] sm:$0xff]
  %v2752 = vld [vmem:[%s2688 + $0x320] sm:$0xff]
  %v2753 = vld [vmem:[%s2688 + $0x1] sm:$0xff]
  %v2754 = vld [vmem:[%s2688 + $0x9] sm:$0xff]
  %v2755 = vld [vmem:[%s2688 + $0x19] sm:$0xff]
  %v2756 = vld [vmem:[%s2688 + $0x21] sm:$0xff]
  %v2757 = vld [vmem:[%s2688 + $0x31] sm:$0xff]
  %v2758 = vld [vmem:[%s2688 + $0x39] sm:$0xff]
  %v2759 = vld [vmem:[%s2688 + $0x49] sm:$0xff]
  %v2760 = vld [vmem:[%s2688 + $0x51] sm:$0xff]
  %v2761 = vld [vmem:[%s2688 + $0x61] sm:$0xff]
  %v2762 = vld [vmem:[%s2688 + $0x69] sm:$0xff]
  %v2763 = vld [vmem:[%s2688 + $0x79] sm:$0xff]
  %v2764 = vld [vmem:[%s2688 + $0x81] sm:$0xff]
  %v2765 = vld [vmem:[%s2688 + $0x91] sm:$0xff]
  %v2766 = vld [vmem:[%s2688 + $0x99] sm:$0xff]
  %v2767 = vld [vmem:[%s2688 + $0xa9] sm:$0xff]
  %v2768 = vld [vmem:[%s2688 + $0xb1] sm:$0xff]
  %v2769 = vld [vmem:[%s2688 + $0xc1] sm:$0xff]
  %v2770 = vld [vmem:[%s2688 + $0xc9] sm:$0xff]
  %v2771 = vld [vmem:[%s2688 + $0xd9] sm:$0xff]
  %v2772 = vld [vmem:[%s2688 + $0xe1] sm:$0xff]
  %v2773 = vld [vmem:[%s2688 + $0xf1] sm:$0xff]
  %v2774 = vld [vmem:[%s2688 + $0xf9] sm:$0xff]
  %v2775 = vld [vmem:[%s2688 + $0x109] sm:$0xff]
  %v2776 = vld [vmem:[%s2688 + $0x111] sm:$0xff]
  %v2777 = vld [vmem:[%s2688 + $0x121] sm:$0xff]
  %v2778 = vld [vmem:[%s2688 + $0x129] sm:$0xff]
  %v2779 = vld [vmem:[%s2688 + $0x139] sm:$0xff]
  %v2780 = vld [vmem:[%s2688 + $0x141] sm:$0xff]
  %v2781 = vld [vmem:[%s2688 + $0x151] sm:$0xff]
  %v2782 = vld [vmem:[%s2688 + $0x159] sm:$0xff]
  %v2783 = vld [vmem:[%s2688 + $0x169] sm:$0xff]
  %v2784 = vld [vmem:[%s2688 + $0x171] sm:$0xff]
  %v2785 = vld [vmem:[%s2688 + $0x1b1] sm:$0xff]
  %v2786 = vld [vmem:[%s2688 + $0x1b9] sm:$0xff]
  %v2787 = vld [vmem:[%s2688 + $0x1c9] sm:$0xff]
  %v2788 = vld [vmem:[%s2688 + $0x1d1] sm:$0xff]
  %v2789 = vld [vmem:[%s2688 + $0x1e1] sm:$0xff]
  %v2790 = vld [vmem:[%s2688 + $0x1e9] sm:$0xff]
  %v2791 = vld [vmem:[%s2688 + $0x1f9] sm:$0xff]
  %v2792 = vld [vmem:[%s2688 + $0x201] sm:$0xff]
  %v2793 = vld [vmem:[%s2688 + $0x211] sm:$0xff]
  %v2794 = vld [vmem:[%s2688 + $0x219] sm:$0xff]
  %v2795 = vld [vmem:[%s2688 + $0x229] sm:$0xff]
  %v2796 = vld [vmem:[%s2688 + $0x231] sm:$0xff]
  %v2797 = vld [vmem:[%s2688 + $0x241] sm:$0xff]
  %v2798 = vld [vmem:[%s2688 + $0x249] sm:$0xff]
  %v2799 = vld [vmem:[%s2688 + $0x259] sm:$0xff]
  %v2800 = vld [vmem:[%s2688 + $0x261] sm:$0xff]
  %v2801 = vld [vmem:[%s2688 + $0x271] sm:$0xff]
  %v2802 = vld [vmem:[%s2688 + $0x279] sm:$0xff]
  %v2803 = vld [vmem:[%s2688 + $0x289] sm:$0xff]
  %v2804 = vld [vmem:[%s2688 + $0x291] sm:$0xff]
  %v2805 = vld [vmem:[%s2688 + $0x2a1] sm:$0xff]
  %v2806 = vld [vmem:[%s2688 + $0x2a9] sm:$0xff]
  %v2807 = vld [vmem:[%s2688 + $0x2b9] sm:$0xff]
  %v2808 = vld [vmem:[%s2688 + $0x2c1] sm:$0xff]
  %v2809 = vld [vmem:[%s2688 + $0x2d1] sm:$0xff]
  %v2810 = vld [vmem:[%s2688 + $0x2d9] sm:$0xff]
  %v2811 = vld [vmem:[%s2688 + $0x2e9] sm:$0xff]
  %v2812 = vld [vmem:[%s2688 + $0x2f1] sm:$0xff]
  %v2813 = vld [vmem:[%s2688 + $0x301] sm:$0xff]
  %v2814 = vld [vmem:[%s2688 + $0x309] sm:$0xff]
  %v2815 = vld [vmem:[%s2688 + $0x319] sm:$0xff]
  %v2816 = vld [vmem:[%s2688 + $0x321] sm:$0xff]
  %v2817 = vld [vmem:[%s2688 + $0x2] sm:$0xff]
  %v2818 = vld [vmem:[%s2688 + $0xa] sm:$0xff]
  %v2819 = vld [vmem:[%s2688 + $0x1a] sm:$0xff]
  %v2820 = vld [vmem:[%s2688 + $0x22] sm:$0xff]
  %v2821 = vld [vmem:[%s2688 + $0x32] sm:$0xff]
  %v2822 = vld [vmem:[%s2688 + $0x3a] sm:$0xff]
  %v2823 = vld [vmem:[%s2688 + $0x4a] sm:$0xff]
  %v2824 = vld [vmem:[%s2688 + $0x52] sm:$0xff]
  %v2825 = vld [vmem:[%s2688 + $0x62] sm:$0xff]
  %v2826 = vld [vmem:[%s2688 + $0x6a] sm:$0xff]
  %v2827 = vld [vmem:[%s2688 + $0x7a] sm:$0xff]
  %v2828 = vld [vmem:[%s2688 + $0x82] sm:$0xff]
  %v2829 = vld [vmem:[%s2688 + $0x92] sm:$0xff]
  %v2830 = vld [vmem:[%s2688 + $0x9a] sm:$0xff]
  %v2831 = vld [vmem:[%s2688 + $0xaa] sm:$0xff]
  %v2832 = vld [vmem:[%s2688 + $0xb2] sm:$0xff]
  %v2833 = vld [vmem:[%s2688 + $0xc2] sm:$0xff]
  %v2834 = vld [vmem:[%s2688 + $0xca] sm:$0xff]
  %v2835 = vld [vmem:[%s2688 + $0xda] sm:$0xff]
  %v2836 = vld [vmem:[%s2688 + $0xe2] sm:$0xff]
  %v2837 = vld [vmem:[%s2688 + $0xf2] sm:$0xff]
  %v2838 = vld [vmem:[%s2688 + $0xfa] sm:$0xff]
  %v2839 = vld [vmem:[%s2688 + $0x10a] sm:$0xff]
  %v2840 = vld [vmem:[%s2688 + $0x112] sm:$0xff]
  %v2841 = vld [vmem:[%s2688 + $0x122] sm:$0xff]
  %v2842 = vld [vmem:[%s2688 + $0x12a] sm:$0xff]
  %v2843 = vld [vmem:[%s2688 + $0x13a] sm:$0xff]
  %v2844 = vld [vmem:[%s2688 + $0x142] sm:$0xff]
  %v2845 = vld [vmem:[%s2688 + $0x152] sm:$0xff]
  %v2846 = vld [vmem:[%s2688 + $0x15a] sm:$0xff]
  %v2847 = vld [vmem:[%s2688 + $0x16a] sm:$0xff]
  %v2848 = vld [vmem:[%s2688 + $0x172] sm:$0xff]
  %v2849 = vld [vmem:[%s2688 + $0x1b2] sm:$0xff]
  %v2850 = vld [vmem:[%s2688 + $0x1ba] sm:$0xff]
  %v2851 = vld [vmem:[%s2688 + $0x1ca] sm:$0xff]
  %v2852 = vld [vmem:[%s2688 + $0x1d2] sm:$0xff]
  %v2853 = vld [vmem:[%s2688 + $0x1e2] sm:$0xff]
  %v2854 = vld [vmem:[%s2688 + $0x1ea] sm:$0xff]
  %v2855 = vld [vmem:[%s2688 + $0x1fa] sm:$0xff]
  %v2856 = vld [vmem:[%s2688 + $0x202] sm:$0xff]
  %v2857 = vld [vmem:[%s2688 + $0x212] sm:$0xff]
  %v2858 = vld [vmem:[%s2688 + $0x21a] sm:$0xff]
  %v2859 = vld [vmem:[%s2688 + $0x22a] sm:$0xff]
  %v2860 = vld [vmem:[%s2688 + $0x232] sm:$0xff]
  %v2861 = vld [vmem:[%s2688 + $0x242] sm:$0xff]
  %v2862 = vld [vmem:[%s2688 + $0x24a] sm:$0xff]
  %v2863 = vld [vmem:[%s2688 + $0x25a] sm:$0xff]
  %v2864 = vld [vmem:[%s2688 + $0x262] sm:$0xff]
  %v2865 = vld [vmem:[%s2688 + $0x272] sm:$0xff]
  %v2866 = vld [vmem:[%s2688 + $0x27a] sm:$0xff]
  %v2867 = vld [vmem:[%s2688 + $0x28a] sm:$0xff]
  %v2868 = vld [vmem:[%s2688 + $0x292] sm:$0xff]
  %v2869 = vld [vmem:[%s2688 + $0x2a2] sm:$0xff]
  %v2870 = vld [vmem:[%s2688 + $0x2aa] sm:$0xff]
  %v2871 = vld [vmem:[%s2688 + $0x2ba] sm:$0xff]
  %v2872 = vld [vmem:[%s2688 + $0x2c2] sm:$0xff]
  %v2873 = vld [vmem:[%s2688 + $0x2d2] sm:$0xff]
  %v2874 = vld [vmem:[%s2688 + $0x2da] sm:$0xff]
  %v2875 = vld [vmem:[%s2688 + $0x2ea] sm:$0xff]
  %v2876 = vld [vmem:[%s2688 + $0x2f2] sm:$0xff]
  %v2877 = vld [vmem:[%s2688 + $0x302] sm:$0xff]
  %v2878 = vld [vmem:[%s2688 + $0x30a] sm:$0xff]
  %v2879 = vld [vmem:[%s2688 + $0x31a] sm:$0xff]
  %v2880 = vld [vmem:[%s2688 + $0x322] sm:$0xff]
  %2945 = vrot.lane.b32.xlu0 %v2368, 4
  %v2946 = vpop.permute.xlu0 %2945
  %2947 = vrot.lane.b32.xlu0 %v2369, 4
  %v2948 = vpop.permute.xlu0 %2947
  %2949 = vrot.lane.b32.xlu0 %v2370, 4
  %v2950 = vpop.permute.xlu0 %2949
  %2951 = vrot.lane.b32.xlu0 %v2371, 4
  %v2952 = vpop.permute.xlu0 %2951
  %2953 = vrot.lane.b32.xlu0 %v2372, 4
  %v2954 = vpop.permute.xlu0 %2953
  %2955 = vrot.lane.b32.xlu0 %v2373, 4
  %v2956 = vpop.permute.xlu0 %2955
  %2957 = vrot.lane.b32.xlu0 %v2374, 4
  %v2958 = vpop.permute.xlu0 %2957
  %2959 = vrot.lane.b32.xlu0 %v2375, 4
  %v2960 = vpop.permute.xlu0 %2959
  %2961 = vrot.lane.b32.xlu0 %v2376, 4
  %v2962 = vpop.permute.xlu0 %2961
  %2963 = vrot.lane.b32.xlu0 %v2377, 4
  %v2964 = vpop.permute.xlu0 %2963
  %2965 = vrot.lane.b32.xlu0 %v2378, 4
  %v2966 = vpop.permute.xlu0 %2965
  %2967 = vrot.lane.b32.xlu0 %v2379, 4
  %v2968 = vpop.permute.xlu0 %2967
  %2969 = vrot.lane.b32.xlu0 %v2380, 4
  %v2970 = vpop.permute.xlu0 %2969
  %2971 = vrot.lane.b32.xlu0 %v2381, 4
  %v2972 = vpop.permute.xlu0 %2971
  %2973 = vrot.lane.b32.xlu0 %v2382, 4
  %v2974 = vpop.permute.xlu0 %2973
  %2975 = vrot.lane.b32.xlu0 %v2383, 4
  %v2976 = vpop.permute.xlu0 %2975
  %2977 = vrot.lane.b32.xlu0 %v2384, 4
  %v2978 = vpop.permute.xlu0 %2977
  %2979 = vrot.lane.b32.xlu0 %v2385, 4
  %v2980 = vpop.permute.xlu0 %2979
  %2981 = vrot.lane.b32.xlu0 %v2386, 4
  %v2982 = vpop.permute.xlu0 %2981
  %2983 = vrot.lane.b32.xlu0 %v2387, 4
  %v2984 = vpop.permute.xlu0 %2983
  %2985 = vrot.lane.b32.xlu0 %v2388, 4
  %v2986 = vpop.permute.xlu0 %2985
  %2987 = vrot.lane.b32.xlu0 %v2389, 4
  %v2988 = vpop.permute.xlu0 %2987
  %2989 = vrot.lane.b32.xlu0 %v2390, 4
  %v2990 = vpop.permute.xlu0 %2989
  %2991 = vrot.lane.b32.xlu0 %v2391, 4
  %v2992 = vpop.permute.xlu0 %2991
  %2993 = vrot.lane.b32.xlu0 %v2392, 4
  %v2994 = vpop.permute.xlu0 %2993
  %2995 = vrot.lane.b32.xlu0 %v2393, 4
  %v2996 = vpop.permute.xlu0 %2995
  %2997 = vrot.lane.b32.xlu0 %v2394, 4
  %v2998 = vpop.permute.xlu0 %2997
  %2999 = vrot.lane.b32.xlu0 %v2395, 4
  %v3000 = vpop.permute.xlu0 %2999
  %3001 = vrot.lane.b32.xlu0 %v2396, 4
  %v3002 = vpop.permute.xlu0 %3001
  %3003 = vrot.lane.b32.xlu0 %v2397, 4
  %v3004 = vpop.permute.xlu0 %3003
  %3005 = vrot.lane.b32.xlu0 %v2398, 4
  %v3006 = vpop.permute.xlu0 %3005
  %3007 = vrot.lane.b32.xlu0 %v2399, 4
  %v3008 = vpop.permute.xlu0 %3007
  %3009 = vrot.lane.b32.xlu0 %v2400, 4
  %v3010 = vpop.permute.xlu0 %3009
  %3011 = vrot.lane.b32.xlu0 %v2401, 4
  %v3012 = vpop.permute.xlu0 %3011
  %3013 = vrot.lane.b32.xlu0 %v2402, 4
  %v3014 = vpop.permute.xlu0 %3013
  %3015 = vrot.lane.b32.xlu0 %v2403, 4
  %v3016 = vpop.permute.xlu0 %3015
  %3017 = vrot.lane.b32.xlu0 %v2404, 4
  %v3018 = vpop.permute.xlu0 %3017
  %3019 = vrot.lane.b32.xlu0 %v2405, 4
  %v3020 = vpop.permute.xlu0 %3019
  %3021 = vrot.lane.b32.xlu0 %v2406, 4
  %v3022 = vpop.permute.xlu0 %3021
  %3023 = vrot.lane.b32.xlu0 %v2407, 4
  %v3024 = vpop.permute.xlu0 %3023
  %3025 = vrot.lane.b32.xlu0 %v2408, 4
  %v3026 = vpop.permute.xlu0 %3025
  %3027 = vrot.lane.b32.xlu0 %v2409, 4
  %v3028 = vpop.permute.xlu0 %3027
  %3029 = vrot.lane.b32.xlu0 %v2410, 4
  %v3030 = vpop.permute.xlu0 %3029
  %3031 = vrot.lane.b32.xlu0 %v2411, 4
  %v3032 = vpop.permute.xlu0 %3031
  %3033 = vrot.lane.b32.xlu0 %v2412, 4
  %v3034 = vpop.permute.xlu0 %3033
  %3035 = vrot.lane.b32.xlu0 %v2413, 4
  %v3036 = vpop.permute.xlu0 %3035
  %3037 = vrot.lane.b32.xlu0 %v2414, 4
  %v3038 = vpop.permute.xlu0 %3037
  %3039 = vrot.lane.b32.xlu0 %v2415, 4
  %v3040 = vpop.permute.xlu0 %3039
  %3041 = vrot.lane.b32.xlu0 %v2416, 4
  %v3042 = vpop.permute.xlu0 %3041
  %3043 = vrot.lane.b32.xlu0 %v2417, 4
  %v3044 = vpop.permute.xlu0 %3043
  %3045 = vrot.lane.b32.xlu0 %v2418, 4
  %v3046 = vpop.permute.xlu0 %3045
  %3047 = vrot.lane.b32.xlu0 %v2419, 4
  %v3048 = vpop.permute.xlu0 %3047
  %3049 = vrot.lane.b32.xlu0 %v2420, 4
  %v3050 = vpop.permute.xlu0 %3049
  %3051 = vrot.lane.b32.xlu0 %v2421, 4
  %v3052 = vpop.permute.xlu0 %3051
  %3053 = vrot.lane.b32.xlu0 %v2422, 4
  %v3054 = vpop.permute.xlu0 %3053
  %3055 = vrot.lane.b32.xlu0 %v2423, 4
  %v3056 = vpop.permute.xlu0 %3055
  %3057 = vrot.lane.b32.xlu0 %v2424, 4
  %v3058 = vpop.permute.xlu0 %3057
  %3059 = vrot.lane.b32.xlu0 %v2425, 4
  %v3060 = vpop.permute.xlu0 %3059
  %3061 = vrot.lane.b32.xlu0 %v2426, 4
  %v3062 = vpop.permute.xlu0 %3061
  %3063 = vrot.lane.b32.xlu0 %v2427, 4
  %v3064 = vpop.permute.xlu0 %3063
  %3065 = vrot.lane.b32.xlu0 %v2428, 4
  %v3066 = vpop.permute.xlu0 %3065
  %3067 = vrot.lane.b32.xlu0 %v2429, 4
  %v3068 = vpop.permute.xlu0 %3067
  %3069 = vrot.lane.b32.xlu0 %v2430, 4
  %v3070 = vpop.permute.xlu0 %3069
  %3071 = vrot.lane.b32.xlu0 %v2431, 4
  %v3072 = vpop.permute.xlu0 %3071
  %3201 = vrot.lane.b32.xlu0 %v2432, 8
  %v3202 = vpop.permute.xlu0 %3201
  %3203 = vrot.lane.b32.xlu0 %v2433, 8
  %v3204 = vpop.permute.xlu0 %3203
  %3205 = vrot.lane.b32.xlu0 %v2434, 8
  %v3206 = vpop.permute.xlu0 %3205
  %3207 = vrot.lane.b32.xlu0 %v2435, 8
  %v3208 = vpop.permute.xlu0 %3207
  %3209 = vrot.lane.b32.xlu0 %v2436, 8
  %v3210 = vpop.permute.xlu0 %3209
  %3211 = vrot.lane.b32.xlu0 %v2437, 8
  %v3212 = vpop.permute.xlu0 %3211
  %3213 = vrot.lane.b32.xlu0 %v2438, 8
  %v3214 = vpop.permute.xlu0 %3213
  %3215 = vrot.lane.b32.xlu0 %v2439, 8
  %v3216 = vpop.permute.xlu0 %3215
  %3217 = vrot.lane.b32.xlu0 %v2440, 8
  %v3218 = vpop.permute.xlu0 %3217
  %3219 = vrot.lane.b32.xlu0 %v2441, 8
  %v3220 = vpop.permute.xlu0 %3219
  %3221 = vrot.lane.b32.xlu0 %v2442, 8
  %v3222 = vpop.permute.xlu0 %3221
  %3223 = vrot.lane.b32.xlu0 %v2443, 8
  %v3224 = vpop.permute.xlu0 %3223
  %3225 = vrot.lane.b32.xlu0 %v2444, 8
  %v3226 = vpop.permute.xlu0 %3225
  %3227 = vrot.lane.b32.xlu0 %v2445, 8
  %v3228 = vpop.permute.xlu0 %3227
  %3229 = vrot.lane.b32.xlu0 %v2446, 8
  %v3230 = vpop.permute.xlu0 %3229
  %3231 = vrot.lane.b32.xlu0 %v2447, 8
  %v3232 = vpop.permute.xlu0 %3231
  %3233 = vrot.lane.b32.xlu0 %v2448, 8
  %v3234 = vpop.permute.xlu0 %3233
  %3235 = vrot.lane.b32.xlu0 %v2449, 8
  %v3236 = vpop.permute.xlu0 %3235
  %3237 = vrot.lane.b32.xlu0 %v2450, 8
  %v3238 = vpop.permute.xlu0 %3237
  %3239 = vrot.lane.b32.xlu0 %v2451, 8
  %v3240 = vpop.permute.xlu0 %3239
  %3241 = vrot.lane.b32.xlu0 %v2452, 8
  %v3242 = vpop.permute.xlu0 %3241
  %3243 = vrot.lane.b32.xlu0 %v2453, 8
  %v3244 = vpop.permute.xlu0 %3243
  %3245 = vrot.lane.b32.xlu0 %v2454, 8
  %v3246 = vpop.permute.xlu0 %3245
  %3247 = vrot.lane.b32.xlu0 %v2455, 8
  %v3248 = vpop.permute.xlu0 %3247
  %3249 = vrot.lane.b32.xlu0 %v2456, 8
  %v3250 = vpop.permute.xlu0 %3249
  %3251 = vrot.lane.b32.xlu0 %v2457, 8
  %v3252 = vpop.permute.xlu0 %3251
  %3253 = vrot.lane.b32.xlu0 %v2458, 8
  %v3254 = vpop.permute.xlu0 %3253
  %3255 = vrot.lane.b32.xlu0 %v2459, 8
  %v3256 = vpop.permute.xlu0 %3255
  %3257 = vrot.lane.b32.xlu0 %v2460, 8
  %v3258 = vpop.permute.xlu0 %3257
  %3259 = vrot.lane.b32.xlu0 %v2461, 8
  %v3260 = vpop.permute.xlu0 %3259
  %3261 = vrot.lane.b32.xlu0 %v2462, 8
  %v3262 = vpop.permute.xlu0 %3261
  %3263 = vrot.lane.b32.xlu0 %v2463, 8
  %v3264 = vpop.permute.xlu0 %3263
  %3265 = vrot.lane.b32.xlu0 %v2464, 8
  %v3266 = vpop.permute.xlu0 %3265
  %3267 = vrot.lane.b32.xlu0 %v2465, 8
  %v3268 = vpop.permute.xlu0 %3267
  %3269 = vrot.lane.b32.xlu0 %v2466, 8
  %v3270 = vpop.permute.xlu0 %3269
  %3271 = vrot.lane.b32.xlu0 %v2467, 8
  %v3272 = vpop.permute.xlu0 %3271
  %3273 = vrot.lane.b32.xlu0 %v2468, 8
  %v3274 = vpop.permute.xlu0 %3273
  %3275 = vrot.lane.b32.xlu0 %v2469, 8
  %v3276 = vpop.permute.xlu0 %3275
  %3277 = vrot.lane.b32.xlu0 %v2470, 8
  %v3278 = vpop.permute.xlu0 %3277
  %3279 = vrot.lane.b32.xlu0 %v2471, 8
  %v3280 = vpop.permute.xlu0 %3279
  %3281 = vrot.lane.b32.xlu0 %v2472, 8
  %v3282 = vpop.permute.xlu0 %3281
  %3283 = vrot.lane.b32.xlu0 %v2473, 8
  %v3284 = vpop.permute.xlu0 %3283
  %3285 = vrot.lane.b32.xlu0 %v2474, 8
  %v3286 = vpop.permute.xlu0 %3285
  %3287 = vrot.lane.b32.xlu0 %v2475, 8
  %v3288 = vpop.permute.xlu0 %3287
  %3289 = vrot.lane.b32.xlu0 %v2476, 8
  %v3290 = vpop.permute.xlu0 %3289
  %3291 = vrot.lane.b32.xlu0 %v2477, 8
  %v3292 = vpop.permute.xlu0 %3291
  %3293 = vrot.lane.b32.xlu0 %v2478, 8
  %v3294 = vpop.permute.xlu0 %3293
  %3295 = vrot.lane.b32.xlu0 %v2479, 8
  %v3296 = vpop.permute.xlu0 %3295
  %3297 = vrot.lane.b32.xlu0 %v2480, 8
  %v3298 = vpop.permute.xlu0 %3297
  %3299 = vrot.lane.b32.xlu0 %v2481, 8
  %v3300 = vpop.permute.xlu0 %3299
  %3301 = vrot.lane.b32.xlu0 %v2482, 8
  %v3302 = vpop.permute.xlu0 %3301
  %3303 = vrot.lane.b32.xlu0 %v2483, 8
  %v3304 = vpop.permute.xlu0 %3303
  %3305 = vrot.lane.b32.xlu0 %v2484, 8
  %v3306 = vpop.permute.xlu0 %3305
  %3307 = vrot.lane.b32.xlu0 %v2485, 8
  %v3308 = vpop.permute.xlu0 %3307
  %3309 = vrot.lane.b32.xlu0 %v2486, 8
  %v3310 = vpop.permute.xlu0 %3309
  %3311 = vrot.lane.b32.xlu0 %v2487, 8
  %v3312 = vpop.permute.xlu0 %3311
  %3313 = vrot.lane.b32.xlu0 %v2488, 8
  %v3314 = vpop.permute.xlu0 %3313
  %3315 = vrot.lane.b32.xlu0 %v2489, 8
  %v3316 = vpop.permute.xlu0 %3315
  %3317 = vrot.lane.b32.xlu0 %v2490, 8
  %v3318 = vpop.permute.xlu0 %3317
  %3319 = vrot.lane.b32.xlu0 %v2491, 8
  %v3320 = vpop.permute.xlu0 %3319
  %3321 = vrot.lane.b32.xlu0 %v2492, 8
  %v3322 = vpop.permute.xlu0 %3321
  %3323 = vrot.lane.b32.xlu0 %v2493, 8
  %v3324 = vpop.permute.xlu0 %3323
  %3325 = vrot.lane.b32.xlu0 %v2494, 8
  %v3326 = vpop.permute.xlu0 %3325
  %3327 = vrot.lane.b32.xlu0 %v2495, 8
  %v3328 = vpop.permute.xlu0 %3327
  %3457 = vrot.lane.b32.xlu0 %v2496, 12
  %v3458 = vpop.permute.xlu0 %3457
  %3459 = vrot.lane.b32.xlu0 %v2497, 12
  %v3460 = vpop.permute.xlu0 %3459
  %3461 = vrot.lane.b32.xlu0 %v2498, 12
  %v3462 = vpop.permute.xlu0 %3461
  %3463 = vrot.lane.b32.xlu0 %v2499, 12
  %v3464 = vpop.permute.xlu0 %3463
  %3465 = vrot.lane.b32.xlu0 %v2500, 12
  %v3466 = vpop.permute.xlu0 %3465
  %3467 = vrot.lane.b32.xlu0 %v2501, 12
  %v3468 = vpop.permute.xlu0 %3467
  %3469 = vrot.lane.b32.xlu0 %v2502, 12
  %v3470 = vpop.permute.xlu0 %3469
  %3471 = vrot.lane.b32.xlu0 %v2503, 12
  %v3472 = vpop.permute.xlu0 %3471
  %3473 = vrot.lane.b32.xlu0 %v2504, 12
  %v3474 = vpop.permute.xlu0 %3473
  %3475 = vrot.lane.b32.xlu0 %v2505, 12
  %v3476 = vpop.permute.xlu0 %3475
  %3477 = vrot.lane.b32.xlu0 %v2506, 12
  %v3478 = vpop.permute.xlu0 %3477
  %3479 = vrot.lane.b32.xlu0 %v2507, 12
  %v3480 = vpop.permute.xlu0 %3479
  %3481 = vrot.lane.b32.xlu0 %v2508, 12
  %v3482 = vpop.permute.xlu0 %3481
  %3483 = vrot.lane.b32.xlu0 %v2509, 12
  %v3484 = vpop.permute.xlu0 %3483
  %3485 = vrot.lane.b32.xlu0 %v2510, 12
  %v3486 = vpop.permute.xlu0 %3485
  %3487 = vrot.lane.b32.xlu0 %v2511, 12
  %v3488 = vpop.permute.xlu0 %3487
  %3489 = vrot.lane.b32.xlu0 %v2512, 12
  %v3490 = vpop.permute.xlu0 %3489
  %3491 = vrot.lane.b32.xlu0 %v2513, 12
  %v3492 = vpop.permute.xlu0 %3491
  %3493 = vrot.lane.b32.xlu0 %v2514, 12
  %v3494 = vpop.permute.xlu0 %3493
  %3495 = vrot.lane.b32.xlu0 %v2515, 12
  %v3496 = vpop.permute.xlu0 %3495
  %3497 = vrot.lane.b32.xlu0 %v2516, 12
  %v3498 = vpop.permute.xlu0 %3497
  %3499 = vrot.lane.b32.xlu0 %v2517, 12
  %v3500 = vpop.permute.xlu0 %3499
  %3501 = vrot.lane.b32.xlu0 %v2518, 12
  %v3502 = vpop.permute.xlu0 %3501
  %3503 = vrot.lane.b32.xlu0 %v2519, 12
  %v3504 = vpop.permute.xlu0 %3503
  %3505 = vrot.lane.b32.xlu0 %v2520, 12
  %v3506 = vpop.permute.xlu0 %3505
  %3507 = vrot.lane.b32.xlu0 %v2521, 12
  %v3508 = vpop.permute.xlu0 %3507
  %3509 = vrot.lane.b32.xlu0 %v2522, 12
  %v3510 = vpop.permute.xlu0 %3509
  %3511 = vrot.lane.b32.xlu0 %v2523, 12
  %v3512 = vpop.permute.xlu0 %3511
  %3513 = vrot.lane.b32.xlu0 %v2524, 12
  %v3514 = vpop.permute.xlu0 %3513
  %3515 = vrot.lane.b32.xlu0 %v2525, 12
  %v3516 = vpop.permute.xlu0 %3515
  %3517 = vrot.lane.b32.xlu0 %v2526, 12
  %v3518 = vpop.permute.xlu0 %3517
  %3519 = vrot.lane.b32.xlu0 %v2527, 12
  %v3520 = vpop.permute.xlu0 %3519
  %3521 = vrot.lane.b32.xlu0 %v2528, 12
  %v3522 = vpop.permute.xlu0 %3521
  %3523 = vrot.lane.b32.xlu0 %v2529, 12
  %v3524 = vpop.permute.xlu0 %3523
  %3525 = vrot.lane.b32.xlu0 %v2530, 12
  %v3526 = vpop.permute.xlu0 %3525
  %3527 = vrot.lane.b32.xlu0 %v2531, 12
  %v3528 = vpop.permute.xlu0 %3527
  %3529 = vrot.lane.b32.xlu0 %v2532, 12
  %v3530 = vpop.permute.xlu0 %3529
  %3531 = vrot.lane.b32.xlu0 %v2533, 12
  %v3532 = vpop.permute.xlu0 %3531
  %3533 = vrot.lane.b32.xlu0 %v2534, 12
  %v3534 = vpop.permute.xlu0 %3533
  %3535 = vrot.lane.b32.xlu0 %v2535, 12
  %v3536 = vpop.permute.xlu0 %3535
  %3537 = vrot.lane.b32.xlu0 %v2536, 12
  %v3538 = vpop.permute.xlu0 %3537
  %3539 = vrot.lane.b32.xlu0 %v2537, 12
  %v3540 = vpop.permute.xlu0 %3539
  %3541 = vrot.lane.b32.xlu0 %v2538, 12
  %v3542 = vpop.permute.xlu0 %3541
  %3543 = vrot.lane.b32.xlu0 %v2539, 12
  %v3544 = vpop.permute.xlu0 %3543
  %3545 = vrot.lane.b32.xlu0 %v2540, 12
  %v3546 = vpop.permute.xlu0 %3545
  %3547 = vrot.lane.b32.xlu0 %v2541, 12
  %v3548 = vpop.permute.xlu0 %3547
  %3549 = vrot.lane.b32.xlu0 %v2542, 12
  %v3550 = vpop.permute.xlu0 %3549
  %3551 = vrot.lane.b32.xlu0 %v2543, 12
  %v3552 = vpop.permute.xlu0 %3551
  %3553 = vrot.lane.b32.xlu0 %v2544, 12
  %v3554 = vpop.permute.xlu0 %3553
  %3555 = vrot.lane.b32.xlu0 %v2545, 12
  %v3556 = vpop.permute.xlu0 %3555
  %3557 = vrot.lane.b32.xlu0 %v2546, 12
  %v3558 = vpop.permute.xlu0 %3557
  %3559 = vrot.lane.b32.xlu0 %v2547, 12
  %v3560 = vpop.permute.xlu0 %3559
  %3561 = vrot.lane.b32.xlu0 %v2548, 12
  %v3562 = vpop.permute.xlu0 %3561
  %3563 = vrot.lane.b32.xlu0 %v2549, 12
  %v3564 = vpop.permute.xlu0 %3563
  %3565 = vrot.lane.b32.xlu0 %v2550, 12
  %v3566 = vpop.permute.xlu0 %3565
  %3567 = vrot.lane.b32.xlu0 %v2551, 12
  %v3568 = vpop.permute.xlu0 %3567
  %3569 = vrot.lane.b32.xlu0 %v2552, 12
  %v3570 = vpop.permute.xlu0 %3569
  %3571 = vrot.lane.b32.xlu0 %v2553, 12
  %v3572 = vpop.permute.xlu0 %3571
  %3573 = vrot.lane.b32.xlu0 %v2554, 12
  %v3574 = vpop.permute.xlu0 %3573
  %3575 = vrot.lane.b32.xlu0 %v2555, 12
  %v3576 = vpop.permute.xlu0 %3575
  %3577 = vrot.lane.b32.xlu0 %v2556, 12
  %v3578 = vpop.permute.xlu0 %3577
  %3579 = vrot.lane.b32.xlu0 %v2557, 12
  %v3580 = vpop.permute.xlu0 %3579
  %3581 = vrot.lane.b32.xlu0 %v2558, 12
  %v3582 = vpop.permute.xlu0 %3581
  %3583 = vrot.lane.b32.xlu0 %v2559, 12
  %v3584 = vpop.permute.xlu0 %3583
  %3713 = vrot.lane.b32.xlu0 %v2560, 16
  %v3714 = vpop.permute.xlu0 %3713
  %3715 = vrot.lane.b32.xlu0 %v2561, 16
  %v3716 = vpop.permute.xlu0 %3715
  %3717 = vrot.lane.b32.xlu0 %v2562, 16
  %v3718 = vpop.permute.xlu0 %3717
  %3719 = vrot.lane.b32.xlu0 %v2563, 16
  %v3720 = vpop.permute.xlu0 %3719
  %3721 = vrot.lane.b32.xlu0 %v2564, 16
  %v3722 = vpop.permute.xlu0 %3721
  %3723 = vrot.lane.b32.xlu0 %v2565, 16
  %v3724 = vpop.permute.xlu0 %3723
  %3725 = vrot.lane.b32.xlu0 %v2566, 16
  %v3726 = vpop.permute.xlu0 %3725
  %3727 = vrot.lane.b32.xlu0 %v2567, 16
  %v3728 = vpop.permute.xlu0 %3727
  %3729 = vrot.lane.b32.xlu0 %v2568, 16
  %v3730 = vpop.permute.xlu0 %3729
  %3731 = vrot.lane.b32.xlu0 %v2569, 16
  %v3732 = vpop.permute.xlu0 %3731
  %3733 = vrot.lane.b32.xlu0 %v2570, 16
  %v3734 = vpop.permute.xlu0 %3733
  %3735 = vrot.lane.b32.xlu0 %v2571, 16
  %v3736 = vpop.permute.xlu0 %3735
  %3737 = vrot.lane.b32.xlu0 %v2572, 16
  %v3738 = vpop.permute.xlu0 %3737
  %3739 = vrot.lane.b32.xlu0 %v2573, 16
  %v3740 = vpop.permute.xlu0 %3739
  %3741 = vrot.lane.b32.xlu0 %v2574, 16
  %v3742 = vpop.permute.xlu0 %3741
  %3743 = vrot.lane.b32.xlu0 %v2575, 16
  %v3744 = vpop.permute.xlu0 %3743
  %3745 = vrot.lane.b32.xlu0 %v2576, 16
  %v3746 = vpop.permute.xlu0 %3745
  %3747 = vrot.lane.b32.xlu0 %v2577, 16
  %v3748 = vpop.permute.xlu0 %3747
  %3749 = vrot.lane.b32.xlu0 %v2578, 16
  %v3750 = vpop.permute.xlu0 %3749
  %3751 = vrot.lane.b32.xlu0 %v2579, 16
  %v3752 = vpop.permute.xlu0 %3751
  %3753 = vrot.lane.b32.xlu0 %v2580, 16
  %v3754 = vpop.permute.xlu0 %3753
  %3755 = vrot.lane.b32.xlu0 %v2581, 16
  %v3756 = vpop.permute.xlu0 %3755
  %3757 = vrot.lane.b32.xlu0 %v2582, 16
  %v3758 = vpop.permute.xlu0 %3757
  %3759 = vrot.lane.b32.xlu0 %v2583, 16
  %v3760 = vpop.permute.xlu0 %3759
  %3761 = vrot.lane.b32.xlu0 %v2584, 16
  %v3762 = vpop.permute.xlu0 %3761
  %3763 = vrot.lane.b32.xlu0 %v2585, 16
  %v3764 = vpop.permute.xlu0 %3763
  %3765 = vrot.lane.b32.xlu0 %v2586, 16
  %v3766 = vpop.permute.xlu0 %3765
  %3767 = vrot.lane.b32.xlu0 %v2587, 16
  %v3768 = vpop.permute.xlu0 %3767
  %3769 = vrot.lane.b32.xlu0 %v2588, 16
  %v3770 = vpop.permute.xlu0 %3769
  %3771 = vrot.lane.b32.xlu0 %v2589, 16
  %v3772 = vpop.permute.xlu0 %3771
  %3773 = vrot.lane.b32.xlu0 %v2590, 16
  %v3774 = vpop.permute.xlu0 %3773
  %3775 = vrot.lane.b32.xlu0 %v2591, 16
  %v3776 = vpop.permute.xlu0 %3775
  %3777 = vrot.lane.b32.xlu0 %v2592, 16
  %v3778 = vpop.permute.xlu0 %3777
  %3779 = vrot.lane.b32.xlu0 %v2593, 16
  %v3780 = vpop.permute.xlu0 %3779
  %3781 = vrot.lane.b32.xlu0 %v2594, 16
  %v3782 = vpop.permute.xlu0 %3781
  %3783 = vrot.lane.b32.xlu0 %v2595, 16
  %v3784 = vpop.permute.xlu0 %3783
  %3785 = vrot.lane.b32.xlu0 %v2596, 16
  %v3786 = vpop.permute.xlu0 %3785
  %3787 = vrot.lane.b32.xlu0 %v2597, 16
  %v3788 = vpop.permute.xlu0 %3787
  %3789 = vrot.lane.b32.xlu0 %v2598, 16
  %v3790 = vpop.permute.xlu0 %3789
  %3791 = vrot.lane.b32.xlu0 %v2599, 16
  %v3792 = vpop.permute.xlu0 %3791
  %3793 = vrot.lane.b32.xlu0 %v2600, 16
  %v3794 = vpop.permute.xlu0 %3793
  %3795 = vrot.lane.b32.xlu0 %v2601, 16
  %v3796 = vpop.permute.xlu0 %3795
  %3797 = vrot.lane.b32.xlu0 %v2602, 16
  %v3798 = vpop.permute.xlu0 %3797
  %3799 = vrot.lane.b32.xlu0 %v2603, 16
  %v3800 = vpop.permute.xlu0 %3799
  %3801 = vrot.lane.b32.xlu0 %v2604, 16
  %v3802 = vpop.permute.xlu0 %3801
  %3803 = vrot.lane.b32.xlu0 %v2605, 16
  %v3804 = vpop.permute.xlu0 %3803
  %3805 = vrot.lane.b32.xlu0 %v2606, 16
  %v3806 = vpop.permute.xlu0 %3805
  %3807 = vrot.lane.b32.xlu0 %v2607, 16
  %v3808 = vpop.permute.xlu0 %3807
  %3809 = vrot.lane.b32.xlu0 %v2608, 16
  %v3810 = vpop.permute.xlu0 %3809
  %3811 = vrot.lane.b32.xlu0 %v2609, 16
  %v3812 = vpop.permute.xlu0 %3811
  %3813 = vrot.lane.b32.xlu0 %v2610, 16
  %v3814 = vpop.permute.xlu0 %3813
  %3815 = vrot.lane.b32.xlu0 %v2611, 16
  %v3816 = vpop.permute.xlu0 %3815
  %3817 = vrot.lane.b32.xlu0 %v2612, 16
  %v3818 = vpop.permute.xlu0 %3817
  %3819 = vrot.lane.b32.xlu0 %v2613, 16
  %v3820 = vpop.permute.xlu0 %3819
  %3821 = vrot.lane.b32.xlu0 %v2614, 16
  %v3822 = vpop.permute.xlu0 %3821
  %3823 = vrot.lane.b32.xlu0 %v2615, 16
  %v3824 = vpop.permute.xlu0 %3823
  %3825 = vrot.lane.b32.xlu0 %v2616, 16
  %v3826 = vpop.permute.xlu0 %3825
  %3827 = vrot.lane.b32.xlu0 %v2617, 16
  %v3828 = vpop.permute.xlu0 %3827
  %3829 = vrot.lane.b32.xlu0 %v2618, 16
  %v3830 = vpop.permute.xlu0 %3829
  %3831 = vrot.lane.b32.xlu0 %v2619, 16
  %v3832 = vpop.permute.xlu0 %3831
  %3833 = vrot.lane.b32.xlu0 %v2620, 16
  %v3834 = vpop.permute.xlu0 %3833
  %3835 = vrot.lane.b32.xlu0 %v2621, 16
  %v3836 = vpop.permute.xlu0 %3835
  %3837 = vrot.lane.b32.xlu0 %v2622, 16
  %v3838 = vpop.permute.xlu0 %3837
  %3839 = vrot.lane.b32.xlu0 %v2623, 16
  %v3840 = vpop.permute.xlu0 %3839
  %3969 = vrot.lane.b32.xlu0 %v2624, 20
  %v3970 = vpop.permute.xlu0 %3969
  %3971 = vrot.lane.b32.xlu0 %v2625, 20
  %v3972 = vpop.permute.xlu0 %3971
  %3973 = vrot.lane.b32.xlu0 %v2626, 20
  %v3974 = vpop.permute.xlu0 %3973
  %3975 = vrot.lane.b32.xlu0 %v2627, 20
  %v3976 = vpop.permute.xlu0 %3975
  %3977 = vrot.lane.b32.xlu0 %v2628, 20
  %v3978 = vpop.permute.xlu0 %3977
  %3979 = vrot.lane.b32.xlu0 %v2629, 20
  %v3980 = vpop.permute.xlu0 %3979
  %3981 = vrot.lane.b32.xlu0 %v2630, 20
  %v3982 = vpop.permute.xlu0 %3981
  %3983 = vrot.lane.b32.xlu0 %v2631, 20
  %v3984 = vpop.permute.xlu0 %3983
  %3985 = vrot.lane.b32.xlu0 %v2632, 20
  %v3986 = vpop.permute.xlu0 %3985
  %3987 = vrot.lane.b32.xlu0 %v2633, 20
  %v3988 = vpop.permute.xlu0 %3987
  %3989 = vrot.lane.b32.xlu0 %v2634, 20
  %v3990 = vpop.permute.xlu0 %3989
  %3991 = vrot.lane.b32.xlu0 %v2635, 20
  %v3992 = vpop.permute.xlu0 %3991
  %3993 = vrot.lane.b32.xlu0 %v2636, 20
  %v3994 = vpop.permute.xlu0 %3993
  %3995 = vrot.lane.b32.xlu0 %v2637, 20
  %v3996 = vpop.permute.xlu0 %3995
  %3997 = vrot.lane.b32.xlu0 %v2638, 20
  %v3998 = vpop.permute.xlu0 %3997
  %3999 = vrot.lane.b32.xlu0 %v2639, 20
  %v4000 = vpop.permute.xlu0 %3999
  %4001 = vrot.lane.b32.xlu0 %v2640, 20
  %v4002 = vpop.permute.xlu0 %4001
  %4003 = vrot.lane.b32.xlu0 %v2641, 20
  %v4004 = vpop.permute.xlu0 %4003
  %4005 = vrot.lane.b32.xlu0 %v2642, 20
  %v4006 = vpop.permute.xlu0 %4005
  %4007 = vrot.lane.b32.xlu0 %v2643, 20
  %v4008 = vpop.permute.xlu0 %4007
  %4009 = vrot.lane.b32.xlu0 %v2644, 20
  %v4010 = vpop.permute.xlu0 %4009
  %4011 = vrot.lane.b32.xlu0 %v2645, 20
  %v4012 = vpop.permute.xlu0 %4011
  %4013 = vrot.lane.b32.xlu0 %v2646, 20
  %v4014 = vpop.permute.xlu0 %4013
  %4015 = vrot.lane.b32.xlu0 %v2647, 20
  %v4016 = vpop.permute.xlu0 %4015
  %4017 = vrot.lane.b32.xlu0 %v2648, 20
  %v4018 = vpop.permute.xlu0 %4017
  %4019 = vrot.lane.b32.xlu0 %v2649, 20
  %v4020 = vpop.permute.xlu0 %4019
  %4021 = vrot.lane.b32.xlu0 %v2650, 20
  %v4022 = vpop.permute.xlu0 %4021
  %4023 = vrot.lane.b32.xlu0 %v2651, 20
  %v4024 = vpop.permute.xlu0 %4023
  %4025 = vrot.lane.b32.xlu0 %v2652, 20
  %v4026 = vpop.permute.xlu0 %4025
  %4027 = vrot.lane.b32.xlu0 %v2653, 20
  %v4028 = vpop.permute.xlu0 %4027
  %4029 = vrot.lane.b32.xlu0 %v2654, 20
  %v4030 = vpop.permute.xlu0 %4029
  %4031 = vrot.lane.b32.xlu0 %v2655, 20
  %v4032 = vpop.permute.xlu0 %4031
  %4033 = vrot.lane.b32.xlu0 %v2656, 20
  %v4034 = vpop.permute.xlu0 %4033
  %4035 = vrot.lane.b32.xlu0 %v2657, 20
  %v4036 = vpop.permute.xlu0 %4035
  %4037 = vrot.lane.b32.xlu0 %v2658, 20
  %v4038 = vpop.permute.xlu0 %4037
  %4039 = vrot.lane.b32.xlu0 %v2659, 20
  %v4040 = vpop.permute.xlu0 %4039
  %4041 = vrot.lane.b32.xlu0 %v2660, 20
  %v4042 = vpop.permute.xlu0 %4041
  %4043 = vrot.lane.b32.xlu0 %v2661, 20
  %v4044 = vpop.permute.xlu0 %4043
  %4045 = vrot.lane.b32.xlu0 %v2662, 20
  %v4046 = vpop.permute.xlu0 %4045
  %4047 = vrot.lane.b32.xlu0 %v2663, 20
  %v4048 = vpop.permute.xlu0 %4047
  %4049 = vrot.lane.b32.xlu0 %v2664, 20
  %v4050 = vpop.permute.xlu0 %4049
  %4051 = vrot.lane.b32.xlu0 %v2665, 20
  %v4052 = vpop.permute.xlu0 %4051
  %4053 = vrot.lane.b32.xlu0 %v2666, 20
  %v4054 = vpop.permute.xlu0 %4053
  %4055 = vrot.lane.b32.xlu0 %v2667, 20
  %v4056 = vpop.permute.xlu0 %4055
  %4057 = vrot.lane.b32.xlu0 %v2668, 20
  %v4058 = vpop.permute.xlu0 %4057
  %4059 = vrot.lane.b32.xlu0 %v2669, 20
  %v4060 = vpop.permute.xlu0 %4059
  %4061 = vrot.lane.b32.xlu0 %v2670, 20
  %v4062 = vpop.permute.xlu0 %4061
  %4063 = vrot.lane.b32.xlu0 %v2671, 20
  %v4064 = vpop.permute.xlu0 %4063
  %4065 = vrot.lane.b32.xlu0 %v2672, 20
  %v4066 = vpop.permute.xlu0 %4065
  %4067 = vrot.lane.b32.xlu0 %v2673, 20
  %v4068 = vpop.permute.xlu0 %4067
  %4069 = vrot.lane.b32.xlu0 %v2674, 20
  %v4070 = vpop.permute.xlu0 %4069
  %4071 = vrot.lane.b32.xlu0 %v2675, 20
  %v4072 = vpop.permute.xlu0 %4071
  %4073 = vrot.lane.b32.xlu0 %v2676, 20
  %v4074 = vpop.permute.xlu0 %4073
  %4075 = vrot.lane.b32.xlu0 %v2677, 20
  %v4076 = vpop.permute.xlu0 %4075
  %4077 = vrot.lane.b32.xlu0 %v2678, 20
  %v4078 = vpop.permute.xlu0 %4077
  %4079 = vrot.lane.b32.xlu0 %v2679, 20
  %v4080 = vpop.permute.xlu0 %4079
  %4081 = vrot.lane.b32.xlu0 %v2680, 20
  %v4082 = vpop.permute.xlu0 %4081
  %4083 = vrot.lane.b32.xlu0 %v2681, 20
  %v4084 = vpop.permute.xlu0 %4083
  %4085 = vrot.lane.b32.xlu0 %v2682, 20
  %v4086 = vpop.permute.xlu0 %4085
  %4087 = vrot.lane.b32.xlu0 %v2683, 20
  %v4088 = vpop.permute.xlu0 %4087
  %4089 = vrot.lane.b32.xlu0 %v2684, 20
  %v4090 = vpop.permute.xlu0 %4089
  %4091 = vrot.lane.b32.xlu0 %v2685, 20
  %v4092 = vpop.permute.xlu0 %4091
  %4093 = vrot.lane.b32.xlu0 %v2686, 20
  %v4094 = vpop.permute.xlu0 %4093
  %4095 = vrot.lane.b32.xlu0 %v2687, 20
  %v4096 = vpop.permute.xlu0 %4095
  %4225 = vrot.lane.b32.xlu0 %v2689, 24
  %v4226 = vpop.permute.xlu0 %4225
  %4227 = vrot.lane.b32.xlu0 %v2690, 24
  %v4228 = vpop.permute.xlu0 %4227
  %4229 = vrot.lane.b32.xlu0 %v2691, 24
  %v4230 = vpop.permute.xlu0 %4229
  %4231 = vrot.lane.b32.xlu0 %v2692, 24
  %v4232 = vpop.permute.xlu0 %4231
  %4233 = vrot.lane.b32.xlu0 %v2693, 24
  %v4234 = vpop.permute.xlu0 %4233
  %4235 = vrot.lane.b32.xlu0 %v2694, 24
  %v4236 = vpop.permute.xlu0 %4235
  %4237 = vrot.lane.b32.xlu0 %v2695, 24
  %v4238 = vpop.permute.xlu0 %4237
  %4239 = vrot.lane.b32.xlu0 %v2696, 24
  %v4240 = vpop.permute.xlu0 %4239
  %4241 = vrot.lane.b32.xlu0 %v2697, 24
  %v4242 = vpop.permute.xlu0 %4241
  %4243 = vrot.lane.b32.xlu0 %v2698, 24
  %v4244 = vpop.permute.xlu0 %4243
  %4245 = vrot.lane.b32.xlu0 %v2699, 24
  %v4246 = vpop.permute.xlu0 %4245
  %4247 = vrot.lane.b32.xlu0 %v2700, 24
  %v4248 = vpop.permute.xlu0 %4247
  %4249 = vrot.lane.b32.xlu0 %v2701, 24
  %v4250 = vpop.permute.xlu0 %4249
  %4251 = vrot.lane.b32.xlu0 %v2702, 24
  %v4252 = vpop.permute.xlu0 %4251
  %4253 = vrot.lane.b32.xlu0 %v2703, 24
  %v4254 = vpop.permute.xlu0 %4253
  %4255 = vrot.lane.b32.xlu0 %v2704, 24
  %v4256 = vpop.permute.xlu0 %4255
  %4257 = vrot.lane.b32.xlu0 %v2705, 24
  %v4258 = vpop.permute.xlu0 %4257
  %4259 = vrot.lane.b32.xlu0 %v2706, 24
  %v4260 = vpop.permute.xlu0 %4259
  %4261 = vrot.lane.b32.xlu0 %v2707, 24
  %v4262 = vpop.permute.xlu0 %4261
  %4263 = vrot.lane.b32.xlu0 %v2708, 24
  %v4264 = vpop.permute.xlu0 %4263
  %4265 = vrot.lane.b32.xlu0 %v2709, 24
  %v4266 = vpop.permute.xlu0 %4265
  %4267 = vrot.lane.b32.xlu0 %v2710, 24
  %v4268 = vpop.permute.xlu0 %4267
  %4269 = vrot.lane.b32.xlu0 %v2711, 24
  %v4270 = vpop.permute.xlu0 %4269
  %4271 = vrot.lane.b32.xlu0 %v2712, 24
  %v4272 = vpop.permute.xlu0 %4271
  %4273 = vrot.lane.b32.xlu0 %v2713, 24
  %v4274 = vpop.permute.xlu0 %4273
  %4275 = vrot.lane.b32.xlu0 %v2714, 24
  %v4276 = vpop.permute.xlu0 %4275
  %4277 = vrot.lane.b32.xlu0 %v2715, 24
  %v4278 = vpop.permute.xlu0 %4277
  %4279 = vrot.lane.b32.xlu0 %v2716, 24
  %v4280 = vpop.permute.xlu0 %4279
  %4281 = vrot.lane.b32.xlu0 %v2717, 24
  %v4282 = vpop.permute.xlu0 %4281
  %4283 = vrot.lane.b32.xlu0 %v2718, 24
  %v4284 = vpop.permute.xlu0 %4283
  %4285 = vrot.lane.b32.xlu0 %v2719, 24
  %v4286 = vpop.permute.xlu0 %4285
  %4287 = vrot.lane.b32.xlu0 %v2720, 24
  %v4288 = vpop.permute.xlu0 %4287
  %4289 = vrot.lane.b32.xlu0 %v2721, 24
  %v4290 = vpop.permute.xlu0 %4289
  %4291 = vrot.lane.b32.xlu0 %v2722, 24
  %v4292 = vpop.permute.xlu0 %4291
  %4293 = vrot.lane.b32.xlu0 %v2723, 24
  %v4294 = vpop.permute.xlu0 %4293
  %4295 = vrot.lane.b32.xlu0 %v2724, 24
  %v4296 = vpop.permute.xlu0 %4295
  %4297 = vrot.lane.b32.xlu0 %v2725, 24
  %v4298 = vpop.permute.xlu0 %4297
  %4299 = vrot.lane.b32.xlu0 %v2726, 24
  %v4300 = vpop.permute.xlu0 %4299
  %4301 = vrot.lane.b32.xlu0 %v2727, 24
  %v4302 = vpop.permute.xlu0 %4301
  %4303 = vrot.lane.b32.xlu0 %v2728, 24
  %v4304 = vpop.permute.xlu0 %4303
  %4305 = vrot.lane.b32.xlu0 %v2729, 24
  %v4306 = vpop.permute.xlu0 %4305
  %4307 = vrot.lane.b32.xlu0 %v2730, 24
  %v4308 = vpop.permute.xlu0 %4307
  %4309 = vrot.lane.b32.xlu0 %v2731, 24
  %v4310 = vpop.permute.xlu0 %4309
  %4311 = vrot.lane.b32.xlu0 %v2732, 24
  %v4312 = vpop.permute.xlu0 %4311
  %4313 = vrot.lane.b32.xlu0 %v2733, 24
  %v4314 = vpop.permute.xlu0 %4313
  %4315 = vrot.lane.b32.xlu0 %v2734, 24
  %v4316 = vpop.permute.xlu0 %4315
  %4317 = vrot.lane.b32.xlu0 %v2735, 24
  %v4318 = vpop.permute.xlu0 %4317
  %4319 = vrot.lane.b32.xlu0 %v2736, 24
  %v4320 = vpop.permute.xlu0 %4319
  %4321 = vrot.lane.b32.xlu0 %v2737, 24
  %v4322 = vpop.permute.xlu0 %4321
  %4323 = vrot.lane.b32.xlu0 %v2738, 24
  %v4324 = vpop.permute.xlu0 %4323
  %4325 = vrot.lane.b32.xlu0 %v2739, 24
  %v4326 = vpop.permute.xlu0 %4325
  %4327 = vrot.lane.b32.xlu0 %v2740, 24
  %v4328 = vpop.permute.xlu0 %4327
  %4329 = vrot.lane.b32.xlu0 %v2741, 24
  %v4330 = vpop.permute.xlu0 %4329
  %4331 = vrot.lane.b32.xlu0 %v2742, 24
  %v4332 = vpop.permute.xlu0 %4331
  %4333 = vrot.lane.b32.xlu0 %v2743, 24
  %v4334 = vpop.permute.xlu0 %4333
  %4335 = vrot.lane.b32.xlu0 %v2744, 24
  %v4336 = vpop.permute.xlu0 %4335
  %4337 = vrot.lane.b32.xlu0 %v2745, 24
  %v4338 = vpop.permute.xlu0 %4337
  %4339 = vrot.lane.b32.xlu0 %v2746, 24
  %v4340 = vpop.permute.xlu0 %4339
  %4341 = vrot.lane.b32.xlu0 %v2747, 24
  %v4342 = vpop.permute.xlu0 %4341
  %4343 = vrot.lane.b32.xlu0 %v2748, 24
  %v4344 = vpop.permute.xlu0 %4343
  %4345 = vrot.lane.b32.xlu0 %v2749, 24
  %v4346 = vpop.permute.xlu0 %4345
  %4347 = vrot.lane.b32.xlu0 %v2750, 24
  %v4348 = vpop.permute.xlu0 %4347
  %4349 = vrot.lane.b32.xlu0 %v2751, 24
  %v4350 = vpop.permute.xlu0 %4349
  %4351 = vrot.lane.b32.xlu0 %v2752, 24
  %v4352 = vpop.permute.xlu0 %4351
  %4481 = vrot.lane.b32.xlu0 %v2753, 28
  %v4482 = vpop.permute.xlu0 %4481
  %4483 = vrot.lane.b32.xlu0 %v2754, 28
  %v4484 = vpop.permute.xlu0 %4483
  %4485 = vrot.lane.b32.xlu0 %v2755, 28
  %v4486 = vpop.permute.xlu0 %4485
  %4487 = vrot.lane.b32.xlu0 %v2756, 28
  %v4488 = vpop.permute.xlu0 %4487
  %4489 = vrot.lane.b32.xlu0 %v2757, 28
  %v4490 = vpop.permute.xlu0 %4489
  %4491 = vrot.lane.b32.xlu0 %v2758, 28
  %v4492 = vpop.permute.xlu0 %4491
  %4493 = vrot.lane.b32.xlu0 %v2759, 28
  %v4494 = vpop.permute.xlu0 %4493
  %4495 = vrot.lane.b32.xlu0 %v2760, 28
  %v4496 = vpop.permute.xlu0 %4495
  %4497 = vrot.lane.b32.xlu0 %v2761, 28
  %v4498 = vpop.permute.xlu0 %4497
  %4499 = vrot.lane.b32.xlu0 %v2762, 28
  %v4500 = vpop.permute.xlu0 %4499
  %4501 = vrot.lane.b32.xlu0 %v2763, 28
  %v4502 = vpop.permute.xlu0 %4501
  %4503 = vrot.lane.b32.xlu0 %v2764, 28
  %v4504 = vpop.permute.xlu0 %4503
  %4505 = vrot.lane.b32.xlu0 %v2765, 28
  %v4506 = vpop.permute.xlu0 %4505
  %4507 = vrot.lane.b32.xlu0 %v2766, 28
  %v4508 = vpop.permute.xlu0 %4507
  %4509 = vrot.lane.b32.xlu0 %v2767, 28
  %v4510 = vpop.permute.xlu0 %4509
  %4511 = vrot.lane.b32.xlu0 %v2768, 28
  %v4512 = vpop.permute.xlu0 %4511
  %4513 = vrot.lane.b32.xlu0 %v2769, 28
  %v4514 = vpop.permute.xlu0 %4513
  %4515 = vrot.lane.b32.xlu0 %v2770, 28
  %v4516 = vpop.permute.xlu0 %4515
  %4517 = vrot.lane.b32.xlu0 %v2771, 28
  %v4518 = vpop.permute.xlu0 %4517
  %4519 = vrot.lane.b32.xlu0 %v2772, 28
  %v4520 = vpop.permute.xlu0 %4519
  %4521 = vrot.lane.b32.xlu0 %v2773, 28
  %v4522 = vpop.permute.xlu0 %4521
  %4523 = vrot.lane.b32.xlu0 %v2774, 28
  %v4524 = vpop.permute.xlu0 %4523
  %4525 = vrot.lane.b32.xlu0 %v2775, 28
  %v4526 = vpop.permute.xlu0 %4525
  %4527 = vrot.lane.b32.xlu0 %v2776, 28
  %v4528 = vpop.permute.xlu0 %4527
  %4529 = vrot.lane.b32.xlu0 %v2777, 28
  %v4530 = vpop.permute.xlu0 %4529
  %4531 = vrot.lane.b32.xlu0 %v2778, 28
  %v4532 = vpop.permute.xlu0 %4531
  %4533 = vrot.lane.b32.xlu0 %v2779, 28
  %v4534 = vpop.permute.xlu0 %4533
  %4535 = vrot.lane.b32.xlu0 %v2780, 28
  %v4536 = vpop.permute.xlu0 %4535
  %4537 = vrot.lane.b32.xlu0 %v2781, 28
  %v4538 = vpop.permute.xlu0 %4537
  %4539 = vrot.lane.b32.xlu0 %v2782, 28
  %v4540 = vpop.permute.xlu0 %4539
  %4541 = vrot.lane.b32.xlu0 %v2783, 28
  %v4542 = vpop.permute.xlu0 %4541
  %4543 = vrot.lane.b32.xlu0 %v2784, 28
  %v4544 = vpop.permute.xlu0 %4543
  %4545 = vrot.lane.b32.xlu0 %v2785, 28
  %v4546 = vpop.permute.xlu0 %4545
  %4547 = vrot.lane.b32.xlu0 %v2786, 28
  %v4548 = vpop.permute.xlu0 %4547
  %4549 = vrot.lane.b32.xlu0 %v2787, 28
  %v4550 = vpop.permute.xlu0 %4549
  %4551 = vrot.lane.b32.xlu0 %v2788, 28
  %v4552 = vpop.permute.xlu0 %4551
  %4553 = vrot.lane.b32.xlu0 %v2789, 28
  %v4554 = vpop.permute.xlu0 %4553
  %4555 = vrot.lane.b32.xlu0 %v2790, 28
  %v4556 = vpop.permute.xlu0 %4555
  %4557 = vrot.lane.b32.xlu0 %v2791, 28
  %v4558 = vpop.permute.xlu0 %4557
  %4559 = vrot.lane.b32.xlu0 %v2792, 28
  %v4560 = vpop.permute.xlu0 %4559
  %4561 = vrot.lane.b32.xlu0 %v2793, 28
  %v4562 = vpop.permute.xlu0 %4561
  %4563 = vrot.lane.b32.xlu0 %v2794, 28
  %v4564 = vpop.permute.xlu0 %4563
  %4565 = vrot.lane.b32.xlu0 %v2795, 28
  %v4566 = vpop.permute.xlu0 %4565
  %4567 = vrot.lane.b32.xlu0 %v2796, 28
  %v4568 = vpop.permute.xlu0 %4567
  %4569 = vrot.lane.b32.xlu0 %v2797, 28
  %v4570 = vpop.permute.xlu0 %4569
  %4571 = vrot.lane.b32.xlu0 %v2798, 28
  %v4572 = vpop.permute.xlu0 %4571
  %4573 = vrot.lane.b32.xlu0 %v2799, 28
  %v4574 = vpop.permute.xlu0 %4573
  %4575 = vrot.lane.b32.xlu0 %v2800, 28
  %v4576 = vpop.permute.xlu0 %4575
  %4577 = vrot.lane.b32.xlu0 %v2801, 28
  %v4578 = vpop.permute.xlu0 %4577
  %4579 = vrot.lane.b32.xlu0 %v2802, 28
  %v4580 = vpop.permute.xlu0 %4579
  %4581 = vrot.lane.b32.xlu0 %v2803, 28
  %v4582 = vpop.permute.xlu0 %4581
  %4583 = vrot.lane.b32.xlu0 %v2804, 28
  %v4584 = vpop.permute.xlu0 %4583
  %4585 = vrot.lane.b32.xlu0 %v2805, 28
  %v4586 = vpop.permute.xlu0 %4585
  %4587 = vrot.lane.b32.xlu0 %v2806, 28
  %v4588 = vpop.permute.xlu0 %4587
  %4589 = vrot.lane.b32.xlu0 %v2807, 28
  %v4590 = vpop.permute.xlu0 %4589
  %4591 = vrot.lane.b32.xlu0 %v2808, 28
  %v4592 = vpop.permute.xlu0 %4591
  %4593 = vrot.lane.b32.xlu0 %v2809, 28
  %v4594 = vpop.permute.xlu0 %4593
  %4595 = vrot.lane.b32.xlu0 %v2810, 28
  %v4596 = vpop.permute.xlu0 %4595
  %4597 = vrot.lane.b32.xlu0 %v2811, 28
  %v4598 = vpop.permute.xlu0 %4597
  %4599 = vrot.lane.b32.xlu0 %v2812, 28
  %v4600 = vpop.permute.xlu0 %4599
  %4601 = vrot.lane.b32.xlu0 %v2813, 28
  %v4602 = vpop.permute.xlu0 %4601
  %4603 = vrot.lane.b32.xlu0 %v2814, 28
  %v4604 = vpop.permute.xlu0 %4603
  %4605 = vrot.lane.b32.xlu0 %v2815, 28
  %v4606 = vpop.permute.xlu0 %4605
  %4607 = vrot.lane.b32.xlu0 %v2816, 28
  %v4608 = vpop.permute.xlu0 %4607
  %4737 = vrot.lane.b32.xlu0 %v2817, 32
  %v4738 = vpop.permute.xlu0 %4737
  %4739 = vrot.lane.b32.xlu0 %v2818, 32
  %v4740 = vpop.permute.xlu0 %4739
  %4741 = vrot.lane.b32.xlu0 %v2819, 32
  %v4742 = vpop.permute.xlu0 %4741
  %4743 = vrot.lane.b32.xlu0 %v2820, 32
  %v4744 = vpop.permute.xlu0 %4743
  %4745 = vrot.lane.b32.xlu0 %v2821, 32
  %v4746 = vpop.permute.xlu0 %4745
  %4747 = vrot.lane.b32.xlu0 %v2822, 32
  %v4748 = vpop.permute.xlu0 %4747
  %4749 = vrot.lane.b32.xlu0 %v2823, 32
  %v4750 = vpop.permute.xlu0 %4749
  %4751 = vrot.lane.b32.xlu0 %v2824, 32
  %v4752 = vpop.permute.xlu0 %4751
  %4753 = vrot.lane.b32.xlu0 %v2825, 32
  %v4754 = vpop.permute.xlu0 %4753
  %4755 = vrot.lane.b32.xlu0 %v2826, 32
  %v4756 = vpop.permute.xlu0 %4755
  %4757 = vrot.lane.b32.xlu0 %v2827, 32
  %v4758 = vpop.permute.xlu0 %4757
  %4759 = vrot.lane.b32.xlu0 %v2828, 32
  %v4760 = vpop.permute.xlu0 %4759
  %4761 = vrot.lane.b32.xlu0 %v2829, 32
  %v4762 = vpop.permute.xlu0 %4761
  %4763 = vrot.lane.b32.xlu0 %v2830, 32
  %v4764 = vpop.permute.xlu0 %4763
  %4765 = vrot.lane.b32.xlu0 %v2831, 32
  %v4766 = vpop.permute.xlu0 %4765
  %4767 = vrot.lane.b32.xlu0 %v2832, 32
  %v4768 = vpop.permute.xlu0 %4767
  %4769 = vrot.lane.b32.xlu0 %v2833, 32
  %v4770 = vpop.permute.xlu0 %4769
  %4771 = vrot.lane.b32.xlu0 %v2834, 32
  %v4772 = vpop.permute.xlu0 %4771
  %4773 = vrot.lane.b32.xlu0 %v2835, 32
  %v4774 = vpop.permute.xlu0 %4773
  %4775 = vrot.lane.b32.xlu0 %v2836, 32
  %v4776 = vpop.permute.xlu0 %4775
  %4777 = vrot.lane.b32.xlu0 %v2837, 32
  %v4778 = vpop.permute.xlu0 %4777
  %4779 = vrot.lane.b32.xlu0 %v2838, 32
  %v4780 = vpop.permute.xlu0 %4779
  %4781 = vrot.lane.b32.xlu0 %v2839, 32
  %v4782 = vpop.permute.xlu0 %4781
  %4783 = vrot.lane.b32.xlu0 %v2840, 32
  %v4784 = vpop.permute.xlu0 %4783
  %4785 = vrot.lane.b32.xlu0 %v2841, 32
  %v4786 = vpop.permute.xlu0 %4785
  %4787 = vrot.lane.b32.xlu0 %v2842, 32
  %v4788 = vpop.permute.xlu0 %4787
  %4789 = vrot.lane.b32.xlu0 %v2843, 32
  %v4790 = vpop.permute.xlu0 %4789
  %4791 = vrot.lane.b32.xlu0 %v2844, 32
  %v4792 = vpop.permute.xlu0 %4791
  %4793 = vrot.lane.b32.xlu0 %v2845, 32
  %v4794 = vpop.permute.xlu0 %4793
  %4795 = vrot.lane.b32.xlu0 %v2846, 32
  %v4796 = vpop.permute.xlu0 %4795
  %4797 = vrot.lane.b32.xlu0 %v2847, 32
  %v4798 = vpop.permute.xlu0 %4797
  %4799 = vrot.lane.b32.xlu0 %v2848, 32
  %v4800 = vpop.permute.xlu0 %4799
  %4801 = vrot.lane.b32.xlu0 %v2849, 32
  %v4802 = vpop.permute.xlu0 %4801
  %4803 = vrot.lane.b32.xlu0 %v2850, 32
  %v4804 = vpop.permute.xlu0 %4803
  %4805 = vrot.lane.b32.xlu0 %v2851, 32
  %v4806 = vpop.permute.xlu0 %4805
  %4807 = vrot.lane.b32.xlu0 %v2852, 32
  %v4808 = vpop.permute.xlu0 %4807
  %4809 = vrot.lane.b32.xlu0 %v2853, 32
  %v4810 = vpop.permute.xlu0 %4809
  %4811 = vrot.lane.b32.xlu0 %v2854, 32
  %v4812 = vpop.permute.xlu0 %4811
  %4813 = vrot.lane.b32.xlu0 %v2855, 32
  %v4814 = vpop.permute.xlu0 %4813
  %4815 = vrot.lane.b32.xlu0 %v2856, 32
  %v4816 = vpop.permute.xlu0 %4815
  %4817 = vrot.lane.b32.xlu0 %v2857, 32
  %v4818 = vpop.permute.xlu0 %4817
  %4819 = vrot.lane.b32.xlu0 %v2858, 32
  %v4820 = vpop.permute.xlu0 %4819
  %4821 = vrot.lane.b32.xlu0 %v2859, 32
  %v4822 = vpop.permute.xlu0 %4821
  %4823 = vrot.lane.b32.xlu0 %v2860, 32
  %v4824 = vpop.permute.xlu0 %4823
  %4825 = vrot.lane.b32.xlu0 %v2861, 32
  %v4826 = vpop.permute.xlu0 %4825
  %4827 = vrot.lane.b32.xlu0 %v2862, 32
  %v4828 = vpop.permute.xlu0 %4827
  %4829 = vrot.lane.b32.xlu0 %v2863, 32
  %v4830 = vpop.permute.xlu0 %4829
  %4831 = vrot.lane.b32.xlu0 %v2864, 32
  %v4832 = vpop.permute.xlu0 %4831
  %4833 = vrot.lane.b32.xlu0 %v2865, 32
  %v4834 = vpop.permute.xlu0 %4833
  %4835 = vrot.lane.b32.xlu0 %v2866, 32
  %v4836 = vpop.permute.xlu0 %4835
  %4837 = vrot.lane.b32.xlu0 %v2867, 32
  %v4838 = vpop.permute.xlu0 %4837
  %4839 = vrot.lane.b32.xlu0 %v2868, 32
  %v4840 = vpop.permute.xlu0 %4839
  %4841 = vrot.lane.b32.xlu0 %v2869, 32
  %v4842 = vpop.permute.xlu0 %4841
  %4843 = vrot.lane.b32.xlu0 %v2870, 32
  %v4844 = vpop.permute.xlu0 %4843
  %4845 = vrot.lane.b32.xlu0 %v2871, 32
  %v4846 = vpop.permute.xlu0 %4845
  %4847 = vrot.lane.b32.xlu0 %v2872, 32
  %v4848 = vpop.permute.xlu0 %4847
  %4849 = vrot.lane.b32.xlu0 %v2873, 32
  %v4850 = vpop.permute.xlu0 %4849
  %4851 = vrot.lane.b32.xlu0 %v2874, 32
  %v4852 = vpop.permute.xlu0 %4851
  %4853 = vrot.lane.b32.xlu0 %v2875, 32
  %v4854 = vpop.permute.xlu0 %4853
  %4855 = vrot.lane.b32.xlu0 %v2876, 32
  %v4856 = vpop.permute.xlu0 %4855
  %4857 = vrot.lane.b32.xlu0 %v2877, 32
  %v4858 = vpop.permute.xlu0 %4857
  %4859 = vrot.lane.b32.xlu0 %v2878, 32
  %v4860 = vpop.permute.xlu0 %4859
  %4861 = vrot.lane.b32.xlu0 %v2879, 32
  %v4862 = vpop.permute.xlu0 %4861
  %4863 = vrot.lane.b32.xlu0 %v2880, 32
  %v4864 = vpop.permute.xlu0 %4863
  %v4929 = vsel %vm116, %v2304, %v2946
  %v4930 = vsel %vm116, %v2305, %v2948
  %v4931 = vsel %vm116, %v2306, %v2950
  %v4932 = vsel %vm116, %v2307, %v2952
  %v4933 = vsel %vm116, %v2308, %v2954
  %v4934 = vsel %vm116, %v2309, %v2956
  %v4935 = vsel %vm116, %v2310, %v2958
  %v4936 = vsel %vm116, %v2311, %v2960
  %v4937 = vsel %vm116, %v2312, %v2962
  %v4938 = vsel %vm116, %v2313, %v2964
  %v4939 = vsel %vm116, %v2314, %v2966
  %v4940 = vsel %vm116, %v2315, %v2968
  %v4941 = vsel %vm116, %v2316, %v2970
  %v4942 = vsel %vm116, %v2317, %v2972
  %v4943 = vsel %vm116, %v2318, %v2974
  %v4944 = vsel %vm116, %v2319, %v2976
  %v4945 = vsel %vm116, %v2320, %v2978
  %v4946 = vsel %vm116, %v2321, %v2980
  %v4947 = vsel %vm116, %v2322, %v2982
  %v4948 = vsel %vm116, %v2323, %v2984
  %v4949 = vsel %vm116, %v2324, %v2986
  %v4950 = vsel %vm116, %v2325, %v2988
  %v4951 = vsel %vm116, %v2326, %v2990
  %v4952 = vsel %vm116, %v2327, %v2992
  %v4953 = vsel %vm116, %v2328, %v2994
  %v4954 = vsel %vm116, %v2329, %v2996
  %v4955 = vsel %vm116, %v2330, %v2998
  %v4956 = vsel %vm116, %v2331, %v3000
  %v4957 = vsel %vm116, %v2332, %v3002
  %v4958 = vsel %vm116, %v2333, %v3004
  %v4959 = vsel %vm116, %v2334, %v3006
  %v4960 = vsel %vm116, %v2335, %v3008
  %v4961 = vsel %vm116, %v2336, %v3010
  %v4962 = vsel %vm116, %v2337, %v3012
  %v4963 = vsel %vm116, %v2338, %v3014
  %v4964 = vsel %vm116, %v2339, %v3016
  %v4965 = vsel %vm116, %v2340, %v3018
  %v4966 = vsel %vm116, %v2341, %v3020
  %v4967 = vsel %vm116, %v2342, %v3022
  %v4968 = vsel %vm116, %v2343, %v3024
  %v4969 = vsel %vm116, %v2344, %v3026
  %v4970 = vsel %vm116, %v2345, %v3028
  %v4971 = vsel %vm116, %v2346, %v3030
  %v4972 = vsel %vm116, %v2347, %v3032
  %v4973 = vsel %vm116, %v2348, %v3034
  %v4974 = vsel %vm116, %v2349, %v3036
  %v4975 = vsel %vm116, %v2350, %v3038
  %v4976 = vsel %vm116, %v2351, %v3040
  %v4977 = vsel %vm116, %v2352, %v3042
  %v4978 = vsel %vm116, %v2353, %v3044
  %v4979 = vsel %vm116, %v2354, %v3046
  %v4980 = vsel %vm116, %v2355, %v3048
  %v4981 = vsel %vm116, %v2356, %v3050
  %v4982 = vsel %vm116, %v2357, %v3052
  %v4983 = vsel %vm116, %v2358, %v3054
  %v4984 = vsel %vm116, %v2359, %v3056
  %v4985 = vsel %vm116, %v2360, %v3058
  %v4986 = vsel %vm116, %v2361, %v3060
  %v4987 = vsel %vm116, %v2362, %v3062
  %v4988 = vsel %vm116, %v2363, %v3064
  %v4989 = vsel %vm116, %v2364, %v3066
  %v4990 = vsel %vm116, %v2365, %v3068
  %v4991 = vsel %vm116, %v2366, %v3070
  %v4992 = vsel %vm116, %v2367, %v3072
  %vm4993 = vcmask 64512
  %v4994 = vsel %vm4993, %v4929, %v3202
  %v4995 = vsel %vm4993, %v4930, %v3204
  %v4996 = vsel %vm4993, %v4931, %v3206
  %v4997 = vsel %vm4993, %v4932, %v3208
  %v4998 = vsel %vm4993, %v4933, %v3210
  %v4999 = vsel %vm4993, %v4934, %v3212
  %v5000 = vsel %vm4993, %v4935, %v3214
  %v5001 = vsel %vm4993, %v4936, %v3216
  %v5002 = vsel %vm4993, %v4937, %v3218
  %v5003 = vsel %vm4993, %v4938, %v3220
  %v5004 = vsel %vm4993, %v4939, %v3222
  %v5005 = vsel %vm4993, %v4940, %v3224
  %v5006 = vsel %vm4993, %v4941, %v3226
  %v5007 = vsel %vm4993, %v4942, %v3228
  %v5008 = vsel %vm4993, %v4943, %v3230
  %v5009 = vsel %vm4993, %v4944, %v3232
  %v5010 = vsel %vm4993, %v4945, %v3234
  %v5011 = vsel %vm4993, %v4946, %v3236
  %v5012 = vsel %vm4993, %v4947, %v3238
  %v5013 = vsel %vm4993, %v4948, %v3240
  %v5014 = vsel %vm4993, %v4949, %v3242
  %v5015 = vsel %vm4993, %v4950, %v3244
  %v5016 = vsel %vm4993, %v4951, %v3246
  %v5017 = vsel %vm4993, %v4952, %v3248
  %v5018 = vsel %vm4993, %v4953, %v3250
  %v5019 = vsel %vm4993, %v4954, %v3252
  %v5020 = vsel %vm4993, %v4955, %v3254
  %v5021 = vsel %vm4993, %v4956, %v3256
  %v5022 = vsel %vm4993, %v4957, %v3258
  %v5023 = vsel %vm4993, %v4958, %v3260
  %v5024 = vsel %vm4993, %v4959, %v3262
  %v5025 = vsel %vm4993, %v4960, %v3264
  %v5026 = vsel %vm4993, %v4961, %v3266
  %v5027 = vsel %vm4993, %v4962, %v3268
  %v5028 = vsel %vm4993, %v4963, %v3270
  %v5029 = vsel %vm4993, %v4964, %v3272
  %v5030 = vsel %vm4993, %v4965, %v3274
  %v5031 = vsel %vm4993, %v4966, %v3276
  %v5032 = vsel %vm4993, %v4967, %v3278
  %v5033 = vsel %vm4993, %v4968, %v3280
  %v5034 = vsel %vm4993, %v4969, %v3282
  %v5035 = vsel %vm4993, %v4970, %v3284
  %v5036 = vsel %vm4993, %v4971, %v3286
  %v5037 = vsel %vm4993, %v4972, %v3288
  %v5038 = vsel %vm4993, %v4973, %v3290
  %v5039 = vsel %vm4993, %v4974, %v3292
  %v5040 = vsel %vm4993, %v4975, %v3294
  %v5041 = vsel %vm4993, %v4976, %v3296
  %v5042 = vsel %vm4993, %v4977, %v3298
  %v5043 = vsel %vm4993, %v4978, %v3300
  %v5044 = vsel %vm4993, %v4979, %v3302
  %v5045 = vsel %vm4993, %v4980, %v3304
  %v5046 = vsel %vm4993, %v4981, %v3306
  %v5047 = vsel %vm4993, %v4982, %v3308
  %v5048 = vsel %vm4993, %v4983, %v3310
  %v5049 = vsel %vm4993, %v4984, %v3312
  %v5050 = vsel %vm4993, %v4985, %v3314
  %v5051 = vsel %vm4993, %v4986, %v3316
  %v5052 = vsel %vm4993, %v4987, %v3318
  %v5053 = vsel %vm4993, %v4988, %v3320
  %v5054 = vsel %vm4993, %v4989, %v3322
  %v5055 = vsel %vm4993, %v4990, %v3324
  %v5056 = vsel %vm4993, %v4991, %v3326
  %v5057 = vsel %vm4993, %v4992, %v3328
  %vm5058 = vcmask 97280
  %v5059 = vsel %vm5058, %v4994, %v3458
  %v5060 = vsel %vm5058, %v4995, %v3460
  %v5061 = vsel %vm5058, %v4996, %v3462
  %v5062 = vsel %vm5058, %v4997, %v3464
  %v5063 = vsel %vm5058, %v4998, %v3466
  %v5064 = vsel %vm5058, %v4999, %v3468
  %v5065 = vsel %vm5058, %v5000, %v3470
  %v5066 = vsel %vm5058, %v5001, %v3472
  %v5067 = vsel %vm5058, %v5002, %v3474
  %v5068 = vsel %vm5058, %v5003, %v3476
  %v5069 = vsel %vm5058, %v5004, %v3478
  %v5070 = vsel %vm5058, %v5005, %v3480
  %v5071 = vsel %vm5058, %v5006, %v3482
  %v5072 = vsel %vm5058, %v5007, %v3484
  %v5073 = vsel %vm5058, %v5008, %v3486
  %v5074 = vsel %vm5058, %v5009, %v3488
  %v5075 = vsel %vm5058, %v5010, %v3490
  %v5076 = vsel %vm5058, %v5011, %v3492
  %v5077 = vsel %vm5058, %v5012, %v3494
  %v5078 = vsel %vm5058, %v5013, %v3496
  %v5079 = vsel %vm5058, %v5014, %v3498
  %v5080 = vsel %vm5058, %v5015, %v3500
  %v5081 = vsel %vm5058, %v5016, %v3502
  %v5082 = vsel %vm5058, %v5017, %v3504
  %v5083 = vsel %vm5058, %v5018, %v3506
  %v5084 = vsel %vm5058, %v5019, %v3508
  %v5085 = vsel %vm5058, %v5020, %v3510
  %v5086 = vsel %vm5058, %v5021, %v3512
  %v5087 = vsel %vm5058, %v5022, %v3514
  %v5088 = vsel %vm5058, %v5023, %v3516
  %v5089 = vsel %vm5058, %v5024, %v3518
  %v5090 = vsel %vm5058, %v5025, %v3520
  %v5091 = vsel %vm5058, %v5026, %v3522
  %v5092 = vsel %vm5058, %v5027, %v3524
  %v5093 = vsel %vm5058, %v5028, %v3526
  %v5094 = vsel %vm5058, %v5029, %v3528
  %v5095 = vsel %vm5058, %v5030, %v3530
  %v5096 = vsel %vm5058, %v5031, %v3532
  %v5097 = vsel %vm5058, %v5032, %v3534
  %v5098 = vsel %vm5058, %v5033, %v3536
  %v5099 = vsel %vm5058, %v5034, %v3538
  %v5100 = vsel %vm5058, %v5035, %v3540
  %v5101 = vsel %vm5058, %v5036, %v3542
  %v5102 = vsel %vm5058, %v5037, %v3544
  %v5103 = vsel %vm5058, %v5038, %v3546
  %v5104 = vsel %vm5058, %v5039, %v3548
  %v5105 = vsel %vm5058, %v5040, %v3550
  %v5106 = vsel %vm5058, %v5041, %v3552
  %v5107 = vsel %vm5058, %v5042, %v3554
  %v5108 = vsel %vm5058, %v5043, %v3556
  %v5109 = vsel %vm5058, %v5044, %v3558
  %v5110 = vsel %vm5058, %v5045, %v3560
  %v5111 = vsel %vm5058, %v5046, %v3562
  %v5112 = vsel %vm5058, %v5047, %v3564
  %v5113 = vsel %vm5058, %v5048, %v3566
  %v5114 = vsel %vm5058, %v5049, %v3568
  %v5115 = vsel %vm5058, %v5050, %v3570
  %v5116 = vsel %vm5058, %v5051, %v3572
  %v5117 = vsel %vm5058, %v5052, %v3574
  %v5118 = vsel %vm5058, %v5053, %v3576
  %v5119 = vsel %vm5058, %v5054, %v3578
  %v5120 = vsel %vm5058, %v5055, %v3580
  %v5121 = vsel %vm5058, %v5056, %v3582
  %v5122 = vsel %vm5058, %v5057, %v3584
  %vm5123 = vcmask 130048
  %v5124 = vsel %vm5123, %v5059, %v3714
  %v5125 = vsel %vm5123, %v5060, %v3716
  %v5126 = vsel %vm5123, %v5061, %v3718
  %v5127 = vsel %vm5123, %v5062, %v3720
  %v5128 = vsel %vm5123, %v5063, %v3722
  %v5129 = vsel %vm5123, %v5064, %v3724
  %v5130 = vsel %vm5123, %v5065, %v3726
  %v5131 = vsel %vm5123, %v5066, %v3728
  %v5132 = vsel %vm5123, %v5067, %v3730
  %v5133 = vsel %vm5123, %v5068, %v3732
  %v5134 = vsel %vm5123, %v5069, %v3734
  %v5135 = vsel %vm5123, %v5070, %v3736
  %v5136 = vsel %vm5123, %v5071, %v3738
  %v5137 = vsel %vm5123, %v5072, %v3740
  %v5138 = vsel %vm5123, %v5073, %v3742
  %v5139 = vsel %vm5123, %v5074, %v3744
  %v5140 = vsel %vm5123, %v5075, %v3746
  %v5141 = vsel %vm5123, %v5076, %v3748
  %v5142 = vsel %vm5123, %v5077, %v3750
  %v5143 = vsel %vm5123, %v5078, %v3752
  %v5144 = vsel %vm5123, %v5079, %v3754
  %v5145 = vsel %vm5123, %v5080, %v3756
  %v5146 = vsel %vm5123, %v5081, %v3758
  %v5147 = vsel %vm5123, %v5082, %v3760
  %v5148 = vsel %vm5123, %v5083, %v3762
  %v5149 = vsel %vm5123, %v5084, %v3764
  %v5150 = vsel %vm5123, %v5085, %v3766
  %v5151 = vsel %vm5123, %v5086, %v3768
  %v5152 = vsel %vm5123, %v5087, %v3770
  %v5153 = vsel %vm5123, %v5088, %v3772
  %v5154 = vsel %vm5123, %v5089, %v3774
  %v5155 = vsel %vm5123, %v5090, %v3776
  %v5156 = vsel %vm5123, %v5091, %v3778
  %v5157 = vsel %vm5123, %v5092, %v3780
  %v5158 = vsel %vm5123, %v5093, %v3782
  %v5159 = vsel %vm5123, %v5094, %v3784
  %v5160 = vsel %vm5123, %v5095, %v3786
  %v5161 = vsel %vm5123, %v5096, %v3788
  %v5162 = vsel %vm5123, %v5097, %v3790
  %v5163 = vsel %vm5123, %v5098, %v3792
  %v5164 = vsel %vm5123, %v5099, %v3794
  %v5165 = vsel %vm5123, %v5100, %v3796
  %v5166 = vsel %vm5123, %v5101, %v3798
  %v5167 = vsel %vm5123, %v5102, %v3800
  %v5168 = vsel %vm5123, %v5103, %v3802
  %v5169 = vsel %vm5123, %v5104, %v3804
  %v5170 = vsel %vm5123, %v5105, %v3806
  %v5171 = vsel %vm5123, %v5106, %v3808
  %v5172 = vsel %vm5123, %v5107, %v3810
  %v5173 = vsel %vm5123, %v5108, %v3812
  %v5174 = vsel %vm5123, %v5109, %v3814
  %v5175 = vsel %vm5123, %v5110, %v3816
  %v5176 = vsel %vm5123, %v5111, %v3818
  %v5177 = vsel %vm5123, %v5112, %v3820
  %v5178 = vsel %vm5123, %v5113, %v3822
  %v5179 = vsel %vm5123, %v5114, %v3824
  %v5180 = vsel %vm5123, %v5115, %v3826
  %v5181 = vsel %vm5123, %v5116, %v3828
  %v5182 = vsel %vm5123, %v5117, %v3830
  %v5183 = vsel %vm5123, %v5118, %v3832
  %v5184 = vsel %vm5123, %v5119, %v3834
  %v5185 = vsel %vm5123, %v5120, %v3836
  %v5186 = vsel %vm5123, %v5121, %v3838
  %v5187 = vsel %vm5123, %v5122, %v3840
  %vm5188 = vcmask 162816
  %v5189 = vsel %vm5188, %v5124, %v3970
  %v5190 = vsel %vm5188, %v5125, %v3972
  %v5191 = vsel %vm5188, %v5126, %v3974
  %v5192 = vsel %vm5188, %v5127, %v3976
  %v5193 = vsel %vm5188, %v5128, %v3978
  %v5194 = vsel %vm5188, %v5129, %v3980
  %v5195 = vsel %vm5188, %v5130, %v3982
  %v5196 = vsel %vm5188, %v5131, %v3984
  %v5197 = vsel %vm5188, %v5132, %v3986
  %v5198 = vsel %vm5188, %v5133, %v3988
  %v5199 = vsel %vm5188, %v5134, %v3990
  %v5200 = vsel %vm5188, %v5135, %v3992
  %v5201 = vsel %vm5188, %v5136, %v3994
  %v5202 = vsel %vm5188, %v5137, %v3996
  %v5203 = vsel %vm5188, %v5138, %v3998
  %v5204 = vsel %vm5188, %v5139, %v4000
  %v5205 = vsel %vm5188, %v5140, %v4002
  %v5206 = vsel %vm5188, %v5141, %v4004
  %v5207 = vsel %vm5188, %v5142, %v4006
  %v5208 = vsel %vm5188, %v5143, %v4008
  %v5209 = vsel %vm5188, %v5144, %v4010
  %v5210 = vsel %vm5188, %v5145, %v4012
  %v5211 = vsel %vm5188, %v5146, %v4014
  %v5212 = vsel %vm5188, %v5147, %v4016
  %v5213 = vsel %vm5188, %v5148, %v4018
  %v5214 = vsel %vm5188, %v5149, %v4020
  %v5215 = vsel %vm5188, %v5150, %v4022
  %v5216 = vsel %vm5188, %v5151, %v4024
  %v5217 = vsel %vm5188, %v5152, %v4026
  %v5218 = vsel %vm5188, %v5153, %v4028
  %v5219 = vsel %vm5188, %v5154, %v4030
  %v5220 = vsel %vm5188, %v5155, %v4032
  %v5221 = vsel %vm5188, %v5156, %v4034
  %v5222 = vsel %vm5188, %v5157, %v4036
  %v5223 = vsel %vm5188, %v5158, %v4038
  %v5224 = vsel %vm5188, %v5159, %v4040
  %v5225 = vsel %vm5188, %v5160, %v4042
  %v5226 = vsel %vm5188, %v5161, %v4044
  %v5227 = vsel %vm5188, %v5162, %v4046
  %v5228 = vsel %vm5188, %v5163, %v4048
  %v5229 = vsel %vm5188, %v5164, %v4050
  %v5230 = vsel %vm5188, %v5165, %v4052
  %v5231 = vsel %vm5188, %v5166, %v4054
  %v5232 = vsel %vm5188, %v5167, %v4056
  %v5233 = vsel %vm5188, %v5168, %v4058
  %v5234 = vsel %vm5188, %v5169, %v4060
  %v5235 = vsel %vm5188, %v5170, %v4062
  %v5236 = vsel %vm5188, %v5171, %v4064
  %v5237 = vsel %vm5188, %v5172, %v4066
  %v5238 = vsel %vm5188, %v5173, %v4068
  %v5239 = vsel %vm5188, %v5174, %v4070
  %v5240 = vsel %vm5188, %v5175, %v4072
  %v5241 = vsel %vm5188, %v5176, %v4074
  %v5242 = vsel %vm5188, %v5177, %v4076
  %v5243 = vsel %vm5188, %v5178, %v4078
  %v5244 = vsel %vm5188, %v5179, %v4080
  %v5245 = vsel %vm5188, %v5180, %v4082
  %v5246 = vsel %vm5188, %v5181, %v4084
  %v5247 = vsel %vm5188, %v5182, %v4086
  %v5248 = vsel %vm5188, %v5183, %v4088
  %v5249 = vsel %vm5188, %v5184, %v4090
  %v5250 = vsel %vm5188, %v5185, %v4092
  %v5251 = vsel %vm5188, %v5186, %v4094
  %v5252 = vsel %vm5188, %v5187, %v4096
  %vm5253 = vcmask 195584
  %v5254 = vsel %vm5253, %v5189, %v4226
  %v5255 = vsel %vm5253, %v5190, %v4228
  %v5256 = vsel %vm5253, %v5191, %v4230
  %v5257 = vsel %vm5253, %v5192, %v4232
  %v5258 = vsel %vm5253, %v5193, %v4234
  %v5259 = vsel %vm5253, %v5194, %v4236
  %v5260 = vsel %vm5253, %v5195, %v4238
  %v5261 = vsel %vm5253, %v5196, %v4240
  %v5262 = vsel %vm5253, %v5197, %v4242
  %v5263 = vsel %vm5253, %v5198, %v4244
  %v5264 = vsel %vm5253, %v5199, %v4246
  %v5265 = vsel %vm5253, %v5200, %v4248
  %v5266 = vsel %vm5253, %v5201, %v4250
  %v5267 = vsel %vm5253, %v5202, %v4252
  %v5268 = vsel %vm5253, %v5203, %v4254
  %v5269 = vsel %vm5253, %v5204, %v4256
  %v5270 = vsel %vm5253, %v5205, %v4258
  %v5271 = vsel %vm5253, %v5206, %v4260
  %v5272 = vsel %vm5253, %v5207, %v4262
  %v5273 = vsel %vm5253, %v5208, %v4264
  %v5274 = vsel %vm5253, %v5209, %v4266
  %v5275 = vsel %vm5253, %v5210, %v4268
  %v5276 = vsel %vm5253, %v5211, %v4270
  %v5277 = vsel %vm5253, %v5212, %v4272
  %v5278 = vsel %vm5253, %v5213, %v4274
  %v5279 = vsel %vm5253, %v5214, %v4276
  %v5280 = vsel %vm5253, %v5215, %v4278
  %v5281 = vsel %vm5253, %v5216, %v4280
  %v5282 = vsel %vm5253, %v5217, %v4282
  %v5283 = vsel %vm5253, %v5218, %v4284
  %v5284 = vsel %vm5253, %v5219, %v4286
  %v5285 = vsel %vm5253, %v5220, %v4288
  %v5286 = vsel %vm5253, %v5221, %v4290
  %v5287 = vsel %vm5253, %v5222, %v4292
  %v5288 = vsel %vm5253, %v5223, %v4294
  %v5289 = vsel %vm5253, %v5224, %v4296
  %v5290 = vsel %vm5253, %v5225, %v4298
  %v5291 = vsel %vm5253, %v5226, %v4300
  %v5292 = vsel %vm5253, %v5227, %v4302
  %v5293 = vsel %vm5253, %v5228, %v4304
  %v5294 = vsel %vm5253, %v5229, %v4306
  %v5295 = vsel %vm5253, %v5230, %v4308
  %v5296 = vsel %vm5253, %v5231, %v4310
  %v5297 = vsel %vm5253, %v5232, %v4312
  %v5298 = vsel %vm5253, %v5233, %v4314
  %v5299 = vsel %vm5253, %v5234, %v4316
  %v5300 = vsel %vm5253, %v5235, %v4318
  %v5301 = vsel %vm5253, %v5236, %v4320
  %v5302 = vsel %vm5253, %v5237, %v4322
  %v5303 = vsel %vm5253, %v5238, %v4324
  %v5304 = vsel %vm5253, %v5239, %v4326
  %v5305 = vsel %vm5253, %v5240, %v4328
  %v5306 = vsel %vm5253, %v5241, %v4330
  %v5307 = vsel %vm5253, %v5242, %v4332
  %v5308 = vsel %vm5253, %v5243, %v4334
  %v5309 = vsel %vm5253, %v5244, %v4336
  %v5310 = vsel %vm5253, %v5245, %v4338
  %v5311 = vsel %vm5253, %v5246, %v4340
  %v5312 = vsel %vm5253, %v5247, %v4342
  %v5313 = vsel %vm5253, %v5248, %v4344
  %v5314 = vsel %vm5253, %v5249, %v4346
  %v5315 = vsel %vm5253, %v5250, %v4348
  %v5316 = vsel %vm5253, %v5251, %v4350
  %v5317 = vsel %vm5253, %v5252, %v4352
  %vm5318 = vcmask 228352
  %v5319 = vsel %vm5318, %v5254, %v4482
  %v5320 = vsel %vm5318, %v5255, %v4484
  %v5321 = vsel %vm5318, %v5256, %v4486
  %v5322 = vsel %vm5318, %v5257, %v4488
  %v5323 = vsel %vm5318, %v5258, %v4490
  %v5324 = vsel %vm5318, %v5259, %v4492
  %v5325 = vsel %vm5318, %v5260, %v4494
  %v5326 = vsel %vm5318, %v5261, %v4496
  %v5327 = vsel %vm5318, %v5262, %v4498
  %v5328 = vsel %vm5318, %v5263, %v4500
  %v5329 = vsel %vm5318, %v5264, %v4502
  %v5330 = vsel %vm5318, %v5265, %v4504
  %v5331 = vsel %vm5318, %v5266, %v4506
  %v5332 = vsel %vm5318, %v5267, %v4508
  %v5333 = vsel %vm5318, %v5268, %v4510
  %v5334 = vsel %vm5318, %v5269, %v4512
  %v5335 = vsel %vm5318, %v5270, %v4514
  %v5336 = vsel %vm5318, %v5271, %v4516
  %v5337 = vsel %vm5318, %v5272, %v4518
  %v5338 = vsel %vm5318, %v5273, %v4520
  %v5339 = vsel %vm5318, %v5274, %v4522
  %v5340 = vsel %vm5318, %v5275, %v4524
  %v5341 = vsel %vm5318, %v5276, %v4526
  %v5342 = vsel %vm5318, %v5277, %v4528
  %v5343 = vsel %vm5318, %v5278, %v4530
  %v5344 = vsel %vm5318, %v5279, %v4532
  %v5345 = vsel %vm5318, %v5280, %v4534
  %v5346 = vsel %vm5318, %v5281, %v4536
  %v5347 = vsel %vm5318, %v5282, %v4538
  %v5348 = vsel %vm5318, %v5283, %v4540
  %v5349 = vsel %vm5318, %v5284, %v4542
  %v5350 = vsel %vm5318, %v5285, %v4544
  %v5351 = vsel %vm5318, %v5286, %v4546
  %v5352 = vsel %vm5318, %v5287, %v4548
  %v5353 = vsel %vm5318, %v5288, %v4550
  %v5354 = vsel %vm5318, %v5289, %v4552
  %v5355 = vsel %vm5318, %v5290, %v4554
  %v5356 = vsel %vm5318, %v5291, %v4556
  %v5357 = vsel %vm5318, %v5292, %v4558
  %v5358 = vsel %vm5318, %v5293, %v4560
  %v5359 = vsel %vm5318, %v5294, %v4562
  %v5360 = vsel %vm5318, %v5295, %v4564
  %v5361 = vsel %vm5318, %v5296, %v4566
  %v5362 = vsel %vm5318, %v5297, %v4568
  %v5363 = vsel %vm5318, %v5298, %v4570
  %v5364 = vsel %vm5318, %v5299, %v4572
  %v5365 = vsel %vm5318, %v5300, %v4574
  %v5366 = vsel %vm5318, %v5301, %v4576
  %v5367 = vsel %vm5318, %v5302, %v4578
  %v5368 = vsel %vm5318, %v5303, %v4580
  %v5369 = vsel %vm5318, %v5304, %v4582
  %v5370 = vsel %vm5318, %v5305, %v4584
  %v5371 = vsel %vm5318, %v5306, %v4586
  %v5372 = vsel %vm5318, %v5307, %v4588
  %v5373 = vsel %vm5318, %v5308, %v4590
  %v5374 = vsel %vm5318, %v5309, %v4592
  %v5375 = vsel %vm5318, %v5310, %v4594
  %v5376 = vsel %vm5318, %v5311, %v4596
  %v5377 = vsel %vm5318, %v5312, %v4598
  %v5378 = vsel %vm5318, %v5313, %v4600
  %v5379 = vsel %vm5318, %v5314, %v4602
  %v5380 = vsel %vm5318, %v5315, %v4604
  %v5381 = vsel %vm5318, %v5316, %v4606
  %v5382 = vsel %vm5318, %v5317, %v4608
  %vm5383 = vcmask 261120
  %v5384 = vsel %vm5383, %v5319, %v4738
  %v5385 = vsel %vm5383, %v5320, %v4740
  %v5386 = vsel %vm5383, %v5321, %v4742
  %v5387 = vsel %vm5383, %v5322, %v4744
  %v5388 = vsel %vm5383, %v5323, %v4746
  %v5389 = vsel %vm5383, %v5324, %v4748
  %v5390 = vsel %vm5383, %v5325, %v4750
  %v5391 = vsel %vm5383, %v5326, %v4752
  %v5392 = vsel %vm5383, %v5327, %v4754
  %v5393 = vsel %vm5383, %v5328, %v4756
  %v5394 = vsel %vm5383, %v5329, %v4758
  %v5395 = vsel %vm5383, %v5330, %v4760
  %v5396 = vsel %vm5383, %v5331, %v4762
  %v5397 = vsel %vm5383, %v5332, %v4764
  %v5398 = vsel %vm5383, %v5333, %v4766
  %v5399 = vsel %vm5383, %v5334, %v4768
  %v5400 = vsel %vm5383, %v5335, %v4770
  %v5401 = vsel %vm5383, %v5336, %v4772
  %v5402 = vsel %vm5383, %v5337, %v4774
  %v5403 = vsel %vm5383, %v5338, %v4776
  %v5404 = vsel %vm5383, %v5339, %v4778
  %v5405 = vsel %vm5383, %v5340, %v4780
  %v5406 = vsel %vm5383, %v5341, %v4782
  %v5407 = vsel %vm5383, %v5342, %v4784
  %v5408 = vsel %vm5383, %v5343, %v4786
  %v5409 = vsel %vm5383, %v5344, %v4788
  %v5410 = vsel %vm5383, %v5345, %v4790
  %v5411 = vsel %vm5383, %v5346, %v4792
  %v5412 = vsel %vm5383, %v5347, %v4794
  %v5413 = vsel %vm5383, %v5348, %v4796
  %v5414 = vsel %vm5383, %v5349, %v4798
  %v5415 = vsel %vm5383, %v5350, %v4800
  %v5416 = vsel %vm5383, %v5351, %v4802
  %v5417 = vsel %vm5383, %v5352, %v4804
  %v5418 = vsel %vm5383, %v5353, %v4806
  %v5419 = vsel %vm5383, %v5354, %v4808
  %v5420 = vsel %vm5383, %v5355, %v4810
  %v5421 = vsel %vm5383, %v5356, %v4812
  %v5422 = vsel %vm5383, %v5357, %v4814
  %v5423 = vsel %vm5383, %v5358, %v4816
  %v5424 = vsel %vm5383, %v5359, %v4818
  %v5425 = vsel %vm5383, %v5360, %v4820
  %v5426 = vsel %vm5383, %v5361, %v4822
  %v5427 = vsel %vm5383, %v5362, %v4824
  %v5428 = vsel %vm5383, %v5363, %v4826
  %v5429 = vsel %vm5383, %v5364, %v4828
  %v5430 = vsel %vm5383, %v5365, %v4830
  %v5431 = vsel %vm5383, %v5366, %v4832
  %v5432 = vsel %vm5383, %v5367, %v4834
  %v5433 = vsel %vm5383, %v5368, %v4836
  %v5434 = vsel %vm5383, %v5369, %v4838
  %v5435 = vsel %vm5383, %v5370, %v4840
  %v5436 = vsel %vm5383, %v5371, %v4842
  %v5437 = vsel %vm5383, %v5372, %v4844
  %v5438 = vsel %vm5383, %v5373, %v4846
  %v5439 = vsel %vm5383, %v5374, %v4848
  %v5440 = vsel %vm5383, %v5375, %v4850
  %v5441 = vsel %vm5383, %v5376, %v4852
  %v5442 = vsel %vm5383, %v5377, %v4854
  %v5443 = vsel %vm5383, %v5378, %v4856
  %v5444 = vsel %vm5383, %v5379, %v4858
  %v5445 = vsel %vm5383, %v5380, %v4860
  %v5446 = vsel %vm5383, %v5381, %v4862
  %v5447 = vsel %vm5383, %v5382, %v4864
  %v5448 = vld [vmem:[%s7] sm:$0xff]
  %v5449 = vld [vmem:[%s7 + $0x8] sm:$0xff]
  %v5450 = vld [vmem:[%s7 + $0x10] sm:$0xff]
  %v5451 = vld [vmem:[%s7 + $0x18] sm:$0xff]
  %v5452 = vld [vmem:[%s7 + $0x20] sm:$0xf]
  %v5453 = vld [vmem:[%s8] sm:$0x1]
  %v5455 = vperm.slane %v5453, 0
  %vm5457 = vcmask 293888
  %v5459 = vsel %vm5457, %v5384, 0
  %v5462 = vsel %vm5457, %v5385, 0
  %v5465 = vsel %vm5457, %v5386, 0
  %v5468 = vsel %vm5457, %v5387, 0
  %v5471 = vsel %vm5457, %v5388, 0
  %v5474 = vsel %vm5457, %v5389, 0
  %v5477 = vsel %vm5457, %v5390, 0
  %v5480 = vsel %vm5457, %v5391, 0
  %v5483 = vsel %vm5457, %v5392, 0
  %v5486 = vsel %vm5457, %v5393, 0
  %v5489 = vsel %vm5457, %v5394, 0
  %v5492 = vsel %vm5457, %v5395, 0
  %v5495 = vsel %vm5457, %v5396, 0
  %v5498 = vsel %vm5457, %v5397, 0
  %v5501 = vsel %vm5457, %v5398, 0
  %v5504 = vsel %vm5457, %v5399, 0
  %v5507 = vsel %vm5457, %v5400, 0
  %v5510 = vsel %vm5457, %v5401, 0
  %v5513 = vsel %vm5457, %v5402, 0
  %v5516 = vsel %vm5457, %v5403, 0
  %v5519 = vsel %vm5457, %v5404, 0
  %v5522 = vsel %vm5457, %v5405, 0
  %v5525 = vsel %vm5457, %v5406, 0
  %v5528 = vsel %vm5457, %v5407, 0
  %v5531 = vsel %vm5457, %v5408, 0
  %v5534 = vsel %vm5457, %v5409, 0
  %v5537 = vsel %vm5457, %v5410, 0
  %v5540 = vsel %vm5457, %v5411, 0
  %v5543 = vsel %vm5457, %v5412, 0
  %v5546 = vsel %vm5457, %v5413, 0
  %v5549 = vsel %vm5457, %v5414, 0
  %v5552 = vsel %vm5457, %v5415, 0
  %v5555 = vsel %vm5457, %v5416, 0
  %v5558 = vsel %vm5457, %v5417, 0
  %v5561 = vsel %vm5457, %v5418, 0
  %v5564 = vsel %vm5457, %v5419, 0
  %v5567 = vsel %vm5457, %v5420, 0
  %v5570 = vsel %vm5457, %v5421, 0
  %v5573 = vsel %vm5457, %v5422, 0
  %v5576 = vsel %vm5457, %v5423, 0
  %v5579 = vsel %vm5457, %v5424, 0
  %v5582 = vsel %vm5457, %v5425, 0
  %v5585 = vsel %vm5457, %v5426, 0
  %v5588 = vsel %vm5457, %v5427, 0
  %v5591 = vsel %vm5457, %v5428, 0
  %v5594 = vsel %vm5457, %v5429, 0
  %v5597 = vsel %vm5457, %v5430, 0
  %v5600 = vsel %vm5457, %v5431, 0
  %v5603 = vsel %vm5457, %v5432, 0
  %v5606 = vsel %vm5457, %v5433, 0
  %v5609 = vsel %vm5457, %v5434, 0
  %v5612 = vsel %vm5457, %v5435, 0
  %v5615 = vsel %vm5457, %v5436, 0
  %v5618 = vsel %vm5457, %v5437, 0
  %v5621 = vsel %vm5457, %v5438, 0
  %v5624 = vsel %vm5457, %v5439, 0
  %v5627 = vsel %vm5457, %v5440, 0
  %v5630 = vsel %vm5457, %v5441, 0
  %v5633 = vsel %vm5457, %v5442, 0
  %v5636 = vsel %vm5457, %v5443, 0
  %v5639 = vsel %vm5457, %v5444, 0
  %v5642 = vsel %vm5457, %v5445, 0
  %v5645 = vsel %vm5457, %v5446, 0
  %v5648 = vsel %vm5457, %v5447, 0
  %v5651 = vsel %vm1118, %v5452, 0
  %5653 = vmatpush.msra.mxu0 0.0
  %5654 = vmatpush.msra.mxu0 0.0
  %5655 = vmatpush.msra.mxu0 0.0
  %5656 = vmatpush.msra.mxu0 0.0
  %5657 = vmatpush.msra.mxu0 0.0
  %5658 = vmatpush.msra.mxu0 0.0
  %5659 = vmatpush.msra.mxu0 0.0
  %5660 = vmatpush.msra.mxu0 0.0
  %5661 = vmatpush.msra.mxu0 0.0
  %5662 = vmatpush.msra.mxu0 0.0
  %5663 = vmatpush.msra.mxu0 0.0
  %5664 = vmatpush.msra.mxu0 %v5651
  %5665 = vmatpush.msra.mxu0 %v5451
  %5666 = vmatpush.msra.mxu0 %v5450
  %5667 = vmatpush.msra.mxu0 %v5449
  %5668 = vmatpush.msra.mxu0 %v5448
  %5669 = vmatmul.f32.gmra.mxu0 %v5459
  %v5670 = vpop.f32.mrf.mxu0
  %v5671 = vadd.f32 %v5455, %v5670
  %5672 = vmatmul.f32.gmra.mxu0 %v5462
  %v5673 = vpop.f32.mrf.mxu0
  %v5674 = vadd.f32 %v5455, %v5673
  %5675 = vmatmul.f32.gmra.mxu0 %v5465
  %v5676 = vpop.f32.mrf.mxu0
  %v5677 = vadd.f32 %v5455, %v5676
  %5678 = vmatmul.f32.gmra.mxu0 %v5468
  %v5679 = vpop.f32.mrf.mxu0
  %v5680 = vadd.f32 %v5455, %v5679
  %5681 = vmatmul.f32.gmra.mxu0 %v5471
  %v5682 = vpop.f32.mrf.mxu0
  %v5683 = vadd.f32 %v5455, %v5682
  %5684 = vmatmul.f32.gmra.mxu0 %v5474
  %v5685 = vpop.f32.mrf.mxu0
  %v5686 = vadd.f32 %v5455, %v5685
  %5687 = vmatmul.f32.gmra.mxu0 %v5477
  %v5688 = vpop.f32.mrf.mxu0
  %v5689 = vadd.f32 %v5455, %v5688
  %5690 = vmatmul.f32.gmra.mxu0 %v5480
  %v5691 = vpop.f32.mrf.mxu0
  %v5692 = vadd.f32 %v5455, %v5691
  %5693 = vmatmul.f32.gmra.mxu0 %v5483
  %v5694 = vpop.f32.mrf.mxu0
  %v5695 = vadd.f32 %v5455, %v5694
  %5696 = vmatmul.f32.gmra.mxu0 %v5486
  %v5697 = vpop.f32.mrf.mxu0
  %v5698 = vadd.f32 %v5455, %v5697
  %5699 = vmatmul.f32.gmra.mxu0 %v5489
  %v5700 = vpop.f32.mrf.mxu0
  %v5701 = vadd.f32 %v5455, %v5700
  %5702 = vmatmul.f32.gmra.mxu0 %v5492
  %v5703 = vpop.f32.mrf.mxu0
  %v5704 = vadd.f32 %v5455, %v5703
  %5705 = vmatmul.f32.gmra.mxu0 %v5495
  %v5706 = vpop.f32.mrf.mxu0
  %v5707 = vadd.f32 %v5455, %v5706
  %5708 = vmatmul.f32.gmra.mxu0 %v5498
  %v5709 = vpop.f32.mrf.mxu0
  %v5710 = vadd.f32 %v5455, %v5709
  %5711 = vmatmul.f32.gmra.mxu0 %v5501
  %v5712 = vpop.f32.mrf.mxu0
  %v5713 = vadd.f32 %v5455, %v5712
  %5714 = vmatmul.f32.gmra.mxu0 %v5504
  %v5715 = vpop.f32.mrf.mxu0
  %v5716 = vadd.f32 %v5455, %v5715
  %5717 = vmatmul.f32.gmra.mxu0 %v5507
  %v5718 = vpop.f32.mrf.mxu0
  %v5719 = vadd.f32 %v5455, %v5718
  %5720 = vmatmul.f32.gmra.mxu0 %v5510
  %v5721 = vpop.f32.mrf.mxu0
  %v5722 = vadd.f32 %v5455, %v5721
  %5723 = vmatmul.f32.gmra.mxu0 %v5513
  %v5724 = vpop.f32.mrf.mxu0
  %v5725 = vadd.f32 %v5455, %v5724
  %5726 = vmatmul.f32.gmra.mxu0 %v5516
  %v5727 = vpop.f32.mrf.mxu0
  %v5728 = vadd.f32 %v5455, %v5727
  %5729 = vmatmul.f32.gmra.mxu0 %v5519
  %v5730 = vpop.f32.mrf.mxu0
  %v5731 = vadd.f32 %v5455, %v5730
  %5732 = vmatmul.f32.gmra.mxu0 %v5522
  %v5733 = vpop.f32.mrf.mxu0
  %v5734 = vadd.f32 %v5455, %v5733
  %5735 = vmatmul.f32.gmra.mxu0 %v5525
  %v5736 = vpop.f32.mrf.mxu0
  %v5737 = vadd.f32 %v5455, %v5736
  %5738 = vmatmul.f32.gmra.mxu0 %v5528
  %v5739 = vpop.f32.mrf.mxu0
  %v5740 = vadd.f32 %v5455, %v5739
  %5741 = vmatmul.f32.gmra.mxu0 %v5531
  %v5742 = vpop.f32.mrf.mxu0
  %v5743 = vadd.f32 %v5455, %v5742
  %5744 = vmatmul.f32.gmra.mxu0 %v5534
  %v5745 = vpop.f32.mrf.mxu0
  %v5746 = vadd.f32 %v5455, %v5745
  %5747 = vmatmul.f32.gmra.mxu0 %v5537
  %v5748 = vpop.f32.mrf.mxu0
  %v5749 = vadd.f32 %v5455, %v5748
  %5750 = vmatmul.f32.gmra.mxu0 %v5540
  %v5751 = vpop.f32.mrf.mxu0
  %v5752 = vadd.f32 %v5455, %v5751
  %5753 = vmatmul.f32.gmra.mxu0 %v5543
  %v5754 = vpop.f32.mrf.mxu0
  %v5755 = vadd.f32 %v5455, %v5754
  %5756 = vmatmul.f32.gmra.mxu0 %v5546
  %v5757 = vpop.f32.mrf.mxu0
  %v5758 = vadd.f32 %v5455, %v5757
  %5759 = vmatmul.f32.gmra.mxu0 %v5549
  %v5760 = vpop.f32.mrf.mxu0
  %v5761 = vadd.f32 %v5455, %v5760
  %5762 = vmatmul.f32.gmra.mxu0 %v5552
  %v5763 = vpop.f32.mrf.mxu0
  %v5764 = vadd.f32 %v5455, %v5763
  %5765 = vmatmul.f32.gmra.mxu0 %v5555
  %v5766 = vpop.f32.mrf.mxu0
  %v5767 = vadd.f32 %v5455, %v5766
  %5768 = vmatmul.f32.gmra.mxu0 %v5558
  %v5769 = vpop.f32.mrf.mxu0
  %v5770 = vadd.f32 %v5455, %v5769
  %5771 = vmatmul.f32.gmra.mxu0 %v5561
  %v5772 = vpop.f32.mrf.mxu0
  %v5773 = vadd.f32 %v5455, %v5772
  %5774 = vmatmul.f32.gmra.mxu0 %v5564
  %v5775 = vpop.f32.mrf.mxu0
  %v5776 = vadd.f32 %v5455, %v5775
  %5777 = vmatmul.f32.gmra.mxu0 %v5567
  %v5778 = vpop.f32.mrf.mxu0
  %v5779 = vadd.f32 %v5455, %v5778
  %5780 = vmatmul.f32.gmra.mxu0 %v5570
  %v5781 = vpop.f32.mrf.mxu0
  %v5782 = vadd.f32 %v5455, %v5781
  %5783 = vmatmul.f32.gmra.mxu0 %v5573
  %v5784 = vpop.f32.mrf.mxu0
  %v5785 = vadd.f32 %v5455, %v5784
  %5786 = vmatmul.f32.gmra.mxu0 %v5576
  %v5787 = vpop.f32.mrf.mxu0
  %v5788 = vadd.f32 %v5455, %v5787
  %5789 = vmatmul.f32.gmra.mxu0 %v5579
  %v5790 = vpop.f32.mrf.mxu0
  %v5791 = vadd.f32 %v5455, %v5790
  %5792 = vmatmul.f32.gmra.mxu0 %v5582
  %v5793 = vpop.f32.mrf.mxu0
  %v5794 = vadd.f32 %v5455, %v5793
  %5795 = vmatmul.f32.gmra.mxu0 %v5585
  %v5796 = vpop.f32.mrf.mxu0
  %v5797 = vadd.f32 %v5455, %v5796
  %5798 = vmatmul.f32.gmra.mxu0 %v5588
  %v5799 = vpop.f32.mrf.mxu0
  %v5800 = vadd.f32 %v5455, %v5799
  %5801 = vmatmul.f32.gmra.mxu0 %v5591
  %v5802 = vpop.f32.mrf.mxu0
  %v5803 = vadd.f32 %v5455, %v5802
  %5804 = vmatmul.f32.gmra.mxu0 %v5594
  %v5805 = vpop.f32.mrf.mxu0
  %v5806 = vadd.f32 %v5455, %v5805
  %5807 = vmatmul.f32.gmra.mxu0 %v5597
  %v5808 = vpop.f32.mrf.mxu0
  %v5809 = vadd.f32 %v5455, %v5808
  %5810 = vmatmul.f32.gmra.mxu0 %v5600
  %v5811 = vpop.f32.mrf.mxu0
  %v5812 = vadd.f32 %v5455, %v5811
  %5813 = vmatmul.f32.gmra.mxu0 %v5603
  %v5814 = vpop.f32.mrf.mxu0
  %v5815 = vadd.f32 %v5455, %v5814
  %5816 = vmatmul.f32.gmra.mxu0 %v5606
  %v5817 = vpop.f32.mrf.mxu0
  %v5818 = vadd.f32 %v5455, %v5817
  %5819 = vmatmul.f32.gmra.mxu0 %v5609
  %v5820 = vpop.f32.mrf.mxu0
  %v5821 = vadd.f32 %v5455, %v5820
  %5822 = vmatmul.f32.gmra.mxu0 %v5612
  %v5823 = vpop.f32.mrf.mxu0
  %v5824 = vadd.f32 %v5455, %v5823
  %5825 = vmatmul.f32.gmra.mxu0 %v5615
  %v5826 = vpop.f32.mrf.mxu0
  %v5827 = vadd.f32 %v5455, %v5826
  %5828 = vmatmul.f32.gmra.mxu0 %v5618
  %v5829 = vpop.f32.mrf.mxu0
  %v5830 = vadd.f32 %v5455, %v5829
  %5831 = vmatmul.f32.gmra.mxu0 %v5621
  %v5832 = vpop.f32.mrf.mxu0
  %v5833 = vadd.f32 %v5455, %v5832
  %5834 = vmatmul.f32.gmra.mxu0 %v5624
  %v5835 = vpop.f32.mrf.mxu0
  %v5836 = vadd.f32 %v5455, %v5835
  %5837 = vmatmul.f32.gmra.mxu0 %v5627
  %v5838 = vpop.f32.mrf.mxu0
  %v5839 = vadd.f32 %v5455, %v5838
  %5840 = vmatmul.f32.gmra.mxu0 %v5630
  %v5841 = vpop.f32.mrf.mxu0
  %v5842 = vadd.f32 %v5455, %v5841
  %5843 = vmatmul.f32.gmra.mxu0 %v5633
  %v5844 = vpop.f32.mrf.mxu0
  %v5845 = vadd.f32 %v5455, %v5844
  %5846 = vmatmul.f32.gmra.mxu0 %v5636
  %v5847 = vpop.f32.mrf.mxu0
  %v5848 = vadd.f32 %v5455, %v5847
  %5849 = vmatmul.f32.gmra.mxu0 %v5639
  %v5850 = vpop.f32.mrf.mxu0
  %v5851 = vadd.f32 %v5455, %v5850
  %5852 = vmatmul.f32.gmra.mxu0 %v5642
  %v5853 = vpop.f32.mrf.mxu0
  %v5854 = vadd.f32 %v5455, %v5853
  %5855 = vmatmul.f32.gmra.mxu0 %v5645
  %v5856 = vpop.f32.mrf.mxu0
  %v5857 = vadd.f32 %v5455, %v5856
  %5858 = vmatmul.f32.gmra.mxu0 %v5648
  %v5859 = vpop.f32.mrf.mxu0
  %v5860 = vadd.f32 %v5455, %v5859
  %5861 = vdwg.mxu0
  %v5862 = vld [vmem:[%s9] sm:$0x1]
  %v5863 = vld [vmem:[%s10] sm:$0x1]
  %v5864 = vsel %vm4993, %v5671, 0.0
  %v5865 = vsel %vm4993, %v5674, 0.0
  %v5866 = vadd.f32 %v5864, %v5865
  %v5867 = vsel %vm4993, %v5677, 0.0
  %v5868 = vadd.f32 %v5866, %v5867
  %v5869 = vsel %vm4993, %v5680, 0.0
  %v5870 = vadd.f32 %v5868, %v5869
  %v5871 = vsel %vm4993, %v5683, 0.0
  %v5872 = vadd.f32 %v5870, %v5871
  %v5873 = vsel %vm4993, %v5686, 0.0
  %v5874 = vadd.f32 %v5872, %v5873
  %v5875 = vsel %vm4993, %v5689, 0.0
  %v5876 = vadd.f32 %v5874, %v5875
  %v5877 = vsel %vm4993, %v5692, 0.0
  %v5878 = vadd.f32 %v5876, %v5877
  %v5879 = vsel %vm4993, %v5695, 0.0
  %v5880 = vadd.f32 %v5878, %v5879
  %v5881 = vsel %vm4993, %v5698, 0.0
  %v5882 = vadd.f32 %v5880, %v5881
  %v5883 = vsel %vm4993, %v5701, 0.0
  %v5884 = vadd.f32 %v5882, %v5883
  %v5885 = vsel %vm4993, %v5704, 0.0
  %v5886 = vadd.f32 %v5884, %v5885
  %v5887 = vsel %vm4993, %v5707, 0.0
  %v5888 = vadd.f32 %v5886, %v5887
  %v5889 = vsel %vm4993, %v5710, 0.0
  %v5890 = vadd.f32 %v5888, %v5889
  %v5891 = vsel %vm4993, %v5713, 0.0
  %v5892 = vadd.f32 %v5890, %v5891
  %v5893 = vsel %vm4993, %v5716, 0.0
  %v5894 = vadd.f32 %v5892, %v5893
  %v5895 = vsel %vm4993, %v5719, 0.0
  %v5896 = vadd.f32 %v5894, %v5895
  %v5897 = vsel %vm4993, %v5722, 0.0
  %v5898 = vadd.f32 %v5896, %v5897
  %v5899 = vsel %vm4993, %v5725, 0.0
  %v5900 = vadd.f32 %v5898, %v5899
  %v5901 = vsel %vm4993, %v5728, 0.0
  %v5902 = vadd.f32 %v5900, %v5901
  %v5903 = vsel %vm4993, %v5731, 0.0
  %v5904 = vadd.f32 %v5902, %v5903
  %v5905 = vsel %vm4993, %v5734, 0.0
  %v5906 = vadd.f32 %v5904, %v5905
  %v5907 = vsel %vm4993, %v5737, 0.0
  %v5908 = vadd.f32 %v5906, %v5907
  %v5909 = vsel %vm4993, %v5740, 0.0
  %v5910 = vadd.f32 %v5908, %v5909
  %v5911 = vsel %vm4993, %v5743, 0.0
  %v5912 = vadd.f32 %v5910, %v5911
  %v5913 = vsel %vm4993, %v5746, 0.0
  %v5914 = vadd.f32 %v5912, %v5913
  %v5915 = vsel %vm4993, %v5749, 0.0
  %v5916 = vadd.f32 %v5914, %v5915
  %v5917 = vsel %vm4993, %v5752, 0.0
  %v5918 = vadd.f32 %v5916, %v5917
  %v5919 = vsel %vm4993, %v5755, 0.0
  %v5920 = vadd.f32 %v5918, %v5919
  %v5921 = vsel %vm4993, %v5758, 0.0
  %v5922 = vadd.f32 %v5920, %v5921
  %v5923 = vsel %vm4993, %v5761, 0.0
  %v5924 = vadd.f32 %v5922, %v5923
  %v5925 = vsel %vm4993, %v5764, 0.0
  %v5926 = vadd.f32 %v5924, %v5925
  %v5927 = vsel %vm4993, %v5767, 0.0
  %v5928 = vadd.f32 %v5926, %v5927
  %v5929 = vsel %vm4993, %v5770, 0.0
  %v5930 = vadd.f32 %v5928, %v5929
  %v5931 = vsel %vm4993, %v5773, 0.0
  %v5932 = vadd.f32 %v5930, %v5931
  %v5933 = vsel %vm4993, %v5776, 0.0
  %v5934 = vadd.f32 %v5932, %v5933
  %v5935 = vsel %vm4993, %v5779, 0.0
  %v5936 = vadd.f32 %v5934, %v5935
  %v5937 = vsel %vm4993, %v5782, 0.0
  %v5938 = vadd.f32 %v5936, %v5937
  %v5939 = vsel %vm4993, %v5785, 0.0
  %v5940 = vadd.f32 %v5938, %v5939
  %v5941 = vsel %vm4993, %v5788, 0.0
  %v5942 = vadd.f32 %v5940, %v5941
  %v5943 = vsel %vm4993, %v5791, 0.0
  %v5944 = vadd.f32 %v5942, %v5943
  %v5945 = vsel %vm4993, %v5794, 0.0
  %v5946 = vadd.f32 %v5944, %v5945
  %v5947 = vsel %vm4993, %v5797, 0.0
  %v5948 = vadd.f32 %v5946, %v5947
  %v5949 = vsel %vm4993, %v5800, 0.0
  %v5950 = vadd.f32 %v5948, %v5949
  %v5951 = vsel %vm4993, %v5803, 0.0
  %v5952 = vadd.f32 %v5950, %v5951
  %v5953 = vsel %vm4993, %v5806, 0.0
  %v5954 = vadd.f32 %v5952, %v5953
  %v5955 = vsel %vm4993, %v5809, 0.0
  %v5956 = vadd.f32 %v5954, %v5955
  %v5957 = vsel %vm4993, %v5812, 0.0
  %v5958 = vadd.f32 %v5956, %v5957
  %v5959 = vsel %vm4993, %v5815, 0.0
  %v5960 = vadd.f32 %v5958, %v5959
  %v5961 = vsel %vm4993, %v5818, 0.0
  %v5962 = vadd.f32 %v5960, %v5961
  %v5963 = vsel %vm4993, %v5821, 0.0
  %v5964 = vadd.f32 %v5962, %v5963
  %v5965 = vsel %vm4993, %v5824, 0.0
  %v5966 = vadd.f32 %v5964, %v5965
  %v5967 = vsel %vm4993, %v5827, 0.0
  %v5968 = vadd.f32 %v5966, %v5967
  %v5969 = vsel %vm4993, %v5830, 0.0
  %v5970 = vadd.f32 %v5968, %v5969
  %v5971 = vsel %vm4993, %v5833, 0.0
  %v5972 = vadd.f32 %v5970, %v5971
  %v5973 = vsel %vm4993, %v5836, 0.0
  %v5974 = vadd.f32 %v5972, %v5973
  %v5975 = vsel %vm4993, %v5839, 0.0
  %v5976 = vadd.f32 %v5974, %v5975
  %v5977 = vsel %vm4993, %v5842, 0.0
  %v5978 = vadd.f32 %v5976, %v5977
  %v5979 = vsel %vm4993, %v5845, 0.0
  %v5980 = vadd.f32 %v5978, %v5979
  %v5981 = vsel %vm4993, %v5848, 0.0
  %v5982 = vadd.f32 %v5980, %v5981
  %v5983 = vsel %vm4993, %v5851, 0.0
  %v5984 = vadd.f32 %v5982, %v5983
  %v5985 = vsel %vm4993, %v5854, 0.0
  %v5986 = vadd.f32 %v5984, %v5985
  %v5987 = vsel %vm4993, %v5857, 0.0
  %v5988 = vadd.f32 %v5986, %v5987
  %v5989 = vsel %vm4993, %v5860, 0.0
  %v5990 = vadd.f32 %v5988, %v5989
  %v5991 = vrot.slane %v5990, 4
  %v5992 = vadd.f32 %v5990, %v5991
  %v5993 = vrot.slane %v5992, 2
  %v5994 = vadd.f32 %v5992, %v5993
  %v5995 = vrot.slane %v5994, 1
  %v5996 = vadd.f32 %v5994, %v5995
  %v5997 = vmul.f32 %v5996, %v256
  %v5998 = vsub.f32 %v5671, %v5997
  %v5999 = vsub.f32 %v5674, %v5997
  %v6000 = vsub.f32 %v5677, %v5997
  %v6001 = vsub.f32 %v5680, %v5997
  %v6002 = vsub.f32 %v5683, %v5997
  %v6003 = vsub.f32 %v5686, %v5997
  %v6004 = vsub.f32 %v5689, %v5997
  %v6005 = vsub.f32 %v5692, %v5997
  %v6006 = vsub.f32 %v5695, %v5997
  %v6007 = vsub.f32 %v5698, %v5997
  %v6008 = vsub.f32 %v5701, %v5997
  %v6009 = vsub.f32 %v5704, %v5997
  %v6010 = vsub.f32 %v5707, %v5997
  %v6011 = vsub.f32 %v5710, %v5997
  %v6012 = vsub.f32 %v5713, %v5997
  %v6013 = vsub.f32 %v5716, %v5997
  %v6014 = vsub.f32 %v5719, %v5997
  %v6015 = vsub.f32 %v5722, %v5997
  %v6016 = vsub.f32 %v5725, %v5997
  %v6017 = vsub.f32 %v5728, %v5997
  %v6018 = vsub.f32 %v5731, %v5997
  %v6019 = vsub.f32 %v5734, %v5997
  %v6020 = vsub.f32 %v5737, %v5997
  %v6021 = vsub.f32 %v5740, %v5997
  %v6022 = vsub.f32 %v5743, %v5997
  %v6023 = vsub.f32 %v5746, %v5997
  %v6024 = vsub.f32 %v5749, %v5997
  %v6025 = vsub.f32 %v5752, %v5997
  %v6026 = vsub.f32 %v5755, %v5997
  %v6027 = vsub.f32 %v5758, %v5997
  %v6028 = vsub.f32 %v5761, %v5997
  %v6029 = vsub.f32 %v5764, %v5997
  %v6030 = vsub.f32 %v5767, %v5997
  %v6031 = vsub.f32 %v5770, %v5997
  %v6032 = vsub.f32 %v5773, %v5997
  %v6033 = vsub.f32 %v5776, %v5997
  %v6034 = vsub.f32 %v5779, %v5997
  %v6035 = vsub.f32 %v5782, %v5997
  %v6036 = vsub.f32 %v5785, %v5997
  %v6037 = vsub.f32 %v5788, %v5997
  %v6038 = vsub.f32 %v5791, %v5997
  %v6039 = vsub.f32 %v5794, %v5997
  %v6040 = vsub.f32 %v5797, %v5997
  %v6041 = vsub.f32 %v5800, %v5997
  %v6042 = vsub.f32 %v5803, %v5997
  %v6043 = vsub.f32 %v5806, %v5997
  %v6044 = vsub.f32 %v5809, %v5997
  %v6045 = vsub.f32 %v5812, %v5997
  %v6046 = vsub.f32 %v5815, %v5997
  %v6047 = vsub.f32 %v5818, %v5997
  %v6048 = vsub.f32 %v5821, %v5997
  %v6049 = vsub.f32 %v5824, %v5997
  %v6050 = vsub.f32 %v5827, %v5997
  %v6051 = vsub.f32 %v5830, %v5997
  %v6052 = vsub.f32 %v5833, %v5997
  %v6053 = vsub.f32 %v5836, %v5997
  %v6054 = vsub.f32 %v5839, %v5997
  %v6055 = vsub.f32 %v5842, %v5997
  %v6056 = vsub.f32 %v5845, %v5997
  %v6057 = vsub.f32 %v5848, %v5997
  %v6058 = vsub.f32 %v5851, %v5997
  %v6059 = vsub.f32 %v5854, %v5997
  %v6060 = vsub.f32 %v5857, %v5997
  %v6061 = vsub.f32 %v5860, %v5997
  %v6062 = vmul.f32 %v5998, %v5998
  %v6063 = vmul.f32 %v5999, %v5999
  %v6064 = vmul.f32 %v6000, %v6000
  %v6065 = vmul.f32 %v6001, %v6001
  %v6066 = vmul.f32 %v6002, %v6002
  %v6067 = vmul.f32 %v6003, %v6003
  %v6068 = vmul.f32 %v6004, %v6004
  %v6069 = vmul.f32 %v6005, %v6005
  %v6070 = vmul.f32 %v6006, %v6006
  %v6071 = vmul.f32 %v6007, %v6007
  %v6072 = vmul.f32 %v6008, %v6008
  %v6073 = vmul.f32 %v6009, %v6009
  %v6074 = vmul.f32 %v6010, %v6010
  %v6075 = vmul.f32 %v6011, %v6011
  %v6076 = vmul.f32 %v6012, %v6012
  %v6077 = vmul.f32 %v6013, %v6013
  %v6078 = vmul.f32 %v6014, %v6014
  %v6079 = vmul.f32 %v6015, %v6015
  %v6080 = vmul.f32 %v6016, %v6016
  %v6081 = vmul.f32 %v6017, %v6017
  %v6082 = vmul.f32 %v6018, %v6018
  %v6083 = vmul.f32 %v6019, %v6019
  %v6084 = vmul.f32 %v6020, %v6020
  %v6085 = vmul.f32 %v6021, %v6021
  %v6086 = vmul.f32 %v6022, %v6022
  %v6087 = vmul.f32 %v6023, %v6023
  %v6088 = vmul.f32 %v6024, %v6024
  %v6089 = vmul.f32 %v6025, %v6025
  %v6090 = vmul.f32 %v6026, %v6026
  %v6091 = vmul.f32 %v6027, %v6027
  %v6092 = vmul.f32 %v6028, %v6028
  %v6093 = vmul.f32 %v6029, %v6029
  %v6094 = vmul.f32 %v6030, %v6030
  %v6095 = vmul.f32 %v6031, %v6031
  %v6096 = vmul.f32 %v6032, %v6032
  %v6097 = vmul.f32 %v6033, %v6033
  %v6098 = vmul.f32 %v6034, %v6034
  %v6099 = vmul.f32 %v6035, %v6035
  %v6100 = vmul.f32 %v6036, %v6036
  %v6101 = vmul.f32 %v6037, %v6037
  %v6102 = vmul.f32 %v6038, %v6038
  %v6103 = vmul.f32 %v6039, %v6039
  %v6104 = vmul.f32 %v6040, %v6040
  %v6105 = vmul.f32 %v6041, %v6041
  %v6106 = vmul.f32 %v6042, %v6042
  %v6107 = vmul.f32 %v6043, %v6043
  %v6108 = vmul.f32 %v6044, %v6044
  %v6109 = vmul.f32 %v6045, %v6045
  %v6110 = vmul.f32 %v6046, %v6046
  %v6111 = vmul.f32 %v6047, %v6047
  %v6112 = vmul.f32 %v6048, %v6048
  %v6113 = vmul.f32 %v6049, %v6049
  %v6114 = vmul.f32 %v6050, %v6050
  %v6115 = vmul.f32 %v6051, %v6051
  %v6116 = vmul.f32 %v6052, %v6052
  %v6117 = vmul.f32 %v6053, %v6053
  %v6118 = vmul.f32 %v6054, %v6054
  %v6119 = vmul.f32 %v6055, %v6055
  %v6120 = vmul.f32 %v6056, %v6056
  %v6121 = vmul.f32 %v6057, %v6057
  %v6122 = vmul.f32 %v6058, %v6058
  %v6123 = vmul.f32 %v6059, %v6059
  %v6124 = vmul.f32 %v6060, %v6060
  %v6125 = vmul.f32 %v6061, %v6061
  %v6126 = vsel %vm4993, %v6062, 0.0
  %v6127 = vsel %vm4993, %v6063, 0.0
  %v6128 = vadd.f32 %v6126, %v6127
  %v6129 = vsel %vm4993, %v6064, 0.0
  %v6130 = vadd.f32 %v6128, %v6129
  %v6131 = vsel %vm4993, %v6065, 0.0
  %v6132 = vadd.f32 %v6130, %v6131
  %v6133 = vsel %vm4993, %v6066, 0.0
  %v6134 = vadd.f32 %v6132, %v6133
  %v6135 = vsel %vm4993, %v6067, 0.0
  %v6136 = vadd.f32 %v6134, %v6135
  %v6137 = vsel %vm4993, %v6068, 0.0
  %v6138 = vadd.f32 %v6136, %v6137
  %v6139 = vsel %vm4993, %v6069, 0.0
  %v6140 = vadd.f32 %v6138, %v6139
  %v6141 = vsel %vm4993, %v6070, 0.0
  %v6142 = vadd.f32 %v6140, %v6141
  %v6143 = vsel %vm4993, %v6071, 0.0
  %v6144 = vadd.f32 %v6142, %v6143
  %v6145 = vsel %vm4993, %v6072, 0.0
  %v6146 = vadd.f32 %v6144, %v6145
  %v6147 = vsel %vm4993, %v6073, 0.0
  %v6148 = vadd.f32 %v6146, %v6147
  %v6149 = vsel %vm4993, %v6074, 0.0
  %v6150 = vadd.f32 %v6148, %v6149
  %v6151 = vsel %vm4993, %v6075, 0.0
  %v6152 = vadd.f32 %v6150, %v6151
  %v6153 = vsel %vm4993, %v6076, 0.0
  %v6154 = vadd.f32 %v6152, %v6153
  %v6155 = vsel %vm4993, %v6077, 0.0
  %v6156 = vadd.f32 %v6154, %v6155
  %v6157 = vsel %vm4993, %v6078, 0.0
  %v6158 = vadd.f32 %v6156, %v6157
  %v6159 = vsel %vm4993, %v6079, 0.0
  %v6160 = vadd.f32 %v6158, %v6159
  %v6161 = vsel %vm4993, %v6080, 0.0
  %v6162 = vadd.f32 %v6160, %v6161
  %v6163 = vsel %vm4993, %v6081, 0.0
  %v6164 = vadd.f32 %v6162, %v6163
  %v6165 = vsel %vm4993, %v6082, 0.0
  %v6166 = vadd.f32 %v6164, %v6165
  %v6167 = vsel %vm4993, %v6083, 0.0
  %v6168 = vadd.f32 %v6166, %v6167
  %v6169 = vsel %vm4993, %v6084, 0.0
  %v6170 = vadd.f32 %v6168, %v6169
  %v6171 = vsel %vm4993, %v6085, 0.0
  %v6172 = vadd.f32 %v6170, %v6171
  %v6173 = vsel %vm4993, %v6086, 0.0
  %v6174 = vadd.f32 %v6172, %v6173
  %v6175 = vsel %vm4993, %v6087, 0.0
  %v6176 = vadd.f32 %v6174, %v6175
  %v6177 = vsel %vm4993, %v6088, 0.0
  %v6178 = vadd.f32 %v6176, %v6177
  %v6179 = vsel %vm4993, %v6089, 0.0
  %v6180 = vadd.f32 %v6178, %v6179
  %v6181 = vsel %vm4993, %v6090, 0.0
  %v6182 = vadd.f32 %v6180, %v6181
  %v6183 = vsel %vm4993, %v6091, 0.0
  %v6184 = vadd.f32 %v6182, %v6183
  %v6185 = vsel %vm4993, %v6092, 0.0
  %v6186 = vadd.f32 %v6184, %v6185
  %v6187 = vsel %vm4993, %v6093, 0.0
  %v6188 = vadd.f32 %v6186, %v6187
  %v6189 = vsel %vm4993, %v6094, 0.0
  %v6190 = vadd.f32 %v6188, %v6189
  %v6191 = vsel %vm4993, %v6095, 0.0
  %v6192 = vadd.f32 %v6190, %v6191
  %v6193 = vsel %vm4993, %v6096, 0.0
  %v6194 = vadd.f32 %v6192, %v6193
  %v6195 = vsel %vm4993, %v6097, 0.0
  %v6196 = vadd.f32 %v6194, %v6195
  %v6197 = vsel %vm4993, %v6098, 0.0
  %v6198 = vadd.f32 %v6196, %v6197
  %v6199 = vsel %vm4993, %v6099, 0.0
  %v6200 = vadd.f32 %v6198, %v6199
  %v6201 = vsel %vm4993, %v6100, 0.0
  %v6202 = vadd.f32 %v6200, %v6201
  %v6203 = vsel %vm4993, %v6101, 0.0
  %v6204 = vadd.f32 %v6202, %v6203
  %v6205 = vsel %vm4993, %v6102, 0.0
  %v6206 = vadd.f32 %v6204, %v6205
  %v6207 = vsel %vm4993, %v6103, 0.0
  %v6208 = vadd.f32 %v6206, %v6207
  %v6209 = vsel %vm4993, %v6104, 0.0
  %v6210 = vadd.f32 %v6208, %v6209
  %v6211 = vsel %vm4993, %v6105, 0.0
  %v6212 = vadd.f32 %v6210, %v6211
  %v6213 = vsel %vm4993, %v6106, 0.0
  %v6214 = vadd.f32 %v6212, %v6213
  %v6215 = vsel %vm4993, %v6107, 0.0
  %v6216 = vadd.f32 %v6214, %v6215
  %v6217 = vsel %vm4993, %v6108, 0.0
  %v6218 = vadd.f32 %v6216, %v6217
  %v6219 = vsel %vm4993, %v6109, 0.0
  %v6220 = vadd.f32 %v6218, %v6219
  %v6221 = vsel %vm4993, %v6110, 0.0
  %v6222 = vadd.f32 %v6220, %v6221
  %v6223 = vsel %vm4993, %v6111, 0.0
  %v6224 = vadd.f32 %v6222, %v6223
  %v6225 = vsel %vm4993, %v6112, 0.0
  %v6226 = vadd.f32 %v6224, %v6225
  %v6227 = vsel %vm4993, %v6113, 0.0
  %v6228 = vadd.f32 %v6226, %v6227
  %v6229 = vsel %vm4993, %v6114, 0.0
  %v6230 = vadd.f32 %v6228, %v6229
  %v6231 = vsel %vm4993, %v6115, 0.0
  %v6232 = vadd.f32 %v6230, %v6231
  %v6233 = vsel %vm4993, %v6116, 0.0
  %v6234 = vadd.f32 %v6232, %v6233
  %v6235 = vsel %vm4993, %v6117, 0.0
  %v6236 = vadd.f32 %v6234, %v6235
  %v6237 = vsel %vm4993, %v6118, 0.0
  %v6238 = vadd.f32 %v6236, %v6237
  %v6239 = vsel %vm4993, %v6119, 0.0
  %v6240 = vadd.f32 %v6238, %v6239
  %v6241 = vsel %vm4993, %v6120, 0.0
  %v6242 = vadd.f32 %v6240, %v6241
  %v6243 = vsel %vm4993, %v6121, 0.0
  %v6244 = vadd.f32 %v6242, %v6243
  %v6245 = vsel %vm4993, %v6122, 0.0
  %v6246 = vadd.f32 %v6244, %v6245
  %v6247 = vsel %vm4993, %v6123, 0.0
  %v6248 = vadd.f32 %v6246, %v6247
  %v6249 = vsel %vm4993, %v6124, 0.0
  %v6250 = vadd.f32 %v6248, %v6249
  %v6251 = vsel %vm4993, %v6125, 0.0
  %v6252 = vadd.f32 %v6250, %v6251
  %v6253 = vrot.slane %v6252, 4
  %v6254 = vadd.f32 %v6252, %v6253
  %v6255 = vrot.slane %v6254, 2
  %v6256 = vadd.f32 %v6254, %v6255
  %v6257 = vrot.slane %v6256, 1
  %v6258 = vadd.f32 %v6256, %v6257
  %v6259 = vmul.f32 %v6258, %v256
  %v6260 = vadd.f32 %v6259, 1e-05
  %v6261 = vrsqrt.pop %v6260
  %v6262 = vmul.f32 %v6261, %v6260
  %v6263 = vmul.f32 %v6262, %v6261
  %v6264 = vmul.f32 0.5, %v6263
  %v6265 = vsub.f32 1.5, %v6264
  %v6266 = vmul.f32 %v6261, %v6265
  %vm6267 = vweird.f32 %v6260
  %vm6268 = vweird.f32 %v6261
  %vm6269 = vmor %vm6267, %vm6268
  %v6270 = vsel %vm6269, %v6261, %v6266
  %v6271 = vmul.f32 %v5998, %v6270
  %v6272 = vmul.f32 %v5999, %v6270
  %v6273 = vmul.f32 %v6000, %v6270
  %v6274 = vmul.f32 %v6001, %v6270
  %v6275 = vmul.f32 %v6002, %v6270
  %v6276 = vmul.f32 %v6003, %v6270
  %v6277 = vmul.f32 %v6004, %v6270
  %v6278 = vmul.f32 %v6005, %v6270
  %v6279 = vmul.f32 %v6006, %v6270
  %v6280 = vmul.f32 %v6007, %v6270
  %v6281 = vmul.f32 %v6008, %v6270
  %v6282 = vmul.f32 %v6009, %v6270
  %v6283 = vmul.f32 %v6010, %v6270
  %v6284 = vmul.f32 %v6011, %v6270
  %v6285 = vmul.f32 %v6012, %v6270
  %v6286 = vmul.f32 %v6013, %v6270
  %v6287 = vmul.f32 %v6014, %v6270
  %v6288 = vmul.f32 %v6015, %v6270
  %v6289 = vmul.f32 %v6016, %v6270
  %v6290 = vmul.f32 %v6017, %v6270
  %v6291 = vmul.f32 %v6018, %v6270
  %v6292 = vmul.f32 %v6019, %v6270
  %v6293 = vmul.f32 %v6020, %v6270
  %v6294 = vmul.f32 %v6021, %v6270
  %v6295 = vmul.f32 %v6022, %v6270
  %v6296 = vmul.f32 %v6023, %v6270
  %v6297 = vmul.f32 %v6024, %v6270
  %v6298 = vmul.f32 %v6025, %v6270
  %v6299 = vmul.f32 %v6026, %v6270
  %v6300 = vmul.f32 %v6027, %v6270
  %v6301 = vmul.f32 %v6028, %v6270
  %v6302 = vmul.f32 %v6029, %v6270
  %v6303 = vmul.f32 %v6030, %v6270
  %v6304 = vmul.f32 %v6031, %v6270
  %v6305 = vmul.f32 %v6032, %v6270
  %v6306 = vmul.f32 %v6033, %v6270
  %v6307 = vmul.f32 %v6034, %v6270
  %v6308 = vmul.f32 %v6035, %v6270
  %v6309 = vmul.f32 %v6036, %v6270
  %v6310 = vmul.f32 %v6037, %v6270
  %v6311 = vmul.f32 %v6038, %v6270
  %v6312 = vmul.f32 %v6039, %v6270
  %v6313 = vmul.f32 %v6040, %v6270
  %v6314 = vmul.f32 %v6041, %v6270
  %v6315 = vmul.f32 %v6042, %v6270
  %v6316 = vmul.f32 %v6043, %v6270
  %v6317 = vmul.f32 %v6044, %v6270
  %v6318 = vmul.f32 %v6045, %v6270
  %v6319 = vmul.f32 %v6046, %v6270
  %v6320 = vmul.f32 %v6047, %v6270
  %v6321 = vmul.f32 %v6048, %v6270
  %v6322 = vmul.f32 %v6049, %v6270
  %v6323 = vmul.f32 %v6050, %v6270
  %v6324 = vmul.f32 %v6051, %v6270
  %v6325 = vmul.f32 %v6052, %v6270
  %v6326 = vmul.f32 %v6053, %v6270
  %v6327 = vmul.f32 %v6054, %v6270
  %v6328 = vmul.f32 %v6055, %v6270
  %v6329 = vmul.f32 %v6056, %v6270
  %v6330 = vmul.f32 %v6057, %v6270
  %v6331 = vmul.f32 %v6058, %v6270
  %v6332 = vmul.f32 %v6059, %v6270
  %v6333 = vmul.f32 %v6060, %v6270
  %v6334 = vmul.f32 %v6061, %v6270
  %v6336 = vperm.slane %v5862, 0
  %v6338 = vmul.f32 %v6271, %v6336
  %v6339 = vmul.f32 %v6272, %v6336
  %v6340 = vmul.f32 %v6273, %v6336
  %v6341 = vmul.f32 %v6274, %v6336
  %v6342 = vmul.f32 %v6275, %v6336
  %v6343 = vmul.f32 %v6276, %v6336
  %v6344 = vmul.f32 %v6277, %v6336
  %v6345 = vmul.f32 %v6278, %v6336
  %v6346 = vmul.f32 %v6279, %v6336
  %v6347 = vmul.f32 %v6280, %v6336
  %v6348 = vmul.f32 %v6281, %v6336
  %v6349 = vmul.f32 %v6282, %v6336
  %v6350 = vmul.f32 %v6283, %v6336
  %v6351 = vmul.f32 %v6284, %v6336
  %v6352 = vmul.f32 %v6285, %v6336
  %v6353 = vmul.f32 %v6286, %v6336
  %v6354 = vmul.f32 %v6287, %v6336
  %v6355 = vmul.f32 %v6288, %v6336
  %v6356 = vmul.f32 %v6289, %v6336
  %v6357 = vmul.f32 %v6290, %v6336
  %v6358 = vmul.f32 %v6291, %v6336
  %v6359 = vmul.f32 %v6292, %v6336
  %v6360 = vmul.f32 %v6293, %v6336
  %v6361 = vmul.f32 %v6294, %v6336
  %v6362 = vmul.f32 %v6295, %v6336
  %v6363 = vmul.f32 %v6296, %v6336
  %v6364 = vmul.f32 %v6297, %v6336
  %v6365 = vmul.f32 %v6298, %v6336
  %v6366 = vmul.f32 %v6299, %v6336
  %v6367 = vmul.f32 %v6300, %v6336
  %v6368 = vmul.f32 %v6301, %v6336
  %v6369 = vmul.f32 %v6302, %v6336
  %v6370 = vmul.f32 %v6303, %v6336
  %v6371 = vmul.f32 %v6304, %v6336
  %v6372 = vmul.f32 %v6305, %v6336
  %v6373 = vmul.f32 %v6306, %v6336
  %v6374 = vmul.f32 %v6307, %v6336
  %v6375 = vmul.f32 %v6308, %v6336
  %v6376 = vmul.f32 %v6309, %v6336
  %v6377 = vmul.f32 %v6310, %v6336
  %v6378 = vmul.f32 %v6311, %v6336
  %v6379 = vmul.f32 %v6312, %v6336
  %v6380 = vmul.f32 %v6313, %v6336
  %v6381 = vmul.f32 %v6314, %v6336
  %v6382 = vmul.f32 %v6315, %v6336
  %v6383 = vmul.f32 %v6316, %v6336
  %v6384 = vmul.f32 %v6317, %v6336
  %v6385 = vmul.f32 %v6318, %v6336
  %v6386 = vmul.f32 %v6319, %v6336
  %v6387 = vmul.f32 %v6320, %v6336
  %v6388 = vmul.f32 %v6321, %v6336
  %v6389 = vmul.f32 %v6322, %v6336
  %v6390 = vmul.f32 %v6323, %v6336
  %v6391 = vmul.f32 %v6324, %v6336
  %v6392 = vmul.f32 %v6325, %v6336
  %v6393 = vmul.f32 %v6326, %v6336
  %v6394 = vmul.f32 %v6327, %v6336
  %v6395 = vmul.f32 %v6328, %v6336
  %v6396 = vmul.f32 %v6329, %v6336
  %v6397 = vmul.f32 %v6330, %v6336
  %v6398 = vmul.f32 %v6331, %v6336
  %v6399 = vmul.f32 %v6332, %v6336
  %v6400 = vmul.f32 %v6333, %v6336
  %v6401 = vmul.f32 %v6334, %v6336
  %v6403 = vperm.slane %v5863, 0
  %v6405 = vadd.f32 %v6338, %v6403
  %v6406 = vadd.f32 %v6339, %v6403
  %v6407 = vadd.f32 %v6340, %v6403
  %v6408 = vadd.f32 %v6341, %v6403
  %v6409 = vadd.f32 %v6342, %v6403
  %v6410 = vadd.f32 %v6343, %v6403
  %v6411 = vadd.f32 %v6344, %v6403
  %v6412 = vadd.f32 %v6345, %v6403
  %v6413 = vadd.f32 %v6346, %v6403
  %v6414 = vadd.f32 %v6347, %v6403
  %v6415 = vadd.f32 %v6348, %v6403
  %v6416 = vadd.f32 %v6349, %v6403
  %v6417 = vadd.f32 %v6350, %v6403
  %v6418 = vadd.f32 %v6351, %v6403
  %v6419 = vadd.f32 %v6352, %v6403
  %v6420 = vadd.f32 %v6353, %v6403
  %v6421 = vadd.f32 %v6354, %v6403
  %v6422 = vadd.f32 %v6355, %v6403
  %v6423 = vadd.f32 %v6356, %v6403
  %v6424 = vadd.f32 %v6357, %v6403
  %v6425 = vadd.f32 %v6358, %v6403
  %v6426 = vadd.f32 %v6359, %v6403
  %v6427 = vadd.f32 %v6360, %v6403
  %v6428 = vadd.f32 %v6361, %v6403
  %v6429 = vadd.f32 %v6362, %v6403
  %v6430 = vadd.f32 %v6363, %v6403
  %v6431 = vadd.f32 %v6364, %v6403
  %v6432 = vadd.f32 %v6365, %v6403
  %v6433 = vadd.f32 %v6366, %v6403
  %v6434 = vadd.f32 %v6367, %v6403
  %v6435 = vadd.f32 %v6368, %v6403
  %v6436 = vadd.f32 %v6369, %v6403
  %v6437 = vadd.f32 %v6370, %v6403
  %v6438 = vadd.f32 %v6371, %v6403
  %v6439 = vadd.f32 %v6372, %v6403
  %v6440 = vadd.f32 %v6373, %v6403
  %v6441 = vadd.f32 %v6374, %v6403
  %v6442 = vadd.f32 %v6375, %v6403
  %v6443 = vadd.f32 %v6376, %v6403
  %v6444 = vadd.f32 %v6377, %v6403
  %v6445 = vadd.f32 %v6378, %v6403
  %v6446 = vadd.f32 %v6379, %v6403
  %v6447 = vadd.f32 %v6380, %v6403
  %v6448 = vadd.f32 %v6381, %v6403
  %v6449 = vadd.f32 %v6382, %v6403
  %v6450 = vadd.f32 %v6383, %v6403
  %v6451 = vadd.f32 %v6384, %v6403
  %v6452 = vadd.f32 %v6385, %v6403
  %v6453 = vadd.f32 %v6386, %v6403
  %v6454 = vadd.f32 %v6387, %v6403
  %v6455 = vadd.f32 %v6388, %v6403
  %v6456 = vadd.f32 %v6389, %v6403
  %v6457 = vadd.f32 %v6390, %v6403
  %v6458 = vadd.f32 %v6391, %v6403
  %v6459 = vadd.f32 %v6392, %v6403
  %v6460 = vadd.f32 %v6393, %v6403
  %v6461 = vadd.f32 %v6394, %v6403
  %v6462 = vadd.f32 %v6395, %v6403
  %v6463 = vadd.f32 %v6396, %v6403
  %v6464 = vadd.f32 %v6397, %v6403
  %v6465 = vadd.f32 %v6398, %v6403
  %v6466 = vadd.f32 %v6399, %v6403
  %v6467 = vadd.f32 %v6400, %v6403
  %v6468 = vadd.f32 %v6401, %v6403
  %vm6469 = vcmp.ge.f32.partialorder %v6405, 0.0
  %vm6470 = vcmp.ge.f32.partialorder %v6406, 0.0
  %vm6471 = vcmp.ge.f32.partialorder %v6407, 0.0
  %vm6472 = vcmp.ge.f32.partialorder %v6408, 0.0
  %vm6473 = vcmp.ge.f32.partialorder %v6409, 0.0
  %vm6474 = vcmp.ge.f32.partialorder %v6410, 0.0
  %vm6475 = vcmp.ge.f32.partialorder %v6411, 0.0
  %vm6476 = vcmp.ge.f32.partialorder %v6412, 0.0
  %vm6477 = vcmp.ge.f32.partialorder %v6413, 0.0
  %vm6478 = vcmp.ge.f32.partialorder %v6414, 0.0
  %vm6479 = vcmp.ge.f32.partialorder %v6415, 0.0
  %vm6480 = vcmp.ge.f32.partialorder %v6416, 0.0
  %vm6481 = vcmp.ge.f32.partialorder %v6417, 0.0
  %vm6482 = vcmp.ge.f32.partialorder %v6418, 0.0
  %vm6483 = vcmp.ge.f32.partialorder %v6419, 0.0
  %vm6484 = vcmp.ge.f32.partialorder %v6420, 0.0
  %vm6485 = vcmp.ge.f32.partialorder %v6421, 0.0
  %vm6486 = vcmp.ge.f32.partialorder %v6422, 0.0
  %vm6487 = vcmp.ge.f32.partialorder %v6423, 0.0
  %vm6488 = vcmp.ge.f32.partialorder %v6424, 0.0
  %vm6489 = vcmp.ge.f32.partialorder %v6425, 0.0
  %vm6490 = vcmp.ge.f32.partialorder %v6426, 0.0
  %vm6491 = vcmp.ge.f32.partialorder %v6427, 0.0
  %vm6492 = vcmp.ge.f32.partialorder %v6428, 0.0
  %vm6493 = vcmp.ge.f32.partialorder %v6429, 0.0
  %vm6494 = vcmp.ge.f32.partialorder %v6430, 0.0
  %vm6495 = vcmp.ge.f32.partialorder %v6431, 0.0
  %vm6496 = vcmp.ge.f32.partialorder %v6432, 0.0
  %vm6497 = vcmp.ge.f32.partialorder %v6433, 0.0
  %vm6498 = vcmp.ge.f32.partialorder %v6434, 0.0
  %vm6499 = vcmp.ge.f32.partialorder %v6435, 0.0
  %vm6500 = vcmp.ge.f32.partialorder %v6436, 0.0
  %vm6501 = vcmp.ge.f32.partialorder %v6437, 0.0
  %vm6502 = vcmp.ge.f32.partialorder %v6438, 0.0
  %vm6503 = vcmp.ge.f32.partialorder %v6439, 0.0
  %vm6504 = vcmp.ge.f32.partialorder %v6440, 0.0
  %vm6505 = vcmp.ge.f32.partialorder %v6441, 0.0
  %vm6506 = vcmp.ge.f32.partialorder %v6442, 0.0
  %vm6507 = vcmp.ge.f32.partialorder %v6443, 0.0
  %vm6508 = vcmp.ge.f32.partialorder %v6444, 0.0
  %vm6509 = vcmp.ge.f32.partialorder %v6445, 0.0
  %vm6510 = vcmp.ge.f32.partialorder %v6446, 0.0
  %vm6511 = vcmp.ge.f32.partialorder %v6447, 0.0
  %vm6512 = vcmp.ge.f32.partialorder %v6448, 0.0
  %vm6513 = vcmp.ge.f32.partialorder %v6449, 0.0
  %vm6514 = vcmp.ge.f32.partialorder %v6450, 0.0
  %vm6515 = vcmp.ge.f32.partialorder %v6451, 0.0
  %vm6516 = vcmp.ge.f32.partialorder %v6452, 0.0
  %vm6517 = vcmp.ge.f32.partialorder %v6453, 0.0
  %vm6518 = vcmp.ge.f32.partialorder %v6454, 0.0
  %vm6519 = vcmp.ge.f32.partialorder %v6455, 0.0
  %vm6520 = vcmp.ge.f32.partialorder %v6456, 0.0
  %vm6521 = vcmp.ge.f32.partialorder %v6457, 0.0
  %vm6522 = vcmp.ge.f32.partialorder %v6458, 0.0
  %vm6523 = vcmp.ge.f32.partialorder %v6459, 0.0
  %vm6524 = vcmp.ge.f32.partialorder %v6460, 0.0
  %vm6525 = vcmp.ge.f32.partialorder %v6461, 0.0
  %vm6526 = vcmp.ge.f32.partialorder %v6462, 0.0
  %vm6527 = vcmp.ge.f32.partialorder %v6463, 0.0
  %vm6528 = vcmp.ge.f32.partialorder %v6464, 0.0
  %vm6529 = vcmp.ge.f32.partialorder %v6465, 0.0
  %vm6530 = vcmp.ge.f32.partialorder %v6466, 0.0
  %vm6531 = vcmp.ge.f32.partialorder %v6467, 0.0
  %vm6532 = vcmp.ge.f32.partialorder %v6468, 0.0
  %v6533 = vmul.f32 %v6405, 0.01
  %v6534 = vmul.f32 %v6406, 0.01
  %v6535 = vmul.f32 %v6407, 0.01
  %v6536 = vmul.f32 %v6408, 0.01
  %v6537 = vmul.f32 %v6409, 0.01
  %v6538 = vmul.f32 %v6410, 0.01
  %v6539 = vmul.f32 %v6411, 0.01
  %v6540 = vmul.f32 %v6412, 0.01
  %v6541 = vmul.f32 %v6413, 0.01
  %v6542 = vmul.f32 %v6414, 0.01
  %v6543 = vmul.f32 %v6415, 0.01
  %v6544 = vmul.f32 %v6416, 0.01
  %v6545 = vmul.f32 %v6417, 0.01
  %v6546 = vmul.f32 %v6418, 0.01
  %v6547 = vmul.f32 %v6419, 0.01
  %v6548 = vmul.f32 %v6420, 0.01
  %v6549 = vmul.f32 %v6421, 0.01
  %v6550 = vmul.f32 %v6422, 0.01
  %v6551 = vmul.f32 %v6423, 0.01
  %v6552 = vmul.f32 %v6424, 0.01
  %v6553 = vmul.f32 %v6425, 0.01
  %v6554 = vmul.f32 %v6426, 0.01
  %v6555 = vmul.f32 %v6427, 0.01
  %v6556 = vmul.f32 %v6428, 0.01
  %v6557 = vmul.f32 %v6429, 0.01
  %v6558 = vmul.f32 %v6430, 0.01
  %v6559 = vmul.f32 %v6431, 0.01
  %v6560 = vmul.f32 %v6432, 0.01
  %v6561 = vmul.f32 %v6433, 0.01
  %v6562 = vmul.f32 %v6434, 0.01
  %v6563 = vmul.f32 %v6435, 0.01
  %v6564 = vmul.f32 %v6436, 0.01
  %v6565 = vmul.f32 %v6437, 0.01
  %v6566 = vmul.f32 %v6438, 0.01
  %v6567 = vmul.f32 %v6439, 0.01
  %v6568 = vmul.f32 %v6440, 0.01
  %v6569 = vmul.f32 %v6441, 0.01
  %v6570 = vmul.f32 %v6442, 0.01
  %v6571 = vmul.f32 %v6443, 0.01
  %v6572 = vmul.f32 %v6444, 0.01
  %v6573 = vmul.f32 %v6445, 0.01
  %v6574 = vmul.f32 %v6446, 0.01
  %v6575 = vmul.f32 %v6447, 0.01
  %v6576 = vmul.f32 %v6448, 0.01
  %v6577 = vmul.f32 %v6449, 0.01
  %v6578 = vmul.f32 %v6450, 0.01
  %v6579 = vmul.f32 %v6451, 0.01
  %v6580 = vmul.f32 %v6452, 0.01
  %v6581 = vmul.f32 %v6453, 0.01
  %v6582 = vmul.f32 %v6454, 0.01
  %v6583 = vmul.f32 %v6455, 0.01
  %v6584 = vmul.f32 %v6456, 0.01
  %v6585 = vmul.f32 %v6457, 0.01
  %v6586 = vmul.f32 %v6458, 0.01
  %v6587 = vmul.f32 %v6459, 0.01
  %v6588 = vmul.f32 %v6460, 0.01
  %v6589 = vmul.f32 %v6461, 0.01
  %v6590 = vmul.f32 %v6462, 0.01
  %v6591 = vmul.f32 %v6463, 0.01
  %v6592 = vmul.f32 %v6464, 0.01
  %v6593 = vmul.f32 %v6465, 0.01
  %v6594 = vmul.f32 %v6466, 0.01
  %v6595 = vmul.f32 %v6467, 0.01
  %v6596 = vmul.f32 %v6468, 0.01
  %v6597 = vsel %vm6469, %v6405, %v6533
  %v6598 = vsel %vm6470, %v6406, %v6534
  %v6599 = vsel %vm6471, %v6407, %v6535
  %v6600 = vsel %vm6472, %v6408, %v6536
  %v6601 = vsel %vm6473, %v6409, %v6537
  %v6602 = vsel %vm6474, %v6410, %v6538
  %v6603 = vsel %vm6475, %v6411, %v6539
  %v6604 = vsel %vm6476, %v6412, %v6540
  %v6605 = vsel %vm6477, %v6413, %v6541
  %v6606 = vsel %vm6478, %v6414, %v6542
  %v6607 = vsel %vm6479, %v6415, %v6543
  %v6608 = vsel %vm6480, %v6416, %v6544
  %v6609 = vsel %vm6481, %v6417, %v6545
  %v6610 = vsel %vm6482, %v6418, %v6546
  %v6611 = vsel %vm6483, %v6419, %v6547
  %v6612 = vsel %vm6484, %v6420, %v6548
  %v6613 = vsel %vm6485, %v6421, %v6549
  %v6614 = vsel %vm6486, %v6422, %v6550
  %v6615 = vsel %vm6487, %v6423, %v6551
  %v6616 = vsel %vm6488, %v6424, %v6552
  %v6617 = vsel %vm6489, %v6425, %v6553
  %v6618 = vsel %vm6490, %v6426, %v6554
  %v6619 = vsel %vm6491, %v6427, %v6555
  %v6620 = vsel %vm6492, %v6428, %v6556
  %v6621 = vsel %vm6493, %v6429, %v6557
  %v6622 = vsel %vm6494, %v6430, %v6558
  %v6623 = vsel %vm6495, %v6431, %v6559
  %v6624 = vsel %vm6496, %v6432, %v6560
  %v6625 = vsel %vm6497, %v6433, %v6561
  %v6626 = vsel %vm6498, %v6434, %v6562
  %v6627 = vsel %vm6499, %v6435, %v6563
  %v6628 = vsel %vm6500, %v6436, %v6564
  %v6629 = vsel %vm6501, %v6437, %v6565
  %v6630 = vsel %vm6502, %v6438, %v6566
  %v6631 = vsel %vm6503, %v6439, %v6567
  %v6632 = vsel %vm6504, %v6440, %v6568
  %v6633 = vsel %vm6505, %v6441, %v6569
  %v6634 = vsel %vm6506, %v6442, %v6570
  %v6635 = vsel %vm6507, %v6443, %v6571
  %v6636 = vsel %vm6508, %v6444, %v6572
  %v6637 = vsel %vm6509, %v6445, %v6573
  %v6638 = vsel %vm6510, %v6446, %v6574
  %v6639 = vsel %vm6511, %v6447, %v6575
  %v6640 = vsel %vm6512, %v6448, %v6576
  %v6641 = vsel %vm6513, %v6449, %v6577
  %v6642 = vsel %vm6514, %v6450, %v6578
  %v6643 = vsel %vm6515, %v6451, %v6579
  %v6644 = vsel %vm6516, %v6452, %v6580
  %v6645 = vsel %vm6517, %v6453, %v6581
  %v6646 = vsel %vm6518, %v6454, %v6582
  %v6647 = vsel %vm6519, %v6455, %v6583
  %v6648 = vsel %vm6520, %v6456, %v6584
  %v6649 = vsel %vm6521, %v6457, %v6585
  %v6650 = vsel %vm6522, %v6458, %v6586
  %v6651 = vsel %vm6523, %v6459, %v6587
  %v6652 = vsel %vm6524, %v6460, %v6588
  %v6653 = vsel %vm6525, %v6461, %v6589
  %v6654 = vsel %vm6526, %v6462, %v6590
  %v6655 = vsel %vm6527, %v6463, %v6591
  %v6656 = vsel %vm6528, %v6464, %v6592
  %v6657 = vsel %vm6529, %v6465, %v6593
  %v6658 = vsel %vm6530, %v6466, %v6594
  %v6659 = vsel %vm6531, %v6467, %v6595
  %v6660 = vsel %vm6532, %v6468, %v6596
  %v6661 = vld [vmem:[%s11] sm:$0xff]
  %v6662 = vld [vmem:[%s12] sm:$0x1]
  %v6664 = vperm.slane %v6662, 0
  %v6667 = vsel %vm4993, %v6597, 0
  %v6670 = vsel %vm4993, %v6598, 0
  %v6673 = vsel %vm4993, %v6599, 0
  %v6676 = vsel %vm4993, %v6600, 0
  %v6679 = vsel %vm4993, %v6601, 0
  %v6682 = vsel %vm4993, %v6602, 0
  %v6685 = vsel %vm4993, %v6603, 0
  %v6688 = vsel %vm4993, %v6604, 0
  %v6691 = vsel %vm4993, %v6605, 0
  %v6694 = vsel %vm4993, %v6606, 0
  %v6697 = vsel %vm4993, %v6607, 0
  %v6700 = vsel %vm4993, %v6608, 0
  %v6703 = vsel %vm4993, %v6609, 0
  %v6706 = vsel %vm4993, %v6610, 0
  %v6709 = vsel %vm4993, %v6611, 0
  %v6712 = vsel %vm4993, %v6612, 0
  %v6715 = vsel %vm4993, %v6613, 0
  %v6718 = vsel %vm4993, %v6614, 0
  %v6721 = vsel %vm4993, %v6615, 0
  %v6724 = vsel %vm4993, %v6616, 0
  %v6727 = vsel %vm4993, %v6617, 0
  %v6730 = vsel %vm4993, %v6618, 0
  %v6733 = vsel %vm4993, %v6619, 0
  %v6736 = vsel %vm4993, %v6620, 0
  %v6739 = vsel %vm4993, %v6621, 0
  %v6742 = vsel %vm4993, %v6622, 0
  %v6745 = vsel %vm4993, %v6623, 0
  %v6748 = vsel %vm4993, %v6624, 0
  %v6751 = vsel %vm4993, %v6625, 0
  %v6754 = vsel %vm4993, %v6626, 0
  %v6757 = vsel %vm4993, %v6627, 0
  %v6760 = vsel %vm4993, %v6628, 0
  %v6763 = vsel %vm4993, %v6629, 0
  %v6766 = vsel %vm4993, %v6630, 0
  %v6769 = vsel %vm4993, %v6631, 0
  %v6772 = vsel %vm4993, %v6632, 0
  %v6775 = vsel %vm4993, %v6633, 0
  %v6778 = vsel %vm4993, %v6634, 0
  %v6781 = vsel %vm4993, %v6635, 0
  %v6784 = vsel %vm4993, %v6636, 0
  %v6787 = vsel %vm4993, %v6637, 0
  %v6790 = vsel %vm4993, %v6638, 0
  %v6793 = vsel %vm4993, %v6639, 0
  %v6796 = vsel %vm4993, %v6640, 0
  %v6799 = vsel %vm4993, %v6641, 0
  %v6802 = vsel %vm4993, %v6642, 0
  %v6805 = vsel %vm4993, %v6643, 0
  %v6808 = vsel %vm4993, %v6644, 0
  %v6811 = vsel %vm4993, %v6645, 0
  %v6814 = vsel %vm4993, %v6646, 0
  %v6817 = vsel %vm4993, %v6647, 0
  %v6820 = vsel %vm4993, %v6648, 0
  %v6823 = vsel %vm4993, %v6649, 0
  %v6826 = vsel %vm4993, %v6650, 0
  %v6829 = vsel %vm4993, %v6651, 0
  %v6832 = vsel %vm4993, %v6652, 0
  %v6835 = vsel %vm4993, %v6653, 0
  %v6838 = vsel %vm4993, %v6654, 0
  %v6841 = vsel %vm4993, %v6655, 0
  %v6844 = vsel %vm4993, %v6656, 0
  %v6847 = vsel %vm4993, %v6657, 0
  %v6850 = vsel %vm4993, %v6658, 0
  %v6853 = vsel %vm4993, %v6659, 0
  %v6856 = vsel %vm4993, %v6660, 0
  %6858 = vmatpush.msra.mxu0 0.0
  %6859 = vmatpush.msra.mxu0 0.0
  %6860 = vmatpush.msra.mxu0 0.0
  %6861 = vmatpush.msra.mxu0 0.0
  %6862 = vmatpush.msra.mxu0 0.0
  %6863 = vmatpush.msra.mxu0 0.0
  %6864 = vmatpush.msra.mxu0 0.0
  %6865 = vmatpush.msra.mxu0 0.0
  %6866 = vmatpush.msra.mxu0 0.0
  %6867 = vmatpush.msra.mxu0 0.0
  %6868 = vmatpush.msra.mxu0 0.0
  %6869 = vmatpush.msra.mxu0 0.0
  %6870 = vmatpush.msra.mxu0 0.0
  %6871 = vmatpush.msra.mxu0 0.0
  %6872 = vmatpush.msra.mxu0 0.0
  %6873 = vmatpush.msra.mxu0 %v6661
  %6874 = vmatmul.f32.gmra.mxu0 %v6667
  %v6875 = vpop.f32.mrf.mxu0
  %v6876 = vadd.f32 %v6664, %v6875
  %6877 = vmatmul.f32.gmra.mxu0 %v6670
  %v6878 = vpop.f32.mrf.mxu0
  %v6879 = vadd.f32 %v6664, %v6878
  %6880 = vmatmul.f32.gmra.mxu0 %v6673
  %v6881 = vpop.f32.mrf.mxu0
  %v6882 = vadd.f32 %v6664, %v6881
  %6883 = vmatmul.f32.gmra.mxu0 %v6676
  %v6884 = vpop.f32.mrf.mxu0
  %v6885 = vadd.f32 %v6664, %v6884
  %6886 = vmatmul.f32.gmra.mxu0 %v6679
  %v6887 = vpop.f32.mrf.mxu0
  %v6888 = vadd.f32 %v6664, %v6887
  %6889 = vmatmul.f32.gmra.mxu0 %v6682
  %v6890 = vpop.f32.mrf.mxu0
  %v6891 = vadd.f32 %v6664, %v6890
  %6892 = vmatmul.f32.gmra.mxu0 %v6685
  %v6893 = vpop.f32.mrf.mxu0
  %v6894 = vadd.f32 %v6664, %v6893
  %6895 = vmatmul.f32.gmra.mxu0 %v6688
  %v6896 = vpop.f32.mrf.mxu0
  %v6897 = vadd.f32 %v6664, %v6896
  %6898 = vmatmul.f32.gmra.mxu0 %v6691
  %v6899 = vpop.f32.mrf.mxu0
  %v6900 = vadd.f32 %v6664, %v6899
  %6901 = vmatmul.f32.gmra.mxu0 %v6694
  %v6902 = vpop.f32.mrf.mxu0
  %v6903 = vadd.f32 %v6664, %v6902
  %6904 = vmatmul.f32.gmra.mxu0 %v6697
  %v6905 = vpop.f32.mrf.mxu0
  %v6906 = vadd.f32 %v6664, %v6905
  %6907 = vmatmul.f32.gmra.mxu0 %v6700
  %v6908 = vpop.f32.mrf.mxu0
  %v6909 = vadd.f32 %v6664, %v6908
  %6910 = vmatmul.f32.gmra.mxu0 %v6703
  %v6911 = vpop.f32.mrf.mxu0
  %v6912 = vadd.f32 %v6664, %v6911
  %6913 = vmatmul.f32.gmra.mxu0 %v6706
  %v6914 = vpop.f32.mrf.mxu0
  %v6915 = vadd.f32 %v6664, %v6914
  %6916 = vmatmul.f32.gmra.mxu0 %v6709
  %v6917 = vpop.f32.mrf.mxu0
  %v6918 = vadd.f32 %v6664, %v6917
  %6919 = vmatmul.f32.gmra.mxu0 %v6712
  %v6920 = vpop.f32.mrf.mxu0
  %v6921 = vadd.f32 %v6664, %v6920
  %6922 = vmatmul.f32.gmra.mxu0 %v6715
  %v6923 = vpop.f32.mrf.mxu0
  %v6924 = vadd.f32 %v6664, %v6923
  %6925 = vmatmul.f32.gmra.mxu0 %v6718
  %v6926 = vpop.f32.mrf.mxu0
  %v6927 = vadd.f32 %v6664, %v6926
  %6928 = vmatmul.f32.gmra.mxu0 %v6721
  %v6929 = vpop.f32.mrf.mxu0
  %v6930 = vadd.f32 %v6664, %v6929
  %6931 = vmatmul.f32.gmra.mxu0 %v6724
  %v6932 = vpop.f32.mrf.mxu0
  %v6933 = vadd.f32 %v6664, %v6932
  %6934 = vmatmul.f32.gmra.mxu0 %v6727
  %v6935 = vpop.f32.mrf.mxu0
  %v6936 = vadd.f32 %v6664, %v6935
  %6937 = vmatmul.f32.gmra.mxu0 %v6730
  %v6938 = vpop.f32.mrf.mxu0
  %v6939 = vadd.f32 %v6664, %v6938
  %6940 = vmatmul.f32.gmra.mxu0 %v6733
  %v6941 = vpop.f32.mrf.mxu0
  %v6942 = vadd.f32 %v6664, %v6941
  %6943 = vmatmul.f32.gmra.mxu0 %v6736
  %v6944 = vpop.f32.mrf.mxu0
  %v6945 = vadd.f32 %v6664, %v6944
  %6946 = vmatmul.f32.gmra.mxu0 %v6739
  %v6947 = vpop.f32.mrf.mxu0
  %v6948 = vadd.f32 %v6664, %v6947
  %6949 = vmatmul.f32.gmra.mxu0 %v6742
  %v6950 = vpop.f32.mrf.mxu0
  %v6951 = vadd.f32 %v6664, %v6950
  %6952 = vmatmul.f32.gmra.mxu0 %v6745
  %v6953 = vpop.f32.mrf.mxu0
  %v6954 = vadd.f32 %v6664, %v6953
  %6955 = vmatmul.f32.gmra.mxu0 %v6748
  %v6956 = vpop.f32.mrf.mxu0
  %v6957 = vadd.f32 %v6664, %v6956
  %6958 = vmatmul.f32.gmra.mxu0 %v6751
  %v6959 = vpop.f32.mrf.mxu0
  %v6960 = vadd.f32 %v6664, %v6959
  %6961 = vmatmul.f32.gmra.mxu0 %v6754
  %v6962 = vpop.f32.mrf.mxu0
  %v6963 = vadd.f32 %v6664, %v6962
  %6964 = vmatmul.f32.gmra.mxu0 %v6757
  %v6965 = vpop.f32.mrf.mxu0
  %v6966 = vadd.f32 %v6664, %v6965
  %6967 = vmatmul.f32.gmra.mxu0 %v6760
  %v6968 = vpop.f32.mrf.mxu0
  %v6969 = vadd.f32 %v6664, %v6968
  %6970 = vmatmul.f32.gmra.mxu0 %v6763
  %v6971 = vpop.f32.mrf.mxu0
  %v6972 = vadd.f32 %v6664, %v6971
  %6973 = vmatmul.f32.gmra.mxu0 %v6766
  %v6974 = vpop.f32.mrf.mxu0
  %v6975 = vadd.f32 %v6664, %v6974
  %6976 = vmatmul.f32.gmra.mxu0 %v6769
  %v6977 = vpop.f32.mrf.mxu0
  %v6978 = vadd.f32 %v6664, %v6977
  %6979 = vmatmul.f32.gmra.mxu0 %v6772
  %v6980 = vpop.f32.mrf.mxu0
  %v6981 = vadd.f32 %v6664, %v6980
  %6982 = vmatmul.f32.gmra.mxu0 %v6775
  %v6983 = vpop.f32.mrf.mxu0
  %v6984 = vadd.f32 %v6664, %v6983
  %6985 = vmatmul.f32.gmra.mxu0 %v6778
  %v6986 = vpop.f32.mrf.mxu0
  %v6987 = vadd.f32 %v6664, %v6986
  %6988 = vmatmul.f32.gmra.mxu0 %v6781
  %v6989 = vpop.f32.mrf.mxu0
  %v6990 = vadd.f32 %v6664, %v6989
  %6991 = vmatmul.f32.gmra.mxu0 %v6784
  %v6992 = vpop.f32.mrf.mxu0
  %v6993 = vadd.f32 %v6664, %v6992
  %6994 = vmatmul.f32.gmra.mxu0 %v6787
  %v6995 = vpop.f32.mrf.mxu0
  %v6996 = vadd.f32 %v6664, %v6995
  %6997 = vmatmul.f32.gmra.mxu0 %v6790
  %v6998 = vpop.f32.mrf.mxu0
  %v6999 = vadd.f32 %v6664, %v6998
  %7000 = vmatmul.f32.gmra.mxu0 %v6793
  %v7001 = vpop.f32.mrf.mxu0
  %v7002 = vadd.f32 %v6664, %v7001
  %7003 = vmatmul.f32.gmra.mxu0 %v6796
  %v7004 = vpop.f32.mrf.mxu0
  %v7005 = vadd.f32 %v6664, %v7004
  %7006 = vmatmul.f32.gmra.mxu0 %v6799
  %v7007 = vpop.f32.mrf.mxu0
  %v7008 = vadd.f32 %v6664, %v7007
  %7009 = vmatmul.f32.gmra.mxu0 %v6802
  %v7010 = vpop.f32.mrf.mxu0
  %v7011 = vadd.f32 %v6664, %v7010
  %7012 = vmatmul.f32.gmra.mxu0 %v6805
  %v7013 = vpop.f32.mrf.mxu0
  %v7014 = vadd.f32 %v6664, %v7013
  %7015 = vmatmul.f32.gmra.mxu0 %v6808
  %v7016 = vpop.f32.mrf.mxu0
  %v7017 = vadd.f32 %v6664, %v7016
  %7018 = vmatmul.f32.gmra.mxu0 %v6811
  %v7019 = vpop.f32.mrf.mxu0
  %v7020 = vadd.f32 %v6664, %v7019
  %7021 = vmatmul.f32.gmra.mxu0 %v6814
  %v7022 = vpop.f32.mrf.mxu0
  %v7023 = vadd.f32 %v6664, %v7022
  %7024 = vmatmul.f32.gmra.mxu0 %v6817
  %v7025 = vpop.f32.mrf.mxu0
  %v7026 = vadd.f32 %v6664, %v7025
  %7027 = vmatmul.f32.gmra.mxu0 %v6820
  %v7028 = vpop.f32.mrf.mxu0
  %v7029 = vadd.f32 %v6664, %v7028
  %7030 = vmatmul.f32.gmra.mxu0 %v6823
  %v7031 = vpop.f32.mrf.mxu0
  %v7032 = vadd.f32 %v6664, %v7031
  %7033 = vmatmul.f32.gmra.mxu0 %v6826
  %v7034 = vpop.f32.mrf.mxu0
  %v7035 = vadd.f32 %v6664, %v7034
  %7036 = vmatmul.f32.gmra.mxu0 %v6829
  %v7037 = vpop.f32.mrf.mxu0
  %v7038 = vadd.f32 %v6664, %v7037
  %7039 = vmatmul.f32.gmra.mxu0 %v6832
  %v7040 = vpop.f32.mrf.mxu0
  %v7041 = vadd.f32 %v6664, %v7040
  %7042 = vmatmul.f32.gmra.mxu0 %v6835
  %v7043 = vpop.f32.mrf.mxu0
  %v7044 = vadd.f32 %v6664, %v7043
  %7045 = vmatmul.f32.gmra.mxu0 %v6838
  %v7046 = vpop.f32.mrf.mxu0
  %v7047 = vadd.f32 %v6664, %v7046
  %7048 = vmatmul.f32.gmra.mxu0 %v6841
  %v7049 = vpop.f32.mrf.mxu0
  %v7050 = vadd.f32 %v6664, %v7049
  %7051 = vmatmul.f32.gmra.mxu0 %v6844
  %v7052 = vpop.f32.mrf.mxu0
  %v7053 = vadd.f32 %v6664, %v7052
  %7054 = vmatmul.f32.gmra.mxu0 %v6847
  %v7055 = vpop.f32.mrf.mxu0
  %v7056 = vadd.f32 %v6664, %v7055
  %7057 = vmatmul.f32.gmra.mxu0 %v6850
  %v7058 = vpop.f32.mrf.mxu0
  %v7059 = vadd.f32 %v6664, %v7058
  %7060 = vmatmul.f32.gmra.mxu0 %v6853
  %v7061 = vpop.f32.mrf.mxu0
  %v7062 = vadd.f32 %v6664, %v7061
  %7063 = vmatmul.f32.gmra.mxu0 %v6856
  %v7064 = vpop.f32.mrf.mxu0
  %v7065 = vadd.f32 %v6664, %v7064
  %7066 = vdwg.mxu0
  %v7067 = vld [vmem:[%s13] sm:$0x1]
  %v7068 = vld [vmem:[%s14] sm:$0x1]
  %v7069 = vsel %vm4993, %v6876, 0.0
  %v7070 = vsel %vm4993, %v6879, 0.0
  %v7071 = vadd.f32 %v7069, %v7070
  %v7072 = vsel %vm4993, %v6882, 0.0
  %v7073 = vadd.f32 %v7071, %v7072
  %v7074 = vsel %vm4993, %v6885, 0.0
  %v7075 = vadd.f32 %v7073, %v7074
  %v7076 = vsel %vm4993, %v6888, 0.0
  %v7077 = vadd.f32 %v7075, %v7076
  %v7078 = vsel %vm4993, %v6891, 0.0
  %v7079 = vadd.f32 %v7077, %v7078
  %v7080 = vsel %vm4993, %v6894, 0.0
  %v7081 = vadd.f32 %v7079, %v7080
  %v7082 = vsel %vm4993, %v6897, 0.0
  %v7083 = vadd.f32 %v7081, %v7082
  %v7084 = vsel %vm4993, %v6900, 0.0
  %v7085 = vadd.f32 %v7083, %v7084
  %v7086 = vsel %vm4993, %v6903, 0.0
  %v7087 = vadd.f32 %v7085, %v7086
  %v7088 = vsel %vm4993, %v6906, 0.0
  %v7089 = vadd.f32 %v7087, %v7088
  %v7090 = vsel %vm4993, %v6909, 0.0
  %v7091 = vadd.f32 %v7089, %v7090
  %v7092 = vsel %vm4993, %v6912, 0.0
  %v7093 = vadd.f32 %v7091, %v7092
  %v7094 = vsel %vm4993, %v6915, 0.0
  %v7095 = vadd.f32 %v7093, %v7094
  %v7096 = vsel %vm4993, %v6918, 0.0
  %v7097 = vadd.f32 %v7095, %v7096
  %v7098 = vsel %vm4993, %v6921, 0.0
  %v7099 = vadd.f32 %v7097, %v7098
  %v7100 = vsel %vm4993, %v6924, 0.0
  %v7101 = vadd.f32 %v7099, %v7100
  %v7102 = vsel %vm4993, %v6927, 0.0
  %v7103 = vadd.f32 %v7101, %v7102
  %v7104 = vsel %vm4993, %v6930, 0.0
  %v7105 = vadd.f32 %v7103, %v7104
  %v7106 = vsel %vm4993, %v6933, 0.0
  %v7107 = vadd.f32 %v7105, %v7106
  %v7108 = vsel %vm4993, %v6936, 0.0
  %v7109 = vadd.f32 %v7107, %v7108
  %v7110 = vsel %vm4993, %v6939, 0.0
  %v7111 = vadd.f32 %v7109, %v7110
  %v7112 = vsel %vm4993, %v6942, 0.0
  %v7113 = vadd.f32 %v7111, %v7112
  %v7114 = vsel %vm4993, %v6945, 0.0
  %v7115 = vadd.f32 %v7113, %v7114
  %v7116 = vsel %vm4993, %v6948, 0.0
  %v7117 = vadd.f32 %v7115, %v7116
  %v7118 = vsel %vm4993, %v6951, 0.0
  %v7119 = vadd.f32 %v7117, %v7118
  %v7120 = vsel %vm4993, %v6954, 0.0
  %v7121 = vadd.f32 %v7119, %v7120
  %v7122 = vsel %vm4993, %v6957, 0.0
  %v7123 = vadd.f32 %v7121, %v7122
  %v7124 = vsel %vm4993, %v6960, 0.0
  %v7125 = vadd.f32 %v7123, %v7124
  %v7126 = vsel %vm4993, %v6963, 0.0
  %v7127 = vadd.f32 %v7125, %v7126
  %v7128 = vsel %vm4993, %v6966, 0.0
  %v7129 = vadd.f32 %v7127, %v7128
  %v7130 = vsel %vm4993, %v6969, 0.0
  %v7131 = vadd.f32 %v7129, %v7130
  %v7132 = vsel %vm4993, %v6972, 0.0
  %v7133 = vadd.f32 %v7131, %v7132
  %v7134 = vsel %vm4993, %v6975, 0.0
  %v7135 = vadd.f32 %v7133, %v7134
  %v7136 = vsel %vm4993, %v6978, 0.0
  %v7137 = vadd.f32 %v7135, %v7136
  %v7138 = vsel %vm4993, %v6981, 0.0
  %v7139 = vadd.f32 %v7137, %v7138
  %v7140 = vsel %vm4993, %v6984, 0.0
  %v7141 = vadd.f32 %v7139, %v7140
  %v7142 = vsel %vm4993, %v6987, 0.0
  %v7143 = vadd.f32 %v7141, %v7142
  %v7144 = vsel %vm4993, %v6990, 0.0
  %v7145 = vadd.f32 %v7143, %v7144
  %v7146 = vsel %vm4993, %v6993, 0.0
  %v7147 = vadd.f32 %v7145, %v7146
  %v7148 = vsel %vm4993, %v6996, 0.0
  %v7149 = vadd.f32 %v7147, %v7148
  %v7150 = vsel %vm4993, %v6999, 0.0
  %v7151 = vadd.f32 %v7149, %v7150
  %v7152 = vsel %vm4993, %v7002, 0.0
  %v7153 = vadd.f32 %v7151, %v7152
  %v7154 = vsel %vm4993, %v7005, 0.0
  %v7155 = vadd.f32 %v7153, %v7154
  %v7156 = vsel %vm4993, %v7008, 0.0
  %v7157 = vadd.f32 %v7155, %v7156
  %v7158 = vsel %vm4993, %v7011, 0.0
  %v7159 = vadd.f32 %v7157, %v7158
  %v7160 = vsel %vm4993, %v7014, 0.0
  %v7161 = vadd.f32 %v7159, %v7160
  %v7162 = vsel %vm4993, %v7017, 0.0
  %v7163 = vadd.f32 %v7161, %v7162
  %v7164 = vsel %vm4993, %v7020, 0.0
  %v7165 = vadd.f32 %v7163, %v7164
  %v7166 = vsel %vm4993, %v7023, 0.0
  %v7167 = vadd.f32 %v7165, %v7166
  %v7168 = vsel %vm4993, %v7026, 0.0
  %v7169 = vadd.f32 %v7167, %v7168
  %v7170 = vsel %vm4993, %v7029, 0.0
  %v7171 = vadd.f32 %v7169, %v7170
  %v7172 = vsel %vm4993, %v7032, 0.0
  %v7173 = vadd.f32 %v7171, %v7172
  %v7174 = vsel %vm4993, %v7035, 0.0
  %v7175 = vadd.f32 %v7173, %v7174
  %v7176 = vsel %vm4993, %v7038, 0.0
  %v7177 = vadd.f32 %v7175, %v7176
  %v7178 = vsel %vm4993, %v7041, 0.0
  %v7179 = vadd.f32 %v7177, %v7178
  %v7180 = vsel %vm4993, %v7044, 0.0
  %v7181 = vadd.f32 %v7179, %v7180
  %v7182 = vsel %vm4993, %v7047, 0.0
  %v7183 = vadd.f32 %v7181, %v7182
  %v7184 = vsel %vm4993, %v7050, 0.0
  %v7185 = vadd.f32 %v7183, %v7184
  %v7186 = vsel %vm4993, %v7053, 0.0
  %v7187 = vadd.f32 %v7185, %v7186
  %v7188 = vsel %vm4993, %v7056, 0.0
  %v7189 = vadd.f32 %v7187, %v7188
  %v7190 = vsel %vm4993, %v7059, 0.0
  %v7191 = vadd.f32 %v7189, %v7190
  %v7192 = vsel %vm4993, %v7062, 0.0
  %v7193 = vadd.f32 %v7191, %v7192
  %v7194 = vsel %vm4993, %v7065, 0.0
  %v7195 = vadd.f32 %v7193, %v7194
  %v7196 = vrot.slane %v7195, 4
  %v7197 = vadd.f32 %v7195, %v7196
  %v7198 = vrot.slane %v7197, 2
  %v7199 = vadd.f32 %v7197, %v7198
  %v7200 = vrot.slane %v7199, 1
  %v7201 = vadd.f32 %v7199, %v7200
  %v7202 = vmul.f32 %v7201, %v256
  %v7203 = vsub.f32 %v6876, %v7202
  %v7204 = vsub.f32 %v6879, %v7202
  %v7205 = vsub.f32 %v6882, %v7202
  %v7206 = vsub.f32 %v6885, %v7202
  %v7207 = vsub.f32 %v6888, %v7202
  %v7208 = vsub.f32 %v6891, %v7202
  %v7209 = vsub.f32 %v6894, %v7202
  %v7210 = vsub.f32 %v6897, %v7202
  %v7211 = vsub.f32 %v6900, %v7202
  %v7212 = vsub.f32 %v6903, %v7202
  %v7213 = vsub.f32 %v6906, %v7202
  %v7214 = vsub.f32 %v6909, %v7202
  %v7215 = vsub.f32 %v6912, %v7202
  %v7216 = vsub.f32 %v6915, %v7202
  %v7217 = vsub.f32 %v6918, %v7202
  %v7218 = vsub.f32 %v6921, %v7202
  %v7219 = vsub.f32 %v6924, %v7202
  %v7220 = vsub.f32 %v6927, %v7202
  %v7221 = vsub.f32 %v6930, %v7202
  %v7222 = vsub.f32 %v6933, %v7202
  %v7223 = vsub.f32 %v6936, %v7202
  %v7224 = vsub.f32 %v6939, %v7202
  %v7225 = vsub.f32 %v6942, %v7202
  %v7226 = vsub.f32 %v6945, %v7202
  %v7227 = vsub.f32 %v6948, %v7202
  %v7228 = vsub.f32 %v6951, %v7202
  %v7229 = vsub.f32 %v6954, %v7202
  %v7230 = vsub.f32 %v6957, %v7202
  %v7231 = vsub.f32 %v6960, %v7202
  %v7232 = vsub.f32 %v6963, %v7202
  %v7233 = vsub.f32 %v6966, %v7202
  %v7234 = vsub.f32 %v6969, %v7202
  %v7235 = vsub.f32 %v6972, %v7202
  %v7236 = vsub.f32 %v6975, %v7202
  %v7237 = vsub.f32 %v6978, %v7202
  %v7238 = vsub.f32 %v6981, %v7202
  %v7239 = vsub.f32 %v6984, %v7202
  %v7240 = vsub.f32 %v6987, %v7202
  %v7241 = vsub.f32 %v6990, %v7202
  %v7242 = vsub.f32 %v6993, %v7202
  %v7243 = vsub.f32 %v6996, %v7202
  %v7244 = vsub.f32 %v6999, %v7202
  %v7245 = vsub.f32 %v7002, %v7202
  %v7246 = vsub.f32 %v7005, %v7202
  %v7247 = vsub.f32 %v7008, %v7202
  %v7248 = vsub.f32 %v7011, %v7202
  %v7249 = vsub.f32 %v7014, %v7202
  %v7250 = vsub.f32 %v7017, %v7202
  %v7251 = vsub.f32 %v7020, %v7202
  %v7252 = vsub.f32 %v7023, %v7202
  %v7253 = vsub.f32 %v7026, %v7202
  %v7254 = vsub.f32 %v7029, %v7202
  %v7255 = vsub.f32 %v7032, %v7202
  %v7256 = vsub.f32 %v7035, %v7202
  %v7257 = vsub.f32 %v7038, %v7202
  %v7258 = vsub.f32 %v7041, %v7202
  %v7259 = vsub.f32 %v7044, %v7202
  %v7260 = vsub.f32 %v7047, %v7202
  %v7261 = vsub.f32 %v7050, %v7202
  %v7262 = vsub.f32 %v7053, %v7202
  %v7263 = vsub.f32 %v7056, %v7202
  %v7264 = vsub.f32 %v7059, %v7202
  %v7265 = vsub.f32 %v7062, %v7202
  %v7266 = vsub.f32 %v7065, %v7202
  %v7267 = vmul.f32 %v7203, %v7203
  %v7268 = vmul.f32 %v7204, %v7204
  %v7269 = vmul.f32 %v7205, %v7205
  %v7270 = vmul.f32 %v7206, %v7206
  %v7271 = vmul.f32 %v7207, %v7207
  %v7272 = vmul.f32 %v7208, %v7208
  %v7273 = vmul.f32 %v7209, %v7209
  %v7274 = vmul.f32 %v7210, %v7210
  %v7275 = vmul.f32 %v7211, %v7211
  %v7276 = vmul.f32 %v7212, %v7212
  %v7277 = vmul.f32 %v7213, %v7213
  %v7278 = vmul.f32 %v7214, %v7214
  %v7279 = vmul.f32 %v7215, %v7215
  %v7280 = vmul.f32 %v7216, %v7216
  %v7281 = vmul.f32 %v7217, %v7217
  %v7282 = vmul.f32 %v7218, %v7218
  %v7283 = vmul.f32 %v7219, %v7219
  %v7284 = vmul.f32 %v7220, %v7220
  %v7285 = vmul.f32 %v7221, %v7221
  %v7286 = vmul.f32 %v7222, %v7222
  %v7287 = vmul.f32 %v7223, %v7223
  %v7288 = vmul.f32 %v7224, %v7224
  %v7289 = vmul.f32 %v7225, %v7225
  %v7290 = vmul.f32 %v7226, %v7226
  %v7291 = vmul.f32 %v7227, %v7227
  %v7292 = vmul.f32 %v7228, %v7228
  %v7293 = vmul.f32 %v7229, %v7229
  %v7294 = vmul.f32 %v7230, %v7230
  %v7295 = vmul.f32 %v7231, %v7231
  %v7296 = vmul.f32 %v7232, %v7232
  %v7297 = vmul.f32 %v7233, %v7233
  %v7298 = vmul.f32 %v7234, %v7234
  %v7299 = vmul.f32 %v7235, %v7235
  %v7300 = vmul.f32 %v7236, %v7236
  %v7301 = vmul.f32 %v7237, %v7237
  %v7302 = vmul.f32 %v7238, %v7238
  %v7303 = vmul.f32 %v7239, %v7239
  %v7304 = vmul.f32 %v7240, %v7240
  %v7305 = vmul.f32 %v7241, %v7241
  %v7306 = vmul.f32 %v7242, %v7242
  %v7307 = vmul.f32 %v7243, %v7243
  %v7308 = vmul.f32 %v7244, %v7244
  %v7309 = vmul.f32 %v7245, %v7245
  %v7310 = vmul.f32 %v7246, %v7246
  %v7311 = vmul.f32 %v7247, %v7247
  %v7312 = vmul.f32 %v7248, %v7248
  %v7313 = vmul.f32 %v7249, %v7249
  %v7314 = vmul.f32 %v7250, %v7250
  %v7315 = vmul.f32 %v7251, %v7251
  %v7316 = vmul.f32 %v7252, %v7252
  %v7317 = vmul.f32 %v7253, %v7253
  %v7318 = vmul.f32 %v7254, %v7254
  %v7319 = vmul.f32 %v7255, %v7255
  %v7320 = vmul.f32 %v7256, %v7256
  %v7321 = vmul.f32 %v7257, %v7257
  %v7322 = vmul.f32 %v7258, %v7258
  %v7323 = vmul.f32 %v7259, %v7259
  %v7324 = vmul.f32 %v7260, %v7260
  %v7325 = vmul.f32 %v7261, %v7261
  %v7326 = vmul.f32 %v7262, %v7262
  %v7327 = vmul.f32 %v7263, %v7263
  %v7328 = vmul.f32 %v7264, %v7264
  %v7329 = vmul.f32 %v7265, %v7265
  %v7330 = vmul.f32 %v7266, %v7266
  %v7331 = vsel %vm4993, %v7267, 0.0
  %v7332 = vsel %vm4993, %v7268, 0.0
  %v7333 = vadd.f32 %v7331, %v7332
  %v7334 = vsel %vm4993, %v7269, 0.0
  %v7335 = vadd.f32 %v7333, %v7334
  %v7336 = vsel %vm4993, %v7270, 0.0
  %v7337 = vadd.f32 %v7335, %v7336
  %v7338 = vsel %vm4993, %v7271, 0.0
  %v7339 = vadd.f32 %v7337, %v7338
  %v7340 = vsel %vm4993, %v7272, 0.0
  %v7341 = vadd.f32 %v7339, %v7340
  %v7342 = vsel %vm4993, %v7273, 0.0
  %v7343 = vadd.f32 %v7341, %v7342
  %v7344 = vsel %vm4993, %v7274, 0.0
  %v7345 = vadd.f32 %v7343, %v7344
  %v7346 = vsel %vm4993, %v7275, 0.0
  %v7347 = vadd.f32 %v7345, %v7346
  %v7348 = vsel %vm4993, %v7276, 0.0
  %v7349 = vadd.f32 %v7347, %v7348
  %v7350 = vsel %vm4993, %v7277, 0.0
  %v7351 = vadd.f32 %v7349, %v7350
  %v7352 = vsel %vm4993, %v7278, 0.0
  %v7353 = vadd.f32 %v7351, %v7352
  %v7354 = vsel %vm4993, %v7279, 0.0
  %v7355 = vadd.f32 %v7353, %v7354
  %v7356 = vsel %vm4993, %v7280, 0.0
  %v7357 = vadd.f32 %v7355, %v7356
  %v7358 = vsel %vm4993, %v7281, 0.0
  %v7359 = vadd.f32 %v7357, %v7358
  %v7360 = vsel %vm4993, %v7282, 0.0
  %v7361 = vadd.f32 %v7359, %v7360
  %v7362 = vsel %vm4993, %v7283, 0.0
  %v7363 = vadd.f32 %v7361, %v7362
  %v7364 = vsel %vm4993, %v7284, 0.0
  %v7365 = vadd.f32 %v7363, %v7364
  %v7366 = vsel %vm4993, %v7285, 0.0
  %v7367 = vadd.f32 %v7365, %v7366
  %v7368 = vsel %vm4993, %v7286, 0.0
  %v7369 = vadd.f32 %v7367, %v7368
  %v7370 = vsel %vm4993, %v7287, 0.0
  %v7371 = vadd.f32 %v7369, %v7370
  %v7372 = vsel %vm4993, %v7288, 0.0
  %v7373 = vadd.f32 %v7371, %v7372
  %v7374 = vsel %vm4993, %v7289, 0.0
  %v7375 = vadd.f32 %v7373, %v7374
  %v7376 = vsel %vm4993, %v7290, 0.0
  %v7377 = vadd.f32 %v7375, %v7376
  %v7378 = vsel %vm4993, %v7291, 0.0
  %v7379 = vadd.f32 %v7377, %v7378
  %v7380 = vsel %vm4993, %v7292, 0.0
  %v7381 = vadd.f32 %v7379, %v7380
  %v7382 = vsel %vm4993, %v7293, 0.0
  %v7383 = vadd.f32 %v7381, %v7382
  %v7384 = vsel %vm4993, %v7294, 0.0
  %v7385 = vadd.f32 %v7383, %v7384
  %v7386 = vsel %vm4993, %v7295, 0.0
  %v7387 = vadd.f32 %v7385, %v7386
  %v7388 = vsel %vm4993, %v7296, 0.0
  %v7389 = vadd.f32 %v7387, %v7388
  %v7390 = vsel %vm4993, %v7297, 0.0
  %v7391 = vadd.f32 %v7389, %v7390
  %v7392 = vsel %vm4993, %v7298, 0.0
  %v7393 = vadd.f32 %v7391, %v7392
  %v7394 = vsel %vm4993, %v7299, 0.0
  %v7395 = vadd.f32 %v7393, %v7394
  %v7396 = vsel %vm4993, %v7300, 0.0
  %v7397 = vadd.f32 %v7395, %v7396
  %v7398 = vsel %vm4993, %v7301, 0.0
  %v7399 = vadd.f32 %v7397, %v7398
  %v7400 = vsel %vm4993, %v7302, 0.0
  %v7401 = vadd.f32 %v7399, %v7400
  %v7402 = vsel %vm4993, %v7303, 0.0
  %v7403 = vadd.f32 %v7401, %v7402
  %v7404 = vsel %vm4993, %v7304, 0.0
  %v7405 = vadd.f32 %v7403, %v7404
  %v7406 = vsel %vm4993, %v7305, 0.0
  %v7407 = vadd.f32 %v7405, %v7406
  %v7408 = vsel %vm4993, %v7306, 0.0
  %v7409 = vadd.f32 %v7407, %v7408
  %v7410 = vsel %vm4993, %v7307, 0.0
  %v7411 = vadd.f32 %v7409, %v7410
  %v7412 = vsel %vm4993, %v7308, 0.0
  %v7413 = vadd.f32 %v7411, %v7412
  %v7414 = vsel %vm4993, %v7309, 0.0
  %v7415 = vadd.f32 %v7413, %v7414
  %v7416 = vsel %vm4993, %v7310, 0.0
  %v7417 = vadd.f32 %v7415, %v7416
  %v7418 = vsel %vm4993, %v7311, 0.0
  %v7419 = vadd.f32 %v7417, %v7418
  %v7420 = vsel %vm4993, %v7312, 0.0
  %v7421 = vadd.f32 %v7419, %v7420
  %v7422 = vsel %vm4993, %v7313, 0.0
  %v7423 = vadd.f32 %v7421, %v7422
  %v7424 = vsel %vm4993, %v7314, 0.0
  %v7425 = vadd.f32 %v7423, %v7424
  %v7426 = vsel %vm4993, %v7315, 0.0
  %v7427 = vadd.f32 %v7425, %v7426
  %v7428 = vsel %vm4993, %v7316, 0.0
  %v7429 = vadd.f32 %v7427, %v7428
  %v7430 = vsel %vm4993, %v7317, 0.0
  %v7431 = vadd.f32 %v7429, %v7430
  %v7432 = vsel %vm4993, %v7318, 0.0
  %v7433 = vadd.f32 %v7431, %v7432
  %v7434 = vsel %vm4993, %v7319, 0.0
  %v7435 = vadd.f32 %v7433, %v7434
  %v7436 = vsel %vm4993, %v7320, 0.0
  %v7437 = vadd.f32 %v7435, %v7436
  %v7438 = vsel %vm4993, %v7321, 0.0
  %v7439 = vadd.f32 %v7437, %v7438
  %v7440 = vsel %vm4993, %v7322, 0.0
  %v7441 = vadd.f32 %v7439, %v7440
  %v7442 = vsel %vm4993, %v7323, 0.0
  %v7443 = vadd.f32 %v7441, %v7442
  %v7444 = vsel %vm4993, %v7324, 0.0
  %v7445 = vadd.f32 %v7443, %v7444
  %v7446 = vsel %vm4993, %v7325, 0.0
  %v7447 = vadd.f32 %v7445, %v7446
  %v7448 = vsel %vm4993, %v7326, 0.0
  %v7449 = vadd.f32 %v7447, %v7448
  %v7450 = vsel %vm4993, %v7327, 0.0
  %v7451 = vadd.f32 %v7449, %v7450
  %v7452 = vsel %vm4993, %v7328, 0.0
  %v7453 = vadd.f32 %v7451, %v7452
  %v7454 = vsel %vm4993, %v7329, 0.0
  %v7455 = vadd.f32 %v7453, %v7454
  %v7456 = vsel %vm4993, %v7330, 0.0
  %v7457 = vadd.f32 %v7455, %v7456
  %v7458 = vrot.slane %v7457, 4
  %v7459 = vadd.f32 %v7457, %v7458
  %v7460 = vrot.slane %v7459, 2
  %v7461 = vadd.f32 %v7459, %v7460
  %v7462 = vrot.slane %v7461, 1
  %v7463 = vadd.f32 %v7461, %v7462
  %v7464 = vmul.f32 %v7463, %v256
  %v7465 = vadd.f32 %v7464, 1e-05
  %v7466 = vrsqrt.pop %v7465
  %v7467 = vmul.f32 %v7466, %v7465
  %v7468 = vmul.f32 %v7467, %v7466
  %v7469 = vmul.f32 0.5, %v7468
  %v7470 = vsub.f32 1.5, %v7469
  %v7471 = vmul.f32 %v7466, %v7470
  %vm7472 = vweird.f32 %v7465
  %vm7473 = vweird.f32 %v7466
  %vm7474 = vmor %vm7472, %vm7473
  %v7475 = vsel %vm7474, %v7466, %v7471
  %v7476 = vmul.f32 %v7203, %v7475
  %v7477 = vmul.f32 %v7204, %v7475
  %v7478 = vmul.f32 %v7205, %v7475
  %v7479 = vmul.f32 %v7206, %v7475
  %v7480 = vmul.f32 %v7207, %v7475
  %v7481 = vmul.f32 %v7208, %v7475
  %v7482 = vmul.f32 %v7209, %v7475
  %v7483 = vmul.f32 %v7210, %v7475
  %v7484 = vmul.f32 %v7211, %v7475
  %v7485 = vmul.f32 %v7212, %v7475
  %v7486 = vmul.f32 %v7213, %v7475
  %v7487 = vmul.f32 %v7214, %v7475
  %v7488 = vmul.f32 %v7215, %v7475
  %v7489 = vmul.f32 %v7216, %v7475
  %v7490 = vmul.f32 %v7217, %v7475
  %v7491 = vmul.f32 %v7218, %v7475
  %v7492 = vmul.f32 %v7219, %v7475
  %v7493 = vmul.f32 %v7220, %v7475
  %v7494 = vmul.f32 %v7221, %v7475
  %v7495 = vmul.f32 %v7222, %v7475
  %v7496 = vmul.f32 %v7223, %v7475
  %v7497 = vmul.f32 %v7224, %v7475
  %v7498 = vmul.f32 %v7225, %v7475
  %v7499 = vmul.f32 %v7226, %v7475
  %v7500 = vmul.f32 %v7227, %v7475
  %v7501 = vmul.f32 %v7228, %v7475
  %v7502 = vmul.f32 %v7229, %v7475
  %v7503 = vmul.f32 %v7230, %v7475
  %v7504 = vmul.f32 %v7231, %v7475
  %v7505 = vmul.f32 %v7232, %v7475
  %v7506 = vmul.f32 %v7233, %v7475
  %v7507 = vmul.f32 %v7234, %v7475
  %v7508 = vmul.f32 %v7235, %v7475
  %v7509 = vmul.f32 %v7236, %v7475
  %v7510 = vmul.f32 %v7237, %v7475
  %v7511 = vmul.f32 %v7238, %v7475
  %v7512 = vmul.f32 %v7239, %v7475
  %v7513 = vmul.f32 %v7240, %v7475
  %v7514 = vmul.f32 %v7241, %v7475
  %v7515 = vmul.f32 %v7242, %v7475
  %v7516 = vmul.f32 %v7243, %v7475
  %v7517 = vmul.f32 %v7244, %v7475
  %v7518 = vmul.f32 %v7245, %v7475
  %v7519 = vmul.f32 %v7246, %v7475
  %v7520 = vmul.f32 %v7247, %v7475
  %v7521 = vmul.f32 %v7248, %v7475
  %v7522 = vmul.f32 %v7249, %v7475
  %v7523 = vmul.f32 %v7250, %v7475
  %v7524 = vmul.f32 %v7251, %v7475
  %v7525 = vmul.f32 %v7252, %v7475
  %v7526 = vmul.f32 %v7253, %v7475
  %v7527 = vmul.f32 %v7254, %v7475
  %v7528 = vmul.f32 %v7255, %v7475
  %v7529 = vmul.f32 %v7256, %v7475
  %v7530 = vmul.f32 %v7257, %v7475
  %v7531 = vmul.f32 %v7258, %v7475
  %v7532 = vmul.f32 %v7259, %v7475
  %v7533 = vmul.f32 %v7260, %v7475
  %v7534 = vmul.f32 %v7261, %v7475
  %v7535 = vmul.f32 %v7262, %v7475
  %v7536 = vmul.f32 %v7263, %v7475
  %v7537 = vmul.f32 %v7264, %v7475
  %v7538 = vmul.f32 %v7265, %v7475
  %v7539 = vmul.f32 %v7266, %v7475
  %v7541 = vperm.slane %v7067, 0
  %v7543 = vmul.f32 %v7476, %v7541
  %v7544 = vmul.f32 %v7477, %v7541
  %v7545 = vmul.f32 %v7478, %v7541
  %v7546 = vmul.f32 %v7479, %v7541
  %v7547 = vmul.f32 %v7480, %v7541
  %v7548 = vmul.f32 %v7481, %v7541
  %v7549 = vmul.f32 %v7482, %v7541
  %v7550 = vmul.f32 %v7483, %v7541
  %v7551 = vmul.f32 %v7484, %v7541
  %v7552 = vmul.f32 %v7485, %v7541
  %v7553 = vmul.f32 %v7486, %v7541
  %v7554 = vmul.f32 %v7487, %v7541
  %v7555 = vmul.f32 %v7488, %v7541
  %v7556 = vmul.f32 %v7489, %v7541
  %v7557 = vmul.f32 %v7490, %v7541
  %v7558 = vmul.f32 %v7491, %v7541
  %v7559 = vmul.f32 %v7492, %v7541
  %v7560 = vmul.f32 %v7493, %v7541
  %v7561 = vmul.f32 %v7494, %v7541
  %v7562 = vmul.f32 %v7495, %v7541
  %v7563 = vmul.f32 %v7496, %v7541
  %v7564 = vmul.f32 %v7497, %v7541
  %v7565 = vmul.f32 %v7498, %v7541
  %v7566 = vmul.f32 %v7499, %v7541
  %v7567 = vmul.f32 %v7500, %v7541
  %v7568 = vmul.f32 %v7501, %v7541
  %v7569 = vmul.f32 %v7502, %v7541
  %v7570 = vmul.f32 %v7503, %v7541
  %v7571 = vmul.f32 %v7504, %v7541
  %v7572 = vmul.f32 %v7505, %v7541
  %v7573 = vmul.f32 %v7506, %v7541
  %v7574 = vmul.f32 %v7507, %v7541
  %v7575 = vmul.f32 %v7508, %v7541
  %v7576 = vmul.f32 %v7509, %v7541
  %v7577 = vmul.f32 %v7510, %v7541
  %v7578 = vmul.f32 %v7511, %v7541
  %v7579 = vmul.f32 %v7512, %v7541
  %v7580 = vmul.f32 %v7513, %v7541
  %v7581 = vmul.f32 %v7514, %v7541
  %v7582 = vmul.f32 %v7515, %v7541
  %v7583 = vmul.f32 %v7516, %v7541
  %v7584 = vmul.f32 %v7517, %v7541
  %v7585 = vmul.f32 %v7518, %v7541
  %v7586 = vmul.f32 %v7519, %v7541
  %v7587 = vmul.f32 %v7520, %v7541
  %v7588 = vmul.f32 %v7521, %v7541
  %v7589 = vmul.f32 %v7522, %v7541
  %v7590 = vmul.f32 %v7523, %v7541
  %v7591 = vmul.f32 %v7524, %v7541
  %v7592 = vmul.f32 %v7525, %v7541
  %v7593 = vmul.f32 %v7526, %v7541
  %v7594 = vmul.f32 %v7527, %v7541
  %v7595 = vmul.f32 %v7528, %v7541
  %v7596 = vmul.f32 %v7529, %v7541
  %v7597 = vmul.f32 %v7530, %v7541
  %v7598 = vmul.f32 %v7531, %v7541
  %v7599 = vmul.f32 %v7532, %v7541
  %v7600 = vmul.f32 %v7533, %v7541
  %v7601 = vmul.f32 %v7534, %v7541
  %v7602 = vmul.f32 %v7535, %v7541
  %v7603 = vmul.f32 %v7536, %v7541
  %v7604 = vmul.f32 %v7537, %v7541
  %v7605 = vmul.f32 %v7538, %v7541
  %v7606 = vmul.f32 %v7539, %v7541
  %v7608 = vperm.slane %v7068, 0
  %v7610 = vadd.f32 %v7543, %v7608
  %v7611 = vadd.f32 %v7544, %v7608
  %v7612 = vadd.f32 %v7545, %v7608
  %v7613 = vadd.f32 %v7546, %v7608
  %v7614 = vadd.f32 %v7547, %v7608
  %v7615 = vadd.f32 %v7548, %v7608
  %v7616 = vadd.f32 %v7549, %v7608
  %v7617 = vadd.f32 %v7550, %v7608
  %v7618 = vadd.f32 %v7551, %v7608
  %v7619 = vadd.f32 %v7552, %v7608
  %v7620 = vadd.f32 %v7553, %v7608
  %v7621 = vadd.f32 %v7554, %v7608
  %v7622 = vadd.f32 %v7555, %v7608
  %v7623 = vadd.f32 %v7556, %v7608
  %v7624 = vadd.f32 %v7557, %v7608
  %v7625 = vadd.f32 %v7558, %v7608
  %v7626 = vadd.f32 %v7559, %v7608
  %v7627 = vadd.f32 %v7560, %v7608
  %v7628 = vadd.f32 %v7561, %v7608
  %v7629 = vadd.f32 %v7562, %v7608
  %v7630 = vadd.f32 %v7563, %v7608
  %v7631 = vadd.f32 %v7564, %v7608
  %v7632 = vadd.f32 %v7565, %v7608
  %v7633 = vadd.f32 %v7566, %v7608
  %v7634 = vadd.f32 %v7567, %v7608
  %v7635 = vadd.f32 %v7568, %v7608
  %v7636 = vadd.f32 %v7569, %v7608
  %v7637 = vadd.f32 %v7570, %v7608
  %v7638 = vadd.f32 %v7571, %v7608
  %v7639 = vadd.f32 %v7572, %v7608
  %v7640 = vadd.f32 %v7573, %v7608
  %v7641 = vadd.f32 %v7574, %v7608
  %v7642 = vadd.f32 %v7575, %v7608
  %v7643 = vadd.f32 %v7576, %v7608
  %v7644 = vadd.f32 %v7577, %v7608
  %v7645 = vadd.f32 %v7578, %v7608
  %v7646 = vadd.f32 %v7579, %v7608
  %v7647 = vadd.f32 %v7580, %v7608
  %v7648 = vadd.f32 %v7581, %v7608
  %v7649 = vadd.f32 %v7582, %v7608
  %v7650 = vadd.f32 %v7583, %v7608
  %v7651 = vadd.f32 %v7584, %v7608
  %v7652 = vadd.f32 %v7585, %v7608
  %v7653 = vadd.f32 %v7586, %v7608
  %v7654 = vadd.f32 %v7587, %v7608
  %v7655 = vadd.f32 %v7588, %v7608
  %v7656 = vadd.f32 %v7589, %v7608
  %v7657 = vadd.f32 %v7590, %v7608
  %v7658 = vadd.f32 %v7591, %v7608
  %v7659 = vadd.f32 %v7592, %v7608
  %v7660 = vadd.f32 %v7593, %v7608
  %v7661 = vadd.f32 %v7594, %v7608
  %v7662 = vadd.f32 %v7595, %v7608
  %v7663 = vadd.f32 %v7596, %v7608
  %v7664 = vadd.f32 %v7597, %v7608
  %v7665 = vadd.f32 %v7598, %v7608
  %v7666 = vadd.f32 %v7599, %v7608
  %v7667 = vadd.f32 %v7600, %v7608
  %v7668 = vadd.f32 %v7601, %v7608
  %v7669 = vadd.f32 %v7602, %v7608
  %v7670 = vadd.f32 %v7603, %v7608
  %v7671 = vadd.f32 %v7604, %v7608
  %v7672 = vadd.f32 %v7605, %v7608
  %v7673 = vadd.f32 %v7606, %v7608
  %vm7674 = vcmp.ge.f32.partialorder %v7610, 0.0
  %vm7675 = vcmp.ge.f32.partialorder %v7611, 0.0
  %vm7676 = vcmp.ge.f32.partialorder %v7612, 0.0
  %vm7677 = vcmp.ge.f32.partialorder %v7613, 0.0
  %vm7678 = vcmp.ge.f32.partialorder %v7614, 0.0
  %vm7679 = vcmp.ge.f32.partialorder %v7615, 0.0
  %vm7680 = vcmp.ge.f32.partialorder %v7616, 0.0
  %vm7681 = vcmp.ge.f32.partialorder %v7617, 0.0
  %vm7682 = vcmp.ge.f32.partialorder %v7618, 0.0
  %vm7683 = vcmp.ge.f32.partialorder %v7619, 0.0
  %vm7684 = vcmp.ge.f32.partialorder %v7620, 0.0
  %vm7685 = vcmp.ge.f32.partialorder %v7621, 0.0
  %vm7686 = vcmp.ge.f32.partialorder %v7622, 0.0
  %vm7687 = vcmp.ge.f32.partialorder %v7623, 0.0
  %vm7688 = vcmp.ge.f32.partialorder %v7624, 0.0
  %vm7689 = vcmp.ge.f32.partialorder %v7625, 0.0
  %vm7690 = vcmp.ge.f32.partialorder %v7626, 0.0
  %vm7691 = vcmp.ge.f32.partialorder %v7627, 0.0
  %vm7692 = vcmp.ge.f32.partialorder %v7628, 0.0
  %vm7693 = vcmp.ge.f32.partialorder %v7629, 0.0
  %vm7694 = vcmp.ge.f32.partialorder %v7630, 0.0
  %vm7695 = vcmp.ge.f32.partialorder %v7631, 0.0
  %vm7696 = vcmp.ge.f32.partialorder %v7632, 0.0
  %vm7697 = vcmp.ge.f32.partialorder %v7633, 0.0
  %vm7698 = vcmp.ge.f32.partialorder %v7634, 0.0
  %vm7699 = vcmp.ge.f32.partialorder %v7635, 0.0
  %vm7700 = vcmp.ge.f32.partialorder %v7636, 0.0
  %vm7701 = vcmp.ge.f32.partialorder %v7637, 0.0
  %vm7702 = vcmp.ge.f32.partialorder %v7638, 0.0
  %vm7703 = vcmp.ge.f32.partialorder %v7639, 0.0
  %vm7704 = vcmp.ge.f32.partialorder %v7640, 0.0
  %vm7705 = vcmp.ge.f32.partialorder %v7641, 0.0
  %vm7706 = vcmp.ge.f32.partialorder %v7642, 0.0
  %vm7707 = vcmp.ge.f32.partialorder %v7643, 0.0
  %vm7708 = vcmp.ge.f32.partialorder %v7644, 0.0
  %vm7709 = vcmp.ge.f32.partialorder %v7645, 0.0
  %vm7710 = vcmp.ge.f32.partialorder %v7646, 0.0
  %vm7711 = vcmp.ge.f32.partialorder %v7647, 0.0
  %vm7712 = vcmp.ge.f32.partialorder %v7648, 0.0
  %vm7713 = vcmp.ge.f32.partialorder %v7649, 0.0
  %vm7714 = vcmp.ge.f32.partialorder %v7650, 0.0
  %vm7715 = vcmp.ge.f32.partialorder %v7651, 0.0
  %vm7716 = vcmp.ge.f32.partialorder %v7652, 0.0
  %vm7717 = vcmp.ge.f32.partialorder %v7653, 0.0
  %vm7718 = vcmp.ge.f32.partialorder %v7654, 0.0
  %vm7719 = vcmp.ge.f32.partialorder %v7655, 0.0
  %vm7720 = vcmp.ge.f32.partialorder %v7656, 0.0
  %vm7721 = vcmp.ge.f32.partialorder %v7657, 0.0
  %vm7722 = vcmp.ge.f32.partialorder %v7658, 0.0
  %vm7723 = vcmp.ge.f32.partialorder %v7659, 0.0
  %vm7724 = vcmp.ge.f32.partialorder %v7660, 0.0
  %vm7725 = vcmp.ge.f32.partialorder %v7661, 0.0
  %vm7726 = vcmp.ge.f32.partialorder %v7662, 0.0
  %vm7727 = vcmp.ge.f32.partialorder %v7663, 0.0
  %vm7728 = vcmp.ge.f32.partialorder %v7664, 0.0
  %vm7729 = vcmp.ge.f32.partialorder %v7665, 0.0
  %vm7730 = vcmp.ge.f32.partialorder %v7666, 0.0
  %vm7731 = vcmp.ge.f32.partialorder %v7667, 0.0
  %vm7732 = vcmp.ge.f32.partialorder %v7668, 0.0
  %vm7733 = vcmp.ge.f32.partialorder %v7669, 0.0
  %vm7734 = vcmp.ge.f32.partialorder %v7670, 0.0
  %vm7735 = vcmp.ge.f32.partialorder %v7671, 0.0
  %vm7736 = vcmp.ge.f32.partialorder %v7672, 0.0
  %vm7737 = vcmp.ge.f32.partialorder %v7673, 0.0
  %v7738 = vmul.f32 %v7610, 0.01
  %v7739 = vmul.f32 %v7611, 0.01
  %v7740 = vmul.f32 %v7612, 0.01
  %v7741 = vmul.f32 %v7613, 0.01
  %v7742 = vmul.f32 %v7614, 0.01
  %v7743 = vmul.f32 %v7615, 0.01
  %v7744 = vmul.f32 %v7616, 0.01
  %v7745 = vmul.f32 %v7617, 0.01
  %v7746 = vmul.f32 %v7618, 0.01
  %v7747 = vmul.f32 %v7619, 0.01
  %v7748 = vmul.f32 %v7620, 0.01
  %v7749 = vmul.f32 %v7621, 0.01
  %v7750 = vmul.f32 %v7622, 0.01
  %v7751 = vmul.f32 %v7623, 0.01
  %v7752 = vmul.f32 %v7624, 0.01
  %v7753 = vmul.f32 %v7625, 0.01
  %v7754 = vmul.f32 %v7626, 0.01
  %v7755 = vmul.f32 %v7627, 0.01
  %v7756 = vmul.f32 %v7628, 0.01
  %v7757 = vmul.f32 %v7629, 0.01
  %v7758 = vmul.f32 %v7630, 0.01
  %v7759 = vmul.f32 %v7631, 0.01
  %v7760 = vmul.f32 %v7632, 0.01
  %v7761 = vmul.f32 %v7633, 0.01
  %v7762 = vmul.f32 %v7634, 0.01
  %v7763 = vmul.f32 %v7635, 0.01
  %v7764 = vmul.f32 %v7636, 0.01
  %v7765 = vmul.f32 %v7637, 0.01
  %v7766 = vmul.f32 %v7638, 0.01
  %v7767 = vmul.f32 %v7639, 0.01
  %v7768 = vmul.f32 %v7640, 0.01
  %v7769 = vmul.f32 %v7641, 0.01
  %v7770 = vmul.f32 %v7642, 0.01
  %v7771 = vmul.f32 %v7643, 0.01
  %v7772 = vmul.f32 %v7644, 0.01
  %v7773 = vmul.f32 %v7645, 0.01
  %v7774 = vmul.f32 %v7646, 0.01
  %v7775 = vmul.f32 %v7647, 0.01
  %v7776 = vmul.f32 %v7648, 0.01
  %v7777 = vmul.f32 %v7649, 0.01
  %v7778 = vmul.f32 %v7650, 0.01
  %v7779 = vmul.f32 %v7651, 0.01
  %v7780 = vmul.f32 %v7652, 0.01
  %v7781 = vmul.f32 %v7653, 0.01
  %v7782 = vmul.f32 %v7654, 0.01
  %v7783 = vmul.f32 %v7655, 0.01
  %v7784 = vmul.f32 %v7656, 0.01
  %v7785 = vmul.f32 %v7657, 0.01
  %v7786 = vmul.f32 %v7658, 0.01
  %v7787 = vmul.f32 %v7659, 0.01
  %v7788 = vmul.f32 %v7660, 0.01
  %v7789 = vmul.f32 %v7661, 0.01
  %v7790 = vmul.f32 %v7662, 0.01
  %v7791 = vmul.f32 %v7663, 0.01
  %v7792 = vmul.f32 %v7664, 0.01
  %v7793 = vmul.f32 %v7665, 0.01
  %v7794 = vmul.f32 %v7666, 0.01
  %v7795 = vmul.f32 %v7667, 0.01
  %v7796 = vmul.f32 %v7668, 0.01
  %v7797 = vmul.f32 %v7669, 0.01
  %v7798 = vmul.f32 %v7670, 0.01
  %v7799 = vmul.f32 %v7671, 0.01
  %v7800 = vmul.f32 %v7672, 0.01
  %v7801 = vmul.f32 %v7673, 0.01
  %v7802 = vsel %vm7674, %v7610, %v7738
  %v7803 = vsel %vm7675, %v7611, %v7739
  %v7804 = vsel %vm7676, %v7612, %v7740
  %v7805 = vsel %vm7677, %v7613, %v7741
  %v7806 = vsel %vm7678, %v7614, %v7742
  %v7807 = vsel %vm7679, %v7615, %v7743
  %v7808 = vsel %vm7680, %v7616, %v7744
  %v7809 = vsel %vm7681, %v7617, %v7745
  %v7810 = vsel %vm7682, %v7618, %v7746
  %v7811 = vsel %vm7683, %v7619, %v7747
  %v7812 = vsel %vm7684, %v7620, %v7748
  %v7813 = vsel %vm7685, %v7621, %v7749
  %v7814 = vsel %vm7686, %v7622, %v7750
  %v7815 = vsel %vm7687, %v7623, %v7751
  %v7816 = vsel %vm7688, %v7624, %v7752
  %v7817 = vsel %vm7689, %v7625, %v7753
  %v7818 = vsel %vm7690, %v7626, %v7754
  %v7819 = vsel %vm7691, %v7627, %v7755
  %v7820 = vsel %vm7692, %v7628, %v7756
  %v7821 = vsel %vm7693, %v7629, %v7757
  %v7822 = vsel %vm7694, %v7630, %v7758
  %v7823 = vsel %vm7695, %v7631, %v7759
  %v7824 = vsel %vm7696, %v7632, %v7760
  %v7825 = vsel %vm7697, %v7633, %v7761
  %v7826 = vsel %vm7698, %v7634, %v7762
  %v7827 = vsel %vm7699, %v7635, %v7763
  %v7828 = vsel %vm7700, %v7636, %v7764
  %v7829 = vsel %vm7701, %v7637, %v7765
  %v7830 = vsel %vm7702, %v7638, %v7766
  %v7831 = vsel %vm7703, %v7639, %v7767
  %v7832 = vsel %vm7704, %v7640, %v7768
  %v7833 = vsel %vm7705, %v7641, %v7769
  %v7834 = vsel %vm7706, %v7642, %v7770
  %v7835 = vsel %vm7707, %v7643, %v7771
  %v7836 = vsel %vm7708, %v7644, %v7772
  %v7837 = vsel %vm7709, %v7645, %v7773
  %v7838 = vsel %vm7710, %v7646, %v7774
  %v7839 = vsel %vm7711, %v7647, %v7775
  %v7840 = vsel %vm7712, %v7648, %v7776
  %v7841 = vsel %vm7713, %v7649, %v7777
  %v7842 = vsel %vm7714, %v7650, %v7778
  %v7843 = vsel %vm7715, %v7651, %v7779
  %v7844 = vsel %vm7716, %v7652, %v7780
  %v7845 = vsel %vm7717, %v7653, %v7781
  %v7846 = vsel %vm7718, %v7654, %v7782
  %v7847 = vsel %vm7719, %v7655, %v7783
  %v7848 = vsel %vm7720, %v7656, %v7784
  %v7849 = vsel %vm7721, %v7657, %v7785
  %v7850 = vsel %vm7722, %v7658, %v7786
  %v7851 = vsel %vm7723, %v7659, %v7787
  %v7852 = vsel %vm7724, %v7660, %v7788
  %v7853 = vsel %vm7725, %v7661, %v7789
  %v7854 = vsel %vm7726, %v7662, %v7790
  %v7855 = vsel %vm7727, %v7663, %v7791
  %v7856 = vsel %vm7728, %v7664, %v7792
  %v7857 = vsel %vm7729, %v7665, %v7793
  %v7858 = vsel %vm7730, %v7666, %v7794
  %v7859 = vsel %vm7731, %v7667, %v7795
  %v7860 = vsel %vm7732, %v7668, %v7796
  %v7861 = vsel %vm7733, %v7669, %v7797
  %v7862 = vsel %vm7734, %v7670, %v7798
  %v7863 = vsel %vm7735, %v7671, %v7799
  %v7864 = vsel %vm7736, %v7672, %v7800
  %v7865 = vsel %vm7737, %v7673, %v7801
  %7930 = vrot.lane.b32.xlu0 %v7802, 4
  %v7931 = vpop.permute.xlu0 %7930
  %7932 = vrot.lane.b32.xlu0 %v7803, 4
  %v7933 = vpop.permute.xlu0 %7932
  %7934 = vrot.lane.b32.xlu0 %v7804, 4
  %v7935 = vpop.permute.xlu0 %7934
  %7936 = vrot.lane.b32.xlu0 %v7805, 4
  %v7937 = vpop.permute.xlu0 %7936
  %7938 = vrot.lane.b32.xlu0 %v7806, 4
  %v7939 = vpop.permute.xlu0 %7938
  %7940 = vrot.lane.b32.xlu0 %v7807, 4
  %v7941 = vpop.permute.xlu0 %7940
  %7942 = vrot.lane.b32.xlu0 %v7808, 4
  %v7943 = vpop.permute.xlu0 %7942
  %7944 = vrot.lane.b32.xlu0 %v7809, 4
  %v7945 = vpop.permute.xlu0 %7944
  %7946 = vrot.lane.b32.xlu0 %v7810, 4
  %v7947 = vpop.permute.xlu0 %7946
  %7948 = vrot.lane.b32.xlu0 %v7811, 4
  %v7949 = vpop.permute.xlu0 %7948
  %7950 = vrot.lane.b32.xlu0 %v7812, 4
  %v7951 = vpop.permute.xlu0 %7950
  %7952 = vrot.lane.b32.xlu0 %v7813, 4
  %v7953 = vpop.permute.xlu0 %7952
  %7954 = vrot.lane.b32.xlu0 %v7814, 4
  %v7955 = vpop.permute.xlu0 %7954
  %7956 = vrot.lane.b32.xlu0 %v7815, 4
  %v7957 = vpop.permute.xlu0 %7956
  %7958 = vrot.lane.b32.xlu0 %v7816, 4
  %v7959 = vpop.permute.xlu0 %7958
  %7960 = vrot.lane.b32.xlu0 %v7817, 4
  %v7961 = vpop.permute.xlu0 %7960
  %7962 = vrot.lane.b32.xlu0 %v7818, 4
  %v7963 = vpop.permute.xlu0 %7962
  %7964 = vrot.lane.b32.xlu0 %v7819, 4
  %v7965 = vpop.permute.xlu0 %7964
  %7966 = vrot.lane.b32.xlu0 %v7820, 4
  %v7967 = vpop.permute.xlu0 %7966
  %7968 = vrot.lane.b32.xlu0 %v7821, 4
  %v7969 = vpop.permute.xlu0 %7968
  %7970 = vrot.lane.b32.xlu0 %v7822, 4
  %v7971 = vpop.permute.xlu0 %7970
  %7972 = vrot.lane.b32.xlu0 %v7823, 4
  %v7973 = vpop.permute.xlu0 %7972
  %7974 = vrot.lane.b32.xlu0 %v7824, 4
  %v7975 = vpop.permute.xlu0 %7974
  %7976 = vrot.lane.b32.xlu0 %v7825, 4
  %v7977 = vpop.permute.xlu0 %7976
  %7978 = vrot.lane.b32.xlu0 %v7826, 4
  %v7979 = vpop.permute.xlu0 %7978
  %7980 = vrot.lane.b32.xlu0 %v7827, 4
  %v7981 = vpop.permute.xlu0 %7980
  %7982 = vrot.lane.b32.xlu0 %v7828, 4
  %v7983 = vpop.permute.xlu0 %7982
  %7984 = vrot.lane.b32.xlu0 %v7829, 4
  %v7985 = vpop.permute.xlu0 %7984
  %7986 = vrot.lane.b32.xlu0 %v7830, 4
  %v7987 = vpop.permute.xlu0 %7986
  %7988 = vrot.lane.b32.xlu0 %v7831, 4
  %v7989 = vpop.permute.xlu0 %7988
  %7990 = vrot.lane.b32.xlu0 %v7832, 4
  %v7991 = vpop.permute.xlu0 %7990
  %7992 = vrot.lane.b32.xlu0 %v7833, 4
  %v7993 = vpop.permute.xlu0 %7992
  %7994 = vrot.lane.b32.xlu0 %v7834, 4
  %v7995 = vpop.permute.xlu0 %7994
  %7996 = vrot.lane.b32.xlu0 %v7835, 4
  %v7997 = vpop.permute.xlu0 %7996
  %7998 = vrot.lane.b32.xlu0 %v7836, 4
  %v7999 = vpop.permute.xlu0 %7998
  %8000 = vrot.lane.b32.xlu0 %v7837, 4
  %v8001 = vpop.permute.xlu0 %8000
  %8002 = vrot.lane.b32.xlu0 %v7838, 4
  %v8003 = vpop.permute.xlu0 %8002
  %8004 = vrot.lane.b32.xlu0 %v7839, 4
  %v8005 = vpop.permute.xlu0 %8004
  %8006 = vrot.lane.b32.xlu0 %v7840, 4
  %v8007 = vpop.permute.xlu0 %8006
  %8008 = vrot.lane.b32.xlu0 %v7841, 4
  %v8009 = vpop.permute.xlu0 %8008
  %8010 = vrot.lane.b32.xlu0 %v7842, 4
  %v8011 = vpop.permute.xlu0 %8010
  %8012 = vrot.lane.b32.xlu0 %v7843, 4
  %v8013 = vpop.permute.xlu0 %8012
  %8014 = vrot.lane.b32.xlu0 %v7844, 4
  %v8015 = vpop.permute.xlu0 %8014
  %8016 = vrot.lane.b32.xlu0 %v7845, 4
  %v8017 = vpop.permute.xlu0 %8016
  %8018 = vrot.lane.b32.xlu0 %v7846, 4
  %v8019 = vpop.permute.xlu0 %8018
  %8020 = vrot.lane.b32.xlu0 %v7847, 4
  %v8021 = vpop.permute.xlu0 %8020
  %8022 = vrot.lane.b32.xlu0 %v7848, 4
  %v8023 = vpop.permute.xlu0 %8022
  %8024 = vrot.lane.b32.xlu0 %v7849, 4
  %v8025 = vpop.permute.xlu0 %8024
  %8026 = vrot.lane.b32.xlu0 %v7850, 4
  %v8027 = vpop.permute.xlu0 %8026
  %8028 = vrot.lane.b32.xlu0 %v7851, 4
  %v8029 = vpop.permute.xlu0 %8028
  %8030 = vrot.lane.b32.xlu0 %v7852, 4
  %v8031 = vpop.permute.xlu0 %8030
  %8032 = vrot.lane.b32.xlu0 %v7853, 4
  %v8033 = vpop.permute.xlu0 %8032
  %8034 = vrot.lane.b32.xlu0 %v7854, 4
  %v8035 = vpop.permute.xlu0 %8034
  %8036 = vrot.lane.b32.xlu0 %v7855, 4
  %v8037 = vpop.permute.xlu0 %8036
  %8038 = vrot.lane.b32.xlu0 %v7856, 4
  %v8039 = vpop.permute.xlu0 %8038
  %8040 = vrot.lane.b32.xlu0 %v7857, 4
  %v8041 = vpop.permute.xlu0 %8040
  %8042 = vrot.lane.b32.xlu0 %v7858, 4
  %v8043 = vpop.permute.xlu0 %8042
  %8044 = vrot.lane.b32.xlu0 %v7859, 4
  %v8045 = vpop.permute.xlu0 %8044
  %8046 = vrot.lane.b32.xlu0 %v7860, 4
  %v8047 = vpop.permute.xlu0 %8046
  %8048 = vrot.lane.b32.xlu0 %v7861, 4
  %v8049 = vpop.permute.xlu0 %8048
  %8050 = vrot.lane.b32.xlu0 %v7862, 4
  %v8051 = vpop.permute.xlu0 %8050
  %8052 = vrot.lane.b32.xlu0 %v7863, 4
  %v8053 = vpop.permute.xlu0 %8052
  %8054 = vrot.lane.b32.xlu0 %v7864, 4
  %v8055 = vpop.permute.xlu0 %8054
  %8056 = vrot.lane.b32.xlu0 %v7865, 4
  %v8057 = vpop.permute.xlu0 %8056
  %v8122 = vsel %vm116, %v50, %v7931
  %v8123 = vsel %vm116, %v51, %v7933
  %v8124 = vsel %vm116, %v52, %v7935
  %v8125 = vsel %vm116, %v53, %v7937
  %v8126 = vsel %vm116, %v54, %v7939
  %v8127 = vsel %vm116, %v55, %v7941
  %v8128 = vsel %vm116, %v56, %v7943
  %v8129 = vsel %vm116, %v57, %v7945
  %v8130 = vsel %vm116, %v58, %v7947
  %v8131 = vsel %vm116, %v59, %v7949
  %v8132 = vsel %vm116, %v60, %v7951
  %v8133 = vsel %vm116, %v61, %v7953
  %v8134 = vsel %vm116, %v62, %v7955
  %v8135 = vsel %vm116, %v63, %v7957
  %v8136 = vsel %vm116, %v64, %v7959
  %v8137 = vsel %vm116, %v65, %v7961
  %v8138 = vsel %vm116, %v66, %v7963
  %v8139 = vsel %vm116, %v67, %v7965
  %v8140 = vsel %vm116, %v68, %v7967
  %v8141 = vsel %vm116, %v69, %v7969
  %v8142 = vsel %vm116, %v70, %v7971
  %v8143 = vsel %vm116, %v71, %v7973
  %v8144 = vsel %vm116, %v72, %v7975
  %v8145 = vsel %vm116, %v73, %v7977
  %v8146 = vsel %vm116, %v74, %v7979
  %v8147 = vsel %vm116, %v75, %v7981
  %v8148 = vsel %vm116, %v76, %v7983
  %v8149 = vsel %vm116, %v77, %v7985
  %v8150 = vsel %vm116, %v78, %v7987
  %v8151 = vsel %vm116, %v79, %v7989
  %v8152 = vsel %vm116, %v80, %v7991
  %v8153 = vsel %vm116, %v81, %v7993
  %v8154 = vsel %vm116, %v82, %v7995
  %v8155 = vsel %vm116, %v83, %v7997
  %v8156 = vsel %vm116, %v84, %v7999
  %v8157 = vsel %vm116, %v85, %v8001
  %v8158 = vsel %vm116, %v86, %v8003
  %v8159 = vsel %vm116, %v87, %v8005
  %v8160 = vsel %vm116, %v88, %v8007
  %v8161 = vsel %vm116, %v89, %v8009
  %v8162 = vsel %vm116, %v90, %v8011
  %v8163 = vsel %vm116, %v91, %v8013
  %v8164 = vsel %vm116, %v92, %v8015
  %v8165 = vsel %vm116, %v93, %v8017
  %v8166 = vsel %vm116, %v94, %v8019
  %v8167 = vsel %vm116, %v95, %v8021
  %v8168 = vsel %vm116, %v96, %v8023
  %v8169 = vsel %vm116, %v97, %v8025
  %v8170 = vsel %vm116, %v98, %v8027
  %v8171 = vsel %vm116, %v99, %v8029
  %v8172 = vsel %vm116, %v100, %v8031
  %v8173 = vsel %vm116, %v101, %v8033
  %v8174 = vsel %vm116, %v102, %v8035
  %v8175 = vsel %vm116, %v103, %v8037
  %v8176 = vsel %vm116, %v104, %v8039
  %v8177 = vsel %vm116, %v105, %v8041
  %v8178 = vsel %vm116, %v106, %v8043
  %v8179 = vsel %vm116, %v107, %v8045
  %v8180 = vsel %vm116, %v108, %v8047
  %v8181 = vsel %vm116, %v109, %v8049
  %v8182 = vsel %vm116, %v110, %v8051
  %v8183 = vsel %vm116, %v111, %v8053
  %v8184 = vsel %vm116, %v112, %v8055
  %v8185 = vsel %vm116, %v113, %v8057
  %8186 = vst.msk [vmem:[%s15] sm:$0xff] %vm5058, %v8122
  %8187 = vst.msk [vmem:[%s15 + $0x8] sm:$0xff] %vm5058, %v8123
  %8188 = vst.msk [vmem:[%s15 + $0x10] sm:$0xff] %vm5058, %v8124
  %8189 = vst.msk [vmem:[%s15 + $0x18] sm:$0xff] %vm5058, %v8125
  %8190 = vst.msk [vmem:[%s15 + $0x20] sm:$0xff] %vm5058, %v8126
  %8191 = vst.msk [vmem:[%s15 + $0x28] sm:$0xff] %vm5058, %v8127
  %8192 = vst.msk [vmem:[%s15 + $0x30] sm:$0xff] %vm5058, %v8128
  %8193 = vst.msk [vmem:[%s15 + $0x38] sm:$0xff] %vm5058, %v8129
  %8194 = vst.msk [vmem:[%s15 + $0x40] sm:$0xff] %vm5058, %v8130
  %8195 = vst.msk [vmem:[%s15 + $0x48] sm:$0xff] %vm5058, %v8131
  %8196 = vst.msk [vmem:[%s15 + $0x50] sm:$0xff] %vm5058, %v8132
  %8197 = vst.msk [vmem:[%s15 + $0x58] sm:$0xff] %vm5058, %v8133
  %8198 = vst.msk [vmem:[%s15 + $0x60] sm:$0xff] %vm5058, %v8134
  %8199 = vst.msk [vmem:[%s15 + $0x68] sm:$0xff] %vm5058, %v8135
  %8200 = vst.msk [vmem:[%s15 + $0x70] sm:$0xff] %vm5058, %v8136
  %8201 = vst.msk [vmem:[%s15 + $0x78] sm:$0xff] %vm5058, %v8137
  %8202 = vst.msk [vmem:[%s15 + $0x80] sm:$0xff] %vm5058, %v8138
  %8203 = vst.msk [vmem:[%s15 + $0x88] sm:$0xff] %vm5058, %v8139
  %8204 = vst.msk [vmem:[%s15 + $0x90] sm:$0xff] %vm5058, %v8140
  %8205 = vst.msk [vmem:[%s15 + $0x98] sm:$0xff] %vm5058, %v8141
  %8206 = vst.msk [vmem:[%s15 + $0xa0] sm:$0xff] %vm5058, %v8142
  %8207 = vst.msk [vmem:[%s15 + $0xa8] sm:$0xff] %vm5058, %v8143
  %8208 = vst.msk [vmem:[%s15 + $0xb0] sm:$0xff] %vm5058, %v8144
  %8209 = vst.msk [vmem:[%s15 + $0xb8] sm:$0xff] %vm5058, %v8145
  %8210 = vst.msk [vmem:[%s15 + $0xc0] sm:$0xff] %vm5058, %v8146
  %8211 = vst.msk [vmem:[%s15 + $0xc8] sm:$0xff] %vm5058, %v8147
  %8212 = vst.msk [vmem:[%s15 + $0xd0] sm:$0xff] %vm5058, %v8148
  %8213 = vst.msk [vmem:[%s15 + $0xd8] sm:$0xff] %vm5058, %v8149
  %8214 = vst.msk [vmem:[%s15 + $0xe0] sm:$0xff] %vm5058, %v8150
  %8215 = vst.msk [vmem:[%s15 + $0xe8] sm:$0xff] %vm5058, %v8151
  %8216 = vst.msk [vmem:[%s15 + $0xf0] sm:$0xff] %vm5058, %v8152
  %8217 = vst.msk [vmem:[%s15 + $0xf8] sm:$0xff] %vm5058, %v8153
  %8218 = vst.msk [vmem:[%s15 + $0x100] sm:$0xff] %vm5058, %v8154
  %8219 = vst.msk [vmem:[%s15 + $0x108] sm:$0xff] %vm5058, %v8155
  %8220 = vst.msk [vmem:[%s15 + $0x110] sm:$0xff] %vm5058, %v8156
  %8221 = vst.msk [vmem:[%s15 + $0x118] sm:$0xff] %vm5058, %v8157
  %8222 = vst.msk [vmem:[%s15 + $0x120] sm:$0xff] %vm5058, %v8158
  %8223 = vst.msk [vmem:[%s15 + $0x128] sm:$0xff] %vm5058, %v8159
  %8224 = vst.msk [vmem:[%s15 + $0x130] sm:$0xff] %vm5058, %v8160
  %8225 = vst.msk [vmem:[%s15 + $0x138] sm:$0xff] %vm5058, %v8161
  %8226 = vst.msk [vmem:[%s15 + $0x140] sm:$0xff] %vm5058, %v8162
  %8227 = vst.msk [vmem:[%s15 + $0x148] sm:$0xff] %vm5058, %v8163
  %8228 = vst.msk [vmem:[%s15 + $0x150] sm:$0xff] %vm5058, %v8164
  %8229 = vst.msk [vmem:[%s15 + $0x158] sm:$0xff] %vm5058, %v8165
  %8230 = vst.msk [vmem:[%s15 + $0x160] sm:$0xff] %vm5058, %v8166
  %8231 = vst.msk [vmem:[%s15 + $0x168] sm:$0xff] %vm5058, %v8167
  %8232 = vst.msk [vmem:[%s15 + $0x170] sm:$0xff] %vm5058, %v8168
  %8233 = vst.msk [vmem:[%s15 + $0x178] sm:$0xff] %vm5058, %v8169
  %8234 = vst.msk [vmem:[%s15 + $0x180] sm:$0xff] %vm5058, %v8170
  %8235 = vst.msk [vmem:[%s15 + $0x188] sm:$0xff] %vm5058, %v8171
  %8236 = vst.msk [vmem:[%s15 + $0x190] sm:$0xff] %vm5058, %v8172
  %8237 = vst.msk [vmem:[%s15 + $0x198] sm:$0xff] %vm5058, %v8173
  %8238 = vst.msk [vmem:[%s15 + $0x1a0] sm:$0xff] %vm5058, %v8174
  %8239 = vst.msk [vmem:[%s15 + $0x1a8] sm:$0xff] %vm5058, %v8175
  %8240 = vst.msk [vmem:[%s15 + $0x1b0] sm:$0xff] %vm5058, %v8176
  %8241 = vst.msk [vmem:[%s15 + $0x1b8] sm:$0xff] %vm5058, %v8177
  %8242 = vst.msk [vmem:[%s15 + $0x1c0] sm:$0xff] %vm5058, %v8178
  %8243 = vst.msk [vmem:[%s15 + $0x1c8] sm:$0xff] %vm5058, %v8179
  %8244 = vst.msk [vmem:[%s15 + $0x1d0] sm:$0xff] %vm5058, %v8180
  %8245 = vst.msk [vmem:[%s15 + $0x1d8] sm:$0xff] %vm5058, %v8181
  %8246 = vst.msk [vmem:[%s15 + $0x1e0] sm:$0xff] %vm5058, %v8182
  %8247 = vst.msk [vmem:[%s15 + $0x1e8] sm:$0xff] %vm5058, %v8183
  %8248 = vst.msk [vmem:[%s15 + $0x1f0] sm:$0xff] %vm5058, %v8184
  %8249 = vst.msk [vmem:[%s15 + $0x1f8] sm:$0xff] %vm5058, %v8185
  // Predicated region
  $region62: #{residual_block_forward.1} parent=0 // pred_check
    _
  $region63: #{residual_block_forward.1} parent=0 // pred_check_branch
    %8251 = sbr.rel (0) target = $region65
  $region64: #{residual_block_forward.1} parent=0 // pred_region
    _
  $region65: #{residual_block_forward.1} parent=0 // pred_fallthru
    _
  // Predicated region
  $region66: #{residual_block_forward.1} parent=0 // pred_check
    _
  $region67: #{residual_block_forward.1} parent=0 // pred_check_branch
    %8253 = sbr.rel (0) target = $region69
  $region68: #{residual_block_forward.1} parent=0 // pred_region
    _
  $region69: #{residual_block_forward.1} parent=0 // pred_fallthru
    _

</llo_original>
